<compile_context>
chip_gen: v6e
topology: v6e:2x2x1
jax: 0.10.0
libtpu: 0.0.40
codegen_flags: <defaults>
</compile_context>

<pallas_src>
import jax
import jax.numpy as jnp
from jax.experimental import pallas as pl
from jax.experimental.pallas import tpu as pltpu


# ----------------------------------------------------------------------------
# Kernel A: conv-as-matmul with fused bias + ReLU + 2x2 max-pool.
#   patches columns are ordered (pool_parity p in 0..3, batch, i, j), so
#   pooling = elementwise max over the 4 contiguous column blocks.
# ----------------------------------------------------------------------------
def _conv_pool_kernel(p_ref, w_ref, b_ref, o_ref):
    acc = jnp.dot(w_ref[...], p_ref[...], preferred_element_type=jnp.float32)
    acc = jnp.maximum(acc + b_ref[...], 0.0)              # (O, 4*B*Hp*Wp)
    n = o_ref.shape[1]                                    # B*Hp*Wp
    pooled = jnp.maximum(jnp.maximum(acc[:, :n], acc[:, n:2 * n]),
                         jnp.maximum(acc[:, 2 * n:3 * n], acc[:, 3 * n:]))
    o_ref[...] = pooled.astype(o_ref.dtype)


def conv_pool_pallas(patches, w2d, bias_col):
    """patches: (K, 4*B*Hp*Wp) bf16; w2d: (O, K) bf16; bias_col: (O, 1) f32.
    Returns (O, B*Hp*Wp) bf16 = relu(conv)+maxpool, columns ordered (b, i, j)."""
    K, N4 = patches.shape
    O = w2d.shape[0]
    N = N4 // 4
    flops = 2 * O * K * N4 + 4 * O * N4
    bytes_accessed = 2 * (K * N4 + O * K + O * N) + 4 * O
    return pl.pallas_call(
        _conv_pool_kernel,
        out_shape=jax.ShapeDtypeStruct((O, N), jnp.bfloat16),
        grid=(1,),
        in_specs=[
            pl.BlockSpec((K, N4), lambda i: (0, 0)),
            pl.BlockSpec((O, K), lambda i: (0, 0)),
            pl.BlockSpec((O, 1), lambda i: (0, 0)),
        ],
        out_specs=pl.BlockSpec((O, N), lambda i: (0, 0)),
        compiler_params=pltpu.CompilerParams(dimension_semantics=("arbitrary",)),
        cost_estimate=pl.CostEstimate(flops=flops, transcendentals=0,
                                      bytes_accessed=bytes_accessed),
    )(patches, w2d, bias_col)


# ----------------------------------------------------------------------------
# Kernel B: fully fused tail.
#   conv2 (matmul + bias + ReLU + fused pool) -> NCHW flatten via VMEM scratch
#   -> hidden1 (split img/s contractions) -> hidden2 -> tanh(output)
#   -> merged out_t/out_s head.  Dropout layers are identity in eval mode.
#   The big hidden1-s weight (Ks, H1) is DMA'd manually so the copy overlaps
#   the conv2 compute instead of serializing in the pipeline prologue.
# ----------------------------------------------------------------------------
def _fused_tail_kernel(p2_ref, w2c_ref, b2c_ref, s_ref,
                       w1i_ref, w1s_hbm, b1_ref,
                       w2_ref, b2_ref, w3_ref, b3_ref,
                       wh_ref, bh_ref,
                       o_ref,
                       xflat_scr, w1s_vmem, dma_sem):
    # Start the hidden1-s weight DMA immediately; wait right before its dot.
    w1s_copy = pltpu.make_async_copy(w1s_hbm, w1s_vmem, dma_sem)
    w1s_copy.start()

    # conv2 as matmul + bias + ReLU + fused 2x2 max-pool (parity column trick).
    acc = jnp.dot(w2c_ref[...], p2_ref[...], preferred_element_type=jnp.float32)
    acc = jnp.maximum(acc + b2c_ref[...], 0.0)            # (C2, 4*B*Hp*Wp)
    n = acc.shape[1] // 4
    pooled = jnp.maximum(jnp.maximum(acc[:, :n], acc[:, n:2 * n]),
                         jnp.maximum(acc[:, 2 * n:3 * n], acc[:, 3 * n:]))
    # pooled: (C2, B*Hp*Wp), columns ordered (b, i, j).

    # NCHW flatten into (B, C2*Hp*Wp) via a tiny VMEM scratch (32 static
    # contiguous row-segment stores; avoids any in-kernel relayout/reshape).
    C2 = pooled.shape[0]
    Bk, Simg = xflat_scr.shape
    S = Simg // C2
    for c in range(C2):
        for b in range(Bk):
            xflat_scr[b:b + 1, c * S:(c + 1) * S] = pooled[c:c + 1, b * S:(b + 1) * S]
    x_img = xflat_scr[...].astype(jnp.bfloat16)           # (B, 1024)

    # TODO(synk): nn.Dropout(0.2) is identity in eval mode; training-mode RNG
    # dropout (after layer2_cnn and after hidden1) is not implemented.
    w1s_copy.wait()
    h1 = (jnp.dot(x_img, w1i_ref[...], preferred_element_type=jnp.float32)
          + jnp.dot(s_ref[...], w1s_vmem[...], preferred_element_type=jnp.float32)
          + b1_ref[...])
    h1 = jnp.maximum(h1, 0.0).astype(jnp.bfloat16)
    h2 = jnp.dot(h1, w2_ref[...], preferred_element_type=jnp.float32) + b2_ref[...]
    h2 = jnp.maximum(h2, 0.0).astype(jnp.bfloat16)
    h3 = jnp.tanh(jnp.dot(h2, w3_ref[...], preferred_element_type=jnp.float32)
                  + b3_ref[...])
    # PyTorch reference applies ReLU to the tanh output before the heads.
    h3 = jnp.maximum(h3, 0.0).astype(jnp.bfloat16)
    heads = jnp.dot(h3, wh_ref[...], preferred_element_type=jnp.float32) + bh_ref[...]
    o_ref[...] = heads.astype(o_ref.dtype)


def fused_tail_pallas(p2, s2, w2c, b2c, w1i, w1s, b1, w2, b2, w3, b3, wh, bh):
    K2, N2 = p2.shape
    O2 = w2c.shape[0]
    B, Ks = s2.shape
    Simg, H1 = w1i.shape
    H2 = w2.shape[1]
    H3 = w3.shape[1]
    NH = wh.shape[1]
    assert Simg == O2 * (N2 // 4 // B)

    def full(shape):
        return pl.BlockSpec(shape, lambda i: (0, 0))

    flops = 2 * (O2 * K2 * N2 + B * Simg * H1 + B * Ks * H1
                 + B * H1 * H2 + B * H2 * H3 + B * H3 * NH)
    bytes_accessed = (2 * (K2 * N2 + O2 * K2 + B * Ks + Simg * H1 + Ks * H1
                           + H1 * H2 + H2 * H3 + H3 * NH)
                      + 4 * (O2 + H1 + H2 + H3 + NH + B * NH))

    return pl.pallas_call(
        _fused_tail_kernel,
        out_shape=jax.ShapeDtypeStruct((B, NH), jnp.float32),
        grid=(1,),
        in_specs=[
            full((K2, N2)),                      # conv2 im2col patches
            full((O2, K2)), full((O2, 1)),       # conv2 weight / bias
            full((B, Ks)),                       # s features
            full((Simg, H1)),                    # hidden1 image weight
            pl.BlockSpec(memory_space=pl.ANY),   # hidden1 s weight (manual DMA)
            full((1, H1)),
            full((H1, H2)), full((1, H2)),
            full((H2, H3)), full((1, H3)),
            full((H3, NH)), full((1, NH)),
        ],
        out_specs=full((B, NH)),
        scratch_shapes=[
            pltpu.VMEM((B, Simg), jnp.float32),      # flatten staging buffer
            pltpu.VMEM((Ks, H1), jnp.bfloat16),      # destination of w1s DMA
            pltpu.SemaphoreType.DMA,
        ],
        compiler_params=pltpu.CompilerParams(dimension_semantics=("arbitrary",)),
        cost_estimate=pl.CostEstimate(flops=flops, transcendentals=B * H3,
                                      bytes_accessed=bytes_accessed),
    )(p2, w2c, b2c, s2, w1i, w1s, b1, w2, b2, w3, b3, wh, bh)


# ----------------------------------------------------------------------------
# XLA-side glue: pooled-parity im2col builder (channel-first input), no
# pre/post-pool activations ever round-trip HBM un-pooled.
# ----------------------------------------------------------------------------
def _pooled_conv_patches(x_cb, k, pad):
    """x_cb: (C, B, H, W).  Returns (C*k*k, 4*B*Hp*Wp), Hp, Wp where the patch
    columns are ordered (pool_parity p=2*pi+pj, batch, pooled_row, pooled_col)
    so the consuming kernel can fuse the 2x2 max-pool as a max over the 4
    contiguous column blocks."""
    C, B, H, W = x_cb.shape
    Ho, Wo = H + 2 * pad - k + 1, W + 2 * pad - k + 1
    assert Ho % 2 == 0 and Wo % 2 == 0
    Hp, Wp = Ho // 2, Wo // 2
    xp = jnp.pad(x_cb, ((0, 0), (0, 0), (pad, pad), (pad, pad)))
    taps = []
    for di in range(k):
        for dj in range(k):
            t = xp[:, :, di:di + Ho, dj:dj + Wo]           # (C, B, Ho, Wo)
            t = t.reshape(C, B, Hp, 2, Wp, 2)               # c, b, i, pi, j, pj
            taps.append(jnp.transpose(t, (0, 3, 5, 1, 2, 4)))  # c, pi, pj, b, i, j
    pt = jnp.stack(taps, axis=1)                            # (C, k*k, 2, 2, B, Hp, Wp)
    return pt.reshape(C * k * k, 4 * B * Hp * Wp), Hp, Wp


# ----------------------------------------------------------------------------
# Parameters: synthetic PyTorch-style init, then one-time prep into the
# kernel-friendly layouts (bf16 matmul weights; (O,1)/(1,N) f32 biases;
# hidden1 split into image/s blocks; out_t/out_s merged into one head).
# ----------------------------------------------------------------------------
def init_params(key, hidden1, hidden2, hidden3):
    def lin(k, fan_in, fan_out):
        k1, k2 = jax.random.split(k)
        bound = 1.0 / jnp.sqrt(fan_in)
        w = jax.random.uniform(k1, (fan_in, fan_out), jnp.float32, -bound, bound)
        b = jax.random.uniform(k2, (fan_out,), jnp.float32, -bound, bound)
        return w, b

    def conv(k, cin, cout, ks):
        k1, k2 = jax.random.split(k)
        fan_in = cin * ks * ks
        bound = 1.0 / jnp.sqrt(fan_in)
        w = jax.random.uniform(k1, (cout, cin, ks, ks), jnp.float32, -bound, bound)
        b = jax.random.uniform(k2, (cout,), jnp.float32, -bound, bound)
        return w, b

    ks = jax.random.split(key, 7)
    return {
        "conv1": conv(ks[0], 1, 32, 3),
        "conv2": conv(ks[1], 32, 16, 5),
        "hidden1": lin(ks[2], 6154, hidden1),
        "hidden2": lin(ks[3], hidden1, hidden2),
        "output": lin(ks[4], hidden2, hidden3),
        "out_t": lin(ks[5], hidden3, 1),
        "out_s": lin(ks[6], hidden3, 1),
    }


IMG_FEATS = 16 * 8 * 8   # conv2 output channels * pooled 8x8 spatial = 1024


def prep_params(p):
    def conv_prep(wb):
        w, b = wb
        O, C, kh, kw = w.shape
        return (w.reshape(O, C * kh * kw).astype(jnp.bfloat16),
                b.reshape(O, 1).astype(jnp.float32))

    def lin_prep(wb):
        w, b = wb
        return w.astype(jnp.bfloat16), b.reshape(1, -1).astype(jnp.float32)

    w1, b1 = p["hidden1"]
    w1i = w1[:IMG_FEATS].astype(jnp.bfloat16)        # image-feature rows (NCHW)
    w1s = w1[IMG_FEATS:].astype(jnp.bfloat16)        # s-feature rows (no padding)

    wt, bt = p["out_t"]
    ws, bs = p["out_s"]
    wh = jnp.concatenate([wt, ws], axis=1)           # (H3, 2): col0=throttle, col1=steer
    bh = jnp.concatenate([bt, bs], axis=0)

    return {
        "conv1": conv_prep(p["conv1"]),
        "conv2": conv_prep(p["conv2"]),
        "hidden1": (w1i, w1s, b1.reshape(1, -1).astype(jnp.float32)),
        "hidden2": lin_prep(p["hidden2"]),
        "output": lin_prep(p["output"]),
        "heads": (wh.astype(jnp.bfloat16), bh.reshape(1, -1).astype(jnp.float32)),
    }


# ----------------------------------------------------------------------------
# Full forward pass (eval mode)
# ----------------------------------------------------------------------------
def model_forward(params, im, s):
    w1c, b1c = params["conv1"]
    w2c, b2c = params["conv2"]
    w1i, w1s, b1 = params["hidden1"]
    w2, b2 = params["hidden2"]
    w3, b3 = params["output"]
    wh, bh = params["heads"]

    B = im.shape[0]
    imb = im.astype(jnp.bfloat16)

    # layer1_cnn: Conv2d(1,32,k=3,p=2) + ReLU + MaxPool2d(2), one fused kernel.
    p1, Hp1, Wp1 = _pooled_conv_patches(jnp.transpose(imb, (1, 0, 2, 3)), 3, 2)
    y1 = conv_pool_pallas(p1, w1c, b1c)                   # (32, B*Hp1*Wp1) bf16
    y1 = y1.reshape(w1c.shape[0], B, Hp1, Wp1)            # channel-first, metadata only

    # layer2_cnn + dropout + flatten + hstack + MLP + heads: one fused kernel.
    p2, _, _ = _pooled_conv_patches(y1, 5, 2)             # (800, 4*B*64) bf16
    s2 = jnp.squeeze(s, axis=1).astype(jnp.bfloat16)      # (B, 5130)
    heads = fused_tail_pallas(p2, s2, w2c, b2c, w1i, w1s, b1,
                              w2, b2, w3, b3, wh, bh)     # (B, 2) f32
    out_throttle = heads[:, 0:1]
    out_steer = heads[:, 1:2]
    return out_steer, out_throttle


if __name__ == "__main__":
    # Shapes implied by hidden1's fixed 6154 input width:
    #   im (2,1,30,30) -> conv1/pool -> (2,32,16,16) -> conv2/pool -> (2,16,8,8)
    #   flattened image features = 16*8*8 = 1024; s provides 6154-1024 = 5130.
    key = jax.random.PRNGKey(0)
    k_im, k_s, k_p = jax.random.split(key, 3)
    im = jax.random.normal(k_im, (2, 1, 30, 30), jnp.float32)
    s = jax.random.normal(k_s, (2, 1, 5130), jnp.float32)
    params = prep_params(init_params(k_p, hidden1=64, hidden2=32, hidden3=16))

    fwd = jax.jit(model_forward)
    steer, throttle = fwd(params, im, s)
    jax.block_until_ready((steer, throttle))
    assert steer.shape == (2, 1) and throttle.shape == (2, 1)
    print("KERNEL_OK")
</pallas_src>

<mosaic_0001>
module attributes {stable_mosaic.version = 11 : i64} {
  func.func @_conv_pool_kernel(%arg0: i32, %arg1: memref<9x2048xbf16, #tpu.memory_space<vmem>>, %arg2: memref<32x9xbf16, #tpu.memory_space<vmem>>, %arg3: memref<32x1xf32, #tpu.memory_space<vmem>>, %arg4: memref<32x512xbf16, #tpu.memory_space<vmem>>) attributes {dimension_semantics = [#tpu.dimension_semantics<arbitrary>], iteration_bounds = array<i64: 1>, scalar_prefetch = 0 : i64, scratch_operands = 0 : i64, tpu.core_type = #tpu.core_type<tc>, window_params = [{pipeline_mode = #tpu.pipeline_mode<synchronous>, transform_indices = @transform_0, window_bounds = array<i64: 9, 2048>}, {pipeline_mode = #tpu.pipeline_mode<synchronous>, transform_indices = @transform_1, window_bounds = array<i64: 32, 9>}, {pipeline_mode = #tpu.pipeline_mode<synchronous>, transform_indices = @transform_2, window_bounds = array<i64: 32, 1>}, {pipeline_mode = #tpu.pipeline_mode<synchronous>, transform_indices = @transform_3, window_bounds = array<i64: 32, 512>}]} {
    %c0 = arith.constant 0 : index
    %c0_0 = arith.constant 0 : index
    %0 = vector.load %arg2[%c0, %c0_0] : memref<32x9xbf16, #tpu.memory_space<vmem>>, vector<32x9xbf16>
    %c0_1 = arith.constant 0 : index
    %c0_2 = arith.constant 0 : index
    %1 = vector.load %arg1[%c0_1, %c0_2] : memref<9x2048xbf16, #tpu.memory_space<vmem>>, vector<9x2048xbf16>
    %cst = arith.constant dense<0.000000e+00> : vector<32x2048xf32>
    %2 = tpu.matmul %0, %1, %cst {dimension_numbers = #tpu.dot_dimension_numbers<[1], [0], [0], [1], [0, 0, 1, 1], [], []>} : vector<32x9xbf16>, vector<9x2048xbf16>, vector<32x2048xf32> -> vector<32x2048xf32>
    %c0_3 = arith.constant 0 : index
    %c0_4 = arith.constant 0 : index
    %3 = vector.load %arg3[%c0_3, %c0_4] : memref<32x1xf32, #tpu.memory_space<vmem>>, vector<32x1xf32>
    %4 = vector.broadcast %3 : vector<32x1xf32> to vector<32x2048xf32>
    %5 = arith.addf %2, %4 : vector<32x2048xf32>
    %cst_5 = arith.constant 0.000000e+00 : f32
    %6 = vector.broadcast %cst_5 : f32 to vector<32x2048xf32>
    %7 = arith.maximumf %5, %6 : vector<32x2048xf32>
    %8 = vector.extract_strided_slice %7 {offsets = [0, 0], sizes = [32, 512], strides = [1, 1]} : vector<32x2048xf32> to vector<32x512xf32>
    %9 = vector.extract_strided_slice %7 {offsets = [0, 512], sizes = [32, 512], strides = [1, 1]} : vector<32x2048xf32> to vector<32x512xf32>
    %10 = arith.maximumf %8, %9 : vector<32x512xf32>
    %11 = vector.extract_strided_slice %7 {offsets = [0, 1024], sizes = [32, 512], strides = [1, 1]} : vector<32x2048xf32> to vector<32x512xf32>
    %12 = vector.extract_strided_slice %7 {offsets = [0, 1536], sizes = [32, 512], strides = [1, 1]} : vector<32x2048xf32> to vector<32x512xf32>
    %13 = arith.maximumf %11, %12 : vector<32x512xf32>
    %14 = arith.maximumf %10, %13 : vector<32x512xf32>
    %15 = arith.truncf %14 : vector<32x512xf32> to vector<32x512xbf16>
    %c0_6 = arith.constant 0 : index
    %c0_7 = arith.constant 0 : index
    %16 = vector.load %arg4[%c0_6, %c0_7] : memref<32x512xbf16, #tpu.memory_space<vmem>>, vector<32x512xbf16>
    tpu.vector_store %arg4[%c0_6, %c0_7], %15 {strides = array<i32>} : memref<32x512xbf16, #tpu.memory_space<vmem>>, vector<32x512xbf16>,
    return
  }
  func.func @transform_0(%arg0: i32) -> (i32, i32) {
    %c0_i32 = arith.constant 0 : i32
    %c0_i32_0 = arith.constant 0 : i32
    %c0_i32_1 = arith.constant 0 : i32
    return %c0_i32, %c0_i32_0 : i32, i32
  }
  func.func @transform_1(%arg0: i32) -> (i32, i32) {
    %c0_i32 = arith.constant 0 : i32
    %c0_i32_0 = arith.constant 0 : i32
    %c0_i32_1 = arith.constant 0 : i32
    return %c0_i32, %c0_i32_0 : i32, i32
  }
  func.func @transform_2(%arg0: i32) -> (i32, i32) {
    %c0_i32 = arith.constant 0 : i32
    %c0_i32_0 = arith.constant 0 : i32
    %c0_i32_1 = arith.constant 0 : i32
    return %c0_i32, %c0_i32_0 : i32, i32
  }
  func.func @transform_3(%arg0: i32) -> (i32, i32) {
    %c0_i32 = arith.constant 0 : i32
    %c0_i32_0 = arith.constant 0 : i32
    %c0_i32_1 = arith.constant 0 : i32
    return %c0_i32, %c0_i32_0 : i32, i32
  }
}

module attributes {stable_mosaic.version = 11 : i64} {
  func.func @_fused_tail_kernel(%arg0: i32, %arg1: memref<800x512xbf16, #tpu.memory_space<vmem>>, %arg2: memref<16x800xbf16, #tpu.memory_space<vmem>>, %arg3: memref<16x1xf32, #tpu.memory_space<vmem>>, %arg4: memref<2x5130xbf16, #tpu.memory_space<vmem>>, %arg5: memref<1024x64xbf16, #tpu.memory_space<vmem>>, %arg6: memref<5130x64xbf16, #tpu.memory_space<any>>, %arg7: memref<1x64xf32, #tpu.memory_space<vmem>>, %arg8: memref<64x32xbf16, #tpu.memory_space<vmem>>, %arg9: memref<1x32xf32, #tpu.memory_space<vmem>>, %arg10: memref<32x16xbf16, #tpu.memory_space<vmem>>, %arg11: memref<1x16xf32, #tpu.memory_space<vmem>>, %arg12: memref<16x2xbf16, #tpu.memory_space<vmem>>, %arg13: memref<1x2xf32, #tpu.memory_space<vmem>>, %arg14: memref<2x2xf32, #tpu.memory_space<vmem>>, %arg15: memref<2x1024xf32, #tpu.memory_space<vmem>>, %arg16: memref<5130x64xbf16, #tpu.memory_space<vmem>>, %arg17: memref<!tpu.dma_semaphore, #tpu.memory_space<semaphore_mem>>) attributes {dimension_semantics = [#tpu.dimension_semantics<arbitrary>], iteration_bounds = array<i64: 1>, scalar_prefetch = 0 : i64, scratch_operands = 3 : i64, tpu.core_type = #tpu.core_type<tc>, window_params = [{pipeline_mode = #tpu.pipeline_mode<synchronous>, transform_indices = @transform_0, window_bounds = array<i64: 800, 512>}, {pipeline_mode = #tpu.pipeline_mode<synchronous>, transform_indices = @transform_1, window_bounds = array<i64: 16, 800>}, {pipeline_mode = #tpu.pipeline_mode<synchronous>, transform_indices = @transform_2, window_bounds = array<i64: 16, 1>}, {pipeline_mode = #tpu.pipeline_mode<synchronous>, transform_indices = @transform_3, window_bounds = array<i64: 2, 5130>}, {pipeline_mode = #tpu.pipeline_mode<synchronous>, transform_indices = @transform_4, window_bounds = array<i64: 1024, 64>}, {}, {pipeline_mode = #tpu.pipeline_mode<synchronous>, transform_indices = @transform_6, window_bounds = array<i64: 1, 64>}, {pipeline_mode = #tpu.pipeline_mode<synchronous>, transform_indices = @transform_7, window_bounds = array<i64: 64, 32>}, {pipeline_mode = #tpu.pipeline_mode<synchronous>, transform_indices = @transform_8, window_bounds = array<i64: 1, 32>}, {pipeline_mode = #tpu.pipeline_mode<synchronous>, transform_indices = @transform_9, window_bounds = array<i64: 32, 16>}, {pipeline_mode = #tpu.pipeline_mode<synchronous>, transform_indices = @transform_10, window_bounds = array<i64: 1, 16>}, {pipeline_mode = #tpu.pipeline_mode<synchronous>, transform_indices = @transform_11, window_bounds = array<i64: 16, 2>}, {pipeline_mode = #tpu.pipeline_mode<synchronous>, transform_indices = @transform_12, window_bounds = array<i64: 1, 2>}, {pipeline_mode = #tpu.pipeline_mode<synchronous>, transform_indices = @transform_13, window_bounds = array<i64: 2, 2>}]} {
    tpu.enqueue_dma source(%arg6 : memref<5130x64xbf16, #tpu.memory_space<any>>) target(%arg16 : memref<5130x64xbf16, #tpu.memory_space<vmem>>) target_semaphore(%arg17 : memref<!tpu.dma_semaphore, #tpu.memory_space<semaphore_mem>>)
    %c0 = arith.constant 0 : index
    %c0_0 = arith.constant 0 : index
    %0 = vector.load %arg2[%c0, %c0_0] : memref<16x800xbf16, #tpu.memory_space<vmem>>, vector<16x800xbf16>
    %c0_1 = arith.constant 0 : index
    %c0_2 = arith.constant 0 : index
    %1 = vector.load %arg1[%c0_1, %c0_2] : memref<800x512xbf16, #tpu.memory_space<vmem>>, vector<800x512xbf16>
    %cst = arith.constant dense<0.000000e+00> : vector<16x512xf32>
    %2 = tpu.matmul %0, %1, %cst {dimension_numbers = #tpu.dot_dimension_numbers<[1], [0], [0], [1], [0, 0, 1, 1], [], []>} : vector<16x800xbf16>, vector<800x512xbf16>, vector<16x512xf32> -> vector<16x512xf32>
    %c0_3 = arith.constant 0 : index
    %c0_4 = arith.constant 0 : index
    %3 = vector.load %arg3[%c0_3, %c0_4] : memref<16x1xf32, #tpu.memory_space<vmem>>, vector<16x1xf32>
    %4 = vector.broadcast %3 : vector<16x1xf32> to vector<16x512xf32>
    %5 = arith.addf %2, %4 : vector<16x512xf32>
    %cst_5 = arith.constant 0.000000e+00 : f32
    %6 = vector.broadcast %cst_5 : f32 to vector<16x512xf32>
    %7 = arith.maximumf %5, %6 : vector<16x512xf32>
    %8 = vector.extract_strided_slice %7 {offsets = [0, 0], sizes = [16, 128], strides = [1, 1]} : vector<16x512xf32> to vector<16x128xf32>
    %9 = vector.extract_strided_slice %7 {offsets = [0, 128], sizes = [16, 128], strides = [1, 1]} : vector<16x512xf32> to vector<16x128xf32>
    %10 = arith.maximumf %8, %9 : vector<16x128xf32>
    %11 = vector.extract_strided_slice %7 {offsets = [0, 256], sizes = [16, 128], strides = [1, 1]} : vector<16x512xf32> to vector<16x128xf32>
    %12 = vector.extract_strided_slice %7 {offsets = [0, 384], sizes = [16, 128], strides = [1, 1]} : vector<16x512xf32> to vector<16x128xf32>
    %13 = arith.maximumf %11, %12 : vector<16x128xf32>
    %14 = arith.maximumf %10, %13 : vector<16x128xf32>
    %15 = vector.extract_strided_slice %14 {offsets = [0, 0], sizes = [1, 64], strides = [1, 1]} : vector<16x128xf32> to vector<1x64xf32>
    %c0_6 = arith.constant 0 : index
    %c0_7 = arith.constant 0 : index
    %16 = vector.load %arg15[%c0_6, %c0_7] : memref<2x1024xf32, #tpu.memory_space<vmem>>, vector<1x64xf32>
    tpu.vector_store %arg15[%c0_6, %c0_7], %15 {strides = array<i32>} : memref<2x1024xf32, #tpu.memory_space<vmem>>, vector<1x64xf32>,
    %17 = vector.extract_strided_slice %14 {offsets = [0, 64], sizes = [1, 64], strides = [1, 1]} : vector<16x128xf32> to vector<1x64xf32>
    %c1 = arith.constant 1 : index
    %c0_8 = arith.constant 0 : index
    %18 = vector.load %arg15[%c1, %c0_8] : memref<2x1024xf32, #tpu.memory_space<vmem>>, vector<1x64xf32>
    tpu.vector_store %arg15[%c1, %c0_8], %17 {strides = array<i32>} : memref<2x1024xf32, #tpu.memory_space<vmem>>, vector<1x64xf32>,
    %19 = vector.extract_strided_slice %14 {offsets = [1, 0], sizes = [1, 64], strides = [1, 1]} : vector<16x128xf32> to vector<1x64xf32>
    %c0_9 = arith.constant 0 : index
    %c64 = arith.constant 64 : index
    %20 = vector.load %arg15[%c0_9, %c64] : memref<2x1024xf32, #tpu.memory_space<vmem>>, vector<1x64xf32>
    tpu.vector_store %arg15[%c0_9, %c64], %19 {strides = array<i32>} : memref<2x1024xf32, #tpu.memory_space<vmem>>, vector<1x64xf32>,
    %21 = vector.extract_strided_slice %14 {offsets = [1, 64], sizes = [1, 64], strides = [1, 1]} : vector<16x128xf32> to vector<1x64xf32>
    %c1_10 = arith.constant 1 : index
    %c64_11 = arith.constant 64 : index
    %22 = vector.load %arg15[%c1_10, %c64_11] : memref<2x1024xf32, #tpu.memory_space<vmem>>, vector<1x64xf32>
    tpu.vector_store %arg15[%c1_10, %c64_11], %21 {strides = array<i32>} : memref<2x1024xf32, #tpu.memory_space<vmem>>, vector<1x64xf32>,
    %23 = vector.extract_strided_slice %14 {offsets = [2, 0], sizes = [1, 64], strides = [1, 1]} : vector<16x128xf32> to vector<1x64xf32>
    %c0_12 = arith.constant 0 : index
    %c128 = arith.constant 128 : index
    %24 = vector.load %arg15[%c0_12, %c128] : memref<2x1024xf32, #tpu.memory_space<vmem>>, vector<1x64xf32>
    tpu.vector_store %arg15[%c0_12, %c128], %23 {strides = array<i32>} : memref<2x1024xf32, #tpu.memory_space<vmem>>, vector<1x64xf32>,
    %25 = vector.extract_strided_slice %14 {offsets = [2, 64], sizes = [1, 64], strides = [1, 1]} : vector<16x128xf32> to vector<1x64xf32>
    %c1_13 = arith.constant 1 : index
    %c128_14 = arith.constant 128 : index
    %26 = vector.load %arg15[%c1_13, %c128_14] : memref<2x1024xf32, #tpu.memory_space<vmem>>, vector<1x64xf32>
    tpu.vector_store %arg15[%c1_13, %c128_14], %25 {strides = array<i32>} : memref<2x1024xf32, #tpu.memory_space<vmem>>, vector<1x64xf32>,
    %27 = vector.extract_strided_slice %14 {offsets = [3, 0], sizes = [1, 64], strides = [1, 1]} : vector<16x128xf32> to vector<1x64xf32>
    %c0_15 = arith.constant 0 : index
    %c192 = arith.constant 192 : index
    %28 = vector.load %arg15[%c0_15, %c192] : memref<2x1024xf32, #tpu.memory_space<vmem>>, vector<1x64xf32>
    tpu.vector_store %arg15[%c0_15, %c192], %27 {strides = array<i32>} : memref<2x1024xf32, #tpu.memory_space<vmem>>, vector<1x64xf32>,
    %29 = vector.extract_strided_slice %14 {offsets = [3, 64], sizes = [1, 64], strides = [1, 1]} : vector<16x128xf32> to vector<1x64xf32>
    %c1_16 = arith.constant 1 : index
    %c192_17 = arith.constant 192 : index
    %30 = vector.load %arg15[%c1_16, %c192_17] : memref<2x1024xf32, #tpu.memory_space<vmem>>, vector<1x64xf32>
    tpu.vector_store %arg15[%c1_16, %c192_17], %29 {strides = array<i32>} : memref<2x1024xf32, #tpu.memory_space<vmem>>, vector<1x64xf32>,
    %31 = vector.extract_strided_slice %14 {offsets = [4, 0], sizes = [1, 64], strides = [1, 1]} : vector<16x128xf32> to vector<1x64xf32>
    %c0_18 = arith.constant 0 : index
    %c256 = arith.constant 256 : index
    %32 = vector.load %arg15[%c0_18, %c256] : memref<2x1024xf32, #tpu.memory_space<vmem>>, vector<1x64xf32>
    tpu.vector_store %arg15[%c0_18, %c256], %31 {strides = array<i32>} : memref<2x1024xf32, #tpu.memory_space<vmem>>, vector<1x64xf32>,
    %33 = vector.extract_strided_slice %14 {offsets = [4, 64], sizes = [1, 64], strides = [1, 1]} : vector<16x128xf32> to vector<1x64xf32>
    %c1_19 = arith.constant 1 : index
    %c256_20 = arith.constant 256 : index
    %34 = vector.load %arg15[%c1_19, %c256_20] : memref<2x1024xf32, #tpu.memory_space<vmem>>, vector<1x64xf32>
    tpu.vector_store %arg15[%c1_19, %c256_20], %33 {strides = array<i32>} : memref<2x1024xf32, #tpu.memory_space<vmem>>, vector<1x64xf32>,
    %35 = vector.extract_strided_slice %14 {offsets = [5, 0], sizes = [1, 64], strides = [1, 1]} : vector<16x128xf32> to vector<1x64xf32>
    %c0_21 = arith.constant 0 : index
    %c320 = arith.constant 320 : index
    %36 = vector.load %arg15[%c0_21, %c320] : memref<2x1024xf32, #tpu.memory_space<vmem>>, vector<1x64xf32>
    tpu.vector_store %arg15[%c0_21, %c320], %35 {strides = array<i32>} : memref<2x1024xf32, #tpu.memory_space<vmem>>, vector<1x64xf32>,
    %37 = vector.extract_strided_slice %14 {offsets = [5, 64], sizes = [1, 64], strides = [1, 1]} : vector<16x128xf32> to vector<1x64xf32>
    %c1_22 = arith.constant 1 : index
    %c320_23 = arith.constant 320 : index
    %38 = vector.load %arg15[%c1_22, %c320_23] : memref<2x1024xf32, #tpu.memory_space<vmem>>, vector<1x64xf32>
    tpu.vector_store %arg15[%c1_22, %c320_23], %37 {strides = array<i32>} : memref<2x1024xf32, #tpu.memory_space<vmem>>, vector<1x64xf32>,
    %39 = vector.extract_strided_slice %14 {offsets = [6, 0], sizes = [1, 64], strides = [1, 1]} : vector<16x128xf32> to vector<1x64xf32>
    %c0_24 = arith.constant 0 : index
    %c384 = arith.constant 384 : index
    %40 = vector.load %arg15[%c0_24, %c384] : memref<2x1024xf32, #tpu.memory_space<vmem>>, vector<1x64xf32>
    tpu.vector_store %arg15[%c0_24, %c384], %39 {strides = array<i32>} : memref<2x1024xf32, #tpu.memory_space<vmem>>, vector<1x64xf32>,
    %41 = vector.extract_strided_slice %14 {offsets = [6, 64], sizes = [1, 64], strides = [1, 1]} : vector<16x128xf32> to vector<1x64xf32>
    %c1_25 = arith.constant 1 : index
    %c384_26 = arith.constant 384 : index
    %42 = vector.load %arg15[%c1_25, %c384_26] : memref<2x1024xf32, #tpu.memory_space<vmem>>, vector<1x64xf32>
    tpu.vector_store %arg15[%c1_25, %c384_26], %41 {strides = array<i32>} : memref<2x1024xf32, #tpu.memory_space<vmem>>, vector<1x64xf32>,
    %43 = vector.extract_strided_slice %14 {offsets = [7, 0], sizes = [1, 64], strides = [1, 1]} : vector<16x128xf32> to vector<1x64xf32>
    %c0_27 = arith.constant 0 : index
    %c448 = arith.constant 448 : index
    %44 = vector.load %arg15[%c0_27, %c448] : memref<2x1024xf32, #tpu.memory_space<vmem>>, vector<1x64xf32>
    tpu.vector_store %arg15[%c0_27, %c448], %43 {strides = array<i32>} : memref<2x1024xf32, #tpu.memory_space<vmem>>, vector<1x64xf32>,
    %45 = vector.extract_strided_slice %14 {offsets = [7, 64], sizes = [1, 64], strides = [1, 1]} : vector<16x128xf32> to vector<1x64xf32>
    %c1_28 = arith.constant 1 : index
    %c448_29 = arith.constant 448 : index
    %46 = vector.load %arg15[%c1_28, %c448_29] : memref<2x1024xf32, #tpu.memory_space<vmem>>, vector<1x64xf32>
    tpu.vector_store %arg15[%c1_28, %c448_29], %45 {strides = array<i32>} : memref<2x1024xf32, #tpu.memory_space<vmem>>, vector<1x64xf32>,
    %47 = vector.extract_strided_slice %14 {offsets = [8, 0], sizes = [1, 64], strides = [1, 1]} : vector<16x128xf32> to vector<1x64xf32>
    %c0_30 = arith.constant 0 : index
    %c512 = arith.constant 512 : index
    %48 = vector.load %arg15[%c0_30, %c512] : memref<2x1024xf32, #tpu.memory_space<vmem>>, vector<1x64xf32>
    tpu.vector_store %arg15[%c0_30, %c512], %47 {strides = array<i32>} : memref<2x1024xf32, #tpu.memory_space<vmem>>, vector<1x64xf32>,
    %49 = vector.extract_strided_slice %14 {offsets = [8, 64], sizes = [1, 64], strides = [1, 1]} : vector<16x128xf32> to vector<1x64xf32>
    %c1_31 = arith.constant 1 : index
    %c512_32 = arith.constant 512 : index
    %50 = vector.load %arg15[%c1_31, %c512_32] : memref<2x1024xf32, #tpu.memory_space<vmem>>, vector<1x64xf32>
    tpu.vector_store %arg15[%c1_31, %c512_32], %49 {strides = array<i32>} : memref<2x1024xf32, #tpu.memory_space<vmem>>, vector<1x64xf32>,
    %51 = vector.extract_strided_slice %14 {offsets = [9, 0], sizes = [1, 64], strides = [1, 1]} : vector<16x128xf32> to vector<1x64xf32>
    %c0_33 = arith.constant 0 : index
    %c576 = arith.constant 576 : index
    %52 = vector.load %arg15[%c0_33, %c576] : memref<2x1024xf32, #tpu.memory_space<vmem>>, vector<1x64xf32>
    tpu.vector_store %arg15[%c0_33, %c576], %51 {strides = array<i32>} : memref<2x1024xf32, #tpu.memory_space<vmem>>, vector<1x64xf32>,
    %53 = vector.extract_strided_slice %14 {offsets = [9, 64], sizes = [1, 64], strides = [1, 1]} : vector<16x128xf32> to vector<1x64xf32>
    %c1_34 = arith.constant 1 : index
    %c576_35 = arith.constant 576 : index
    %54 = vector.load %arg15[%c1_34, %c576_35] : memref<2x1024xf32, #tpu.memory_space<vmem>>, vector<1x64xf32>
    tpu.vector_store %arg15[%c1_34, %c576_35], %53 {strides = array<i32>} : memref<2x1024xf32, #tpu.memory_space<vmem>>, vector<1x64xf32>,
    %55 = vector.extract_strided_slice %14 {offsets = [10, 0], sizes = [1, 64], strides = [1, 1]} : vector<16x128xf32> to vector<1x64xf32>
    %c0_36 = arith.constant 0 : index
    %c640 = arith.constant 640 : index
    %56 = vector.load %arg15[%c0_36, %c640] : memref<2x1024xf32, #tpu.memory_space<vmem>>, vector<1x64xf32>
    tpu.vector_store %arg15[%c0_36, %c640], %55 {strides = array<i32>} : memref<2x1024xf32, #tpu.memory_space<vmem>>, vector<1x64xf32>,
    %57 = vector.extract_strided_slice %14 {offsets = [10, 64], sizes = [1, 64], strides = [1, 1]} : vector<16x128xf32> to vector<1x64xf32>
    %c1_37 = arith.constant 1 : index
    %c640_38 = arith.constant 640 : index
    %58 = vector.load %arg15[%c1_37, %c640_38] : memref<2x1024xf32, #tpu.memory_space<vmem>>, vector<1x64xf32>
    tpu.vector_store %arg15[%c1_37, %c640_38], %57 {strides = array<i32>} : memref<2x1024xf32, #tpu.memory_space<vmem>>, vector<1x64xf32>,
    %59 = vector.extract_strided_slice %14 {offsets = [11, 0], sizes = [1, 64], strides = [1, 1]} : vector<16x128xf32> to vector<1x64xf32>
    %c0_39 = arith.constant 0 : index
    %c704 = arith.constant 704 : index
    %60 = vector.load %arg15[%c0_39, %c704] : memref<2x1024xf32, #tpu.memory_space<vmem>>, vector<1x64xf32>
    tpu.vector_store %arg15[%c0_39, %c704], %59 {strides = array<i32>} : memref<2x1024xf32, #tpu.memory_space<vmem>>, vector<1x64xf32>,
    %61 = vector.extract_strided_slice %14 {offsets = [11, 64], sizes = [1, 64], strides = [1, 1]} : vector<16x128xf32> to vector<1x64xf32>
    %c1_40 = arith.constant 1 : index
    %c704_41 = arith.constant 704 : index
    %62 = vector.load %arg15[%c1_40, %c704_41] : memref<2x1024xf32, #tpu.memory_space<vmem>>, vector<1x64xf32>
    tpu.vector_store %arg15[%c1_40, %c704_41], %61 {strides = array<i32>} : memref<2x1024xf32, #tpu.memory_space<vmem>>, vector<1x64xf32>,
    %63 = vector.extract_strided_slice %14 {offsets = [12, 0], sizes = [1, 64], strides = [1, 1]} : vector<16x128xf32> to vector<1x64xf32>
    %c0_42 = arith.constant 0 : index
    %c768 = arith.constant 768 : index
    %64 = vector.load %arg15[%c0_42, %c768] : memref<2x1024xf32, #tpu.memory_space<vmem>>, vector<1x64xf32>
    tpu.vector_store %arg15[%c0_42, %c768], %63 {strides = array<i32>} : memref<2x1024xf32, #tpu.memory_space<vmem>>, vector<1x64xf32>,
    %65 = vector.extract_strided_slice %14 {offsets = [12, 64], sizes = [1, 64], strides = [1, 1]} : vector<16x128xf32> to vector<1x64xf32>
    %c1_43 = arith.constant 1 : index
    %c768_44 = arith.constant 768 : index
    %66 = vector.load %arg15[%c1_43, %c768_44] : memref<2x1024xf32, #tpu.memory_space<vmem>>, vector<1x64xf32>
    tpu.vector_store %arg15[%c1_43, %c768_44], %65 {strides = array<i32>} : memref<2x1024xf32, #tpu.memory_space<vmem>>, vector<1x64xf32>,
    %67 = vector.extract_strided_slice %14 {offsets = [13, 0], sizes = [1, 64], strides = [1, 1]} : vector<16x128xf32> to vector<1x64xf32>
    %c0_45 = arith.constant 0 : index
    %c832 = arith.constant 832 : index
    %68 = vector.load %arg15[%c0_45, %c832] : memref<2x1024xf32, #tpu.memory_space<vmem>>, vector<1x64xf32>
    tpu.vector_store %arg15[%c0_45, %c832], %67 {strides = array<i32>} : memref<2x1024xf32, #tpu.memory_space<vmem>>, vector<1x64xf32>,
    %69 = vector.extract_strided_slice %14 {offsets = [13, 64], sizes = [1, 64], strides = [1, 1]} : vector<16x128xf32> to vector<1x64xf32>
    %c1_46 = arith.constant 1 : index
    %c832_47 = arith.constant 832 : index
    %70 = vector.load %arg15[%c1_46, %c832_47] : memref<2x1024xf32, #tpu.memory_space<vmem>>, vector<1x64xf32>
    tpu.vector_store %arg15[%c1_46, %c832_47], %69 {strides = array<i32>} : memref<2x1024xf32, #tpu.memory_space<vmem>>, vector<1x64xf32>,
    %71 = vector.extract_strided_slice %14 {offsets = [14, 0], sizes = [1, 64], strides = [1, 1]} : vector<16x128xf32> to vector<1x64xf32>
    %c0_48 = arith.constant 0 : index
    %c896 = arith.constant 896 : index
    %72 = vector.load %arg15[%c0_48, %c896] : memref<2x1024xf32, #tpu.memory_space<vmem>>, vector<1x64xf32>
    tpu.vector_store %arg15[%c0_48, %c896], %71 {strides = array<i32>} : memref<2x1024xf32, #tpu.memory_space<vmem>>, vector<1x64xf32>,
    %73 = vector.extract_strided_slice %14 {offsets = [14, 64], sizes = [1, 64], strides = [1, 1]} : vector<16x128xf32> to vector<1x64xf32>
    %c1_49 = arith.constant 1 : index
    %c896_50 = arith.constant 896 : index
    %74 = vector.load %arg15[%c1_49, %c896_50] : memref<2x1024xf32, #tpu.memory_space<vmem>>, vector<1x64xf32>
    tpu.vector_store %arg15[%c1_49, %c896_50], %73 {strides = array<i32>} : memref<2x1024xf32, #tpu.memory_space<vmem>>, vector<1x64xf32>,
    %75 = vector.extract_strided_slice %14 {offsets = [15, 0], sizes = [1, 64], strides = [1, 1]} : vector<16x128xf32> to vector<1x64xf32>
    %c0_51 = arith.constant 0 : index
    %c960 = arith.constant 960 : index
    %76 = vector.load %arg15[%c0_51, %c960] : memref<2x1024xf32, #tpu.memory_space<vmem>>, vector<1x64xf32>
    tpu.vector_store %arg15[%c0_51, %c960], %75 {strides = array<i32>} : memref<2x1024xf32, #tpu.memory_space<vmem>>, vector<1x64xf32>,
    %77 = vector.extract_strided_slice %14 {offsets = [15, 64], sizes = [1, 64], strides = [1, 1]} : vector<16x128xf32> to vector<1x64xf32>
    %c1_52 = arith.constant 1 : index
    %c960_53 = arith.constant 960 : index
    %78 = vector.load %arg15[%c1_52, %c960_53] : memref<2x1024xf32, #tpu.memory_space<vmem>>, vector<1x64xf32>
    tpu.vector_store %arg15[%c1_52, %c960_53], %77 {strides = array<i32>} : memref<2x1024xf32, #tpu.memory_space<vmem>>, vector<1x64xf32>,
    %c0_54 = arith.constant 0 : index
    %c0_55 = arith.constant 0 : index
    %79 = vector.load %arg15[%c0_54, %c0_55] : memref<2x1024xf32, #tpu.memory_space<vmem>>, vector<2x1024xf32>
    %80 = arith.truncf %79 : vector<2x1024xf32> to vector<2x1024xbf16>
    tpu.wait_dma2 semaphore(%arg17 : memref<!tpu.dma_semaphore, #tpu.memory_space<semaphore_mem>>) src(%arg6 : memref<5130x64xbf16, #tpu.memory_space<any>>) dst(%arg16 : memref<5130x64xbf16, #tpu.memory_space<vmem>>)
    %c0_56 = arith.constant 0 : index
    %c0_57 = arith.constant 0 : index
    %81 = vector.load %arg5[%c0_56, %c0_57] : memref<1024x64xbf16, #tpu.memory_space<vmem>>, vector<1024x64xbf16>
    %cst_58 = arith.constant dense<0.000000e+00> : vector<2x64xf32>
    %82 = tpu.matmul %80, %81, %cst_58 {dimension_numbers = #tpu.dot_dimension_numbers<[1], [0], [0], [1], [0, 0, 1, 1], [], []>} : vector<2x1024xbf16>, vector<1024x64xbf16>, vector<2x64xf32> -> vector<2x64xf32>
    %c0_59 = arith.constant 0 : index
    %c0_60 = arith.constant 0 : index
    %83 = vector.load %arg4[%c0_59, %c0_60] : memref<2x5130xbf16, #tpu.memory_space<vmem>>, vector<2x5130xbf16>
    %c0_61 = arith.constant 0 : index
    %c0_62 = arith.constant 0 : index
    %84 = vector.load %arg16[%c0_61, %c0_62] : memref<5130x64xbf16, #tpu.memory_space<vmem>>, vector<5130x64xbf16>
    %cst_63 = arith.constant dense<0.000000e+00> : vector<2x64xf32>
    %85 = tpu.matmul %83, %84, %cst_63 {dimension_numbers = #tpu.dot_dimension_numbers<[1], [0], [0], [1], [0, 0, 1, 1], [], []>} : vector<2x5130xbf16>, vector<5130x64xbf16>, vector<2x64xf32> -> vector<2x64xf32>
    %86 = arith.addf %82, %85 : vector<2x64xf32>
    %c0_64 = arith.constant 0 : index
    %c0_65 = arith.constant 0 : index
    %87 = vector.load %arg7[%c0_64, %c0_65] : memref<1x64xf32, #tpu.memory_space<vmem>>, vector<1x64xf32>
    %88 = vector.broadcast %87 : vector<1x64xf32> to vector<2x64xf32>
    %89 = arith.addf %86, %88 : vector<2x64xf32>
    %cst_66 = arith.constant 0.000000e+00 : f32
    %90 = vector.broadcast %cst_66 : f32 to vector<2x64xf32>
    %91 = arith.maximumf %89, %90 : vector<2x64xf32>
    %92 = arith.truncf %91 : vector<2x64xf32> to vector<2x64xbf16>
    %c0_67 = arith.constant 0 : index
    %c0_68 = arith.constant 0 : index
    %93 = vector.load %arg8[%c0_67, %c0_68] : memref<64x32xbf16, #tpu.memory_space<vmem>>, vector<64x32xbf16>
    %cst_69 = arith.constant dense<0.000000e+00> : vector<2x32xf32>
    %94 = tpu.matmul %92, %93, %cst_69 {dimension_numbers = #tpu.dot_dimension_numbers<[1], [0], [0], [1], [0, 0, 1, 1], [], []>} : vector<2x64xbf16>, vector<64x32xbf16>, vector<2x32xf32> -> vector<2x32xf32>
    %c0_70 = arith.constant 0 : index
    %c0_71 = arith.constant 0 : index
    %95 = vector.load %arg9[%c0_70, %c0_71] : memref<1x32xf32, #tpu.memory_space<vmem>>, vector<1x32xf32>
    %96 = vector.broadcast %95 : vector<1x32xf32> to vector<2x32xf32>
    %97 = arith.addf %94, %96 : vector<2x32xf32>
    %cst_72 = arith.constant 0.000000e+00 : f32
    %98 = vector.broadcast %cst_72 : f32 to vector<2x32xf32>
    %99 = arith.maximumf %97, %98 : vector<2x32xf32>
    %100 = arith.truncf %99 : vector<2x32xf32> to vector<2x32xbf16>
    %c0_73 = arith.constant 0 : index
    %c0_74 = arith.constant 0 : index
    %101 = vector.load %arg10[%c0_73, %c0_74] : memref<32x16xbf16, #tpu.memory_space<vmem>>, vector<32x16xbf16>
    %cst_75 = arith.constant dense<0.000000e+00> : vector<2x16xf32>
    %102 = tpu.matmul %100, %101, %cst_75 {dimension_numbers = #tpu.dot_dimension_numbers<[1], [0], [0], [1], [0, 0, 1, 1], [], []>} : vector<2x32xbf16>, vector<32x16xbf16>, vector<2x16xf32> -> vector<2x16xf32>
    %c0_76 = arith.constant 0 : index
    %c0_77 = arith.constant 0 : index
    %103 = vector.load %arg11[%c0_76, %c0_77] : memref<1x16xf32, #tpu.memory_space<vmem>>, vector<1x16xf32>
    %104 = vector.broadcast %103 : vector<1x16xf32> to vector<2x16xf32>
    %105 = arith.addf %102, %104 : vector<2x16xf32>
    %106 = math.tanh %105 : vector<2x16xf32>
    %cst_78 = arith.constant 0.000000e+00 : f32
    %107 = vector.broadcast %cst_78 : f32 to vector<2x16xf32>
    %108 = arith.maximumf %106, %107 : vector<2x16xf32>
    %109 = arith.truncf %108 : vector<2x16xf32> to vector<2x16xbf16>
    %c0_79 = arith.constant 0 : index
    %c0_80 = arith.constant 0 : index
    %110 = vector.load %arg12[%c0_79, %c0_80] : memref<16x2xbf16, #tpu.memory_space<vmem>>, vector<16x2xbf16>
    %cst_81 = arith.constant dense<0.000000e+00> : vector<2x2xf32>
    %111 = tpu.matmul %109, %110, %cst_81 {dimension_numbers = #tpu.dot_dimension_numbers<[1], [0], [0], [1], [0, 0, 1, 1], [], []>} : vector<2x16xbf16>, vector<16x2xbf16>, vector<2x2xf32> -> vector<2x2xf32>
    %c0_82 = arith.constant 0 : index
    %c0_83 = arith.constant 0 : index
    %112 = vector.load %arg13[%c0_82, %c0_83] : memref<1x2xf32, #tpu.memory_space<vmem>>, vector<1x2xf32>
    %113 = vector.broadcast %112 : vector<1x2xf32> to vector<2x2xf32>
    %114 = arith.addf %111, %113 : vector<2x2xf32>
    %c0_84 = arith.constant 0 : index
    %c0_85 = arith.constant 0 : index
    %115 = vector.load %arg14[%c0_84, %c0_85] : memref<2x2xf32, #tpu.memory_space<vmem>>, vector<2x2xf32>
    tpu.vector_store %arg14[%c0_84, %c0_85], %114 {strides = array<i32>} : memref<2x2xf32, #tpu.memory_space<vmem>>, vector<2x2xf32>,
    return
  }
  func.func @transform_0(%arg0: i32) -> (i32, i32) {
    %c0_i32 = arith.constant 0 : i32
    %c0_i32_0 = arith.constant 0 : i32
    %c0_i32_1 = arith.constant 0 : i32
    return %c0_i32, %c0_i32_0 : i32, i32
  }
  func.func @transform_1(%arg0: i32) -> (i32, i32) {
    %c0_i32 = arith.constant 0 : i32
    %c0_i32_0 = arith.constant 0 : i32
    %c0_i32_1 = arith.constant 0 : i32
    return %c0_i32, %c0_i32_0 : i32, i32
  }
  func.func @transform_2(%arg0: i32) -> (i32, i32) {
    %c0_i32 = arith.constant 0 : i32
    %c0_i32_0 = arith.constant 0 : i32
    %c0_i32_1 = arith.constant 0 : i32
    return %c0_i32, %c0_i32_0 : i32, i32
  }
  func.func @transform_3(%arg0: i32) -> (i32, i32) {
    %c0_i32 = arith.constant 0 : i32
    %c0_i32_0 = arith.constant 0 : i32
    %c0_i32_1 = arith.constant 0 : i32
    return %c0_i32, %c0_i32_0 : i32, i32
  }
  func.func @transform_4(%arg0: i32) -> (i32, i32) {
    %c0_i32 = arith.constant 0 : i32
    %c0_i32_0 = arith.constant 0 : i32
    %c0_i32_1 = arith.constant 0 : i32
    return %c0_i32, %c0_i32_0 : i32, i32
  }
  func.func @transform_6(%arg0: i32) -> (i32, i32) {
    %c0_i32 = arith.constant 0 : i32
    %c0_i32_0 = arith.constant 0 : i32
    %c0_i32_1 = arith.constant 0 : i32
    return %c0_i32, %c0_i32_0 : i32, i32
  }
  func.func @transform_7(%arg0: i32) -> (i32, i32) {
    %c0_i32 = arith.constant 0 : i32
    %c0_i32_0 = arith.constant 0 : i32
    %c0_i32_1 = arith.constant 0 : i32
    return %c0_i32, %c0_i32_0 : i32, i32
  }
  func.func @transform_8(%arg0: i32) -> (i32, i32) {
    %c0_i32 = arith.constant 0 : i32
    %c0_i32_0 = arith.constant 0 : i32
    %c0_i32_1 = arith.constant 0 : i32
    return %c0_i32, %c0_i32_0 : i32, i32
  }
  func.func @transform_9(%arg0: i32) -> (i32, i32) {
    %c0_i32 = arith.constant 0 : i32
    %c0_i32_0 = arith.constant 0 : i32
    %c0_i32_1 = arith.constant 0 : i32
    return %c0_i32, %c0_i32_0 : i32, i32
  }
  func.func @transform_10(%arg0: i32) -> (i32, i32) {
    %c0_i32 = arith.constant 0 : i32
    %c0_i32_0 = arith.constant 0 : i32
    %c0_i32_1 = arith.constant 0 : i32
    return %c0_i32, %c0_i32_0 : i32, i32
  }
  func.func @transform_11(%arg0: i32) -> (i32, i32) {
    %c0_i32 = arith.constant 0 : i32
    %c0_i32_0 = arith.constant 0 : i32
    %c0_i32_1 = arith.constant 0 : i32
    return %c0_i32, %c0_i32_0 : i32, i32
  }
  func.func @transform_12(%arg0: i32) -> (i32, i32) {
    %c0_i32 = arith.constant 0 : i32
    %c0_i32_0 = arith.constant 0 : i32
    %c0_i32_1 = arith.constant 0 : i32
    return %c0_i32, %c0_i32_0 : i32, i32
  }
  func.func @transform_13(%arg0: i32) -> (i32, i32) {
    %c0_i32 = arith.constant 0 : i32
    %c0_i32_0 = arith.constant 0 : i32
    %c0_i32_1 = arith.constant 0 : i32
    return %c0_i32, %c0_i32_0 : i32, i32
  }
}

</mosaic_0001>

<llo_original>
// kernel: model_forward.2
$region0: #{model_forward.2}
  #allocation0 [shape = 'u32[]', space=smem, size = 0x4, offset = 0x4, fixed_abs, tag = 'smem constant byte address 0x4 - core index']
  #allocation1 [shape = 'u32[144,128]{1,0:T(1,128)}', space=vmem, size = 0x12000, scoped, tag = 'internal scratch']
  %s0 = inlined_call_operand.vmem [shape: bf16[9,2048], index: 0, kind: input, shape index: {}]
  %s1 = inlined_call_operand.vmem [shape: bf16[32,9], index: 1, kind: input, shape index: {}]
  %s2 = inlined_call_operand.vmem [shape: f32[32,1], index: 2, kind: input, shape index: {}]
  %s3 = inlined_call_operand.vmem [shape: bf16[32,512], index: 3, kind: output, shape index: {}]
  %s4 = sld [smem:[#allocation0]]
  $region22: #{model_forward.2} parent=0
    _
  %s6 = ssub.s32 1, %s4
  %s7 = scalar_select 0, %s6, %s4
  // Predicated region
  $region2: #{model_forward.2} parent=0 // pred_check
    _
  $region3: #{model_forward.2} parent=0 // pred_check_branch
    %9 = sbr.rel (0) target = $region5
  $region4: #{model_forward.2} parent=0 // pred_region
    _
  $region5: #{model_forward.2} parent=0 // pred_fallthru
    _
  // Predicated region
  $region6: #{model_forward.2} parent=0 // pred_check
    _
  $region7: #{model_forward.2} parent=0 // pred_check_branch
    %11 = sbr.rel (0) target = $region9
  $region8: #{model_forward.2} parent=0 // pred_region
    _
  $region9: #{model_forward.2} parent=0 // pred_fallthru
    _
  // Predicated region
  $region10: #{model_forward.2} parent=0 // pred_check
    _
  $region11: #{model_forward.2} parent=0 // pred_check_branch
    %13 = sbr.rel (0) target = $region13
  $region12: #{model_forward.2} parent=0 // pred_region
    _
  $region13: #{model_forward.2} parent=0 // pred_fallthru
    _
  %v15 = vld [vmem:[%s1] sm:$0xf]
  %v16 = vld [vmem:[%s1 + $0x4] sm:$0xf]
  %v17 = vld [vmem:[%s1 + $0x8] sm:$0xf]
  %v18 = vld [vmem:[%s1 + $0xc] sm:$0xf]
  %v19 = vld [vmem:[%s0] sm:$0xff]
  %v20 = vld [vmem:[%s0 + $0x8] sm:$0xff]
  %v21 = vld [vmem:[%s0 + $0x10] sm:$0xff]
  %v22 = vld [vmem:[%s0 + $0x18] sm:$0xff]
  %v23 = vld [vmem:[%s0 + $0x20] sm:$0xff]
  %v24 = vld [vmem:[%s0 + $0x28] sm:$0xff]
  %v25 = vld [vmem:[%s0 + $0x30] sm:$0xff]
  %v26 = vld [vmem:[%s0 + $0x38] sm:$0xff]
  %v27 = vld [vmem:[%s0 + $0x40] sm:$0x11]
  %v28 = vld [vmem:[%s0 + $0x48] sm:$0x11]
  %v29 = vld [vmem:[%s0 + $0x50] sm:$0x11]
  %v30 = vld [vmem:[%s0 + $0x58] sm:$0x11]
  %v31 = vld [vmem:[%s0 + $0x60] sm:$0x11]
  %v32 = vld [vmem:[%s0 + $0x68] sm:$0x11]
  %v33 = vld [vmem:[%s0 + $0x70] sm:$0x11]
  %v34 = vld [vmem:[%s0 + $0x78] sm:$0x11]
  %v35 = vld [vmem:[%s2] sm:$0xff]
  %v36 = vld [vmem:[%s2 + $0x8] sm:$0xff]
  %v37 = vld [vmem:[%s2 + $0x10] sm:$0xff]
  %v38 = vld [vmem:[%s2 + $0x18] sm:$0xff]
  %40 = vset.pattern.permute.xlu0 0
  %41 = vperm.xlu0 %40, %v35
  %v42 = vpop.permute.xlu0 %41
  %45 = vset.pattern.permute.xlu0 0
  %46 = vperm.xlu0 %45, %v36
  %v47 = vpop.permute.xlu0 %46
  %50 = vset.pattern.permute.xlu0 0
  %51 = vperm.xlu0 %50, %v37
  %v52 = vpop.permute.xlu0 %51
  %55 = vset.pattern.permute.xlu0 0
  %56 = vperm.xlu0 %55, %v38
  %v57 = vpop.permute.xlu0 %56
  %v63 = vunpack.c.l.b16 %v15
  %v64 = vunpack.c.l.b16 %v16
  %v65 = vunpack.c.l.b16 %v17
  %v66 = vunpack.c.l.b16 %v18
  %v67 = vpack.c.b16 %v64, %v63
  %v68 = vpack.c.b16 %v66, %v65
  %v85 = vunpack.c.l.b16 %v19
  %v86 = vunpack.c.h.b16 %v19
  %v87 = vunpack.c.l.b16 %v20
  %v88 = vunpack.c.h.b16 %v20
  %v89 = vunpack.c.l.b16 %v21
  %v90 = vunpack.c.h.b16 %v21
  %v91 = vunpack.c.l.b16 %v22
  %v92 = vunpack.c.h.b16 %v22
  %v93 = vunpack.c.l.b16 %v23
  %v94 = vunpack.c.h.b16 %v23
  %v95 = vunpack.c.l.b16 %v24
  %v96 = vunpack.c.h.b16 %v24
  %v97 = vunpack.c.l.b16 %v25
  %v98 = vunpack.c.h.b16 %v25
  %v99 = vunpack.c.l.b16 %v26
  %v100 = vunpack.c.h.b16 %v26
  %v101 = vunpack.c.l.b16 %v27
  %v102 = vunpack.c.h.b16 %v27
  %v103 = vunpack.c.l.b16 %v28
  %v104 = vunpack.c.h.b16 %v28
  %v105 = vunpack.c.l.b16 %v29
  %v106 = vunpack.c.h.b16 %v29
  %v107 = vunpack.c.l.b16 %v30
  %v108 = vunpack.c.h.b16 %v30
  %v109 = vunpack.c.l.b16 %v31
  %v110 = vunpack.c.h.b16 %v31
  %v111 = vunpack.c.l.b16 %v32
  %v112 = vunpack.c.h.b16 %v32
  %v113 = vunpack.c.l.b16 %v33
  %v114 = vunpack.c.h.b16 %v33
  %v115 = vunpack.c.l.b16 %v34
  %v116 = vunpack.c.h.b16 %v34
  %v117 = vpack.c.b16 %v101, %v85
  %v118 = vpack.c.b16 %v102, %v86
  %v119 = vpack.c.b16 %v103, %v87
  %v120 = vpack.c.b16 %v104, %v88
  %v121 = vpack.c.b16 %v105, %v89
  %v122 = vpack.c.b16 %v106, %v90
  %v123 = vpack.c.b16 %v107, %v91
  %v124 = vpack.c.b16 %v108, %v92
  %v125 = vpack.c.b16 %v109, %v93
  %v126 = vpack.c.b16 %v110, %v94
  %v127 = vpack.c.b16 %v111, %v95
  %v128 = vpack.c.b16 %v112, %v96
  %v129 = vpack.c.b16 %v113, %v97
  %v130 = vpack.c.b16 %v114, %v98
  %v131 = vpack.c.b16 %v115, %v99
  %v132 = vpack.c.b16 %v116, %v100
  %vm133 = vcmask 72704
  %v135 = vsel %vm133, %v67, 0
  %v138 = vsel %vm133, %v68, 0
  %vm140 = vcmask 1043456
  %vm141 = vcmask 1044480
  %v142 = vsel %vm140, 4294967295, 65535
  %v143 = vsel %vm141, %v142, 0
  %v145 = vand.u32 %v117, %v143
  %v148 = vand.u32 %v118, %v143
  %v151 = vand.u32 %v119, %v143
  %v154 = vand.u32 %v120, %v143
  %v157 = vand.u32 %v121, %v143
  %v160 = vand.u32 %v122, %v143
  %v163 = vand.u32 %v123, %v143
  %v166 = vand.u32 %v124, %v143
  %v169 = vand.u32 %v125, %v143
  %v172 = vand.u32 %v126, %v143
  %v175 = vand.u32 %v127, %v143
  %v178 = vand.u32 %v128, %v143
  %v181 = vand.u32 %v129, %v143
  %v184 = vand.u32 %v130, %v143
  %v187 = vand.u32 %v131, %v143
  %v190 = vand.u32 %v132, %v143
  %192 = vmatprep.subr.bf16.mxu0 0
  %193 = vmatpush1.bf16.msra.mxu0 0
  %194 = vmatprep.subr.bf16.mxu0 0
  %195 = vmatpush1.bf16.msra.mxu0 0
  %196 = vmatprep.subr.bf16.mxu0 0
  %197 = vmatpush1.bf16.msra.mxu0 0
  %198 = vmatprep.subr.bf16.mxu0 0
  %199 = vmatpush1.bf16.msra.mxu0 0
  %200 = vmatprep.subr.bf16.mxu0 0
  %201 = vmatpush1.bf16.msra.mxu0 0
  %202 = vmatprep.subr.bf16.mxu0 0
  %203 = vmatpush1.bf16.msra.mxu0 0
  %204 = vmatprep.subr.bf16.mxu0 0
  %205 = vmatpush1.bf16.msra.mxu0 0
  %206 = vmatprep.subr.bf16.mxu0 %v148
  %207 = vmatpush1.bf16.msra.mxu0 %v145
  %208 = vmatprep.subr.bf16.mxu0 0
  %209 = vmatpush2.bf16.msra.mxu0 0
  %210 = vmatprep.subr.bf16.mxu0 0
  %211 = vmatpush2.bf16.msra.mxu0 0
  %212 = vmatprep.subr.bf16.mxu0 0
  %213 = vmatpush2.bf16.msra.mxu0 0
  %214 = vmatprep.subr.bf16.mxu0 0
  %215 = vmatpush2.bf16.msra.mxu0 0
  %216 = vmatprep.subr.bf16.mxu0 0
  %217 = vmatpush2.bf16.msra.mxu0 0
  %218 = vmatprep.subr.bf16.mxu0 0
  %219 = vmatpush2.bf16.msra.mxu0 0
  %220 = vmatprep.subr.bf16.mxu0 0
  %221 = vmatpush2.bf16.msra.mxu0 0
  %222 = vmatprep.subr.bf16.mxu0 0
  %223 = vmatpush2.bf16.msra.mxu0 0
  %224 = vmatprep.mubr.bf16.mxu0 0
  %225 = vmatmul.mubr.bf16.gmra.mxu0 %v135
  %v226 = vpop.f32.mrf.mxu0
  %v227 = vadd.f32 %v42, %v226
  %v228 = vpop.f32.mrf.mxu0
  %v229 = vadd.f32 %v42, %v228
  %v230 = vpop.f32.mrf.mxu0
  %v231 = vadd.f32 %v47, %v230
  %v232 = vpop.f32.mrf.mxu0
  %v233 = vadd.f32 %v47, %v232
  %234 = vmatprep.mubr.bf16.mxu0 0
  %235 = vmatmul.mubr.bf16.gmra.mxu0 %v138
  %v236 = vpop.f32.mrf.mxu0
  %v237 = vadd.f32 %v52, %v236
  %v238 = vpop.f32.mrf.mxu0
  %v239 = vadd.f32 %v52, %v238
  %v240 = vpop.f32.mrf.mxu0
  %v241 = vadd.f32 %v57, %v240
  %v242 = vpop.f32.mrf.mxu0
  %v243 = vadd.f32 %v57, %v242
  %244 = vdwg.mxu0
  %245 = vmatprep.subr.bf16.mxu0 0
  %246 = vmatpush1.bf16.msra.mxu0 0
  %247 = vmatprep.subr.bf16.mxu0 0
  %248 = vmatpush1.bf16.msra.mxu0 0
  %249 = vmatprep.subr.bf16.mxu0 0
  %250 = vmatpush1.bf16.msra.mxu0 0
  %251 = vmatprep.subr.bf16.mxu0 0
  %252 = vmatpush1.bf16.msra.mxu0 0
  %253 = vmatprep.subr.bf16.mxu0 0
  %254 = vmatpush1.bf16.msra.mxu0 0
  %255 = vmatprep.subr.bf16.mxu0 0
  %256 = vmatpush1.bf16.msra.mxu0 0
  %257 = vmatprep.subr.bf16.mxu0 0
  %258 = vmatpush1.bf16.msra.mxu0 0
  %259 = vmatprep.subr.bf16.mxu0 %v154
  %260 = vmatpush1.bf16.msra.mxu0 %v151
  %261 = vmatprep.subr.bf16.mxu0 0
  %262 = vmatpush2.bf16.msra.mxu0 0
  %263 = vmatprep.subr.bf16.mxu0 0
  %264 = vmatpush2.bf16.msra.mxu0 0
  %265 = vmatprep.subr.bf16.mxu0 0
  %266 = vmatpush2.bf16.msra.mxu0 0
  %267 = vmatprep.subr.bf16.mxu0 0
  %268 = vmatpush2.bf16.msra.mxu0 0
  %269 = vmatprep.subr.bf16.mxu0 0
  %270 = vmatpush2.bf16.msra.mxu0 0
  %271 = vmatprep.subr.bf16.mxu0 0
  %272 = vmatpush2.bf16.msra.mxu0 0
  %273 = vmatprep.subr.bf16.mxu0 0
  %274 = vmatpush2.bf16.msra.mxu0 0
  %275 = vmatprep.subr.bf16.mxu0 0
  %276 = vmatpush2.bf16.msra.mxu0 0
  %277 = vmatprep.mubr.bf16.mxu0 0
  %278 = vmatmul.mubr.bf16.gmra.mxu0 %v135
  %v279 = vpop.f32.mrf.mxu0
  %v280 = vadd.f32 %v42, %v279
  %v281 = vpop.f32.mrf.mxu0
  %v282 = vadd.f32 %v42, %v281
  %v283 = vpop.f32.mrf.mxu0
  %v284 = vadd.f32 %v47, %v283
  %v285 = vpop.f32.mrf.mxu0
  %v286 = vadd.f32 %v47, %v285
  %287 = vmatprep.mubr.bf16.mxu0 0
  %288 = vmatmul.mubr.bf16.gmra.mxu0 %v138
  %v289 = vpop.f32.mrf.mxu0
  %v290 = vadd.f32 %v52, %v289
  %v291 = vpop.f32.mrf.mxu0
  %v292 = vadd.f32 %v52, %v291
  %v293 = vpop.f32.mrf.mxu0
  %v294 = vadd.f32 %v57, %v293
  %v295 = vpop.f32.mrf.mxu0
  %v296 = vadd.f32 %v57, %v295
  %297 = vdwg.mxu0
  %298 = vmatprep.subr.bf16.mxu0 0
  %299 = vmatpush1.bf16.msra.mxu0 0
  %300 = vmatprep.subr.bf16.mxu0 0
  %301 = vmatpush1.bf16.msra.mxu0 0
  %302 = vmatprep.subr.bf16.mxu0 0
  %303 = vmatpush1.bf16.msra.mxu0 0
  %304 = vmatprep.subr.bf16.mxu0 0
  %305 = vmatpush1.bf16.msra.mxu0 0
  %306 = vmatprep.subr.bf16.mxu0 0
  %307 = vmatpush1.bf16.msra.mxu0 0
  %308 = vmatprep.subr.bf16.mxu0 0
  %309 = vmatpush1.bf16.msra.mxu0 0
  %310 = vmatprep.subr.bf16.mxu0 0
  %311 = vmatpush1.bf16.msra.mxu0 0
  %312 = vmatprep.subr.bf16.mxu0 %v160
  %313 = vmatpush1.bf16.msra.mxu0 %v157
  %314 = vmatprep.subr.bf16.mxu0 0
  %315 = vmatpush2.bf16.msra.mxu0 0
  %316 = vmatprep.subr.bf16.mxu0 0
  %317 = vmatpush2.bf16.msra.mxu0 0
  %318 = vmatprep.subr.bf16.mxu0 0
  %319 = vmatpush2.bf16.msra.mxu0 0
  %320 = vmatprep.subr.bf16.mxu0 0
  %321 = vmatpush2.bf16.msra.mxu0 0
  %322 = vmatprep.subr.bf16.mxu0 0
  %323 = vmatpush2.bf16.msra.mxu0 0
  %324 = vmatprep.subr.bf16.mxu0 0
  %325 = vmatpush2.bf16.msra.mxu0 0
  %326 = vmatprep.subr.bf16.mxu0 0
  %327 = vmatpush2.bf16.msra.mxu0 0
  %328 = vmatprep.subr.bf16.mxu0 0
  %329 = vmatpush2.bf16.msra.mxu0 0
  %330 = vmatprep.mubr.bf16.mxu0 0
  %331 = vmatmul.mubr.bf16.gmra.mxu0 %v135
  %v332 = vpop.f32.mrf.mxu0
  %v333 = vadd.f32 %v42, %v332
  %v334 = vpop.f32.mrf.mxu0
  %v335 = vadd.f32 %v42, %v334
  %v336 = vpop.f32.mrf.mxu0
  %v337 = vadd.f32 %v47, %v336
  %v338 = vpop.f32.mrf.mxu0
  %v339 = vadd.f32 %v47, %v338
  %340 = vmatprep.mubr.bf16.mxu0 0
  %341 = vmatmul.mubr.bf16.gmra.mxu0 %v138
  %v342 = vpop.f32.mrf.mxu0
  %v343 = vadd.f32 %v52, %v342
  %v344 = vpop.f32.mrf.mxu0
  %v345 = vadd.f32 %v52, %v344
  %v346 = vpop.f32.mrf.mxu0
  %v347 = vadd.f32 %v57, %v346
  %v348 = vpop.f32.mrf.mxu0
  %v349 = vadd.f32 %v57, %v348
  %350 = vdwg.mxu0
  %351 = vmatprep.subr.bf16.mxu0 0
  %352 = vmatpush1.bf16.msra.mxu0 0
  %353 = vmatprep.subr.bf16.mxu0 0
  %354 = vmatpush1.bf16.msra.mxu0 0
  %355 = vmatprep.subr.bf16.mxu0 0
  %356 = vmatpush1.bf16.msra.mxu0 0
  %357 = vmatprep.subr.bf16.mxu0 0
  %358 = vmatpush1.bf16.msra.mxu0 0
  %359 = vmatprep.subr.bf16.mxu0 0
  %360 = vmatpush1.bf16.msra.mxu0 0
  %361 = vmatprep.subr.bf16.mxu0 0
  %362 = vmatpush1.bf16.msra.mxu0 0
  %363 = vmatprep.subr.bf16.mxu0 0
  %364 = vmatpush1.bf16.msra.mxu0 0
  %365 = vmatprep.subr.bf16.mxu0 %v166
  %366 = vmatpush1.bf16.msra.mxu0 %v163
  %367 = vmatprep.subr.bf16.mxu0 0
  %368 = vmatpush2.bf16.msra.mxu0 0
  %369 = vmatprep.subr.bf16.mxu0 0
  %370 = vmatpush2.bf16.msra.mxu0 0
  %371 = vmatprep.subr.bf16.mxu0 0
  %372 = vmatpush2.bf16.msra.mxu0 0
  %373 = vmatprep.subr.bf16.mxu0 0
  %374 = vmatpush2.bf16.msra.mxu0 0
  %375 = vmatprep.subr.bf16.mxu0 0
  %376 = vmatpush2.bf16.msra.mxu0 0
  %377 = vmatprep.subr.bf16.mxu0 0
  %378 = vmatpush2.bf16.msra.mxu0 0
  %379 = vmatprep.subr.bf16.mxu0 0
  %380 = vmatpush2.bf16.msra.mxu0 0
  %381 = vmatprep.subr.bf16.mxu0 0
  %382 = vmatpush2.bf16.msra.mxu0 0
  %383 = vmatprep.mubr.bf16.mxu0 0
  %384 = vmatmul.mubr.bf16.gmra.mxu0 %v135
  %v385 = vpop.f32.mrf.mxu0
  %v386 = vadd.f32 %v42, %v385
  %v387 = vpop.f32.mrf.mxu0
  %v388 = vadd.f32 %v42, %v387
  %v389 = vpop.f32.mrf.mxu0
  %v390 = vadd.f32 %v47, %v389
  %v391 = vpop.f32.mrf.mxu0
  %v392 = vadd.f32 %v47, %v391
  %393 = vmatprep.mubr.bf16.mxu0 0
  %394 = vmatmul.mubr.bf16.gmra.mxu0 %v138
  %v395 = vpop.f32.mrf.mxu0
  %v396 = vadd.f32 %v52, %v395
  %v397 = vpop.f32.mrf.mxu0
  %v398 = vadd.f32 %v52, %v397
  %v399 = vpop.f32.mrf.mxu0
  %v400 = vadd.f32 %v57, %v399
  %v401 = vpop.f32.mrf.mxu0
  %v402 = vadd.f32 %v57, %v401
  %403 = vdwg.mxu0
  %404 = vmatprep.subr.bf16.mxu0 0
  %405 = vmatpush1.bf16.msra.mxu0 0
  %406 = vmatprep.subr.bf16.mxu0 0
  %407 = vmatpush1.bf16.msra.mxu0 0
  %408 = vmatprep.subr.bf16.mxu0 0
  %409 = vmatpush1.bf16.msra.mxu0 0
  %410 = vmatprep.subr.bf16.mxu0 0
  %411 = vmatpush1.bf16.msra.mxu0 0
  %412 = vmatprep.subr.bf16.mxu0 0
  %413 = vmatpush1.bf16.msra.mxu0 0
  %414 = vmatprep.subr.bf16.mxu0 0
  %415 = vmatpush1.bf16.msra.mxu0 0
  %416 = vmatprep.subr.bf16.mxu0 0
  %417 = vmatpush1.bf16.msra.mxu0 0
  %418 = vmatprep.subr.bf16.mxu0 %v172
  %419 = vmatpush1.bf16.msra.mxu0 %v169
  %420 = vmatprep.subr.bf16.mxu0 0
  %421 = vmatpush2.bf16.msra.mxu0 0
  %422 = vmatprep.subr.bf16.mxu0 0
  %423 = vmatpush2.bf16.msra.mxu0 0
  %424 = vmatprep.subr.bf16.mxu0 0
  %425 = vmatpush2.bf16.msra.mxu0 0
  %426 = vmatprep.subr.bf16.mxu0 0
  %427 = vmatpush2.bf16.msra.mxu0 0
  %428 = vmatprep.subr.bf16.mxu0 0
  %429 = vmatpush2.bf16.msra.mxu0 0
  %430 = vmatprep.subr.bf16.mxu0 0
  %431 = vmatpush2.bf16.msra.mxu0 0
  %432 = vmatprep.subr.bf16.mxu0 0
  %433 = vmatpush2.bf16.msra.mxu0 0
  %434 = vmatprep.subr.bf16.mxu0 0
  %435 = vmatpush2.bf16.msra.mxu0 0
  %436 = vmatprep.mubr.bf16.mxu0 0
  %437 = vmatmul.mubr.bf16.gmra.mxu0 %v135
  %v438 = vpop.f32.mrf.mxu0
  %v439 = vadd.f32 %v42, %v438
  %v440 = vpop.f32.mrf.mxu0
  %v441 = vadd.f32 %v42, %v440
  %v442 = vpop.f32.mrf.mxu0
  %v443 = vadd.f32 %v47, %v442
  %v444 = vpop.f32.mrf.mxu0
  %v445 = vadd.f32 %v47, %v444
  %446 = vmatprep.mubr.bf16.mxu0 0
  %447 = vmatmul.mubr.bf16.gmra.mxu0 %v138
  %v448 = vpop.f32.mrf.mxu0
  %v449 = vadd.f32 %v52, %v448
  %v450 = vpop.f32.mrf.mxu0
  %v451 = vadd.f32 %v52, %v450
  %v452 = vpop.f32.mrf.mxu0
  %v453 = vadd.f32 %v57, %v452
  %v454 = vpop.f32.mrf.mxu0
  %v455 = vadd.f32 %v57, %v454
  %456 = vdwg.mxu0
  %457 = vmatprep.subr.bf16.mxu0 0
  %458 = vmatpush1.bf16.msra.mxu0 0
  %459 = vmatprep.subr.bf16.mxu0 0
  %460 = vmatpush1.bf16.msra.mxu0 0
  %461 = vmatprep.subr.bf16.mxu0 0
  %462 = vmatpush1.bf16.msra.mxu0 0
  %463 = vmatprep.subr.bf16.mxu0 0
  %464 = vmatpush1.bf16.msra.mxu0 0
  %465 = vmatprep.subr.bf16.mxu0 0
  %466 = vmatpush1.bf16.msra.mxu0 0
  %467 = vmatprep.subr.bf16.mxu0 0
  %468 = vmatpush1.bf16.msra.mxu0 0
  %469 = vmatprep.subr.bf16.mxu0 0
  %470 = vmatpush1.bf16.msra.mxu0 0
  %471 = vmatprep.subr.bf16.mxu0 %v178
  %472 = vmatpush1.bf16.msra.mxu0 %v175
  %473 = vmatprep.subr.bf16.mxu0 0
  %474 = vmatpush2.bf16.msra.mxu0 0
  %475 = vmatprep.subr.bf16.mxu0 0
  %476 = vmatpush2.bf16.msra.mxu0 0
  %477 = vmatprep.subr.bf16.mxu0 0
  %478 = vmatpush2.bf16.msra.mxu0 0
  %479 = vmatprep.subr.bf16.mxu0 0
  %480 = vmatpush2.bf16.msra.mxu0 0
  %481 = vmatprep.subr.bf16.mxu0 0
  %482 = vmatpush2.bf16.msra.mxu0 0
  %483 = vmatprep.subr.bf16.mxu0 0
  %484 = vmatpush2.bf16.msra.mxu0 0
  %485 = vmatprep.subr.bf16.mxu0 0
  %486 = vmatpush2.bf16.msra.mxu0 0
  %487 = vmatprep.subr.bf16.mxu0 0
  %488 = vmatpush2.bf16.msra.mxu0 0
  %489 = vmatprep.mubr.bf16.mxu0 0
  %490 = vmatmul.mubr.bf16.gmra.mxu0 %v135
  %v491 = vpop.f32.mrf.mxu0
  %v492 = vadd.f32 %v42, %v491
  %v493 = vpop.f32.mrf.mxu0
  %v494 = vadd.f32 %v42, %v493
  %v495 = vpop.f32.mrf.mxu0
  %v496 = vadd.f32 %v47, %v495
  %v497 = vpop.f32.mrf.mxu0
  %v498 = vadd.f32 %v47, %v497
  %499 = vmatprep.mubr.bf16.mxu0 0
  %500 = vmatmul.mubr.bf16.gmra.mxu0 %v138
  %v501 = vpop.f32.mrf.mxu0
  %v502 = vadd.f32 %v52, %v501
  %v503 = vpop.f32.mrf.mxu0
  %v504 = vadd.f32 %v52, %v503
  %v505 = vpop.f32.mrf.mxu0
  %v506 = vadd.f32 %v57, %v505
  %v507 = vpop.f32.mrf.mxu0
  %v508 = vadd.f32 %v57, %v507
  %509 = vdwg.mxu0
  %510 = vmatprep.subr.bf16.mxu0 0
  %511 = vmatpush1.bf16.msra.mxu0 0
  %512 = vmatprep.subr.bf16.mxu0 0
  %513 = vmatpush1.bf16.msra.mxu0 0
  %514 = vmatprep.subr.bf16.mxu0 0
  %515 = vmatpush1.bf16.msra.mxu0 0
  %516 = vmatprep.subr.bf16.mxu0 0
  %517 = vmatpush1.bf16.msra.mxu0 0
  %518 = vmatprep.subr.bf16.mxu0 0
  %519 = vmatpush1.bf16.msra.mxu0 0
  %520 = vmatprep.subr.bf16.mxu0 0
  %521 = vmatpush1.bf16.msra.mxu0 0
  %522 = vmatprep.subr.bf16.mxu0 0
  %523 = vmatpush1.bf16.msra.mxu0 0
  %524 = vmatprep.subr.bf16.mxu0 %v184
  %525 = vmatpush1.bf16.msra.mxu0 %v181
  %526 = vmatprep.subr.bf16.mxu0 0
  %527 = vmatpush2.bf16.msra.mxu0 0
  %528 = vmatprep.subr.bf16.mxu0 0
  %529 = vmatpush2.bf16.msra.mxu0 0
  %530 = vmatprep.subr.bf16.mxu0 0
  %531 = vmatpush2.bf16.msra.mxu0 0
  %532 = vmatprep.subr.bf16.mxu0 0
  %533 = vmatpush2.bf16.msra.mxu0 0
  %534 = vmatprep.subr.bf16.mxu0 0
  %535 = vmatpush2.bf16.msra.mxu0 0
  %536 = vmatprep.subr.bf16.mxu0 0
  %537 = vmatpush2.bf16.msra.mxu0 0
  %538 = vmatprep.subr.bf16.mxu0 0
  %539 = vmatpush2.bf16.msra.mxu0 0
  %540 = vmatprep.subr.bf16.mxu0 0
  %541 = vmatpush2.bf16.msra.mxu0 0
  %542 = vmatprep.mubr.bf16.mxu0 0
  %543 = vmatmul.mubr.bf16.gmra.mxu0 %v135
  %v544 = vpop.f32.mrf.mxu0
  %v545 = vadd.f32 %v42, %v544
  %v546 = vpop.f32.mrf.mxu0
  %v547 = vadd.f32 %v42, %v546
  %v548 = vpop.f32.mrf.mxu0
  %v549 = vadd.f32 %v47, %v548
  %v550 = vpop.f32.mrf.mxu0
  %v551 = vadd.f32 %v47, %v550
  %552 = vmatprep.mubr.bf16.mxu0 0
  %553 = vmatmul.mubr.bf16.gmra.mxu0 %v138
  %v554 = vpop.f32.mrf.mxu0
  %v555 = vadd.f32 %v52, %v554
  %v556 = vpop.f32.mrf.mxu0
  %v557 = vadd.f32 %v52, %v556
  %v558 = vpop.f32.mrf.mxu0
  %v559 = vadd.f32 %v57, %v558
  %v560 = vpop.f32.mrf.mxu0
  %v561 = vadd.f32 %v57, %v560
  %562 = vdwg.mxu0
  %563 = vmatprep.subr.bf16.mxu0 0
  %564 = vmatpush1.bf16.msra.mxu0 0
  %565 = vmatprep.subr.bf16.mxu0 0
  %566 = vmatpush1.bf16.msra.mxu0 0
  %567 = vmatprep.subr.bf16.mxu0 0
  %568 = vmatpush1.bf16.msra.mxu0 0
  %569 = vmatprep.subr.bf16.mxu0 0
  %570 = vmatpush1.bf16.msra.mxu0 0
  %571 = vmatprep.subr.bf16.mxu0 0
  %572 = vmatpush1.bf16.msra.mxu0 0
  %573 = vmatprep.subr.bf16.mxu0 0
  %574 = vmatpush1.bf16.msra.mxu0 0
  %575 = vmatprep.subr.bf16.mxu0 0
  %576 = vmatpush1.bf16.msra.mxu0 0
  %577 = vmatprep.subr.bf16.mxu0 %v190
  %578 = vmatpush1.bf16.msra.mxu0 %v187
  %579 = vmatprep.subr.bf16.mxu0 0
  %580 = vmatpush2.bf16.msra.mxu0 0
  %581 = vmatprep.subr.bf16.mxu0 0
  %582 = vmatpush2.bf16.msra.mxu0 0
  %583 = vmatprep.subr.bf16.mxu0 0
  %584 = vmatpush2.bf16.msra.mxu0 0
  %585 = vmatprep.subr.bf16.mxu0 0
  %586 = vmatpush2.bf16.msra.mxu0 0
  %587 = vmatprep.subr.bf16.mxu0 0
  %588 = vmatpush2.bf16.msra.mxu0 0
  %589 = vmatprep.subr.bf16.mxu0 0
  %590 = vmatpush2.bf16.msra.mxu0 0
  %591 = vmatprep.subr.bf16.mxu0 0
  %592 = vmatpush2.bf16.msra.mxu0 0
  %593 = vmatprep.subr.bf16.mxu0 0
  %594 = vmatpush2.bf16.msra.mxu0 0
  %595 = vmatprep.mubr.bf16.mxu0 0
  %596 = vmatmul.mubr.bf16.gmra.mxu0 %v135
  %v597 = vpop.f32.mrf.mxu0
  %v598 = vadd.f32 %v42, %v597
  %v599 = vpop.f32.mrf.mxu0
  %v600 = vadd.f32 %v42, %v599
  %v601 = vpop.f32.mrf.mxu0
  %v602 = vadd.f32 %v47, %v601
  %v603 = vpop.f32.mrf.mxu0
  %v604 = vadd.f32 %v47, %v603
  %605 = vmatprep.mubr.bf16.mxu0 0
  %606 = vmatmul.mubr.bf16.gmra.mxu0 %v138
  %v607 = vpop.f32.mrf.mxu0
  %v608 = vadd.f32 %v52, %v607
  %v609 = vpop.f32.mrf.mxu0
  %v610 = vadd.f32 %v52, %v609
  %v611 = vpop.f32.mrf.mxu0
  %v612 = vadd.f32 %v57, %v611
  %v613 = vpop.f32.mrf.mxu0
  %v614 = vadd.f32 %v57, %v613
  %615 = vdwg.mxu0
  %v616 = vmax.f32 %v227, 0.0
  %v617 = vmax.f32 %v229, 0.0
  %v618 = vmax.f32 %v280, 0.0
  %v619 = vmax.f32 %v282, 0.0
  %v620 = vmax.f32 %v333, 0.0
  %v621 = vmax.f32 %v335, 0.0
  %v622 = vmax.f32 %v386, 0.0
  %v623 = vmax.f32 %v388, 0.0
  %v624 = vmax.f32 %v439, 0.0
  %v625 = vmax.f32 %v441, 0.0
  %v626 = vmax.f32 %v492, 0.0
  %v627 = vmax.f32 %v494, 0.0
  %v628 = vmax.f32 %v545, 0.0
  %v629 = vmax.f32 %v547, 0.0
  %v630 = vmax.f32 %v598, 0.0
  %v631 = vmax.f32 %v600, 0.0
  %v632 = vmax.f32 %v231, 0.0
  %v633 = vmax.f32 %v233, 0.0
  %v634 = vmax.f32 %v284, 0.0
  %v635 = vmax.f32 %v286, 0.0
  %v636 = vmax.f32 %v337, 0.0
  %v637 = vmax.f32 %v339, 0.0
  %v638 = vmax.f32 %v390, 0.0
  %v639 = vmax.f32 %v392, 0.0
  %v640 = vmax.f32 %v443, 0.0
  %v641 = vmax.f32 %v445, 0.0
  %v642 = vmax.f32 %v496, 0.0
  %v643 = vmax.f32 %v498, 0.0
  %v644 = vmax.f32 %v549, 0.0
  %v645 = vmax.f32 %v551, 0.0
  %v646 = vmax.f32 %v602, 0.0
  %v647 = vmax.f32 %v604, 0.0
  %v648 = vmax.f32 %v237, 0.0
  %v649 = vmax.f32 %v239, 0.0
  %v650 = vmax.f32 %v290, 0.0
  %v651 = vmax.f32 %v292, 0.0
  %v652 = vmax.f32 %v343, 0.0
  %v653 = vmax.f32 %v345, 0.0
  %v654 = vmax.f32 %v396, 0.0
  %v655 = vmax.f32 %v398, 0.0
  %v656 = vmax.f32 %v449, 0.0
  %v657 = vmax.f32 %v451, 0.0
  %v658 = vmax.f32 %v502, 0.0
  %v659 = vmax.f32 %v504, 0.0
  %v660 = vmax.f32 %v555, 0.0
  %v661 = vmax.f32 %v557, 0.0
  %v662 = vmax.f32 %v608, 0.0
  %v663 = vmax.f32 %v610, 0.0
  %v664 = vmax.f32 %v241, 0.0
  %v665 = vmax.f32 %v243, 0.0
  %v666 = vmax.f32 %v294, 0.0
  %v667 = vmax.f32 %v296, 0.0
  %v668 = vmax.f32 %v347, 0.0
  %v669 = vmax.f32 %v349, 0.0
  %v670 = vmax.f32 %v400, 0.0
  %v671 = vmax.f32 %v402, 0.0
  %v672 = vmax.f32 %v453, 0.0
  %v673 = vmax.f32 %v455, 0.0
  %v674 = vmax.f32 %v506, 0.0
  %v675 = vmax.f32 %v508, 0.0
  %v676 = vmax.f32 %v559, 0.0
  %v677 = vmax.f32 %v561, 0.0
  %v678 = vmax.f32 %v612, 0.0
  %v679 = vmax.f32 %v614, 0.0
  %v680 = vmax.f32 %v616, %v620
  %v681 = vmax.f32 %v617, %v621
  %v682 = vmax.f32 %v618, %v622
  %v683 = vmax.f32 %v619, %v623
  %v684 = vmax.f32 %v632, %v636
  %v685 = vmax.f32 %v633, %v637
  %v686 = vmax.f32 %v634, %v638
  %v687 = vmax.f32 %v635, %v639
  %v688 = vmax.f32 %v648, %v652
  %v689 = vmax.f32 %v649, %v653
  %v690 = vmax.f32 %v650, %v654
  %v691 = vmax.f32 %v651, %v655
  %v692 = vmax.f32 %v664, %v668
  %v693 = vmax.f32 %v665, %v669
  %v694 = vmax.f32 %v666, %v670
  %v695 = vmax.f32 %v667, %v671
  %v696 = vmax.f32 %v624, %v628
  %v697 = vmax.f32 %v625, %v629
  %v698 = vmax.f32 %v626, %v630
  %v699 = vmax.f32 %v627, %v631
  %v700 = vmax.f32 %v640, %v644
  %v701 = vmax.f32 %v641, %v645
  %v702 = vmax.f32 %v642, %v646
  %v703 = vmax.f32 %v643, %v647
  %v704 = vmax.f32 %v656, %v660
  %v705 = vmax.f32 %v657, %v661
  %v706 = vmax.f32 %v658, %v662
  %v707 = vmax.f32 %v659, %v663
  %v708 = vmax.f32 %v672, %v676
  %v709 = vmax.f32 %v673, %v677
  %v710 = vmax.f32 %v674, %v678
  %v711 = vmax.f32 %v675, %v679
  %v712 = vmax.f32 %v680, %v696
  %v713 = vmax.f32 %v681, %v697
  %v714 = vmax.f32 %v682, %v698
  %v715 = vmax.f32 %v683, %v699
  %v716 = vmax.f32 %v684, %v700
  %v717 = vmax.f32 %v685, %v701
  %v718 = vmax.f32 %v686, %v702
  %v719 = vmax.f32 %v687, %v703
  %v720 = vmax.f32 %v688, %v704
  %v721 = vmax.f32 %v689, %v705
  %v722 = vmax.f32 %v690, %v706
  %v723 = vmax.f32 %v691, %v707
  %v724 = vmax.f32 %v692, %v708
  %v725 = vmax.f32 %v693, %v709
  %v726 = vmax.f32 %v694, %v710
  %v727 = vmax.f32 %v695, %v711
  %v728 = vpack.c.bf16 %v716, %v712
  %v729 = vpack.c.bf16 %v717, %v713
  %v730 = vpack.c.bf16 %v718, %v714
  %v731 = vpack.c.bf16 %v719, %v715
  %v732 = vpack.c.bf16 %v724, %v720
  %v733 = vpack.c.bf16 %v725, %v721
  %v734 = vpack.c.bf16 %v726, %v722
  %v735 = vpack.c.bf16 %v727, %v723
  %v744 = vunpack.c.l.b16 %v728
  %v745 = vunpack.c.l.b16 %v729
  %v746 = vunpack.c.l.b16 %v730
  %v747 = vunpack.c.l.b16 %v731
  %v748 = vunpack.c.h.b16 %v728
  %v749 = vunpack.c.h.b16 %v729
  %v750 = vunpack.c.h.b16 %v730
  %v751 = vunpack.c.h.b16 %v731
  %v752 = vunpack.c.l.b16 %v732
  %v753 = vunpack.c.l.b16 %v733
  %v754 = vunpack.c.l.b16 %v734
  %v755 = vunpack.c.l.b16 %v735
  %v756 = vunpack.c.h.b16 %v732
  %v757 = vunpack.c.h.b16 %v733
  %v758 = vunpack.c.h.b16 %v734
  %v759 = vunpack.c.h.b16 %v735
  %v760 = vpack.c.b16 %v745, %v744
  %v761 = vpack.c.b16 %v747, %v746
  %v762 = vpack.c.b16 %v749, %v748
  %v763 = vpack.c.b16 %v751, %v750
  %v764 = vpack.c.b16 %v753, %v752
  %v765 = vpack.c.b16 %v755, %v754
  %v766 = vpack.c.b16 %v757, %v756
  %v767 = vpack.c.b16 %v759, %v758
  %776 = vst [vmem:[%s3] sm:$0xff] %v760
  %777 = vst [vmem:[%s3 + $0x8] sm:$0xff] %v761
  %778 = vst [vmem:[%s3 + $0x10] sm:$0xff] %v762
  %779 = vst [vmem:[%s3 + $0x18] sm:$0xff] %v763
  %780 = vst [vmem:[%s3 + $0x20] sm:$0xff] %v764
  %781 = vst [vmem:[%s3 + $0x28] sm:$0xff] %v765
  %782 = vst [vmem:[%s3 + $0x30] sm:$0xff] %v766
  %783 = vst [vmem:[%s3 + $0x38] sm:$0xff] %v767
  // Predicated region
  $region14: #{model_forward.2} parent=0 // pred_check
    _
  $region15: #{model_forward.2} parent=0 // pred_check_branch
    %785 = sbr.rel (0) target = $region17
  $region16: #{model_forward.2} parent=0 // pred_region
    _
  $region17: #{model_forward.2} parent=0 // pred_fallthru
    _
  // Predicated region
  $region18: #{model_forward.2} parent=0 // pred_check
    _
  $region19: #{model_forward.2} parent=0 // pred_check_branch
    %787 = sbr.rel (0) target = $region21
  $region20: #{model_forward.2} parent=0 // pred_region
    _
  $region21: #{model_forward.2} parent=0 // pred_fallthru
    _

// kernel: model_forward.3
$region0: #{model_forward.3}
  #allocation0 [shape = 'u32[]', space=smem, size = 0x4, offset = 0x4, fixed_abs, tag = 'smem constant byte address 0x4 - core index']
  #allocation1 [shape = 'u32[144,128]{1,0:T(1,128)}', space=vmem, size = 0x12000, scoped, tag = 'internal scratch']
  #allocation2 [shape = 'f32[2,1024]{1,0:T(2,128)}', space=vmem, size = 0x2000, scoped, tag = 'scratch operand']
  #allocation3 [shape = 'bf16[5130,64]{1,0:T(8,128)(2,1)}', space=vmem, size = 0x141000, scoped, tag = 'scratch operand']
  #allocation4 [shape = 's32[1]{0}', space=sflag, size = 0x4, scoped, tag = 'scratch operand']
  #allocation5 [shape = 's32[]', space=sflag, size = 0x4, offset = 0, fixed_abs, tag = 'sflag constant byte address 0x0 - dummy sync flag']
  %s0 = inlined_call_operand.vmem [shape: bf16[800,512], index: 0, kind: input, shape index: {}]
  %s1 = inlined_call_operand.vmem [shape: bf16[16,800], index: 1, kind: input, shape index: {}]
  %s2 = inlined_call_operand.vmem [shape: f32[16,1], index: 2, kind: input, shape index: {}]
  %s3 = inlined_call_operand.vmem [shape: bf16[2,5130], index: 3, kind: input, shape index: {}]
  %s4 = inlined_call_operand.vmem [shape: bf16[1024,64], index: 4, kind: input, shape index: {}]
  %s5 = inlined_call_operand.vmem [shape: bf16[5130,64], index: 5, kind: input, shape index: {}]
  %s6 = inlined_call_operand.vmem [shape: f32[1,64], index: 6, kind: input, shape index: {}]
  %s7 = inlined_call_operand.vmem [shape: bf16[64,32], index: 7, kind: input, shape index: {}]
  %s8 = inlined_call_operand.vmem [shape: f32[1,32], index: 8, kind: input, shape index: {}]
  %s9 = inlined_call_operand.vmem [shape: bf16[32,16], index: 9, kind: input, shape index: {}]
  %s10 = inlined_call_operand.vmem [shape: f32[1,16], index: 10, kind: input, shape index: {}]
  %s11 = inlined_call_operand.vmem [shape: bf16[16,2], index: 11, kind: input, shape index: {}]
  %s12 = inlined_call_operand.vmem [shape: f32[1,2], index: 12, kind: input, shape index: {}]
  %s13 = inlined_call_operand.vmem [shape: f32[2,2], index: 13, kind: output, shape index: {}]
  %s14 = sld [smem:[#allocation0]]
  $region92: #{model_forward.3} parent=0
    _
  %s16 = ssub.s32 1, %s14
  %s17 = scalar_select 0, %s16, %s14
  // Predicated region
  $region2: #{model_forward.3} parent=0 // pred_check
    _
  $region3: #{model_forward.3} parent=0 // pred_check_branch
    %19 = sbr.rel (0) target = $region5
  $region4: #{model_forward.3} parent=0 // pred_region
    _
  $region5: #{model_forward.3} parent=0 // pred_fallthru
    _
  // Predicated region
  $region6: #{model_forward.3} parent=0 // pred_check
    _
  $region7: #{model_forward.3} parent=0 // pred_check_branch
    %21 = sbr.rel (0) target = $region9
  $region8: #{model_forward.3} parent=0 // pred_region
    _
  $region9: #{model_forward.3} parent=0 // pred_fallthru
    _
  // Predicated region
  $region10: #{model_forward.3} parent=0 // pred_check
    _
  $region11: #{model_forward.3} parent=0 // pred_check_branch
    %23 = sbr.rel (0) target = $region13
  $region12: #{model_forward.3} parent=0 // pred_region
    _
  $region13: #{model_forward.3} parent=0 // pred_fallthru
    _
  // Predicated region
  $region14: #{model_forward.3} parent=0 // pred_check
    _
  $region15: #{model_forward.3} parent=0 // pred_check_branch
    %25 = sbr.rel (0) target = $region17
  $region16: #{model_forward.3} parent=0 // pred_region
    _
  $region17: #{model_forward.3} parent=0 // pred_fallthru
    _
  // Predicated region
  $region18: #{model_forward.3} parent=0 // pred_check
    _
  $region19: #{model_forward.3} parent=0 // pred_check_branch
    %27 = sbr.rel (0) target = $region21
  $region20: #{model_forward.3} parent=0 // pred_region
    _
  $region21: #{model_forward.3} parent=0 // pred_fallthru
    _
  // Predicated region
  $region22: #{model_forward.3} parent=0 // pred_check
    _
  $region23: #{model_forward.3} parent=0 // pred_check_branch
    %29 = sbr.rel (0) target = $region25
  $region24: #{model_forward.3} parent=0 // pred_region
    _
  $region25: #{model_forward.3} parent=0 // pred_fallthru
    _
  // Predicated region
  $region26: #{model_forward.3} parent=0 // pred_check
    _
  $region27: #{model_forward.3} parent=0 // pred_check_branch
    %31 = sbr.rel (0) target = $region29
  $region28: #{model_forward.3} parent=0 // pred_region
    _
  $region29: #{model_forward.3} parent=0 // pred_fallthru
    _
  // Predicated region
  $region30: #{model_forward.3} parent=0 // pred_check
    _
  $region31: #{model_forward.3} parent=0 // pred_check_branch
    %33 = sbr.rel (0) target = $region33
  $region32: #{model_forward.3} parent=0 // pred_region
    _
  $region33: #{model_forward.3} parent=0 // pred_fallthru
    _
  // Predicated region
  $region34: #{model_forward.3} parent=0 // pred_check
    _
  $region35: #{model_forward.3} parent=0 // pred_check_branch
    %35 = sbr.rel (0) target = $region37
  $region36: #{model_forward.3} parent=0 // pred_region
    _
  $region37: #{model_forward.3} parent=0 // pred_fallthru
    _
  // Predicated region
  $region38: #{model_forward.3} parent=0 // pred_check
    _
  $region39: #{model_forward.3} parent=0 // pred_check_branch
    %37 = sbr.rel (0) target = $region41
  $region40: #{model_forward.3} parent=0 // pred_region
    _
  $region41: #{model_forward.3} parent=0 // pred_fallthru
    _
  // Predicated region
  $region42: #{model_forward.3} parent=0 // pred_check
    _
  $region43: #{model_forward.3} parent=0 // pred_check_branch
    %39 = sbr.rel (0) target = $region45
  $region44: #{model_forward.3} parent=0 // pred_region
    _
  $region45: #{model_forward.3} parent=0 // pred_fallthru
    _
  // Predicated region
  $region46: #{model_forward.3} parent=0 // pred_check
    _
  $region47: #{model_forward.3} parent=0 // pred_check_branch
    %41 = sbr.rel (0) target = $region49
  $region48: #{model_forward.3} parent=0 // pred_region
    _
  $region49: #{model_forward.3} parent=0 // pred_fallthru
    _
  %p44 = scmp.lt.u32.totalorder 2568, 8
  %p45 = pneg %p44
  // Predicated region
  $region50: #{model_forward.3} parent=0 // pred_check
    _
  $region51: #{model_forward.3} parent=0 // pred_check_branch
    %47 = sbr.rel (%p44) target = $region53
  $region52: #{model_forward.3} parent=0 // pred_region
    %s63 = sand.u32 2568, 7
    %p64 = scmp.eq.s32.totalorder %s63, 0
    // Predicated region
    $region65: #{model_forward.3} parent=52 // pred_check
      %p65 = pneg %p64
    $region66: #{model_forward.3} parent=52 // pred_check_branch
      %67 = sbr.rel (%p65) target = $region68
    $region67: #{model_forward.3} parent=52 // pred_region
      loop: start=0, step=1, limit=1
      $region69: #{model_forward.3} parent=67 // loop_pre_header
        _
      $region70: #{model_forward.3} parent=67 // loop_header
        %s69 = sphi 0, %s73
        %p70 = scmp.ge.s32.totalorder %s69, 1
        %s74 = sphi %s5, %s5
        %s75 = sphi [#allocation3], [#allocation3]
      $region71: #{model_forward.3} parent=67 // loop_header_branch
        %72 = sbr.rel (%p70) target = $region75
      $region72: #{model_forward.3} parent=67 // loop_body
        %v76 = vld [vmem:[%s74] sm:$0xff]
        %77 = vst [vmem:[%s75] sm:$0xff] %v76
        %v78 = vld [vmem:[%s74 + $0x8] sm:$0xff]
        %79 = vst [vmem:[%s75 + $0x8] sm:$0xff] %v78
        %v80 = vld [vmem:[%s74 + $0x10] sm:$0xff]
        %81 = vst [vmem:[%s75 + $0x10] sm:$0xff] %v80
        %v82 = vld [vmem:[%s74 + $0x18] sm:$0xff]
        %83 = vst [vmem:[%s75 + $0x18] sm:$0xff] %v82
        %v84 = vld [vmem:[%s74 + $0x20] sm:$0xff]
        %85 = vst [vmem:[%s75 + $0x20] sm:$0xff] %v84
        %v86 = vld [vmem:[%s74 + $0x28] sm:$0xff]
        %87 = vst [vmem:[%s75 + $0x28] sm:$0xff] %v86
        %v88 = vld [vmem:[%s74 + $0x30] sm:$0xff]
        %89 = vst [vmem:[%s75 + $0x30] sm:$0xff] %v88
        %v90 = vld [vmem:[%s74 + $0x38] sm:$0xff]
        %91 = vst [vmem:[%s75 + $0x38] sm:$0xff] %v90
        %v92 = vld [vmem:[%s74 + $0x40] sm:$0xff]
        %93 = vst [vmem:[%s75 + $0x40] sm:$0xff] %v92
        %v94 = vld [vmem:[%s74 + $0x48] sm:$0xff]
        %95 = vst [vmem:[%s75 + $0x48] sm:$0xff] %v94
        %v96 = vld [vmem:[%s74 + $0x50] sm:$0xff]
        %97 = vst [vmem:[%s75 + $0x50] sm:$0xff] %v96
        %v98 = vld [vmem:[%s74 + $0x58] sm:$0xff]
        %99 = vst [vmem:[%s75 + $0x58] sm:$0xff] %v98
        %v100 = vld [vmem:[%s74 + $0x60] sm:$0xff]
        %101 = vst [vmem:[%s75 + $0x60] sm:$0xff] %v100
        %v102 = vld [vmem:[%s74 + $0x68] sm:$0xff]
        %103 = vst [vmem:[%s75 + $0x68] sm:$0xff] %v102
        %v104 = vld [vmem:[%s74 + $0x70] sm:$0xff]
        %105 = vst [vmem:[%s75 + $0x70] sm:$0xff] %v104
        %v106 = vld [vmem:[%s74 + $0x78] sm:$0xff]
        %107 = vst [vmem:[%s75 + $0x78] sm:$0xff] %v106
        %v108 = vld [vmem:[%s74 + $0x80] sm:$0xff]
        %109 = vst [vmem:[%s75 + $0x80] sm:$0xff] %v108
        %v110 = vld [vmem:[%s74 + $0x88] sm:$0xff]
        %111 = vst [vmem:[%s75 + $0x88] sm:$0xff] %v110
        %v112 = vld [vmem:[%s74 + $0x90] sm:$0xff]
        %113 = vst [vmem:[%s75 + $0x90] sm:$0xff] %v112
        %v114 = vld [vmem:[%s74 + $0x98] sm:$0xff]
        %115 = vst [vmem:[%s75 + $0x98] sm:$0xff] %v114
        %v116 = vld [vmem:[%s74 + $0xa0] sm:$0xff]
        %117 = vst [vmem:[%s75 + $0xa0] sm:$0xff] %v116
        %v118 = vld [vmem:[%s74 + $0xa8] sm:$0xff]
        %119 = vst [vmem:[%s75 + $0xa8] sm:$0xff] %v118
        %v120 = vld [vmem:[%s74 + $0xb0] sm:$0xff]
        %121 = vst [vmem:[%s75 + $0xb0] sm:$0xff] %v120
        %v122 = vld [vmem:[%s74 + $0xb8] sm:$0xff]
        %123 = vst [vmem:[%s75 + $0xb8] sm:$0xff] %v122
        %v124 = vld [vmem:[%s74 + $0xc0] sm:$0xff]
        %125 = vst [vmem:[%s75 + $0xc0] sm:$0xff] %v124
        %v126 = vld [vmem:[%s74 + $0xc8] sm:$0xff]
        %127 = vst [vmem:[%s75 + $0xc8] sm:$0xff] %v126
        %v128 = vld [vmem:[%s74 + $0xd0] sm:$0xff]
        %129 = vst [vmem:[%s75 + $0xd0] sm:$0xff] %v128
        %v130 = vld [vmem:[%s74 + $0xd8] sm:$0xff]
        %131 = vst [vmem:[%s75 + $0xd8] sm:$0xff] %v130
        %v132 = vld [vmem:[%s74 + $0xe0] sm:$0xff]
        %133 = vst [vmem:[%s75 + $0xe0] sm:$0xff] %v132
        %v134 = vld [vmem:[%s74 + $0xe8] sm:$0xff]
        %135 = vst [vmem:[%s75 + $0xe8] sm:$0xff] %v134
        %v136 = vld [vmem:[%s74 + $0xf0] sm:$0xff]
        %137 = vst [vmem:[%s75 + $0xf0] sm:$0xff] %v136
        %v138 = vld [vmem:[%s74 + $0xf8] sm:$0xff]
        %139 = vst [vmem:[%s75 + $0xf8] sm:$0xff] %v138
        %v140 = vld [vmem:[%s74 + $0x100] sm:$0xff]
        %141 = vst [vmem:[%s75 + $0x100] sm:$0xff] %v140
        %v142 = vld [vmem:[%s74 + $0x108] sm:$0xff]
        %143 = vst [vmem:[%s75 + $0x108] sm:$0xff] %v142
        %v144 = vld [vmem:[%s74 + $0x110] sm:$0xff]
        %145 = vst [vmem:[%s75 + $0x110] sm:$0xff] %v144
        %v146 = vld [vmem:[%s74 + $0x118] sm:$0xff]
        %147 = vst [vmem:[%s75 + $0x118] sm:$0xff] %v146
        %v148 = vld [vmem:[%s74 + $0x120] sm:$0xff]
        %149 = vst [vmem:[%s75 + $0x120] sm:$0xff] %v148
        %v150 = vld [vmem:[%s74 + $0x128] sm:$0xff]
        %151 = vst [vmem:[%s75 + $0x128] sm:$0xff] %v150
        %v152 = vld [vmem:[%s74 + $0x130] sm:$0xff]
        %153 = vst [vmem:[%s75 + $0x130] sm:$0xff] %v152
        %v154 = vld [vmem:[%s74 + $0x138] sm:$0xff]
        %155 = vst [vmem:[%s75 + $0x138] sm:$0xff] %v154
        %v156 = vld [vmem:[%s74 + $0x140] sm:$0xff]
        %157 = vst [vmem:[%s75 + $0x140] sm:$0xff] %v156
        %v158 = vld [vmem:[%s74 + $0x148] sm:$0xff]
        %159 = vst [vmem:[%s75 + $0x148] sm:$0xff] %v158
        %v160 = vld [vmem:[%s74 + $0x150] sm:$0xff]
        %161 = vst [vmem:[%s75 + $0x150] sm:$0xff] %v160
        %v162 = vld [vmem:[%s74 + $0x158] sm:$0xff]
        %163 = vst [vmem:[%s75 + $0x158] sm:$0xff] %v162
        %v164 = vld [vmem:[%s74 + $0x160] sm:$0xff]
        %165 = vst [vmem:[%s75 + $0x160] sm:$0xff] %v164
        %v166 = vld [vmem:[%s74 + $0x168] sm:$0xff]
        %167 = vst [vmem:[%s75 + $0x168] sm:$0xff] %v166
        %v168 = vld [vmem:[%s74 + $0x170] sm:$0xff]
        %169 = vst [vmem:[%s75 + $0x170] sm:$0xff] %v168
        %v170 = vld [vmem:[%s74 + $0x178] sm:$0xff]
        %171 = vst [vmem:[%s75 + $0x178] sm:$0xff] %v170
        %v172 = vld [vmem:[%s74 + $0x180] sm:$0xff]
        %173 = vst [vmem:[%s75 + $0x180] sm:$0xff] %v172
        %v174 = vld [vmem:[%s74 + $0x188] sm:$0xff]
        %175 = vst [vmem:[%s75 + $0x188] sm:$0xff] %v174
        %v176 = vld [vmem:[%s74 + $0x190] sm:$0xff]
        %177 = vst [vmem:[%s75 + $0x190] sm:$0xff] %v176
        %v178 = vld [vmem:[%s74 + $0x198] sm:$0xff]
        %179 = vst [vmem:[%s75 + $0x198] sm:$0xff] %v178
        %v180 = vld [vmem:[%s74 + $0x1a0] sm:$0xff]
        %181 = vst [vmem:[%s75 + $0x1a0] sm:$0xff] %v180
        %v182 = vld [vmem:[%s74 + $0x1a8] sm:$0xff]
        %183 = vst [vmem:[%s75 + $0x1a8] sm:$0xff] %v182
        %v184 = vld [vmem:[%s74 + $0x1b0] sm:$0xff]
        %185 = vst [vmem:[%s75 + $0x1b0] sm:$0xff] %v184
        %v186 = vld [vmem:[%s74 + $0x1b8] sm:$0xff]
        %187 = vst [vmem:[%s75 + $0x1b8] sm:$0xff] %v186
        %v188 = vld [vmem:[%s74 + $0x1c0] sm:$0xff]
        %189 = vst [vmem:[%s75 + $0x1c0] sm:$0xff] %v188
        %v190 = vld [vmem:[%s74 + $0x1c8] sm:$0xff]
        %191 = vst [vmem:[%s75 + $0x1c8] sm:$0xff] %v190
        %v192 = vld [vmem:[%s74 + $0x1d0] sm:$0xff]
        %193 = vst [vmem:[%s75 + $0x1d0] sm:$0xff] %v192
        %v194 = vld [vmem:[%s74 + $0x1d8] sm:$0xff]
        %195 = vst [vmem:[%s75 + $0x1d8] sm:$0xff] %v194
        %v196 = vld [vmem:[%s74 + $0x1e0] sm:$0xff]
        %197 = vst [vmem:[%s75 + $0x1e0] sm:$0xff] %v196
        %v198 = vld [vmem:[%s74 + $0x1e8] sm:$0xff]
        %199 = vst [vmem:[%s75 + $0x1e8] sm:$0xff] %v198
        %v200 = vld [vmem:[%s74 + $0x1f0] sm:$0xff]
        %201 = vst [vmem:[%s75 + $0x1f0] sm:$0xff] %v200
        %v202 = vld [vmem:[%s74 + $0x1f8] sm:$0xff]
        %203 = vst [vmem:[%s75 + $0x1f8] sm:$0xff] %v202
        %v204 = vld [vmem:[%s74 + $0x200] sm:$0xff]
        %205 = vst [vmem:[%s75 + $0x200] sm:$0xff] %v204
        %v206 = vld [vmem:[%s74 + $0x208] sm:$0xff]
        %207 = vst [vmem:[%s75 + $0x208] sm:$0xff] %v206
        %v208 = vld [vmem:[%s74 + $0x210] sm:$0xff]
        %209 = vst [vmem:[%s75 + $0x210] sm:$0xff] %v208
        %v210 = vld [vmem:[%s74 + $0x218] sm:$0xff]
        %211 = vst [vmem:[%s75 + $0x218] sm:$0xff] %v210
        %v212 = vld [vmem:[%s74 + $0x220] sm:$0xff]
        %213 = vst [vmem:[%s75 + $0x220] sm:$0xff] %v212
        %v214 = vld [vmem:[%s74 + $0x228] sm:$0xff]
        %215 = vst [vmem:[%s75 + $0x228] sm:$0xff] %v214
        %v216 = vld [vmem:[%s74 + $0x230] sm:$0xff]
        %217 = vst [vmem:[%s75 + $0x230] sm:$0xff] %v216
        %v218 = vld [vmem:[%s74 + $0x238] sm:$0xff]
        %219 = vst [vmem:[%s75 + $0x238] sm:$0xff] %v218
        %v220 = vld [vmem:[%s74 + $0x240] sm:$0xff]
        %221 = vst [vmem:[%s75 + $0x240] sm:$0xff] %v220
        %v222 = vld [vmem:[%s74 + $0x248] sm:$0xff]
        %223 = vst [vmem:[%s75 + $0x248] sm:$0xff] %v222
        %v224 = vld [vmem:[%s74 + $0x250] sm:$0xff]
        %225 = vst [vmem:[%s75 + $0x250] sm:$0xff] %v224
        %v226 = vld [vmem:[%s74 + $0x258] sm:$0xff]
        %227 = vst [vmem:[%s75 + $0x258] sm:$0xff] %v226
        %v228 = vld [vmem:[%s74 + $0x260] sm:$0xff]
        %229 = vst [vmem:[%s75 + $0x260] sm:$0xff] %v228
        %v230 = vld [vmem:[%s74 + $0x268] sm:$0xff]
        %231 = vst [vmem:[%s75 + $0x268] sm:$0xff] %v230
        %v232 = vld [vmem:[%s74 + $0x270] sm:$0xff]
        %233 = vst [vmem:[%s75 + $0x270] sm:$0xff] %v232
        %v234 = vld [vmem:[%s74 + $0x278] sm:$0xff]
        %235 = vst [vmem:[%s75 + $0x278] sm:$0xff] %v234
        %v236 = vld [vmem:[%s74 + $0x280] sm:$0xff]
        %237 = vst [vmem:[%s75 + $0x280] sm:$0xff] %v236
        %v238 = vld [vmem:[%s74 + $0x288] sm:$0xff]
        %239 = vst [vmem:[%s75 + $0x288] sm:$0xff] %v238
        %v240 = vld [vmem:[%s74 + $0x290] sm:$0xff]
        %241 = vst [vmem:[%s75 + $0x290] sm:$0xff] %v240
        %v242 = vld [vmem:[%s74 + $0x298] sm:$0xff]
        %243 = vst [vmem:[%s75 + $0x298] sm:$0xff] %v242
        %v244 = vld [vmem:[%s74 + $0x2a0] sm:$0xff]
        %245 = vst [vmem:[%s75 + $0x2a0] sm:$0xff] %v244
        %v246 = vld [vmem:[%s74 + $0x2a8] sm:$0xff]
        %247 = vst [vmem:[%s75 + $0x2a8] sm:$0xff] %v246
        %v248 = vld [vmem:[%s74 + $0x2b0] sm:$0xff]
        %249 = vst [vmem:[%s75 + $0x2b0] sm:$0xff] %v248
        %v250 = vld [vmem:[%s74 + $0x2b8] sm:$0xff]
        %251 = vst [vmem:[%s75 + $0x2b8] sm:$0xff] %v250
        %v252 = vld [vmem:[%s74 + $0x2c0] sm:$0xff]
        %253 = vst [vmem:[%s75 + $0x2c0] sm:$0xff] %v252
        %v254 = vld [vmem:[%s74 + $0x2c8] sm:$0xff]
        %255 = vst [vmem:[%s75 + $0x2c8] sm:$0xff] %v254
        %v256 = vld [vmem:[%s74 + $0x2d0] sm:$0xff]
        %257 = vst [vmem:[%s75 + $0x2d0] sm:$0xff] %v256
        %v258 = vld [vmem:[%s74 + $0x2d8] sm:$0xff]
        %259 = vst [vmem:[%s75 + $0x2d8] sm:$0xff] %v258
        %v260 = vld [vmem:[%s74 + $0x2e0] sm:$0xff]
        %261 = vst [vmem:[%s75 + $0x2e0] sm:$0xff] %v260
        %v262 = vld [vmem:[%s74 + $0x2e8] sm:$0xff]
        %263 = vst [vmem:[%s75 + $0x2e8] sm:$0xff] %v262
        %v264 = vld [vmem:[%s74 + $0x2f0] sm:$0xff]
        %265 = vst [vmem:[%s75 + $0x2f0] sm:$0xff] %v264
        %v266 = vld [vmem:[%s74 + $0x2f8] sm:$0xff]
        %267 = vst [vmem:[%s75 + $0x2f8] sm:$0xff] %v266
        %v268 = vld [vmem:[%s74 + $0x300] sm:$0xff]
        %269 = vst [vmem:[%s75 + $0x300] sm:$0xff] %v268
        %v270 = vld [vmem:[%s74 + $0x308] sm:$0xff]
        %271 = vst [vmem:[%s75 + $0x308] sm:$0xff] %v270
        %v272 = vld [vmem:[%s74 + $0x310] sm:$0xff]
        %273 = vst [vmem:[%s75 + $0x310] sm:$0xff] %v272
        %v274 = vld [vmem:[%s74 + $0x318] sm:$0xff]
        %275 = vst [vmem:[%s75 + $0x318] sm:$0xff] %v274
        %v276 = vld [vmem:[%s74 + $0x320] sm:$0xff]
        %277 = vst [vmem:[%s75 + $0x320] sm:$0xff] %v276
        %v278 = vld [vmem:[%s74 + $0x328] sm:$0xff]
        %279 = vst [vmem:[%s75 + $0x328] sm:$0xff] %v278
        %v280 = vld [vmem:[%s74 + $0x330] sm:$0xff]
        %281 = vst [vmem:[%s75 + $0x330] sm:$0xff] %v280
        %v282 = vld [vmem:[%s74 + $0x338] sm:$0xff]
        %283 = vst [vmem:[%s75 + $0x338] sm:$0xff] %v282
        %v284 = vld [vmem:[%s74 + $0x340] sm:$0xff]
        %285 = vst [vmem:[%s75 + $0x340] sm:$0xff] %v284
        %v286 = vld [vmem:[%s74 + $0x348] sm:$0xff]
        %287 = vst [vmem:[%s75 + $0x348] sm:$0xff] %v286
        %v288 = vld [vmem:[%s74 + $0x350] sm:$0xff]
        %289 = vst [vmem:[%s75 + $0x350] sm:$0xff] %v288
        %v290 = vld [vmem:[%s74 + $0x358] sm:$0xff]
        %291 = vst [vmem:[%s75 + $0x358] sm:$0xff] %v290
        %v292 = vld [vmem:[%s74 + $0x360] sm:$0xff]
        %293 = vst [vmem:[%s75 + $0x360] sm:$0xff] %v292
        %v294 = vld [vmem:[%s74 + $0x368] sm:$0xff]
        %295 = vst [vmem:[%s75 + $0x368] sm:$0xff] %v294
        %v296 = vld [vmem:[%s74 + $0x370] sm:$0xff]
        %297 = vst [vmem:[%s75 + $0x370] sm:$0xff] %v296
        %v298 = vld [vmem:[%s74 + $0x378] sm:$0xff]
        %299 = vst [vmem:[%s75 + $0x378] sm:$0xff] %v298
        %v300 = vld [vmem:[%s74 + $0x380] sm:$0xff]
        %301 = vst [vmem:[%s75 + $0x380] sm:$0xff] %v300
        %v302 = vld [vmem:[%s74 + $0x388] sm:$0xff]
        %303 = vst [vmem:[%s75 + $0x388] sm:$0xff] %v302
        %v304 = vld [vmem:[%s74 + $0x390] sm:$0xff]
        %305 = vst [vmem:[%s75 + $0x390] sm:$0xff] %v304
        %v306 = vld [vmem:[%s74 + $0x398] sm:$0xff]
        %307 = vst [vmem:[%s75 + $0x398] sm:$0xff] %v306
        %v308 = vld [vmem:[%s74 + $0x3a0] sm:$0xff]
        %309 = vst [vmem:[%s75 + $0x3a0] sm:$0xff] %v308
        %v310 = vld [vmem:[%s74 + $0x3a8] sm:$0xff]
        %311 = vst [vmem:[%s75 + $0x3a8] sm:$0xff] %v310
        %v312 = vld [vmem:[%s74 + $0x3b0] sm:$0xff]
        %313 = vst [vmem:[%s75 + $0x3b0] sm:$0xff] %v312
        %v314 = vld [vmem:[%s74 + $0x3b8] sm:$0xff]
        %315 = vst [vmem:[%s75 + $0x3b8] sm:$0xff] %v314
        %v316 = vld [vmem:[%s74 + $0x3c0] sm:$0xff]
        %317 = vst [vmem:[%s75 + $0x3c0] sm:$0xff] %v316
        %v318 = vld [vmem:[%s74 + $0x3c8] sm:$0xff]
        %319 = vst [vmem:[%s75 + $0x3c8] sm:$0xff] %v318
        %v320 = vld [vmem:[%s74 + $0x3d0] sm:$0xff]
        %321 = vst [vmem:[%s75 + $0x3d0] sm:$0xff] %v320
        %v322 = vld [vmem:[%s74 + $0x3d8] sm:$0xff]
        %323 = vst [vmem:[%s75 + $0x3d8] sm:$0xff] %v322
        %v324 = vld [vmem:[%s74 + $0x3e0] sm:$0xff]
        %325 = vst [vmem:[%s75 + $0x3e0] sm:$0xff] %v324
        %v326 = vld [vmem:[%s74 + $0x3e8] sm:$0xff]
        %327 = vst [vmem:[%s75 + $0x3e8] sm:$0xff] %v326
        %v328 = vld [vmem:[%s74 + $0x3f0] sm:$0xff]
        %329 = vst [vmem:[%s75 + $0x3f0] sm:$0xff] %v328
        %v330 = vld [vmem:[%s74 + $0x3f8] sm:$0xff]
        %331 = vst [vmem:[%s75 + $0x3f8] sm:$0xff] %v330
        %v332 = vld [vmem:[%s74 + $0x400] sm:$0xff]
        %333 = vst [vmem:[%s75 + $0x400] sm:$0xff] %v332
        %v334 = vld [vmem:[%s74 + $0x408] sm:$0xff]
        %335 = vst [vmem:[%s75 + $0x408] sm:$0xff] %v334
        %v336 = vld [vmem:[%s74 + $0x410] sm:$0xff]
        %337 = vst [vmem:[%s75 + $0x410] sm:$0xff] %v336
        %v338 = vld [vmem:[%s74 + $0x418] sm:$0xff]
        %339 = vst [vmem:[%s75 + $0x418] sm:$0xff] %v338
        %v340 = vld [vmem:[%s74 + $0x420] sm:$0xff]
        %341 = vst [vmem:[%s75 + $0x420] sm:$0xff] %v340
        %v342 = vld [vmem:[%s74 + $0x428] sm:$0xff]
        %343 = vst [vmem:[%s75 + $0x428] sm:$0xff] %v342
        %v344 = vld [vmem:[%s74 + $0x430] sm:$0xff]
        %345 = vst [vmem:[%s75 + $0x430] sm:$0xff] %v344
        %v346 = vld [vmem:[%s74 + $0x438] sm:$0xff]
        %347 = vst [vmem:[%s75 + $0x438] sm:$0xff] %v346
        %v348 = vld [vmem:[%s74 + $0x440] sm:$0xff]
        %349 = vst [vmem:[%s75 + $0x440] sm:$0xff] %v348
        %v350 = vld [vmem:[%s74 + $0x448] sm:$0xff]
        %351 = vst [vmem:[%s75 + $0x448] sm:$0xff] %v350
        %v352 = vld [vmem:[%s74 + $0x450] sm:$0xff]
        %353 = vst [vmem:[%s75 + $0x450] sm:$0xff] %v352
        %v354 = vld [vmem:[%s74 + $0x458] sm:$0xff]
        %355 = vst [vmem:[%s75 + $0x458] sm:$0xff] %v354
        %v356 = vld [vmem:[%s74 + $0x460] sm:$0xff]
        %357 = vst [vmem:[%s75 + $0x460] sm:$0xff] %v356
        %v358 = vld [vmem:[%s74 + $0x468] sm:$0xff]
        %359 = vst [vmem:[%s75 + $0x468] sm:$0xff] %v358
        %v360 = vld [vmem:[%s74 + $0x470] sm:$0xff]
        %361 = vst [vmem:[%s75 + $0x470] sm:$0xff] %v360
        %v362 = vld [vmem:[%s74 + $0x478] sm:$0xff]
        %363 = vst [vmem:[%s75 + $0x478] sm:$0xff] %v362
        %v364 = vld [vmem:[%s74 + $0x480] sm:$0xff]
        %365 = vst [vmem:[%s75 + $0x480] sm:$0xff] %v364
        %v366 = vld [vmem:[%s74 + $0x488] sm:$0xff]
        %367 = vst [vmem:[%s75 + $0x488] sm:$0xff] %v366
        %v368 = vld [vmem:[%s74 + $0x490] sm:$0xff]
        %369 = vst [vmem:[%s75 + $0x490] sm:$0xff] %v368
        %v370 = vld [vmem:[%s74 + $0x498] sm:$0xff]
        %371 = vst [vmem:[%s75 + $0x498] sm:$0xff] %v370
        %v372 = vld [vmem:[%s74 + $0x4a0] sm:$0xff]
        %373 = vst [vmem:[%s75 + $0x4a0] sm:$0xff] %v372
        %v374 = vld [vmem:[%s74 + $0x4a8] sm:$0xff]
        %375 = vst [vmem:[%s75 + $0x4a8] sm:$0xff] %v374
        %v376 = vld [vmem:[%s74 + $0x4b0] sm:$0xff]
        %377 = vst [vmem:[%s75 + $0x4b0] sm:$0xff] %v376
        %v378 = vld [vmem:[%s74 + $0x4b8] sm:$0xff]
        %379 = vst [vmem:[%s75 + $0x4b8] sm:$0xff] %v378
        %v380 = vld [vmem:[%s74 + $0x4c0] sm:$0xff]
        %381 = vst [vmem:[%s75 + $0x4c0] sm:$0xff] %v380
        %v382 = vld [vmem:[%s74 + $0x4c8] sm:$0xff]
        %383 = vst [vmem:[%s75 + $0x4c8] sm:$0xff] %v382
        %v384 = vld [vmem:[%s74 + $0x4d0] sm:$0xff]
        %385 = vst [vmem:[%s75 + $0x4d0] sm:$0xff] %v384
        %v386 = vld [vmem:[%s74 + $0x4d8] sm:$0xff]
        %387 = vst [vmem:[%s75 + $0x4d8] sm:$0xff] %v386
        %v388 = vld [vmem:[%s74 + $0x4e0] sm:$0xff]
        %389 = vst [vmem:[%s75 + $0x4e0] sm:$0xff] %v388
        %v390 = vld [vmem:[%s74 + $0x4e8] sm:$0xff]
        %391 = vst [vmem:[%s75 + $0x4e8] sm:$0xff] %v390
        %v392 = vld [vmem:[%s74 + $0x4f0] sm:$0xff]
        %393 = vst [vmem:[%s75 + $0x4f0] sm:$0xff] %v392
        %v394 = vld [vmem:[%s74 + $0x4f8] sm:$0xff]
        %395 = vst [vmem:[%s75 + $0x4f8] sm:$0xff] %v394
        %v396 = vld [vmem:[%s74 + $0x500] sm:$0xff]
        %397 = vst [vmem:[%s75 + $0x500] sm:$0xff] %v396
        %v398 = vld [vmem:[%s74 + $0x508] sm:$0xff]
        %399 = vst [vmem:[%s75 + $0x508] sm:$0xff] %v398
        %v400 = vld [vmem:[%s74 + $0x510] sm:$0xff]
        %401 = vst [vmem:[%s75 + $0x510] sm:$0xff] %v400
        %v402 = vld [vmem:[%s74 + $0x518] sm:$0xff]
        %403 = vst [vmem:[%s75 + $0x518] sm:$0xff] %v402
        %v404 = vld [vmem:[%s74 + $0x520] sm:$0xff]
        %405 = vst [vmem:[%s75 + $0x520] sm:$0xff] %v404
        %v406 = vld [vmem:[%s74 + $0x528] sm:$0xff]
        %407 = vst [vmem:[%s75 + $0x528] sm:$0xff] %v406
        %v408 = vld [vmem:[%s74 + $0x530] sm:$0xff]
        %409 = vst [vmem:[%s75 + $0x530] sm:$0xff] %v408
        %v410 = vld [vmem:[%s74 + $0x538] sm:$0xff]
        %411 = vst [vmem:[%s75 + $0x538] sm:$0xff] %v410
        %v412 = vld [vmem:[%s74 + $0x540] sm:$0xff]
        %413 = vst [vmem:[%s75 + $0x540] sm:$0xff] %v412
        %v414 = vld [vmem:[%s74 + $0x548] sm:$0xff]
        %415 = vst [vmem:[%s75 + $0x548] sm:$0xff] %v414
        %v416 = vld [vmem:[%s74 + $0x550] sm:$0xff]
        %417 = vst [vmem:[%s75 + $0x550] sm:$0xff] %v416
        %v418 = vld [vmem:[%s74 + $0x558] sm:$0xff]
        %419 = vst [vmem:[%s75 + $0x558] sm:$0xff] %v418
        %v420 = vld [vmem:[%s74 + $0x560] sm:$0xff]
        %421 = vst [vmem:[%s75 + $0x560] sm:$0xff] %v420
        %v422 = vld [vmem:[%s74 + $0x568] sm:$0xff]
        %423 = vst [vmem:[%s75 + $0x568] sm:$0xff] %v422
        %v424 = vld [vmem:[%s74 + $0x570] sm:$0xff]
        %425 = vst [vmem:[%s75 + $0x570] sm:$0xff] %v424
        %v426 = vld [vmem:[%s74 + $0x578] sm:$0xff]
        %427 = vst [vmem:[%s75 + $0x578] sm:$0xff] %v426
        %v428 = vld [vmem:[%s74 + $0x580] sm:$0xff]
        %429 = vst [vmem:[%s75 + $0x580] sm:$0xff] %v428
        %v430 = vld [vmem:[%s74 + $0x588] sm:$0xff]
        %431 = vst [vmem:[%s75 + $0x588] sm:$0xff] %v430
        %v432 = vld [vmem:[%s74 + $0x590] sm:$0xff]
        %433 = vst [vmem:[%s75 + $0x590] sm:$0xff] %v432
        %v434 = vld [vmem:[%s74 + $0x598] sm:$0xff]
        %435 = vst [vmem:[%s75 + $0x598] sm:$0xff] %v434
        %v436 = vld [vmem:[%s74 + $0x5a0] sm:$0xff]
        %437 = vst [vmem:[%s75 + $0x5a0] sm:$0xff] %v436
        %v438 = vld [vmem:[%s74 + $0x5a8] sm:$0xff]
        %439 = vst [vmem:[%s75 + $0x5a8] sm:$0xff] %v438
        %v440 = vld [vmem:[%s74 + $0x5b0] sm:$0xff]
        %441 = vst [vmem:[%s75 + $0x5b0] sm:$0xff] %v440
        %v442 = vld [vmem:[%s74 + $0x5b8] sm:$0xff]
        %443 = vst [vmem:[%s75 + $0x5b8] sm:$0xff] %v442
        %v444 = vld [vmem:[%s74 + $0x5c0] sm:$0xff]
        %445 = vst [vmem:[%s75 + $0x5c0] sm:$0xff] %v444
        %v446 = vld [vmem:[%s74 + $0x5c8] sm:$0xff]
        %447 = vst [vmem:[%s75 + $0x5c8] sm:$0xff] %v446
        %v448 = vld [vmem:[%s74 + $0x5d0] sm:$0xff]
        %449 = vst [vmem:[%s75 + $0x5d0] sm:$0xff] %v448
        %v450 = vld [vmem:[%s74 + $0x5d8] sm:$0xff]
        %451 = vst [vmem:[%s75 + $0x5d8] sm:$0xff] %v450
        %v452 = vld [vmem:[%s74 + $0x5e0] sm:$0xff]
        %453 = vst [vmem:[%s75 + $0x5e0] sm:$0xff] %v452
        %v454 = vld [vmem:[%s74 + $0x5e8] sm:$0xff]
        %455 = vst [vmem:[%s75 + $0x5e8] sm:$0xff] %v454
        %v456 = vld [vmem:[%s74 + $0x5f0] sm:$0xff]
        %457 = vst [vmem:[%s75 + $0x5f0] sm:$0xff] %v456
        %v458 = vld [vmem:[%s74 + $0x5f8] sm:$0xff]
        %459 = vst [vmem:[%s75 + $0x5f8] sm:$0xff] %v458
        %v460 = vld [vmem:[%s74 + $0x600] sm:$0xff]
        %461 = vst [vmem:[%s75 + $0x600] sm:$0xff] %v460
        %v462 = vld [vmem:[%s74 + $0x608] sm:$0xff]
        %463 = vst [vmem:[%s75 + $0x608] sm:$0xff] %v462
        %v464 = vld [vmem:[%s74 + $0x610] sm:$0xff]
        %465 = vst [vmem:[%s75 + $0x610] sm:$0xff] %v464
        %v466 = vld [vmem:[%s74 + $0x618] sm:$0xff]
        %467 = vst [vmem:[%s75 + $0x618] sm:$0xff] %v466
        %v468 = vld [vmem:[%s74 + $0x620] sm:$0xff]
        %469 = vst [vmem:[%s75 + $0x620] sm:$0xff] %v468
        %v470 = vld [vmem:[%s74 + $0x628] sm:$0xff]
        %471 = vst [vmem:[%s75 + $0x628] sm:$0xff] %v470
        %v472 = vld [vmem:[%s74 + $0x630] sm:$0xff]
        %473 = vst [vmem:[%s75 + $0x630] sm:$0xff] %v472
        %v474 = vld [vmem:[%s74 + $0x638] sm:$0xff]
        %475 = vst [vmem:[%s75 + $0x638] sm:$0xff] %v474
        %v476 = vld [vmem:[%s74 + $0x640] sm:$0xff]
        %477 = vst [vmem:[%s75 + $0x640] sm:$0xff] %v476
        %v478 = vld [vmem:[%s74 + $0x648] sm:$0xff]
        %479 = vst [vmem:[%s75 + $0x648] sm:$0xff] %v478
        %v480 = vld [vmem:[%s74 + $0x650] sm:$0xff]
        %481 = vst [vmem:[%s75 + $0x650] sm:$0xff] %v480
        %v482 = vld [vmem:[%s74 + $0x658] sm:$0xff]
        %483 = vst [vmem:[%s75 + $0x658] sm:$0xff] %v482
        %v484 = vld [vmem:[%s74 + $0x660] sm:$0xff]
        %485 = vst [vmem:[%s75 + $0x660] sm:$0xff] %v484
        %v486 = vld [vmem:[%s74 + $0x668] sm:$0xff]
        %487 = vst [vmem:[%s75 + $0x668] sm:$0xff] %v486
        %v488 = vld [vmem:[%s74 + $0x670] sm:$0xff]
        %489 = vst [vmem:[%s75 + $0x670] sm:$0xff] %v488
        %v490 = vld [vmem:[%s74 + $0x678] sm:$0xff]
        %491 = vst [vmem:[%s75 + $0x678] sm:$0xff] %v490
        %v492 = vld [vmem:[%s74 + $0x680] sm:$0xff]
        %493 = vst [vmem:[%s75 + $0x680] sm:$0xff] %v492
        %v494 = vld [vmem:[%s74 + $0x688] sm:$0xff]
        %495 = vst [vmem:[%s75 + $0x688] sm:$0xff] %v494
        %v496 = vld [vmem:[%s74 + $0x690] sm:$0xff]
        %497 = vst [vmem:[%s75 + $0x690] sm:$0xff] %v496
        %v498 = vld [vmem:[%s74 + $0x698] sm:$0xff]
        %499 = vst [vmem:[%s75 + $0x698] sm:$0xff] %v498
        %v500 = vld [vmem:[%s74 + $0x6a0] sm:$0xff]
        %501 = vst [vmem:[%s75 + $0x6a0] sm:$0xff] %v500
        %v502 = vld [vmem:[%s74 + $0x6a8] sm:$0xff]
        %503 = vst [vmem:[%s75 + $0x6a8] sm:$0xff] %v502
        %v504 = vld [vmem:[%s74 + $0x6b0] sm:$0xff]
        %505 = vst [vmem:[%s75 + $0x6b0] sm:$0xff] %v504
        %v506 = vld [vmem:[%s74 + $0x6b8] sm:$0xff]
        %507 = vst [vmem:[%s75 + $0x6b8] sm:$0xff] %v506
        %v508 = vld [vmem:[%s74 + $0x6c0] sm:$0xff]
        %509 = vst [vmem:[%s75 + $0x6c0] sm:$0xff] %v508
        %v510 = vld [vmem:[%s74 + $0x6c8] sm:$0xff]
        %511 = vst [vmem:[%s75 + $0x6c8] sm:$0xff] %v510
        %v512 = vld [vmem:[%s74 + $0x6d0] sm:$0xff]
        %513 = vst [vmem:[%s75 + $0x6d0] sm:$0xff] %v512
        %v514 = vld [vmem:[%s74 + $0x6d8] sm:$0xff]
        %515 = vst [vmem:[%s75 + $0x6d8] sm:$0xff] %v514
        %v516 = vld [vmem:[%s74 + $0x6e0] sm:$0xff]
        %517 = vst [vmem:[%s75 + $0x6e0] sm:$0xff] %v516
        %v518 = vld [vmem:[%s74 + $0x6e8] sm:$0xff]
        %519 = vst [vmem:[%s75 + $0x6e8] sm:$0xff] %v518
        %v520 = vld [vmem:[%s74 + $0x6f0] sm:$0xff]
        %521 = vst [vmem:[%s75 + $0x6f0] sm:$0xff] %v520
        %v522 = vld [vmem:[%s74 + $0x6f8] sm:$0xff]
        %523 = vst [vmem:[%s75 + $0x6f8] sm:$0xff] %v522
        %v524 = vld [vmem:[%s74 + $0x700] sm:$0xff]
        %525 = vst [vmem:[%s75 + $0x700] sm:$0xff] %v524
        %v526 = vld [vmem:[%s74 + $0x708] sm:$0xff]
        %527 = vst [vmem:[%s75 + $0x708] sm:$0xff] %v526
        %v528 = vld [vmem:[%s74 + $0x710] sm:$0xff]
        %529 = vst [vmem:[%s75 + $0x710] sm:$0xff] %v528
        %v530 = vld [vmem:[%s74 + $0x718] sm:$0xff]
        %531 = vst [vmem:[%s75 + $0x718] sm:$0xff] %v530
        %v532 = vld [vmem:[%s74 + $0x720] sm:$0xff]
        %533 = vst [vmem:[%s75 + $0x720] sm:$0xff] %v532
        %v534 = vld [vmem:[%s74 + $0x728] sm:$0xff]
        %535 = vst [vmem:[%s75 + $0x728] sm:$0xff] %v534
        %v536 = vld [vmem:[%s74 + $0x730] sm:$0xff]
        %537 = vst [vmem:[%s75 + $0x730] sm:$0xff] %v536
        %v538 = vld [vmem:[%s74 + $0x738] sm:$0xff]
        %539 = vst [vmem:[%s75 + $0x738] sm:$0xff] %v538
        %v540 = vld [vmem:[%s74 + $0x740] sm:$0xff]
        %541 = vst [vmem:[%s75 + $0x740] sm:$0xff] %v540
        %v542 = vld [vmem:[%s74 + $0x748] sm:$0xff]
        %543 = vst [vmem:[%s75 + $0x748] sm:$0xff] %v542
        %v544 = vld [vmem:[%s74 + $0x750] sm:$0xff]
        %545 = vst [vmem:[%s75 + $0x750] sm:$0xff] %v544
        %v546 = vld [vmem:[%s74 + $0x758] sm:$0xff]
        %547 = vst [vmem:[%s75 + $0x758] sm:$0xff] %v546
        %v548 = vld [vmem:[%s74 + $0x760] sm:$0xff]
        %549 = vst [vmem:[%s75 + $0x760] sm:$0xff] %v548
        %v550 = vld [vmem:[%s74 + $0x768] sm:$0xff]
        %551 = vst [vmem:[%s75 + $0x768] sm:$0xff] %v550
        %v552 = vld [vmem:[%s74 + $0x770] sm:$0xff]
        %553 = vst [vmem:[%s75 + $0x770] sm:$0xff] %v552
        %v554 = vld [vmem:[%s74 + $0x778] sm:$0xff]
        %555 = vst [vmem:[%s75 + $0x778] sm:$0xff] %v554
        %v556 = vld [vmem:[%s74 + $0x780] sm:$0xff]
        %557 = vst [vmem:[%s75 + $0x780] sm:$0xff] %v556
        %v558 = vld [vmem:[%s74 + $0x788] sm:$0xff]
        %559 = vst [vmem:[%s75 + $0x788] sm:$0xff] %v558
        %v560 = vld [vmem:[%s74 + $0x790] sm:$0xff]
        %561 = vst [vmem:[%s75 + $0x790] sm:$0xff] %v560
        %v562 = vld [vmem:[%s74 + $0x798] sm:$0xff]
        %563 = vst [vmem:[%s75 + $0x798] sm:$0xff] %v562
        %v564 = vld [vmem:[%s74 + $0x7a0] sm:$0xff]
        %565 = vst [vmem:[%s75 + $0x7a0] sm:$0xff] %v564
        %v566 = vld [vmem:[%s74 + $0x7a8] sm:$0xff]
        %567 = vst [vmem:[%s75 + $0x7a8] sm:$0xff] %v566
        %v568 = vld [vmem:[%s74 + $0x7b0] sm:$0xff]
        %569 = vst [vmem:[%s75 + $0x7b0] sm:$0xff] %v568
        %v570 = vld [vmem:[%s74 + $0x7b8] sm:$0xff]
        %571 = vst [vmem:[%s75 + $0x7b8] sm:$0xff] %v570
        %v572 = vld [vmem:[%s74 + $0x7c0] sm:$0xff]
        %573 = vst [vmem:[%s75 + $0x7c0] sm:$0xff] %v572
        %v574 = vld [vmem:[%s74 + $0x7c8] sm:$0xff]
        %575 = vst [vmem:[%s75 + $0x7c8] sm:$0xff] %v574
        %v576 = vld [vmem:[%s74 + $0x7d0] sm:$0xff]
        %577 = vst [vmem:[%s75 + $0x7d0] sm:$0xff] %v576
        %v578 = vld [vmem:[%s74 + $0x7d8] sm:$0xff]
        %579 = vst [vmem:[%s75 + $0x7d8] sm:$0xff] %v578
        %v580 = vld [vmem:[%s74 + $0x7e0] sm:$0xff]
        %581 = vst [vmem:[%s75 + $0x7e0] sm:$0xff] %v580
        %v582 = vld [vmem:[%s74 + $0x7e8] sm:$0xff]
        %583 = vst [vmem:[%s75 + $0x7e8] sm:$0xff] %v582
        %v584 = vld [vmem:[%s74 + $0x7f0] sm:$0xff]
        %585 = vst [vmem:[%s75 + $0x7f0] sm:$0xff] %v584
        %v586 = vld [vmem:[%s74 + $0x7f8] sm:$0xff]
        %587 = vst [vmem:[%s75 + $0x7f8] sm:$0xff] %v586
        %v588 = vld [vmem:[%s74 + $0x800] sm:$0xff]
        %589 = vst [vmem:[%s75 + $0x800] sm:$0xff] %v588
        %v590 = vld [vmem:[%s74 + $0x808] sm:$0xff]
        %591 = vst [vmem:[%s75 + $0x808] sm:$0xff] %v590
        %v592 = vld [vmem:[%s74 + $0x810] sm:$0xff]
        %593 = vst [vmem:[%s75 + $0x810] sm:$0xff] %v592
        %v594 = vld [vmem:[%s74 + $0x818] sm:$0xff]
        %595 = vst [vmem:[%s75 + $0x818] sm:$0xff] %v594
        %v596 = vld [vmem:[%s74 + $0x820] sm:$0xff]
        %597 = vst [vmem:[%s75 + $0x820] sm:$0xff] %v596
        %v598 = vld [vmem:[%s74 + $0x828] sm:$0xff]
        %599 = vst [vmem:[%s75 + $0x828] sm:$0xff] %v598
        %v600 = vld [vmem:[%s74 + $0x830] sm:$0xff]
        %601 = vst [vmem:[%s75 + $0x830] sm:$0xff] %v600
        %v602 = vld [vmem:[%s74 + $0x838] sm:$0xff]
        %603 = vst [vmem:[%s75 + $0x838] sm:$0xff] %v602
        %v604 = vld [vmem:[%s74 + $0x840] sm:$0xff]
        %605 = vst [vmem:[%s75 + $0x840] sm:$0xff] %v604
        %v606 = vld [vmem:[%s74 + $0x848] sm:$0xff]
        %607 = vst [vmem:[%s75 + $0x848] sm:$0xff] %v606
        %v608 = vld [vmem:[%s74 + $0x850] sm:$0xff]
        %609 = vst [vmem:[%s75 + $0x850] sm:$0xff] %v608
        %v610 = vld [vmem:[%s74 + $0x858] sm:$0xff]
        %611 = vst [vmem:[%s75 + $0x858] sm:$0xff] %v610
        %v612 = vld [vmem:[%s74 + $0x860] sm:$0xff]
        %613 = vst [vmem:[%s75 + $0x860] sm:$0xff] %v612
        %v614 = vld [vmem:[%s74 + $0x868] sm:$0xff]
        %615 = vst [vmem:[%s75 + $0x868] sm:$0xff] %v614
        %v616 = vld [vmem:[%s74 + $0x870] sm:$0xff]
        %617 = vst [vmem:[%s75 + $0x870] sm:$0xff] %v616
        %v618 = vld [vmem:[%s74 + $0x878] sm:$0xff]
        %619 = vst [vmem:[%s75 + $0x878] sm:$0xff] %v618
        %v620 = vld [vmem:[%s74 + $0x880] sm:$0xff]
        %621 = vst [vmem:[%s75 + $0x880] sm:$0xff] %v620
        %v622 = vld [vmem:[%s74 + $0x888] sm:$0xff]
        %623 = vst [vmem:[%s75 + $0x888] sm:$0xff] %v622
        %v624 = vld [vmem:[%s74 + $0x890] sm:$0xff]
        %625 = vst [vmem:[%s75 + $0x890] sm:$0xff] %v624
        %v626 = vld [vmem:[%s74 + $0x898] sm:$0xff]
        %627 = vst [vmem:[%s75 + $0x898] sm:$0xff] %v626
        %v628 = vld [vmem:[%s74 + $0x8a0] sm:$0xff]
        %629 = vst [vmem:[%s75 + $0x8a0] sm:$0xff] %v628
        %v630 = vld [vmem:[%s74 + $0x8a8] sm:$0xff]
        %631 = vst [vmem:[%s75 + $0x8a8] sm:$0xff] %v630
        %v632 = vld [vmem:[%s74 + $0x8b0] sm:$0xff]
        %633 = vst [vmem:[%s75 + $0x8b0] sm:$0xff] %v632
        %v634 = vld [vmem:[%s74 + $0x8b8] sm:$0xff]
        %635 = vst [vmem:[%s75 + $0x8b8] sm:$0xff] %v634
        %v636 = vld [vmem:[%s74 + $0x8c0] sm:$0xff]
        %637 = vst [vmem:[%s75 + $0x8c0] sm:$0xff] %v636
        %v638 = vld [vmem:[%s74 + $0x8c8] sm:$0xff]
        %639 = vst [vmem:[%s75 + $0x8c8] sm:$0xff] %v638
        %v640 = vld [vmem:[%s74 + $0x8d0] sm:$0xff]
        %641 = vst [vmem:[%s75 + $0x8d0] sm:$0xff] %v640
        %v642 = vld [vmem:[%s74 + $0x8d8] sm:$0xff]
        %643 = vst [vmem:[%s75 + $0x8d8] sm:$0xff] %v642
        %v644 = vld [vmem:[%s74 + $0x8e0] sm:$0xff]
        %645 = vst [vmem:[%s75 + $0x8e0] sm:$0xff] %v644
        %v646 = vld [vmem:[%s74 + $0x8e8] sm:$0xff]
        %647 = vst [vmem:[%s75 + $0x8e8] sm:$0xff] %v646
        %v648 = vld [vmem:[%s74 + $0x8f0] sm:$0xff]
        %649 = vst [vmem:[%s75 + $0x8f0] sm:$0xff] %v648
        %v650 = vld [vmem:[%s74 + $0x8f8] sm:$0xff]
        %651 = vst [vmem:[%s75 + $0x8f8] sm:$0xff] %v650
        %v652 = vld [vmem:[%s74 + $0x900] sm:$0xff]
        %653 = vst [vmem:[%s75 + $0x900] sm:$0xff] %v652
        %v654 = vld [vmem:[%s74 + $0x908] sm:$0xff]
        %655 = vst [vmem:[%s75 + $0x908] sm:$0xff] %v654
        %v656 = vld [vmem:[%s74 + $0x910] sm:$0xff]
        %657 = vst [vmem:[%s75 + $0x910] sm:$0xff] %v656
        %v658 = vld [vmem:[%s74 + $0x918] sm:$0xff]
        %659 = vst [vmem:[%s75 + $0x918] sm:$0xff] %v658
        %v660 = vld [vmem:[%s74 + $0x920] sm:$0xff]
        %661 = vst [vmem:[%s75 + $0x920] sm:$0xff] %v660
        %v662 = vld [vmem:[%s74 + $0x928] sm:$0xff]
        %663 = vst [vmem:[%s75 + $0x928] sm:$0xff] %v662
        %v664 = vld [vmem:[%s74 + $0x930] sm:$0xff]
        %665 = vst [vmem:[%s75 + $0x930] sm:$0xff] %v664
        %v666 = vld [vmem:[%s74 + $0x938] sm:$0xff]
        %667 = vst [vmem:[%s75 + $0x938] sm:$0xff] %v666
        %v668 = vld [vmem:[%s74 + $0x940] sm:$0xff]
        %669 = vst [vmem:[%s75 + $0x940] sm:$0xff] %v668
        %v670 = vld [vmem:[%s74 + $0x948] sm:$0xff]
        %671 = vst [vmem:[%s75 + $0x948] sm:$0xff] %v670
        %v672 = vld [vmem:[%s74 + $0x950] sm:$0xff]
        %673 = vst [vmem:[%s75 + $0x950] sm:$0xff] %v672
        %v674 = vld [vmem:[%s74 + $0x958] sm:$0xff]
        %675 = vst [vmem:[%s75 + $0x958] sm:$0xff] %v674
        %v676 = vld [vmem:[%s74 + $0x960] sm:$0xff]
        %677 = vst [vmem:[%s75 + $0x960] sm:$0xff] %v676
        %v678 = vld [vmem:[%s74 + $0x968] sm:$0xff]
        %679 = vst [vmem:[%s75 + $0x968] sm:$0xff] %v678
        %v680 = vld [vmem:[%s74 + $0x970] sm:$0xff]
        %681 = vst [vmem:[%s75 + $0x970] sm:$0xff] %v680
        %v682 = vld [vmem:[%s74 + $0x978] sm:$0xff]
        %683 = vst [vmem:[%s75 + $0x978] sm:$0xff] %v682
        %v684 = vld [vmem:[%s74 + $0x980] sm:$0xff]
        %685 = vst [vmem:[%s75 + $0x980] sm:$0xff] %v684
        %v686 = vld [vmem:[%s74 + $0x988] sm:$0xff]
        %687 = vst [vmem:[%s75 + $0x988] sm:$0xff] %v686
        %v688 = vld [vmem:[%s74 + $0x990] sm:$0xff]
        %689 = vst [vmem:[%s75 + $0x990] sm:$0xff] %v688
        %v690 = vld [vmem:[%s74 + $0x998] sm:$0xff]
        %691 = vst [vmem:[%s75 + $0x998] sm:$0xff] %v690
        %v692 = vld [vmem:[%s74 + $0x9a0] sm:$0xff]
        %693 = vst [vmem:[%s75 + $0x9a0] sm:$0xff] %v692
        %v694 = vld [vmem:[%s74 + $0x9a8] sm:$0xff]
        %695 = vst [vmem:[%s75 + $0x9a8] sm:$0xff] %v694
        %v696 = vld [vmem:[%s74 + $0x9b0] sm:$0xff]
        %697 = vst [vmem:[%s75 + $0x9b0] sm:$0xff] %v696
        %v698 = vld [vmem:[%s74 + $0x9b8] sm:$0xff]
        %699 = vst [vmem:[%s75 + $0x9b8] sm:$0xff] %v698
        %v700 = vld [vmem:[%s74 + $0x9c0] sm:$0xff]
        %701 = vst [vmem:[%s75 + $0x9c0] sm:$0xff] %v700
        %v702 = vld [vmem:[%s74 + $0x9c8] sm:$0xff]
        %703 = vst [vmem:[%s75 + $0x9c8] sm:$0xff] %v702
        %v704 = vld [vmem:[%s74 + $0x9d0] sm:$0xff]
        %705 = vst [vmem:[%s75 + $0x9d0] sm:$0xff] %v704
        %v706 = vld [vmem:[%s74 + $0x9d8] sm:$0xff]
        %707 = vst [vmem:[%s75 + $0x9d8] sm:$0xff] %v706
        %v708 = vld [vmem:[%s74 + $0x9e0] sm:$0xff]
        %709 = vst [vmem:[%s75 + $0x9e0] sm:$0xff] %v708
        %v710 = vld [vmem:[%s74 + $0x9e8] sm:$0xff]
        %711 = vst [vmem:[%s75 + $0x9e8] sm:$0xff] %v710
        %v712 = vld [vmem:[%s74 + $0x9f0] sm:$0xff]
        %713 = vst [vmem:[%s75 + $0x9f0] sm:$0xff] %v712
        %v714 = vld [vmem:[%s74 + $0x9f8] sm:$0xff]
        %715 = vst [vmem:[%s75 + $0x9f8] sm:$0xff] %v714
        %v716 = vld [vmem:[%s74 + $0xa00] sm:$0xff]
        %717 = vst [vmem:[%s75 + $0xa00] sm:$0xff] %v716
      $region73: #{model_forward.3} parent=67 // loop_footer
        %s73 = sadd.s32 1, %s69
      $region74: #{model_forward.3} parent=67 // loop_footer_branch
        %68 = sbr.rel target = $region70
      $region75: #{model_forward.3} parent=67 // loop_exit
        _
    $region68: #{model_forward.3} parent=52 // pred_fallthru
      _
    %p718 = pneg %p64
    // Predicated region
    $region76: #{model_forward.3} parent=52 // pred_check
      _
    $region77: #{model_forward.3} parent=52 // pred_check_branch
      %720 = sbr.rel (%p64) target = $region79
    $region78: #{model_forward.3} parent=52 // pred_region
      %s721 = sand.u32 2568, 7
    $region79: #{model_forward.3} parent=52 // pred_fallthru
      _
  $region53: #{model_forward.3} parent=0 // pred_fallthru
    _
  // Predicated region
  $region54: #{model_forward.3} parent=0 // pred_check
    %p48 = pneg %p44
  $region55: #{model_forward.3} parent=0 // pred_check_branch
    %50 = sbr.rel (%p48) target = $region57
  $region56: #{model_forward.3} parent=0 // pred_region
    %s51 = sshll.u32 1, 2568
    %s52 = ssub.s32 %s51, 1
    loop: start=0, step=1, limit=1
    $region58: #{model_forward.3} parent=56 // loop_pre_header
      _
    $region59: #{model_forward.3} parent=56 // loop_header
      %s54 = sphi 0, %s58
      %p55 = scmp.ge.s32.totalorder %s54, 1
      %s59 = sphi %s5, %s5
      %s60 = sphi [#allocation3], [#allocation3]
    $region60: #{model_forward.3} parent=56 // loop_header_branch
      %57 = sbr.rel (%p55) target = $region64
    $region61: #{model_forward.3} parent=56 // loop_body
      %v61 = vld [vmem:[%s59] sm:%s52]
      %62 = vst [vmem:[%s60] sm:%s52] %v61
    $region62: #{model_forward.3} parent=56 // loop_footer
      %s58 = sadd.s32 1, %s54
    $region63: #{model_forward.3} parent=56 // loop_footer_branch
      %53 = sbr.rel target = $region59
    $region64: #{model_forward.3} parent=56 // loop_exit
      _
  $region57: #{model_forward.3} parent=0 // pred_fallthru
    _
  // Predicated region
  $region80: #{model_forward.3} parent=0 // pred_check
    _
  $region81: #{model_forward.3} parent=0 // pred_check_branch
    %724 = sbr.rel (0) target = $region83
  $region82: #{model_forward.3} parent=0 // pred_region
    %725 = vsyncadd [#allocation4], 41088
  $region83: #{model_forward.3} parent=0 // pred_fallthru
    _
  %v726 = vld [vmem:[%s1] sm:$0xff]
  %v727 = vld [vmem:[%s1 + $0x8] sm:$0xff]
  %v728 = vld [vmem:[%s1 + $0x10] sm:$0xff]
  %v729 = vld [vmem:[%s1 + $0x18] sm:$0xf]
  %v730 = vld [vmem:[%s1 + $0x1c] sm:$0xff]
  %v731 = vld [vmem:[%s1 + $0x24] sm:$0xff]
  %v732 = vld [vmem:[%s1 + $0x2c] sm:$0xff]
  %v733 = vld [vmem:[%s1 + $0x34] sm:$0xf]
  %v734 = vld [vmem:[%s0] sm:$0xff]
  %v735 = vld [vmem:[%s0 + $0x8] sm:$0xff]
  %v736 = vld [vmem:[%s0 + $0x10] sm:$0xff]
  %v737 = vld [vmem:[%s0 + $0x18] sm:$0xff]
  %v738 = vld [vmem:[%s0 + $0x20] sm:$0xff]
  %v739 = vld [vmem:[%s0 + $0x28] sm:$0xff]
  %v740 = vld [vmem:[%s0 + $0x30] sm:$0xff]
  %v741 = vld [vmem:[%s0 + $0x38] sm:$0xff]
  %v742 = vld [vmem:[%s0 + $0x40] sm:$0xff]
  %v743 = vld [vmem:[%s0 + $0x48] sm:$0xff]
  %v744 = vld [vmem:[%s0 + $0x50] sm:$0xff]
  %v745 = vld [vmem:[%s0 + $0x58] sm:$0xff]
  %v746 = vld [vmem:[%s0 + $0x60] sm:$0xff]
  %v747 = vld [vmem:[%s0 + $0x68] sm:$0xff]
  %v748 = vld [vmem:[%s0 + $0x70] sm:$0xff]
  %v749 = vld [vmem:[%s0 + $0x78] sm:$0xff]
  %v750 = vld [vmem:[%s0 + $0x80] sm:$0xff]
  %v751 = vld [vmem:[%s0 + $0x88] sm:$0xff]
  %v752 = vld [vmem:[%s0 + $0x90] sm:$0xff]
  %v753 = vld [vmem:[%s0 + $0x98] sm:$0xff]
  %v754 = vld [vmem:[%s0 + $0xa0] sm:$0xff]
  %v755 = vld [vmem:[%s0 + $0xa8] sm:$0xff]
  %v756 = vld [vmem:[%s0 + $0xb0] sm:$0xff]
  %v757 = vld [vmem:[%s0 + $0xb8] sm:$0xff]
  %v758 = vld [vmem:[%s0 + $0xc0] sm:$0xff]
  %v759 = vld [vmem:[%s0 + $0xc8] sm:$0xff]
  %v760 = vld [vmem:[%s0 + $0xd0] sm:$0xff]
  %v761 = vld [vmem:[%s0 + $0xd8] sm:$0xff]
  %v762 = vld [vmem:[%s0 + $0xe0] sm:$0xff]
  %v763 = vld [vmem:[%s0 + $0xe8] sm:$0xff]
  %v764 = vld [vmem:[%s0 + $0xf0] sm:$0xff]
  %v765 = vld [vmem:[%s0 + $0xf8] sm:$0xff]
  %v766 = vld [vmem:[%s0 + $0x100] sm:$0xff]
  %v767 = vld [vmem:[%s0 + $0x108] sm:$0xff]
  %v768 = vld [vmem:[%s0 + $0x110] sm:$0xff]
  %v769 = vld [vmem:[%s0 + $0x118] sm:$0xff]
  %v770 = vld [vmem:[%s0 + $0x120] sm:$0xff]
  %v771 = vld [vmem:[%s0 + $0x128] sm:$0xff]
  %v772 = vld [vmem:[%s0 + $0x130] sm:$0xff]
  %v773 = vld [vmem:[%s0 + $0x138] sm:$0xff]
  %v774 = vld [vmem:[%s0 + $0x140] sm:$0xff]
  %v775 = vld [vmem:[%s0 + $0x148] sm:$0xff]
  %v776 = vld [vmem:[%s0 + $0x150] sm:$0xff]
  %v777 = vld [vmem:[%s0 + $0x158] sm:$0xff]
  %v778 = vld [vmem:[%s0 + $0x160] sm:$0xff]
  %v779 = vld [vmem:[%s0 + $0x168] sm:$0xff]
  %v780 = vld [vmem:[%s0 + $0x170] sm:$0xff]
  %v781 = vld [vmem:[%s0 + $0x178] sm:$0xff]
  %v782 = vld [vmem:[%s0 + $0x180] sm:$0xff]
  %v783 = vld [vmem:[%s0 + $0x188] sm:$0xff]
  %v784 = vld [vmem:[%s0 + $0x190] sm:$0xff]
  %v785 = vld [vmem:[%s0 + $0x198] sm:$0xff]
  %v786 = vld [vmem:[%s0 + $0x1a0] sm:$0xff]
  %v787 = vld [vmem:[%s0 + $0x1a8] sm:$0xff]
  %v788 = vld [vmem:[%s0 + $0x1b0] sm:$0xff]
  %v789 = vld [vmem:[%s0 + $0x1b8] sm:$0xff]
  %v790 = vld [vmem:[%s0 + $0x1c0] sm:$0xff]
  %v791 = vld [vmem:[%s0 + $0x1c8] sm:$0xff]
  %v792 = vld [vmem:[%s0 + $0x1d0] sm:$0xff]
  %v793 = vld [vmem:[%s0 + $0x1d8] sm:$0xff]
  %v794 = vld [vmem:[%s0 + $0x1e0] sm:$0xff]
  %v795 = vld [vmem:[%s0 + $0x1e8] sm:$0xff]
  %v796 = vld [vmem:[%s0 + $0x1f0] sm:$0xff]
  %v797 = vld [vmem:[%s0 + $0x1f8] sm:$0xff]
  %v798 = vld [vmem:[%s0 + $0x200] sm:$0xff]
  %v799 = vld [vmem:[%s0 + $0x208] sm:$0xff]
  %v800 = vld [vmem:[%s0 + $0x210] sm:$0xff]
  %v801 = vld [vmem:[%s0 + $0x218] sm:$0xff]
  %v802 = vld [vmem:[%s0 + $0x220] sm:$0xff]
  %v803 = vld [vmem:[%s0 + $0x228] sm:$0xff]
  %v804 = vld [vmem:[%s0 + $0x230] sm:$0xff]
  %v805 = vld [vmem:[%s0 + $0x238] sm:$0xff]
  %v806 = vld [vmem:[%s0 + $0x240] sm:$0xff]
  %v807 = vld [vmem:[%s0 + $0x248] sm:$0xff]
  %v808 = vld [vmem:[%s0 + $0x250] sm:$0xff]
  %v809 = vld [vmem:[%s0 + $0x258] sm:$0xff]
  %v810 = vld [vmem:[%s0 + $0x260] sm:$0xff]
  %v811 = vld [vmem:[%s0 + $0x268] sm:$0xff]
  %v812 = vld [vmem:[%s0 + $0x270] sm:$0xff]
  %v813 = vld [vmem:[%s0 + $0x278] sm:$0xff]
  %v814 = vld [vmem:[%s0 + $0x280] sm:$0xff]
  %v815 = vld [vmem:[%s0 + $0x288] sm:$0xff]
  %v816 = vld [vmem:[%s0 + $0x290] sm:$0xff]
  %v817 = vld [vmem:[%s0 + $0x298] sm:$0xff]
  %v818 = vld [vmem:[%s0 + $0x2a0] sm:$0xff]
  %v819 = vld [vmem:[%s0 + $0x2a8] sm:$0xff]
  %v820 = vld [vmem:[%s0 + $0x2b0] sm:$0xff]
  %v821 = vld [vmem:[%s0 + $0x2b8] sm:$0xff]
  %v822 = vld [vmem:[%s0 + $0x2c0] sm:$0xff]
  %v823 = vld [vmem:[%s0 + $0x2c8] sm:$0xff]
  %v824 = vld [vmem:[%s0 + $0x2d0] sm:$0xff]
  %v825 = vld [vmem:[%s0 + $0x2d8] sm:$0xff]
  %v826 = vld [vmem:[%s0 + $0x2e0] sm:$0xff]
  %v827 = vld [vmem:[%s0 + $0x2e8] sm:$0xff]
  %v828 = vld [vmem:[%s0 + $0x2f0] sm:$0xff]
  %v829 = vld [vmem:[%s0 + $0x2f8] sm:$0xff]
  %v830 = vld [vmem:[%s0 + $0x300] sm:$0xff]
  %v831 = vld [vmem:[%s0 + $0x308] sm:$0xff]
  %v832 = vld [vmem:[%s0 + $0x310] sm:$0xff]
  %v833 = vld [vmem:[%s0 + $0x318] sm:$0xff]
  %v834 = vld [vmem:[%s0 + $0x320] sm:$0xff]
  %v835 = vld [vmem:[%s0 + $0x328] sm:$0xff]
  %v836 = vld [vmem:[%s0 + $0x330] sm:$0xff]
  %v837 = vld [vmem:[%s0 + $0x338] sm:$0xff]
  %v838 = vld [vmem:[%s0 + $0x340] sm:$0xff]
  %v839 = vld [vmem:[%s0 + $0x348] sm:$0xff]
  %v840 = vld [vmem:[%s0 + $0x350] sm:$0xff]
  %v841 = vld [vmem:[%s0 + $0x358] sm:$0xff]
  %v842 = vld [vmem:[%s0 + $0x360] sm:$0xff]
  %v843 = vld [vmem:[%s0 + $0x368] sm:$0xff]
  %v844 = vld [vmem:[%s0 + $0x370] sm:$0xff]
  %v845 = vld [vmem:[%s0 + $0x378] sm:$0xff]
  %v846 = vld [vmem:[%s0 + $0x380] sm:$0xff]
  %v847 = vld [vmem:[%s0 + $0x388] sm:$0xff]
  %v848 = vld [vmem:[%s0 + $0x390] sm:$0xff]
  %v849 = vld [vmem:[%s0 + $0x398] sm:$0xff]
  %v850 = vld [vmem:[%s0 + $0x3a0] sm:$0xff]
  %v851 = vld [vmem:[%s0 + $0x3a8] sm:$0xff]
  %v852 = vld [vmem:[%s0 + $0x3b0] sm:$0xff]
  %v853 = vld [vmem:[%s0 + $0x3b8] sm:$0xff]
  %v854 = vld [vmem:[%s0 + $0x3c0] sm:$0xff]
  %v855 = vld [vmem:[%s0 + $0x3c8] sm:$0xff]
  %v856 = vld [vmem:[%s0 + $0x3d0] sm:$0xff]
  %v857 = vld [vmem:[%s0 + $0x3d8] sm:$0xff]
  %v858 = vld [vmem:[%s0 + $0x3e0] sm:$0xff]
  %v859 = vld [vmem:[%s0 + $0x3e8] sm:$0xff]
  %v860 = vld [vmem:[%s0 + $0x3f0] sm:$0xff]
  %v861 = vld [vmem:[%s0 + $0x3f8] sm:$0xff]
  %v862 = vld [vmem:[%s0 + $0x400] sm:$0xff]
  %v863 = vld [vmem:[%s0 + $0x408] sm:$0xff]
  %v864 = vld [vmem:[%s0 + $0x410] sm:$0xff]
  %v865 = vld [vmem:[%s0 + $0x418] sm:$0xff]
  %v866 = vld [vmem:[%s0 + $0x420] sm:$0xff]
  %v867 = vld [vmem:[%s0 + $0x428] sm:$0xff]
  %v868 = vld [vmem:[%s0 + $0x430] sm:$0xff]
  %v869 = vld [vmem:[%s0 + $0x438] sm:$0xff]
  %v870 = vld [vmem:[%s0 + $0x440] sm:$0xff]
  %v871 = vld [vmem:[%s0 + $0x448] sm:$0xff]
  %v872 = vld [vmem:[%s0 + $0x450] sm:$0xff]
  %v873 = vld [vmem:[%s0 + $0x458] sm:$0xff]
  %v874 = vld [vmem:[%s0 + $0x460] sm:$0xff]
  %v875 = vld [vmem:[%s0 + $0x468] sm:$0xff]
  %v876 = vld [vmem:[%s0 + $0x470] sm:$0xff]
  %v877 = vld [vmem:[%s0 + $0x478] sm:$0xff]
  %v878 = vld [vmem:[%s0 + $0x480] sm:$0xff]
  %v879 = vld [vmem:[%s0 + $0x488] sm:$0xff]
  %v880 = vld [vmem:[%s0 + $0x490] sm:$0xff]
  %v881 = vld [vmem:[%s0 + $0x498] sm:$0xff]
  %v882 = vld [vmem:[%s0 + $0x4a0] sm:$0xff]
  %v883 = vld [vmem:[%s0 + $0x4a8] sm:$0xff]
  %v884 = vld [vmem:[%s0 + $0x4b0] sm:$0xff]
  %v885 = vld [vmem:[%s0 + $0x4b8] sm:$0xff]
  %v886 = vld [vmem:[%s0 + $0x4c0] sm:$0xff]
  %v887 = vld [vmem:[%s0 + $0x4c8] sm:$0xff]
  %v888 = vld [vmem:[%s0 + $0x4d0] sm:$0xff]
  %v889 = vld [vmem:[%s0 + $0x4d8] sm:$0xff]
  %v890 = vld [vmem:[%s0 + $0x4e0] sm:$0xff]
  %v891 = vld [vmem:[%s0 + $0x4e8] sm:$0xff]
  %v892 = vld [vmem:[%s0 + $0x4f0] sm:$0xff]
  %v893 = vld [vmem:[%s0 + $0x4f8] sm:$0xff]
  %v894 = vld [vmem:[%s0 + $0x500] sm:$0xff]
  %v895 = vld [vmem:[%s0 + $0x508] sm:$0xff]
  %v896 = vld [vmem:[%s0 + $0x510] sm:$0xff]
  %v897 = vld [vmem:[%s0 + $0x518] sm:$0xff]
  %v898 = vld [vmem:[%s0 + $0x520] sm:$0xff]
  %v899 = vld [vmem:[%s0 + $0x528] sm:$0xff]
  %v900 = vld [vmem:[%s0 + $0x530] sm:$0xff]
  %v901 = vld [vmem:[%s0 + $0x538] sm:$0xff]
  %v902 = vld [vmem:[%s0 + $0x540] sm:$0xff]
  %v903 = vld [vmem:[%s0 + $0x548] sm:$0xff]
  %v904 = vld [vmem:[%s0 + $0x550] sm:$0xff]
  %v905 = vld [vmem:[%s0 + $0x558] sm:$0xff]
  %v906 = vld [vmem:[%s0 + $0x560] sm:$0xff]
  %v907 = vld [vmem:[%s0 + $0x568] sm:$0xff]
  %v908 = vld [vmem:[%s0 + $0x570] sm:$0xff]
  %v909 = vld [vmem:[%s0 + $0x578] sm:$0xff]
  %v910 = vld [vmem:[%s0 + $0x580] sm:$0xff]
  %v911 = vld [vmem:[%s0 + $0x588] sm:$0xff]
  %v912 = vld [vmem:[%s0 + $0x590] sm:$0xff]
  %v913 = vld [vmem:[%s0 + $0x598] sm:$0xff]
  %v914 = vld [vmem:[%s0 + $0x5a0] sm:$0xff]
  %v915 = vld [vmem:[%s0 + $0x5a8] sm:$0xff]
  %v916 = vld [vmem:[%s0 + $0x5b0] sm:$0xff]
  %v917 = vld [vmem:[%s0 + $0x5b8] sm:$0xff]
  %v918 = vld [vmem:[%s0 + $0x5c0] sm:$0xff]
  %v919 = vld [vmem:[%s0 + $0x5c8] sm:$0xff]
  %v920 = vld [vmem:[%s0 + $0x5d0] sm:$0xff]
  %v921 = vld [vmem:[%s0 + $0x5d8] sm:$0xff]
  %v922 = vld [vmem:[%s0 + $0x5e0] sm:$0xff]
  %v923 = vld [vmem:[%s0 + $0x5e8] sm:$0xff]
  %v924 = vld [vmem:[%s0 + $0x5f0] sm:$0xff]
  %v925 = vld [vmem:[%s0 + $0x5f8] sm:$0xff]
  %v926 = vld [vmem:[%s0 + $0x600] sm:$0xff]
  %v927 = vld [vmem:[%s0 + $0x608] sm:$0xff]
  %v928 = vld [vmem:[%s0 + $0x610] sm:$0xff]
  %v929 = vld [vmem:[%s0 + $0x618] sm:$0xff]
  %v930 = vld [vmem:[%s0 + $0x620] sm:$0xff]
  %v931 = vld [vmem:[%s0 + $0x628] sm:$0xff]
  %v932 = vld [vmem:[%s0 + $0x630] sm:$0xff]
  %v933 = vld [vmem:[%s0 + $0x638] sm:$0xff]
  %v934 = vld [vmem:[%s2] sm:$0xff]
  %v935 = vld [vmem:[%s2 + $0x8] sm:$0xff]
  %937 = vset.pattern.permute.xlu0 0
  %938 = vperm.xlu0 %937, %v934
  %v939 = vpop.permute.xlu0 %938
  %942 = vset.pattern.permute.xlu0 0
  %943 = vperm.xlu0 %942, %v935
  %v944 = vpop.permute.xlu0 %943
  %v954 = vunpack.c.l.b16 %v726
  %v955 = vunpack.c.h.b16 %v726
  %v956 = vunpack.c.l.b16 %v727
  %v957 = vunpack.c.h.b16 %v727
  %v958 = vunpack.c.l.b16 %v728
  %v959 = vunpack.c.h.b16 %v728
  %v960 = vunpack.c.l.b16 %v729
  %v961 = vunpack.c.l.b16 %v730
  %v962 = vunpack.c.h.b16 %v730
  %v963 = vunpack.c.l.b16 %v731
  %v964 = vunpack.c.h.b16 %v731
  %v965 = vunpack.c.l.b16 %v732
  %v966 = vunpack.c.h.b16 %v732
  %v967 = vunpack.c.l.b16 %v733
  %v968 = vpack.c.b16 %v961, %v954
  %v969 = vpack.c.b16 %v962, %v955
  %v970 = vpack.c.b16 %v963, %v956
  %v971 = vpack.c.b16 %v964, %v957
  %v972 = vpack.c.b16 %v965, %v958
  %v973 = vpack.c.b16 %v966, %v959
  %v974 = vpack.c.b16 %v967, %v960
  %v1181 = vunpack.c.l.b16 %v734
  %v1182 = vunpack.c.h.b16 %v734
  %v1183 = vunpack.c.l.b16 %v735
  %v1184 = vunpack.c.h.b16 %v735
  %v1185 = vunpack.c.l.b16 %v736
  %v1186 = vunpack.c.h.b16 %v736
  %v1187 = vunpack.c.l.b16 %v737
  %v1188 = vunpack.c.h.b16 %v737
  %v1189 = vunpack.c.l.b16 %v738
  %v1190 = vunpack.c.h.b16 %v738
  %v1191 = vunpack.c.l.b16 %v739
  %v1192 = vunpack.c.h.b16 %v739
  %v1193 = vunpack.c.l.b16 %v740
  %v1194 = vunpack.c.h.b16 %v740
  %v1195 = vunpack.c.l.b16 %v741
  %v1196 = vunpack.c.h.b16 %v741
  %v1197 = vunpack.c.l.b16 %v742
  %v1198 = vunpack.c.h.b16 %v742
  %v1199 = vunpack.c.l.b16 %v743
  %v1200 = vunpack.c.h.b16 %v743
  %v1201 = vunpack.c.l.b16 %v744
  %v1202 = vunpack.c.h.b16 %v744
  %v1203 = vunpack.c.l.b16 %v745
  %v1204 = vunpack.c.h.b16 %v745
  %v1205 = vunpack.c.l.b16 %v746
  %v1206 = vunpack.c.h.b16 %v746
  %v1207 = vunpack.c.l.b16 %v747
  %v1208 = vunpack.c.h.b16 %v747
  %v1209 = vunpack.c.l.b16 %v748
  %v1210 = vunpack.c.h.b16 %v748
  %v1211 = vunpack.c.l.b16 %v749
  %v1212 = vunpack.c.h.b16 %v749
  %v1213 = vunpack.c.l.b16 %v750
  %v1214 = vunpack.c.h.b16 %v750
  %v1215 = vunpack.c.l.b16 %v751
  %v1216 = vunpack.c.h.b16 %v751
  %v1217 = vunpack.c.l.b16 %v752
  %v1218 = vunpack.c.h.b16 %v752
  %v1219 = vunpack.c.l.b16 %v753
  %v1220 = vunpack.c.h.b16 %v753
  %v1221 = vunpack.c.l.b16 %v754
  %v1222 = vunpack.c.h.b16 %v754
  %v1223 = vunpack.c.l.b16 %v755
  %v1224 = vunpack.c.h.b16 %v755
  %v1225 = vunpack.c.l.b16 %v756
  %v1226 = vunpack.c.h.b16 %v756
  %v1227 = vunpack.c.l.b16 %v757
  %v1228 = vunpack.c.h.b16 %v757
  %v1229 = vunpack.c.l.b16 %v758
  %v1230 = vunpack.c.h.b16 %v758
  %v1231 = vunpack.c.l.b16 %v759
  %v1232 = vunpack.c.h.b16 %v759
  %v1233 = vunpack.c.l.b16 %v760
  %v1234 = vunpack.c.h.b16 %v760
  %v1235 = vunpack.c.l.b16 %v761
  %v1236 = vunpack.c.h.b16 %v761
  %v1237 = vunpack.c.l.b16 %v762
  %v1238 = vunpack.c.h.b16 %v762
  %v1239 = vunpack.c.l.b16 %v763
  %v1240 = vunpack.c.h.b16 %v763
  %v1241 = vunpack.c.l.b16 %v764
  %v1242 = vunpack.c.h.b16 %v764
  %v1243 = vunpack.c.l.b16 %v765
  %v1244 = vunpack.c.h.b16 %v765
  %v1245 = vunpack.c.l.b16 %v766
  %v1246 = vunpack.c.h.b16 %v766
  %v1247 = vunpack.c.l.b16 %v767
  %v1248 = vunpack.c.h.b16 %v767
  %v1249 = vunpack.c.l.b16 %v768
  %v1250 = vunpack.c.h.b16 %v768
  %v1251 = vunpack.c.l.b16 %v769
  %v1252 = vunpack.c.h.b16 %v769
  %v1253 = vunpack.c.l.b16 %v770
  %v1254 = vunpack.c.h.b16 %v770
  %v1255 = vunpack.c.l.b16 %v771
  %v1256 = vunpack.c.h.b16 %v771
  %v1257 = vunpack.c.l.b16 %v772
  %v1258 = vunpack.c.h.b16 %v772
  %v1259 = vunpack.c.l.b16 %v773
  %v1260 = vunpack.c.h.b16 %v773
  %v1261 = vunpack.c.l.b16 %v774
  %v1262 = vunpack.c.h.b16 %v774
  %v1263 = vunpack.c.l.b16 %v775
  %v1264 = vunpack.c.h.b16 %v775
  %v1265 = vunpack.c.l.b16 %v776
  %v1266 = vunpack.c.h.b16 %v776
  %v1267 = vunpack.c.l.b16 %v777
  %v1268 = vunpack.c.h.b16 %v777
  %v1269 = vunpack.c.l.b16 %v778
  %v1270 = vunpack.c.h.b16 %v778
  %v1271 = vunpack.c.l.b16 %v779
  %v1272 = vunpack.c.h.b16 %v779
  %v1273 = vunpack.c.l.b16 %v780
  %v1274 = vunpack.c.h.b16 %v780
  %v1275 = vunpack.c.l.b16 %v781
  %v1276 = vunpack.c.h.b16 %v781
  %v1277 = vunpack.c.l.b16 %v782
  %v1278 = vunpack.c.h.b16 %v782
  %v1279 = vunpack.c.l.b16 %v783
  %v1280 = vunpack.c.h.b16 %v783
  %v1281 = vunpack.c.l.b16 %v784
  %v1282 = vunpack.c.h.b16 %v784
  %v1283 = vunpack.c.l.b16 %v785
  %v1284 = vunpack.c.h.b16 %v785
  %v1285 = vunpack.c.l.b16 %v786
  %v1286 = vunpack.c.h.b16 %v786
  %v1287 = vunpack.c.l.b16 %v787
  %v1288 = vunpack.c.h.b16 %v787
  %v1289 = vunpack.c.l.b16 %v788
  %v1290 = vunpack.c.h.b16 %v788
  %v1291 = vunpack.c.l.b16 %v789
  %v1292 = vunpack.c.h.b16 %v789
  %v1293 = vunpack.c.l.b16 %v790
  %v1294 = vunpack.c.h.b16 %v790
  %v1295 = vunpack.c.l.b16 %v791
  %v1296 = vunpack.c.h.b16 %v791
  %v1297 = vunpack.c.l.b16 %v792
  %v1298 = vunpack.c.h.b16 %v792
  %v1299 = vunpack.c.l.b16 %v793
  %v1300 = vunpack.c.h.b16 %v793
  %v1301 = vunpack.c.l.b16 %v794
  %v1302 = vunpack.c.h.b16 %v794
  %v1303 = vunpack.c.l.b16 %v795
  %v1304 = vunpack.c.h.b16 %v795
  %v1305 = vunpack.c.l.b16 %v796
  %v1306 = vunpack.c.h.b16 %v796
  %v1307 = vunpack.c.l.b16 %v797
  %v1308 = vunpack.c.h.b16 %v797
  %v1309 = vunpack.c.l.b16 %v798
  %v1310 = vunpack.c.h.b16 %v798
  %v1311 = vunpack.c.l.b16 %v799
  %v1312 = vunpack.c.h.b16 %v799
  %v1313 = vunpack.c.l.b16 %v800
  %v1314 = vunpack.c.h.b16 %v800
  %v1315 = vunpack.c.l.b16 %v801
  %v1316 = vunpack.c.h.b16 %v801
  %v1317 = vunpack.c.l.b16 %v802
  %v1318 = vunpack.c.h.b16 %v802
  %v1319 = vunpack.c.l.b16 %v803
  %v1320 = vunpack.c.h.b16 %v803
  %v1321 = vunpack.c.l.b16 %v804
  %v1322 = vunpack.c.h.b16 %v804
  %v1323 = vunpack.c.l.b16 %v805
  %v1324 = vunpack.c.h.b16 %v805
  %v1325 = vunpack.c.l.b16 %v806
  %v1326 = vunpack.c.h.b16 %v806
  %v1327 = vunpack.c.l.b16 %v807
  %v1328 = vunpack.c.h.b16 %v807
  %v1329 = vunpack.c.l.b16 %v808
  %v1330 = vunpack.c.h.b16 %v808
  %v1331 = vunpack.c.l.b16 %v809
  %v1332 = vunpack.c.h.b16 %v809
  %v1333 = vunpack.c.l.b16 %v810
  %v1334 = vunpack.c.h.b16 %v810
  %v1335 = vunpack.c.l.b16 %v811
  %v1336 = vunpack.c.h.b16 %v811
  %v1337 = vunpack.c.l.b16 %v812
  %v1338 = vunpack.c.h.b16 %v812
  %v1339 = vunpack.c.l.b16 %v813
  %v1340 = vunpack.c.h.b16 %v813
  %v1341 = vunpack.c.l.b16 %v814
  %v1342 = vunpack.c.h.b16 %v814
  %v1343 = vunpack.c.l.b16 %v815
  %v1344 = vunpack.c.h.b16 %v815
  %v1345 = vunpack.c.l.b16 %v816
  %v1346 = vunpack.c.h.b16 %v816
  %v1347 = vunpack.c.l.b16 %v817
  %v1348 = vunpack.c.h.b16 %v817
  %v1349 = vunpack.c.l.b16 %v818
  %v1350 = vunpack.c.h.b16 %v818
  %v1351 = vunpack.c.l.b16 %v819
  %v1352 = vunpack.c.h.b16 %v819
  %v1353 = vunpack.c.l.b16 %v820
  %v1354 = vunpack.c.h.b16 %v820
  %v1355 = vunpack.c.l.b16 %v821
  %v1356 = vunpack.c.h.b16 %v821
  %v1357 = vunpack.c.l.b16 %v822
  %v1358 = vunpack.c.h.b16 %v822
  %v1359 = vunpack.c.l.b16 %v823
  %v1360 = vunpack.c.h.b16 %v823
  %v1361 = vunpack.c.l.b16 %v824
  %v1362 = vunpack.c.h.b16 %v824
  %v1363 = vunpack.c.l.b16 %v825
  %v1364 = vunpack.c.h.b16 %v825
  %v1365 = vunpack.c.l.b16 %v826
  %v1366 = vunpack.c.h.b16 %v826
  %v1367 = vunpack.c.l.b16 %v827
  %v1368 = vunpack.c.h.b16 %v827
  %v1369 = vunpack.c.l.b16 %v828
  %v1370 = vunpack.c.h.b16 %v828
  %v1371 = vunpack.c.l.b16 %v829
  %v1372 = vunpack.c.h.b16 %v829
  %v1373 = vunpack.c.l.b16 %v830
  %v1374 = vunpack.c.h.b16 %v830
  %v1375 = vunpack.c.l.b16 %v831
  %v1376 = vunpack.c.h.b16 %v831
  %v1377 = vunpack.c.l.b16 %v832
  %v1378 = vunpack.c.h.b16 %v832
  %v1379 = vunpack.c.l.b16 %v833
  %v1380 = vunpack.c.h.b16 %v833
  %v1381 = vunpack.c.l.b16 %v834
  %v1382 = vunpack.c.h.b16 %v834
  %v1383 = vunpack.c.l.b16 %v835
  %v1384 = vunpack.c.h.b16 %v835
  %v1385 = vunpack.c.l.b16 %v836
  %v1386 = vunpack.c.h.b16 %v836
  %v1387 = vunpack.c.l.b16 %v837
  %v1388 = vunpack.c.h.b16 %v837
  %v1389 = vunpack.c.l.b16 %v838
  %v1390 = vunpack.c.h.b16 %v838
  %v1391 = vunpack.c.l.b16 %v839
  %v1392 = vunpack.c.h.b16 %v839
  %v1393 = vunpack.c.l.b16 %v840
  %v1394 = vunpack.c.h.b16 %v840
  %v1395 = vunpack.c.l.b16 %v841
  %v1396 = vunpack.c.h.b16 %v841
  %v1397 = vunpack.c.l.b16 %v842
  %v1398 = vunpack.c.h.b16 %v842
  %v1399 = vunpack.c.l.b16 %v843
  %v1400 = vunpack.c.h.b16 %v843
  %v1401 = vunpack.c.l.b16 %v844
  %v1402 = vunpack.c.h.b16 %v844
  %v1403 = vunpack.c.l.b16 %v845
  %v1404 = vunpack.c.h.b16 %v845
  %v1405 = vunpack.c.l.b16 %v846
  %v1406 = vunpack.c.h.b16 %v846
  %v1407 = vunpack.c.l.b16 %v847
  %v1408 = vunpack.c.h.b16 %v847
  %v1409 = vunpack.c.l.b16 %v848
  %v1410 = vunpack.c.h.b16 %v848
  %v1411 = vunpack.c.l.b16 %v849
  %v1412 = vunpack.c.h.b16 %v849
  %v1413 = vunpack.c.l.b16 %v850
  %v1414 = vunpack.c.h.b16 %v850
  %v1415 = vunpack.c.l.b16 %v851
  %v1416 = vunpack.c.h.b16 %v851
  %v1417 = vunpack.c.l.b16 %v852
  %v1418 = vunpack.c.h.b16 %v852
  %v1419 = vunpack.c.l.b16 %v853
  %v1420 = vunpack.c.h.b16 %v853
  %v1421 = vunpack.c.l.b16 %v854
  %v1422 = vunpack.c.h.b16 %v854
  %v1423 = vunpack.c.l.b16 %v855
  %v1424 = vunpack.c.h.b16 %v855
  %v1425 = vunpack.c.l.b16 %v856
  %v1426 = vunpack.c.h.b16 %v856
  %v1427 = vunpack.c.l.b16 %v857
  %v1428 = vunpack.c.h.b16 %v857
  %v1429 = vunpack.c.l.b16 %v858
  %v1430 = vunpack.c.h.b16 %v858
  %v1431 = vunpack.c.l.b16 %v859
  %v1432 = vunpack.c.h.b16 %v859
  %v1433 = vunpack.c.l.b16 %v860
  %v1434 = vunpack.c.h.b16 %v860
  %v1435 = vunpack.c.l.b16 %v861
  %v1436 = vunpack.c.h.b16 %v861
  %v1437 = vunpack.c.l.b16 %v862
  %v1438 = vunpack.c.h.b16 %v862
  %v1439 = vunpack.c.l.b16 %v863
  %v1440 = vunpack.c.h.b16 %v863
  %v1441 = vunpack.c.l.b16 %v864
  %v1442 = vunpack.c.h.b16 %v864
  %v1443 = vunpack.c.l.b16 %v865
  %v1444 = vunpack.c.h.b16 %v865
  %v1445 = vunpack.c.l.b16 %v866
  %v1446 = vunpack.c.h.b16 %v866
  %v1447 = vunpack.c.l.b16 %v867
  %v1448 = vunpack.c.h.b16 %v867
  %v1449 = vunpack.c.l.b16 %v868
  %v1450 = vunpack.c.h.b16 %v868
  %v1451 = vunpack.c.l.b16 %v869
  %v1452 = vunpack.c.h.b16 %v869
  %v1453 = vunpack.c.l.b16 %v870
  %v1454 = vunpack.c.h.b16 %v870
  %v1455 = vunpack.c.l.b16 %v871
  %v1456 = vunpack.c.h.b16 %v871
  %v1457 = vunpack.c.l.b16 %v872
  %v1458 = vunpack.c.h.b16 %v872
  %v1459 = vunpack.c.l.b16 %v873
  %v1460 = vunpack.c.h.b16 %v873
  %v1461 = vunpack.c.l.b16 %v874
  %v1462 = vunpack.c.h.b16 %v874
  %v1463 = vunpack.c.l.b16 %v875
  %v1464 = vunpack.c.h.b16 %v875
  %v1465 = vunpack.c.l.b16 %v876
  %v1466 = vunpack.c.h.b16 %v876
  %v1467 = vunpack.c.l.b16 %v877
  %v1468 = vunpack.c.h.b16 %v877
  %v1469 = vunpack.c.l.b16 %v878
  %v1470 = vunpack.c.h.b16 %v878
  %v1471 = vunpack.c.l.b16 %v879
  %v1472 = vunpack.c.h.b16 %v879
  %v1473 = vunpack.c.l.b16 %v880
  %v1474 = vunpack.c.h.b16 %v880
  %v1475 = vunpack.c.l.b16 %v881
  %v1476 = vunpack.c.h.b16 %v881
  %v1477 = vunpack.c.l.b16 %v882
  %v1478 = vunpack.c.h.b16 %v882
  %v1479 = vunpack.c.l.b16 %v883
  %v1480 = vunpack.c.h.b16 %v883
  %v1481 = vunpack.c.l.b16 %v884
  %v1482 = vunpack.c.h.b16 %v884
  %v1483 = vunpack.c.l.b16 %v885
  %v1484 = vunpack.c.h.b16 %v885
  %v1485 = vunpack.c.l.b16 %v886
  %v1486 = vunpack.c.h.b16 %v886
  %v1487 = vunpack.c.l.b16 %v887
  %v1488 = vunpack.c.h.b16 %v887
  %v1489 = vunpack.c.l.b16 %v888
  %v1490 = vunpack.c.h.b16 %v888
  %v1491 = vunpack.c.l.b16 %v889
  %v1492 = vunpack.c.h.b16 %v889
  %v1493 = vunpack.c.l.b16 %v890
  %v1494 = vunpack.c.h.b16 %v890
  %v1495 = vunpack.c.l.b16 %v891
  %v1496 = vunpack.c.h.b16 %v891
  %v1497 = vunpack.c.l.b16 %v892
  %v1498 = vunpack.c.h.b16 %v892
  %v1499 = vunpack.c.l.b16 %v893
  %v1500 = vunpack.c.h.b16 %v893
  %v1501 = vunpack.c.l.b16 %v894
  %v1502 = vunpack.c.h.b16 %v894
  %v1503 = vunpack.c.l.b16 %v895
  %v1504 = vunpack.c.h.b16 %v895
  %v1505 = vunpack.c.l.b16 %v896
  %v1506 = vunpack.c.h.b16 %v896
  %v1507 = vunpack.c.l.b16 %v897
  %v1508 = vunpack.c.h.b16 %v897
  %v1509 = vunpack.c.l.b16 %v898
  %v1510 = vunpack.c.h.b16 %v898
  %v1511 = vunpack.c.l.b16 %v899
  %v1512 = vunpack.c.h.b16 %v899
  %v1513 = vunpack.c.l.b16 %v900
  %v1514 = vunpack.c.h.b16 %v900
  %v1515 = vunpack.c.l.b16 %v901
  %v1516 = vunpack.c.h.b16 %v901
  %v1517 = vunpack.c.l.b16 %v902
  %v1518 = vunpack.c.h.b16 %v902
  %v1519 = vunpack.c.l.b16 %v903
  %v1520 = vunpack.c.h.b16 %v903
  %v1521 = vunpack.c.l.b16 %v904
  %v1522 = vunpack.c.h.b16 %v904
  %v1523 = vunpack.c.l.b16 %v905
  %v1524 = vunpack.c.h.b16 %v905
  %v1525 = vunpack.c.l.b16 %v906
  %v1526 = vunpack.c.h.b16 %v906
  %v1527 = vunpack.c.l.b16 %v907
  %v1528 = vunpack.c.h.b16 %v907
  %v1529 = vunpack.c.l.b16 %v908
  %v1530 = vunpack.c.h.b16 %v908
  %v1531 = vunpack.c.l.b16 %v909
  %v1532 = vunpack.c.h.b16 %v909
  %v1533 = vunpack.c.l.b16 %v910
  %v1534 = vunpack.c.h.b16 %v910
  %v1535 = vunpack.c.l.b16 %v911
  %v1536 = vunpack.c.h.b16 %v911
  %v1537 = vunpack.c.l.b16 %v912
  %v1538 = vunpack.c.h.b16 %v912
  %v1539 = vunpack.c.l.b16 %v913
  %v1540 = vunpack.c.h.b16 %v913
  %v1541 = vunpack.c.l.b16 %v914
  %v1542 = vunpack.c.h.b16 %v914
  %v1543 = vunpack.c.l.b16 %v915
  %v1544 = vunpack.c.h.b16 %v915
  %v1545 = vunpack.c.l.b16 %v916
  %v1546 = vunpack.c.h.b16 %v916
  %v1547 = vunpack.c.l.b16 %v917
  %v1548 = vunpack.c.h.b16 %v917
  %v1549 = vunpack.c.l.b16 %v918
  %v1550 = vunpack.c.h.b16 %v918
  %v1551 = vunpack.c.l.b16 %v919
  %v1552 = vunpack.c.h.b16 %v919
  %v1553 = vunpack.c.l.b16 %v920
  %v1554 = vunpack.c.h.b16 %v920
  %v1555 = vunpack.c.l.b16 %v921
  %v1556 = vunpack.c.h.b16 %v921
  %v1557 = vunpack.c.l.b16 %v922
  %v1558 = vunpack.c.h.b16 %v922
  %v1559 = vunpack.c.l.b16 %v923
  %v1560 = vunpack.c.h.b16 %v923
  %v1561 = vunpack.c.l.b16 %v924
  %v1562 = vunpack.c.h.b16 %v924
  %v1563 = vunpack.c.l.b16 %v925
  %v1564 = vunpack.c.h.b16 %v925
  %v1565 = vunpack.c.l.b16 %v926
  %v1566 = vunpack.c.h.b16 %v926
  %v1567 = vunpack.c.l.b16 %v927
  %v1568 = vunpack.c.h.b16 %v927
  %v1569 = vunpack.c.l.b16 %v928
  %v1570 = vunpack.c.h.b16 %v928
  %v1571 = vunpack.c.l.b16 %v929
  %v1572 = vunpack.c.h.b16 %v929
  %v1573 = vunpack.c.l.b16 %v930
  %v1574 = vunpack.c.h.b16 %v930
  %v1575 = vunpack.c.l.b16 %v931
  %v1576 = vunpack.c.h.b16 %v931
  %v1577 = vunpack.c.l.b16 %v932
  %v1578 = vunpack.c.h.b16 %v932
  %v1579 = vunpack.c.l.b16 %v933
  %v1580 = vunpack.c.h.b16 %v933
  %v1581 = vpack.c.b16 %v1185, %v1181
  %v1582 = vpack.c.b16 %v1186, %v1182
  %v1583 = vpack.c.b16 %v1187, %v1183
  %v1584 = vpack.c.b16 %v1188, %v1184
  %v1585 = vpack.c.b16 %v1193, %v1189
  %v1586 = vpack.c.b16 %v1194, %v1190
  %v1587 = vpack.c.b16 %v1195, %v1191
  %v1588 = vpack.c.b16 %v1196, %v1192
  %v1589 = vpack.c.b16 %v1201, %v1197
  %v1590 = vpack.c.b16 %v1202, %v1198
  %v1591 = vpack.c.b16 %v1203, %v1199
  %v1592 = vpack.c.b16 %v1204, %v1200
  %v1593 = vpack.c.b16 %v1209, %v1205
  %v1594 = vpack.c.b16 %v1210, %v1206
  %v1595 = vpack.c.b16 %v1211, %v1207
  %v1596 = vpack.c.b16 %v1212, %v1208
  %v1597 = vpack.c.b16 %v1217, %v1213
  %v1598 = vpack.c.b16 %v1218, %v1214
  %v1599 = vpack.c.b16 %v1219, %v1215
  %v1600 = vpack.c.b16 %v1220, %v1216
  %v1601 = vpack.c.b16 %v1225, %v1221
  %v1602 = vpack.c.b16 %v1226, %v1222
  %v1603 = vpack.c.b16 %v1227, %v1223
  %v1604 = vpack.c.b16 %v1228, %v1224
  %v1605 = vpack.c.b16 %v1233, %v1229
  %v1606 = vpack.c.b16 %v1234, %v1230
  %v1607 = vpack.c.b16 %v1235, %v1231
  %v1608 = vpack.c.b16 %v1236, %v1232
  %v1609 = vpack.c.b16 %v1241, %v1237
  %v1610 = vpack.c.b16 %v1242, %v1238
  %v1611 = vpack.c.b16 %v1243, %v1239
  %v1612 = vpack.c.b16 %v1244, %v1240
  %v1613 = vpack.c.b16 %v1249, %v1245
  %v1614 = vpack.c.b16 %v1250, %v1246
  %v1615 = vpack.c.b16 %v1251, %v1247
  %v1616 = vpack.c.b16 %v1252, %v1248
  %v1617 = vpack.c.b16 %v1257, %v1253
  %v1618 = vpack.c.b16 %v1258, %v1254
  %v1619 = vpack.c.b16 %v1259, %v1255
  %v1620 = vpack.c.b16 %v1260, %v1256
  %v1621 = vpack.c.b16 %v1265, %v1261
  %v1622 = vpack.c.b16 %v1266, %v1262
  %v1623 = vpack.c.b16 %v1267, %v1263
  %v1624 = vpack.c.b16 %v1268, %v1264
  %v1625 = vpack.c.b16 %v1273, %v1269
  %v1626 = vpack.c.b16 %v1274, %v1270
  %v1627 = vpack.c.b16 %v1275, %v1271
  %v1628 = vpack.c.b16 %v1276, %v1272
  %v1629 = vpack.c.b16 %v1281, %v1277
  %v1630 = vpack.c.b16 %v1282, %v1278
  %v1631 = vpack.c.b16 %v1283, %v1279
  %v1632 = vpack.c.b16 %v1284, %v1280
  %v1633 = vpack.c.b16 %v1289, %v1285
  %v1634 = vpack.c.b16 %v1290, %v1286
  %v1635 = vpack.c.b16 %v1291, %v1287
  %v1636 = vpack.c.b16 %v1292, %v1288
  %v1637 = vpack.c.b16 %v1297, %v1293
  %v1638 = vpack.c.b16 %v1298, %v1294
  %v1639 = vpack.c.b16 %v1299, %v1295
  %v1640 = vpack.c.b16 %v1300, %v1296
  %v1641 = vpack.c.b16 %v1305, %v1301
  %v1642 = vpack.c.b16 %v1306, %v1302
  %v1643 = vpack.c.b16 %v1307, %v1303
  %v1644 = vpack.c.b16 %v1308, %v1304
  %v1645 = vpack.c.b16 %v1313, %v1309
  %v1646 = vpack.c.b16 %v1314, %v1310
  %v1647 = vpack.c.b16 %v1315, %v1311
  %v1648 = vpack.c.b16 %v1316, %v1312
  %v1649 = vpack.c.b16 %v1321, %v1317
  %v1650 = vpack.c.b16 %v1322, %v1318
  %v1651 = vpack.c.b16 %v1323, %v1319
  %v1652 = vpack.c.b16 %v1324, %v1320
  %v1653 = vpack.c.b16 %v1329, %v1325
  %v1654 = vpack.c.b16 %v1330, %v1326
  %v1655 = vpack.c.b16 %v1331, %v1327
  %v1656 = vpack.c.b16 %v1332, %v1328
  %v1657 = vpack.c.b16 %v1337, %v1333
  %v1658 = vpack.c.b16 %v1338, %v1334
  %v1659 = vpack.c.b16 %v1339, %v1335
  %v1660 = vpack.c.b16 %v1340, %v1336
  %v1661 = vpack.c.b16 %v1345, %v1341
  %v1662 = vpack.c.b16 %v1346, %v1342
  %v1663 = vpack.c.b16 %v1347, %v1343
  %v1664 = vpack.c.b16 %v1348, %v1344
  %v1665 = vpack.c.b16 %v1353, %v1349
  %v1666 = vpack.c.b16 %v1354, %v1350
  %v1667 = vpack.c.b16 %v1355, %v1351
  %v1668 = vpack.c.b16 %v1356, %v1352
  %v1669 = vpack.c.b16 %v1361, %v1357
  %v1670 = vpack.c.b16 %v1362, %v1358
  %v1671 = vpack.c.b16 %v1363, %v1359
  %v1672 = vpack.c.b16 %v1364, %v1360
  %v1673 = vpack.c.b16 %v1369, %v1365
  %v1674 = vpack.c.b16 %v1370, %v1366
  %v1675 = vpack.c.b16 %v1371, %v1367
  %v1676 = vpack.c.b16 %v1372, %v1368
  %v1677 = vpack.c.b16 %v1377, %v1373
  %v1678 = vpack.c.b16 %v1378, %v1374
  %v1679 = vpack.c.b16 %v1379, %v1375
  %v1680 = vpack.c.b16 %v1380, %v1376
  %v1681 = vpack.c.b16 %v1385, %v1381
  %v1682 = vpack.c.b16 %v1386, %v1382
  %v1683 = vpack.c.b16 %v1387, %v1383
  %v1684 = vpack.c.b16 %v1388, %v1384
  %v1685 = vpack.c.b16 %v1393, %v1389
  %v1686 = vpack.c.b16 %v1394, %v1390
  %v1687 = vpack.c.b16 %v1395, %v1391
  %v1688 = vpack.c.b16 %v1396, %v1392
  %v1689 = vpack.c.b16 %v1401, %v1397
  %v1690 = vpack.c.b16 %v1402, %v1398
  %v1691 = vpack.c.b16 %v1403, %v1399
  %v1692 = vpack.c.b16 %v1404, %v1400
  %v1693 = vpack.c.b16 %v1409, %v1405
  %v1694 = vpack.c.b16 %v1410, %v1406
  %v1695 = vpack.c.b16 %v1411, %v1407
  %v1696 = vpack.c.b16 %v1412, %v1408
  %v1697 = vpack.c.b16 %v1417, %v1413
  %v1698 = vpack.c.b16 %v1418, %v1414
  %v1699 = vpack.c.b16 %v1419, %v1415
  %v1700 = vpack.c.b16 %v1420, %v1416
  %v1701 = vpack.c.b16 %v1425, %v1421
  %v1702 = vpack.c.b16 %v1426, %v1422
  %v1703 = vpack.c.b16 %v1427, %v1423
  %v1704 = vpack.c.b16 %v1428, %v1424
  %v1705 = vpack.c.b16 %v1433, %v1429
  %v1706 = vpack.c.b16 %v1434, %v1430
  %v1707 = vpack.c.b16 %v1435, %v1431
  %v1708 = vpack.c.b16 %v1436, %v1432
  %v1709 = vpack.c.b16 %v1441, %v1437
  %v1710 = vpack.c.b16 %v1442, %v1438
  %v1711 = vpack.c.b16 %v1443, %v1439
  %v1712 = vpack.c.b16 %v1444, %v1440
  %v1713 = vpack.c.b16 %v1449, %v1445
  %v1714 = vpack.c.b16 %v1450, %v1446
  %v1715 = vpack.c.b16 %v1451, %v1447
  %v1716 = vpack.c.b16 %v1452, %v1448
  %v1717 = vpack.c.b16 %v1457, %v1453
  %v1718 = vpack.c.b16 %v1458, %v1454
  %v1719 = vpack.c.b16 %v1459, %v1455
  %v1720 = vpack.c.b16 %v1460, %v1456
  %v1721 = vpack.c.b16 %v1465, %v1461
  %v1722 = vpack.c.b16 %v1466, %v1462
  %v1723 = vpack.c.b16 %v1467, %v1463
  %v1724 = vpack.c.b16 %v1468, %v1464
  %v1725 = vpack.c.b16 %v1473, %v1469
  %v1726 = vpack.c.b16 %v1474, %v1470
  %v1727 = vpack.c.b16 %v1475, %v1471
  %v1728 = vpack.c.b16 %v1476, %v1472
  %v1729 = vpack.c.b16 %v1481, %v1477
  %v1730 = vpack.c.b16 %v1482, %v1478
  %v1731 = vpack.c.b16 %v1483, %v1479
  %v1732 = vpack.c.b16 %v1484, %v1480
  %v1733 = vpack.c.b16 %v1489, %v1485
  %v1734 = vpack.c.b16 %v1490, %v1486
  %v1735 = vpack.c.b16 %v1491, %v1487
  %v1736 = vpack.c.b16 %v1492, %v1488
  %v1737 = vpack.c.b16 %v1497, %v1493
  %v1738 = vpack.c.b16 %v1498, %v1494
  %v1739 = vpack.c.b16 %v1499, %v1495
  %v1740 = vpack.c.b16 %v1500, %v1496
  %v1741 = vpack.c.b16 %v1505, %v1501
  %v1742 = vpack.c.b16 %v1506, %v1502
  %v1743 = vpack.c.b16 %v1507, %v1503
  %v1744 = vpack.c.b16 %v1508, %v1504
  %v1745 = vpack.c.b16 %v1513, %v1509
  %v1746 = vpack.c.b16 %v1514, %v1510
  %v1747 = vpack.c.b16 %v1515, %v1511
  %v1748 = vpack.c.b16 %v1516, %v1512
  %v1749 = vpack.c.b16 %v1521, %v1517
  %v1750 = vpack.c.b16 %v1522, %v1518
  %v1751 = vpack.c.b16 %v1523, %v1519
  %v1752 = vpack.c.b16 %v1524, %v1520
  %v1753 = vpack.c.b16 %v1529, %v1525
  %v1754 = vpack.c.b16 %v1530, %v1526
  %v1755 = vpack.c.b16 %v1531, %v1527
  %v1756 = vpack.c.b16 %v1532, %v1528
  %v1757 = vpack.c.b16 %v1537, %v1533
  %v1758 = vpack.c.b16 %v1538, %v1534
  %v1759 = vpack.c.b16 %v1539, %v1535
  %v1760 = vpack.c.b16 %v1540, %v1536
  %v1761 = vpack.c.b16 %v1545, %v1541
  %v1762 = vpack.c.b16 %v1546, %v1542
  %v1763 = vpack.c.b16 %v1547, %v1543
  %v1764 = vpack.c.b16 %v1548, %v1544
  %v1765 = vpack.c.b16 %v1553, %v1549
  %v1766 = vpack.c.b16 %v1554, %v1550
  %v1767 = vpack.c.b16 %v1555, %v1551
  %v1768 = vpack.c.b16 %v1556, %v1552
  %v1769 = vpack.c.b16 %v1561, %v1557
  %v1770 = vpack.c.b16 %v1562, %v1558
  %v1771 = vpack.c.b16 %v1563, %v1559
  %v1772 = vpack.c.b16 %v1564, %v1560
  %v1773 = vpack.c.b16 %v1569, %v1565
  %v1774 = vpack.c.b16 %v1570, %v1566
  %v1775 = vpack.c.b16 %v1571, %v1567
  %v1776 = vpack.c.b16 %v1572, %v1568
  %v1777 = vpack.c.b16 %v1577, %v1573
  %v1778 = vpack.c.b16 %v1578, %v1574
  %v1779 = vpack.c.b16 %v1579, %v1575
  %v1780 = vpack.c.b16 %v1580, %v1576
  %vm1981 = vcmask 261120
  %v1983 = vsel %vm1981, %v974, 0
  %1985 = vmatprep.subr.bf16.mxu0 %v1610
  %1986 = vmatpush1.bf16.msra.mxu0 %v1609
  %1987 = vmatprep.subr.bf16.mxu0 %v1606
  %1988 = vmatpush1.bf16.msra.mxu0 %v1605
  %1989 = vmatprep.subr.bf16.mxu0 %v1602
  %1990 = vmatpush1.bf16.msra.mxu0 %v1601
  %1991 = vmatprep.subr.bf16.mxu0 %v1598
  %1992 = vmatpush1.bf16.msra.mxu0 %v1597
  %1993 = vmatprep.subr.bf16.mxu0 %v1594
  %1994 = vmatpush1.bf16.msra.mxu0 %v1593
  %1995 = vmatprep.subr.bf16.mxu0 %v1590
  %1996 = vmatpush1.bf16.msra.mxu0 %v1589
  %1997 = vmatprep.subr.bf16.mxu0 %v1586
  %1998 = vmatpush1.bf16.msra.mxu0 %v1585
  %1999 = vmatprep.subr.bf16.mxu0 %v1582
  %2000 = vmatpush1.bf16.msra.mxu0 %v1581
  %2001 = vmatprep.subr.bf16.mxu0 %v1642
  %2002 = vmatpush2.bf16.msra.mxu0 %v1641
  %2003 = vmatprep.subr.bf16.mxu0 %v1638
  %2004 = vmatpush2.bf16.msra.mxu0 %v1637
  %2005 = vmatprep.subr.bf16.mxu0 %v1634
  %2006 = vmatpush2.bf16.msra.mxu0 %v1633
  %2007 = vmatprep.subr.bf16.mxu0 %v1630
  %2008 = vmatpush2.bf16.msra.mxu0 %v1629
  %2009 = vmatprep.subr.bf16.mxu0 %v1626
  %2010 = vmatpush2.bf16.msra.mxu0 %v1625
  %2011 = vmatprep.subr.bf16.mxu0 %v1622
  %2012 = vmatpush2.bf16.msra.mxu0 %v1621
  %2013 = vmatprep.subr.bf16.mxu0 %v1618
  %2014 = vmatpush2.bf16.msra.mxu0 %v1617
  %2015 = vmatprep.subr.bf16.mxu0 %v1614
  %2016 = vmatpush2.bf16.msra.mxu0 %v1613
  %2017 = vmatprep.mubr.bf16.mxu0 %v969
  %2018 = vmatmul.mubr.bf16.gmra.mxu0 %v968
  %v2019 = vpop.f32.mrf.mxu0
  %v2020 = vadd.f32 %v939, %v2019
  %v2021 = vpop.f32.mrf.mxu0
  %v2022 = vadd.f32 %v939, %v2021
  %v2023 = vpop.f32.mrf.mxu0
  %v2024 = vadd.f32 %v944, %v2023
  %v2025 = vpop.f32.mrf.mxu0
  %v2026 = vadd.f32 %v944, %v2025
  %2027 = vdwg.mxu0
  %2028 = vmatprep.subr.bf16.mxu0 %v1674
  %2029 = vmatpush1.bf16.msra.mxu0 %v1673
  %2030 = vmatprep.subr.bf16.mxu0 %v1670
  %2031 = vmatpush1.bf16.msra.mxu0 %v1669
  %2032 = vmatprep.subr.bf16.mxu0 %v1666
  %2033 = vmatpush1.bf16.msra.mxu0 %v1665
  %2034 = vmatprep.subr.bf16.mxu0 %v1662
  %2035 = vmatpush1.bf16.msra.mxu0 %v1661
  %2036 = vmatprep.subr.bf16.mxu0 %v1658
  %2037 = vmatpush1.bf16.msra.mxu0 %v1657
  %2038 = vmatprep.subr.bf16.mxu0 %v1654
  %2039 = vmatpush1.bf16.msra.mxu0 %v1653
  %2040 = vmatprep.subr.bf16.mxu0 %v1650
  %2041 = vmatpush1.bf16.msra.mxu0 %v1649
  %2042 = vmatprep.subr.bf16.mxu0 %v1646
  %2043 = vmatpush1.bf16.msra.mxu0 %v1645
  %2044 = vmatprep.subr.bf16.mxu0 %v1706
  %2045 = vmatpush2.bf16.msra.mxu0 %v1705
  %2046 = vmatprep.subr.bf16.mxu0 %v1702
  %2047 = vmatpush2.bf16.msra.mxu0 %v1701
  %2048 = vmatprep.subr.bf16.mxu0 %v1698
  %2049 = vmatpush2.bf16.msra.mxu0 %v1697
  %2050 = vmatprep.subr.bf16.mxu0 %v1694
  %2051 = vmatpush2.bf16.msra.mxu0 %v1693
  %2052 = vmatprep.subr.bf16.mxu0 %v1690
  %2053 = vmatpush2.bf16.msra.mxu0 %v1689
  %2054 = vmatprep.subr.bf16.mxu0 %v1686
  %2055 = vmatpush2.bf16.msra.mxu0 %v1685
  %2056 = vmatprep.subr.bf16.mxu0 %v1682
  %2057 = vmatpush2.bf16.msra.mxu0 %v1681
  %2058 = vmatprep.subr.bf16.mxu0 %v1678
  %2059 = vmatpush2.bf16.msra.mxu0 %v1677
  %2060 = vmatprep.mubr.bf16.mxu0 %v971
  %2061 = vmatmul.mubr.bf16.gmra.mxu0 %v970
  %v2062 = vpop.f32.mrf.mxu0
  %v2063 = vadd.f32 %v2020, %v2062
  %v2064 = vpop.f32.mrf.mxu0
  %v2065 = vadd.f32 %v2022, %v2064
  %v2066 = vpop.f32.mrf.mxu0
  %v2067 = vadd.f32 %v2024, %v2066
  %v2068 = vpop.f32.mrf.mxu0
  %v2069 = vadd.f32 %v2026, %v2068
  %2070 = vdwg.mxu0
  %2071 = vmatprep.subr.bf16.mxu0 %v1738
  %2072 = vmatpush1.bf16.msra.mxu0 %v1737
  %2073 = vmatprep.subr.bf16.mxu0 %v1734
  %2074 = vmatpush1.bf16.msra.mxu0 %v1733
  %2075 = vmatprep.subr.bf16.mxu0 %v1730
  %2076 = vmatpush1.bf16.msra.mxu0 %v1729
  %2077 = vmatprep.subr.bf16.mxu0 %v1726
  %2078 = vmatpush1.bf16.msra.mxu0 %v1725
  %2079 = vmatprep.subr.bf16.mxu0 %v1722
  %2080 = vmatpush1.bf16.msra.mxu0 %v1721
  %2081 = vmatprep.subr.bf16.mxu0 %v1718
  %2082 = vmatpush1.bf16.msra.mxu0 %v1717
  %2083 = vmatprep.subr.bf16.mxu0 %v1714
  %2084 = vmatpush1.bf16.msra.mxu0 %v1713
  %2085 = vmatprep.subr.bf16.mxu0 %v1710
  %2086 = vmatpush1.bf16.msra.mxu0 %v1709
  %2087 = vmatprep.subr.bf16.mxu0 %v1770
  %2088 = vmatpush2.bf16.msra.mxu0 %v1769
  %2089 = vmatprep.subr.bf16.mxu0 %v1766
  %2090 = vmatpush2.bf16.msra.mxu0 %v1765
  %2091 = vmatprep.subr.bf16.mxu0 %v1762
  %2092 = vmatpush2.bf16.msra.mxu0 %v1761
  %2093 = vmatprep.subr.bf16.mxu0 %v1758
  %2094 = vmatpush2.bf16.msra.mxu0 %v1757
  %2095 = vmatprep.subr.bf16.mxu0 %v1754
  %2096 = vmatpush2.bf16.msra.mxu0 %v1753
  %2097 = vmatprep.subr.bf16.mxu0 %v1750
  %2098 = vmatpush2.bf16.msra.mxu0 %v1749
  %2099 = vmatprep.subr.bf16.mxu0 %v1746
  %2100 = vmatpush2.bf16.msra.mxu0 %v1745
  %2101 = vmatprep.subr.bf16.mxu0 %v1742
  %2102 = vmatpush2.bf16.msra.mxu0 %v1741
  %2103 = vmatprep.mubr.bf16.mxu0 %v973
  %2104 = vmatmul.mubr.bf16.gmra.mxu0 %v972
  %v2105 = vpop.f32.mrf.mxu0
  %v2106 = vadd.f32 %v2063, %v2105
  %v2107 = vpop.f32.mrf.mxu0
  %v2108 = vadd.f32 %v2065, %v2107
  %v2109 = vpop.f32.mrf.mxu0
  %v2110 = vadd.f32 %v2067, %v2109
  %v2111 = vpop.f32.mrf.mxu0
  %v2112 = vadd.f32 %v2069, %v2111
  %2113 = vdwg.mxu0
  %2114 = vmatprep.subr.bf16.mxu0 0
  %2115 = vmatpush1.bf16.msra.mxu0 0
  %2116 = vmatprep.subr.bf16.mxu0 0
  %2117 = vmatpush1.bf16.msra.mxu0 0
  %2118 = vmatprep.subr.bf16.mxu0 0
  %2119 = vmatpush1.bf16.msra.mxu0 0
  %2120 = vmatprep.subr.bf16.mxu0 0
  %2121 = vmatpush1.bf16.msra.mxu0 0
  %2122 = vmatprep.subr.bf16.mxu0 0
  %2123 = vmatpush1.bf16.msra.mxu0 0
  %2124 = vmatprep.subr.bf16.mxu0 0
  %2125 = vmatpush1.bf16.msra.mxu0 0
  %2126 = vmatprep.subr.bf16.mxu0 %v1778
  %2127 = vmatpush1.bf16.msra.mxu0 %v1777
  %2128 = vmatprep.subr.bf16.mxu0 %v1774
  %2129 = vmatpush1.bf16.msra.mxu0 %v1773
  %2130 = vmatprep.subr.bf16.mxu0 0
  %2131 = vmatpush2.bf16.msra.mxu0 0
  %2132 = vmatprep.subr.bf16.mxu0 0
  %2133 = vmatpush2.bf16.msra.mxu0 0
  %2134 = vmatprep.subr.bf16.mxu0 0
  %2135 = vmatpush2.bf16.msra.mxu0 0
  %2136 = vmatprep.subr.bf16.mxu0 0
  %2137 = vmatpush2.bf16.msra.mxu0 0
  %2138 = vmatprep.subr.bf16.mxu0 0
  %2139 = vmatpush2.bf16.msra.mxu0 0
  %2140 = vmatprep.subr.bf16.mxu0 0
  %2141 = vmatpush2.bf16.msra.mxu0 0
  %2142 = vmatprep.subr.bf16.mxu0 0
  %2143 = vmatpush2.bf16.msra.mxu0 0
  %2144 = vmatprep.subr.bf16.mxu0 0
  %2145 = vmatpush2.bf16.msra.mxu0 0
  %2146 = vmatprep.mubr.bf16.mxu0 0
  %2147 = vmatmul.mubr.bf16.gmra.mxu0 %v1983
  %v2148 = vpop.f32.mrf.mxu0
  %v2149 = vadd.f32 %v2106, %v2148
  %v2150 = vpop.f32.mrf.mxu0
  %v2151 = vadd.f32 %v2108, %v2150
  %v2152 = vpop.f32.mrf.mxu0
  %v2153 = vadd.f32 %v2110, %v2152
  %v2154 = vpop.f32.mrf.mxu0
  %v2155 = vadd.f32 %v2112, %v2154
  %2156 = vdwg.mxu0
  %2157 = vmatprep.subr.bf16.mxu0 %v1612
  %2158 = vmatpush1.bf16.msra.mxu0 %v1611
  %2159 = vmatprep.subr.bf16.mxu0 %v1608
  %2160 = vmatpush1.bf16.msra.mxu0 %v1607
  %2161 = vmatprep.subr.bf16.mxu0 %v1604
  %2162 = vmatpush1.bf16.msra.mxu0 %v1603
  %2163 = vmatprep.subr.bf16.mxu0 %v1600
  %2164 = vmatpush1.bf16.msra.mxu0 %v1599
  %2165 = vmatprep.subr.bf16.mxu0 %v1596
  %2166 = vmatpush1.bf16.msra.mxu0 %v1595
  %2167 = vmatprep.subr.bf16.mxu0 %v1592
  %2168 = vmatpush1.bf16.msra.mxu0 %v1591
  %2169 = vmatprep.subr.bf16.mxu0 %v1588
  %2170 = vmatpush1.bf16.msra.mxu0 %v1587
  %2171 = vmatprep.subr.bf16.mxu0 %v1584
  %2172 = vmatpush1.bf16.msra.mxu0 %v1583
  %2173 = vmatprep.subr.bf16.mxu0 %v1644
  %2174 = vmatpush2.bf16.msra.mxu0 %v1643
  %2175 = vmatprep.subr.bf16.mxu0 %v1640
  %2176 = vmatpush2.bf16.msra.mxu0 %v1639
  %2177 = vmatprep.subr.bf16.mxu0 %v1636
  %2178 = vmatpush2.bf16.msra.mxu0 %v1635
  %2179 = vmatprep.subr.bf16.mxu0 %v1632
  %2180 = vmatpush2.bf16.msra.mxu0 %v1631
  %2181 = vmatprep.subr.bf16.mxu0 %v1628
  %2182 = vmatpush2.bf16.msra.mxu0 %v1627
  %2183 = vmatprep.subr.bf16.mxu0 %v1624
  %2184 = vmatpush2.bf16.msra.mxu0 %v1623
  %2185 = vmatprep.subr.bf16.mxu0 %v1620
  %2186 = vmatpush2.bf16.msra.mxu0 %v1619
  %2187 = vmatprep.subr.bf16.mxu0 %v1616
  %2188 = vmatpush2.bf16.msra.mxu0 %v1615
  %2189 = vmatprep.mubr.bf16.mxu0 %v969
  %2190 = vmatmul.mubr.bf16.gmra.mxu0 %v968
  %v2191 = vpop.f32.mrf.mxu0
  %v2192 = vadd.f32 %v939, %v2191
  %v2193 = vpop.f32.mrf.mxu0
  %v2194 = vadd.f32 %v939, %v2193
  %v2195 = vpop.f32.mrf.mxu0
  %v2196 = vadd.f32 %v944, %v2195
  %v2197 = vpop.f32.mrf.mxu0
  %v2198 = vadd.f32 %v944, %v2197
  %2199 = vdwg.mxu0
  %2200 = vmatprep.subr.bf16.mxu0 %v1676
  %2201 = vmatpush1.bf16.msra.mxu0 %v1675
  %2202 = vmatprep.subr.bf16.mxu0 %v1672
  %2203 = vmatpush1.bf16.msra.mxu0 %v1671
  %2204 = vmatprep.subr.bf16.mxu0 %v1668
  %2205 = vmatpush1.bf16.msra.mxu0 %v1667
  %2206 = vmatprep.subr.bf16.mxu0 %v1664
  %2207 = vmatpush1.bf16.msra.mxu0 %v1663
  %2208 = vmatprep.subr.bf16.mxu0 %v1660
  %2209 = vmatpush1.bf16.msra.mxu0 %v1659
  %2210 = vmatprep.subr.bf16.mxu0 %v1656
  %2211 = vmatpush1.bf16.msra.mxu0 %v1655
  %2212 = vmatprep.subr.bf16.mxu0 %v1652
  %2213 = vmatpush1.bf16.msra.mxu0 %v1651
  %2214 = vmatprep.subr.bf16.mxu0 %v1648
  %2215 = vmatpush1.bf16.msra.mxu0 %v1647
  %2216 = vmatprep.subr.bf16.mxu0 %v1708
  %2217 = vmatpush2.bf16.msra.mxu0 %v1707
  %2218 = vmatprep.subr.bf16.mxu0 %v1704
  %2219 = vmatpush2.bf16.msra.mxu0 %v1703
  %2220 = vmatprep.subr.bf16.mxu0 %v1700
  %2221 = vmatpush2.bf16.msra.mxu0 %v1699
  %2222 = vmatprep.subr.bf16.mxu0 %v1696
  %2223 = vmatpush2.bf16.msra.mxu0 %v1695
  %2224 = vmatprep.subr.bf16.mxu0 %v1692
  %2225 = vmatpush2.bf16.msra.mxu0 %v1691
  %2226 = vmatprep.subr.bf16.mxu0 %v1688
  %2227 = vmatpush2.bf16.msra.mxu0 %v1687
  %2228 = vmatprep.subr.bf16.mxu0 %v1684
  %2229 = vmatpush2.bf16.msra.mxu0 %v1683
  %2230 = vmatprep.subr.bf16.mxu0 %v1680
  %2231 = vmatpush2.bf16.msra.mxu0 %v1679
  %2232 = vmatprep.mubr.bf16.mxu0 %v971
  %2233 = vmatmul.mubr.bf16.gmra.mxu0 %v970
  %v2234 = vpop.f32.mrf.mxu0
  %v2235 = vadd.f32 %v2192, %v2234
  %v2236 = vpop.f32.mrf.mxu0
  %v2237 = vadd.f32 %v2194, %v2236
  %v2238 = vpop.f32.mrf.mxu0
  %v2239 = vadd.f32 %v2196, %v2238
  %v2240 = vpop.f32.mrf.mxu0
  %v2241 = vadd.f32 %v2198, %v2240
  %2242 = vdwg.mxu0
  %2243 = vmatprep.subr.bf16.mxu0 %v1740
  %2244 = vmatpush1.bf16.msra.mxu0 %v1739
  %2245 = vmatprep.subr.bf16.mxu0 %v1736
  %2246 = vmatpush1.bf16.msra.mxu0 %v1735
  %2247 = vmatprep.subr.bf16.mxu0 %v1732
  %2248 = vmatpush1.bf16.msra.mxu0 %v1731
  %2249 = vmatprep.subr.bf16.mxu0 %v1728
  %2250 = vmatpush1.bf16.msra.mxu0 %v1727
  %2251 = vmatprep.subr.bf16.mxu0 %v1724
  %2252 = vmatpush1.bf16.msra.mxu0 %v1723
  %2253 = vmatprep.subr.bf16.mxu0 %v1720
  %2254 = vmatpush1.bf16.msra.mxu0 %v1719
  %2255 = vmatprep.subr.bf16.mxu0 %v1716
  %2256 = vmatpush1.bf16.msra.mxu0 %v1715
  %2257 = vmatprep.subr.bf16.mxu0 %v1712
  %2258 = vmatpush1.bf16.msra.mxu0 %v1711
  %2259 = vmatprep.subr.bf16.mxu0 %v1772
  %2260 = vmatpush2.bf16.msra.mxu0 %v1771
  %2261 = vmatprep.subr.bf16.mxu0 %v1768
  %2262 = vmatpush2.bf16.msra.mxu0 %v1767
  %2263 = vmatprep.subr.bf16.mxu0 %v1764
  %2264 = vmatpush2.bf16.msra.mxu0 %v1763
  %2265 = vmatprep.subr.bf16.mxu0 %v1760
  %2266 = vmatpush2.bf16.msra.mxu0 %v1759
  %2267 = vmatprep.subr.bf16.mxu0 %v1756
  %2268 = vmatpush2.bf16.msra.mxu0 %v1755
  %2269 = vmatprep.subr.bf16.mxu0 %v1752
  %2270 = vmatpush2.bf16.msra.mxu0 %v1751
  %2271 = vmatprep.subr.bf16.mxu0 %v1748
  %2272 = vmatpush2.bf16.msra.mxu0 %v1747
  %2273 = vmatprep.subr.bf16.mxu0 %v1744
  %2274 = vmatpush2.bf16.msra.mxu0 %v1743
  %2275 = vmatprep.mubr.bf16.mxu0 %v973
  %2276 = vmatmul.mubr.bf16.gmra.mxu0 %v972
  %v2277 = vpop.f32.mrf.mxu0
  %v2278 = vadd.f32 %v2235, %v2277
  %v2279 = vpop.f32.mrf.mxu0
  %v2280 = vadd.f32 %v2237, %v2279
  %v2281 = vpop.f32.mrf.mxu0
  %v2282 = vadd.f32 %v2239, %v2281
  %v2283 = vpop.f32.mrf.mxu0
  %v2284 = vadd.f32 %v2241, %v2283
  %2285 = vdwg.mxu0
  %2286 = vmatprep.subr.bf16.mxu0 0
  %2287 = vmatpush1.bf16.msra.mxu0 0
  %2288 = vmatprep.subr.bf16.mxu0 0
  %2289 = vmatpush1.bf16.msra.mxu0 0
  %2290 = vmatprep.subr.bf16.mxu0 0
  %2291 = vmatpush1.bf16.msra.mxu0 0
  %2292 = vmatprep.subr.bf16.mxu0 0
  %2293 = vmatpush1.bf16.msra.mxu0 0
  %2294 = vmatprep.subr.bf16.mxu0 0
  %2295 = vmatpush1.bf16.msra.mxu0 0
  %2296 = vmatprep.subr.bf16.mxu0 0
  %2297 = vmatpush1.bf16.msra.mxu0 0
  %2298 = vmatprep.subr.bf16.mxu0 %v1780
  %2299 = vmatpush1.bf16.msra.mxu0 %v1779
  %2300 = vmatprep.subr.bf16.mxu0 %v1776
  %2301 = vmatpush1.bf16.msra.mxu0 %v1775
  %2302 = vmatprep.subr.bf16.mxu0 0
  %2303 = vmatpush2.bf16.msra.mxu0 0
  %2304 = vmatprep.subr.bf16.mxu0 0
  %2305 = vmatpush2.bf16.msra.mxu0 0
  %2306 = vmatprep.subr.bf16.mxu0 0
  %2307 = vmatpush2.bf16.msra.mxu0 0
  %2308 = vmatprep.subr.bf16.mxu0 0
  %2309 = vmatpush2.bf16.msra.mxu0 0
  %2310 = vmatprep.subr.bf16.mxu0 0
  %2311 = vmatpush2.bf16.msra.mxu0 0
  %2312 = vmatprep.subr.bf16.mxu0 0
  %2313 = vmatpush2.bf16.msra.mxu0 0
  %2314 = vmatprep.subr.bf16.mxu0 0
  %2315 = vmatpush2.bf16.msra.mxu0 0
  %2316 = vmatprep.subr.bf16.mxu0 0
  %2317 = vmatpush2.bf16.msra.mxu0 0
  %2318 = vmatprep.mubr.bf16.mxu0 0
  %2319 = vmatmul.mubr.bf16.gmra.mxu0 %v1983
  %v2320 = vpop.f32.mrf.mxu0
  %v2321 = vadd.f32 %v2278, %v2320
  %v2322 = vpop.f32.mrf.mxu0
  %v2323 = vadd.f32 %v2280, %v2322
  %v2324 = vpop.f32.mrf.mxu0
  %v2325 = vadd.f32 %v2282, %v2324
  %v2326 = vpop.f32.mrf.mxu0
  %v2327 = vadd.f32 %v2284, %v2326
  %2328 = vdwg.mxu0
  %v2329 = vmax.f32 %v2149, 0.0
  %v2330 = vmax.f32 %v2151, 0.0
  %v2331 = vmax.f32 %v2321, 0.0
  %v2332 = vmax.f32 %v2323, 0.0
  %v2333 = vmax.f32 %v2153, 0.0
  %v2334 = vmax.f32 %v2155, 0.0
  %v2335 = vmax.f32 %v2325, 0.0
  %v2336 = vmax.f32 %v2327, 0.0
  %v2337 = vmax.f32 %v2329, %v2330
  %v2338 = vmax.f32 %v2333, %v2334
  %v2339 = vmax.f32 %v2331, %v2332
  %v2340 = vmax.f32 %v2335, %v2336
  %v2341 = vmax.f32 %v2337, %v2339
  %v2342 = vmax.f32 %v2338, %v2340
  %vm2343 = vcmask 516096
  %2344 = vst.msk [vmem:[#allocation2] sm:$0x1] %vm2343, %v2341
  %v2347 = vunpack.c.l.s4 1983009808
  %v2348 = vunpack.c.0.s8 %v2347
  %v2349 = vlaneseq
  %v2350 = vshrl.u32 %v2349, 7
  %v2351 = vsub.s32 %v2348, %v2350
  %v2352 = vrot.slane %v2341, %v2351
  %2353 = vrot.lane.b32.xlu0 %v2352, 64
  %v2354 = vpop.permute.xlu0 %2353
  %2356 = vst.msk [vmem:[#allocation2 + $0x1] sm:$0x1] %vm2343, %v2354
  %v2357 = vrot.slane %v2352, 7
  %v2358 = vrot.slane %v2357, 2
  %2359 = vrot.lane.b32.xlu0 %v2358, 64
  %v2360 = vpop.permute.xlu0 %2359
  %vm2362 = vcmask 1040896
  %2363 = vst.msk [vmem:[#allocation2] sm:$0x1] %vm2362, %v2360
  %2365 = vst.msk [vmem:[#allocation2 + $0x1] sm:$0x1] %vm2362, %v2358
  %v2366 = vcombine.high %v2352, %v2352
  %2368 = vst.msk [vmem:[#allocation2 + $0x2] sm:$0x1] %vm2343, %v2366
  %2369 = vrot.lane.b32.xlu0 %v2366, 64
  %v2370 = vpop.permute.xlu0 %2369
  %2372 = vst.msk [vmem:[#allocation2 + $0x3] sm:$0x1] %vm2343, %v2370
  %v2373 = vrot.slane %v2366, 7
  %v2374 = vrot.slane %v2373, 2
  %2375 = vrot.lane.b32.xlu0 %v2374, 64
  %v2376 = vpop.permute.xlu0 %2375
  %2378 = vst.msk [vmem:[#allocation2 + $0x2] sm:$0x1] %vm2362, %v2376
  %2380 = vst.msk [vmem:[#allocation2 + $0x3] sm:$0x1] %vm2362, %v2374
  %v2381 = vcombine.high %v2341, %v2341
  %v2383 = vunpack.c.l.s4 1983009808
  %v2384 = vunpack.c.0.s8 %v2383
  %v2385 = vlaneseq
  %v2386 = vshrl.u32 %v2385, 7
  %v2387 = vsub.s32 %v2384, %v2386
  %v2388 = vrot.slane %v2381, %v2387
  %2390 = vst.msk [vmem:[#allocation2 + $0x4] sm:$0x1] %vm2343, %v2388
  %2391 = vrot.lane.b32.xlu0 %v2388, 64
  %v2392 = vpop.permute.xlu0 %2391
  %2394 = vst.msk [vmem:[#allocation2 + $0x5] sm:$0x1] %vm2343, %v2392
  %v2395 = vrot.slane %v2388, 7
  %v2396 = vrot.slane %v2395, 2
  %2397 = vrot.lane.b32.xlu0 %v2396, 64
  %v2398 = vpop.permute.xlu0 %2397
  %2400 = vst.msk [vmem:[#allocation2 + $0x4] sm:$0x1] %vm2362, %v2398
  %2402 = vst.msk [vmem:[#allocation2 + $0x5] sm:$0x1] %vm2362, %v2396
  %v2403 = vcombine.high %v2388, %v2388
  %2405 = vst.msk [vmem:[#allocation2 + $0x6] sm:$0x1] %vm2343, %v2403
  %2406 = vrot.lane.b32.xlu0 %v2403, 64
  %v2407 = vpop.permute.xlu0 %2406
  %2409 = vst.msk [vmem:[#allocation2 + $0x7] sm:$0x1] %vm2343, %v2407
  %v2410 = vrot.slane %v2403, 7
  %v2411 = vrot.slane %v2410, 2
  %2412 = vrot.lane.b32.xlu0 %v2411, 64
  %v2413 = vpop.permute.xlu0 %2412
  %2415 = vst.msk [vmem:[#allocation2 + $0x6] sm:$0x1] %vm2362, %v2413
  %2417 = vst.msk [vmem:[#allocation2 + $0x7] sm:$0x1] %vm2362, %v2411
  %2418 = vst.msk [vmem:[#allocation2 + $0x8] sm:$0x1] %vm2343, %v2342
  %v2421 = vunpack.c.l.s4 1983009808
  %v2422 = vunpack.c.0.s8 %v2421
  %v2423 = vlaneseq
  %v2424 = vshrl.u32 %v2423, 7
  %v2425 = vsub.s32 %v2422, %v2424
  %v2426 = vrot.slane %v2342, %v2425
  %2427 = vrot.lane.b32.xlu0 %v2426, 64
  %v2428 = vpop.permute.xlu0 %2427
  %2430 = vst.msk [vmem:[#allocation2 + $0x9] sm:$0x1] %vm2343, %v2428
  %v2431 = vrot.slane %v2426, 7
  %v2432 = vrot.slane %v2431, 2
  %2433 = vrot.lane.b32.xlu0 %v2432, 64
  %v2434 = vpop.permute.xlu0 %2433
  %2436 = vst.msk [vmem:[#allocation2 + $0x8] sm:$0x1] %vm2362, %v2434
  %2438 = vst.msk [vmem:[#allocation2 + $0x9] sm:$0x1] %vm2362, %v2432
  %v2439 = vcombine.high %v2426, %v2426
  %2441 = vst.msk [vmem:[#allocation2 + $0xa] sm:$0x1] %vm2343, %v2439
  %2442 = vrot.lane.b32.xlu0 %v2439, 64
  %v2443 = vpop.permute.xlu0 %2442
  %2445 = vst.msk [vmem:[#allocation2 + $0xb] sm:$0x1] %vm2343, %v2443
  %v2446 = vrot.slane %v2439, 7
  %v2447 = vrot.slane %v2446, 2
  %2448 = vrot.lane.b32.xlu0 %v2447, 64
  %v2449 = vpop.permute.xlu0 %2448
  %2451 = vst.msk [vmem:[#allocation2 + $0xa] sm:$0x1] %vm2362, %v2449
  %2453 = vst.msk [vmem:[#allocation2 + $0xb] sm:$0x1] %vm2362, %v2447
  %v2454 = vcombine.high %v2342, %v2342
  %v2456 = vunpack.c.l.s4 1983009808
  %v2457 = vunpack.c.0.s8 %v2456
  %v2458 = vlaneseq
  %v2459 = vshrl.u32 %v2458, 7
  %v2460 = vsub.s32 %v2457, %v2459
  %v2461 = vrot.slane %v2454, %v2460
  %2463 = vst.msk [vmem:[#allocation2 + $0xc] sm:$0x1] %vm2343, %v2461
  %2464 = vrot.lane.b32.xlu0 %v2461, 64
  %v2465 = vpop.permute.xlu0 %2464
  %2467 = vst.msk [vmem:[#allocation2 + $0xd] sm:$0x1] %vm2343, %v2465
  %v2468 = vrot.slane %v2461, 7
  %v2469 = vrot.slane %v2468, 2
  %2470 = vrot.lane.b32.xlu0 %v2469, 64
  %v2471 = vpop.permute.xlu0 %2470
  %2473 = vst.msk [vmem:[#allocation2 + $0xc] sm:$0x1] %vm2362, %v2471
  %2475 = vst.msk [vmem:[#allocation2 + $0xd] sm:$0x1] %vm2362, %v2469
  %v2476 = vcombine.high %v2461, %v2461
  %2478 = vst.msk [vmem:[#allocation2 + $0xe] sm:$0x1] %vm2343, %v2476
  %2479 = vrot.lane.b32.xlu0 %v2476, 64
  %v2480 = vpop.permute.xlu0 %2479
  %2482 = vst.msk [vmem:[#allocation2 + $0xf] sm:$0x1] %vm2343, %v2480
  %v2483 = vrot.slane %v2476, 7
  %v2484 = vrot.slane %v2483, 2
  %2485 = vrot.lane.b32.xlu0 %v2484, 64
  %v2486 = vpop.permute.xlu0 %2485
  %2488 = vst.msk [vmem:[#allocation2 + $0xe] sm:$0x1] %vm2362, %v2486
  %2490 = vst.msk [vmem:[#allocation2 + $0xf] sm:$0x1] %vm2362, %v2484
  %v2491 = vld [vmem:[#allocation2] sm:$0xff]
  %v2492 = vld [vmem:[#allocation2 + $0x8] sm:$0xff]
  %v2495 = vcombine.high %v2491, %v2491
  %v2497 = vunpack.c.l.s4 1983009808
  %v2498 = vunpack.c.0.s8 %v2497
  %v2499 = vlaneseq
  %v2500 = vshrl.u32 %v2499, 7
  %v2501 = vsub.s32 %v2498, %v2500
  %v2502 = vrot.slane %v2491, %v2501
  %v2504 = vunpack.c.l.s4 1983009808
  %v2505 = vunpack.c.0.s8 %v2504
  %v2506 = vlaneseq
  %v2507 = vshrl.u32 %v2506, 7
  %v2508 = vsub.s32 %v2505, %v2507
  %v2509 = vrot.slane %v2495, %v2508
  %v2510 = vcombine.high %v2502, %v2502
  %v2511 = vcombine.high %v2509, %v2509
  %v2512 = vcombine.high %v2492, %v2492
  %v2514 = vunpack.c.l.s4 1983009808
  %v2515 = vunpack.c.0.s8 %v2514
  %v2516 = vlaneseq
  %v2517 = vshrl.u32 %v2516, 7
  %v2518 = vsub.s32 %v2515, %v2517
  %v2519 = vrot.slane %v2492, %v2518
  %v2521 = vunpack.c.l.s4 1983009808
  %v2522 = vunpack.c.0.s8 %v2521
  %v2523 = vlaneseq
  %v2524 = vshrl.u32 %v2523, 7
  %v2525 = vsub.s32 %v2522, %v2524
  %v2526 = vrot.slane %v2512, %v2525
  %v2527 = vcombine.high %v2519, %v2519
  %v2528 = vcombine.high %v2526, %v2526
  %v2537 = vpack.c.bf16 %v2502, %v2502
  %v2538 = vpack.c.bf16 %v2510, %v2510
  %v2539 = vpack.c.bf16 %v2509, %v2509
  %v2540 = vpack.c.bf16 %v2511, %v2511
  %v2541 = vpack.c.bf16 %v2519, %v2519
  %v2542 = vpack.c.bf16 %v2527, %v2527
  %v2543 = vpack.c.bf16 %v2526, %v2526
  %v2544 = vpack.c.bf16 %v2528, %v2528
  %s2545 = smul.u32 4, 642
  %s2546 = smul.u32 %s2545, 1
  %s2547 = sshll.u32 %s2546, 4
  %2548 = dma.done [#allocation4], %s2547
  %v2549 = vld [vmem:[%s4] sm:$0xf]
  %v2550 = vld [vmem:[%s4 + $0x4] sm:$0xf]
  %v2551 = vld [vmem:[%s4 + $0x8] sm:$0xf]
  %v2552 = vld [vmem:[%s4 + $0xc] sm:$0xf]
  %v2553 = vld [vmem:[%s4 + $0x10] sm:$0xf]
  %v2554 = vld [vmem:[%s4 + $0x14] sm:$0xf]
  %v2555 = vld [vmem:[%s4 + $0x18] sm:$0xf]
  %v2556 = vld [vmem:[%s4 + $0x1c] sm:$0xf]
  %v2557 = vld [vmem:[%s4 + $0x20] sm:$0xf]
  %v2558 = vld [vmem:[%s4 + $0x24] sm:$0xf]
  %v2559 = vld [vmem:[%s4 + $0x28] sm:$0xf]
  %v2560 = vld [vmem:[%s4 + $0x2c] sm:$0xf]
  %v2561 = vld [vmem:[%s4 + $0x30] sm:$0xf]
  %v2562 = vld [vmem:[%s4 + $0x34] sm:$0xf]
  %v2563 = vld [vmem:[%s4 + $0x38] sm:$0xf]
  %v2564 = vld [vmem:[%s4 + $0x3c] sm:$0xf]
  %v2565 = vld [vmem:[%s4 + $0x40] sm:$0xf]
  %v2566 = vld [vmem:[%s4 + $0x44] sm:$0xf]
  %v2567 = vld [vmem:[%s4 + $0x48] sm:$0xf]
  %v2568 = vld [vmem:[%s4 + $0x4c] sm:$0xf]
  %v2569 = vld [vmem:[%s4 + $0x50] sm:$0xf]
  %v2570 = vld [vmem:[%s4 + $0x54] sm:$0xf]
  %v2571 = vld [vmem:[%s4 + $0x58] sm:$0xf]
  %v2572 = vld [vmem:[%s4 + $0x5c] sm:$0xf]
  %v2573 = vld [vmem:[%s4 + $0x60] sm:$0xf]
  %v2574 = vld [vmem:[%s4 + $0x64] sm:$0xf]
  %v2575 = vld [vmem:[%s4 + $0x68] sm:$0xf]
  %v2576 = vld [vmem:[%s4 + $0x6c] sm:$0xf]
  %v2577 = vld [vmem:[%s4 + $0x70] sm:$0xf]
  %v2578 = vld [vmem:[%s4 + $0x74] sm:$0xf]
  %v2579 = vld [vmem:[%s4 + $0x78] sm:$0xf]
  %v2580 = vld [vmem:[%s4 + $0x7c] sm:$0xf]
  %v2581 = vld [vmem:[%s4 + $0x80] sm:$0xf]
  %v2582 = vld [vmem:[%s4 + $0x84] sm:$0xf]
  %v2583 = vld [vmem:[%s4 + $0x88] sm:$0xf]
  %v2584 = vld [vmem:[%s4 + $0x8c] sm:$0xf]
  %v2585 = vld [vmem:[%s4 + $0x90] sm:$0xf]
  %v2586 = vld [vmem:[%s4 + $0x94] sm:$0xf]
  %v2587 = vld [vmem:[%s4 + $0x98] sm:$0xf]
  %v2588 = vld [vmem:[%s4 + $0x9c] sm:$0xf]
  %v2589 = vld [vmem:[%s4 + $0xa0] sm:$0xf]
  %v2590 = vld [vmem:[%s4 + $0xa4] sm:$0xf]
  %v2591 = vld [vmem:[%s4 + $0xa8] sm:$0xf]
  %v2592 = vld [vmem:[%s4 + $0xac] sm:$0xf]
  %v2593 = vld [vmem:[%s4 + $0xb0] sm:$0xf]
  %v2594 = vld [vmem:[%s4 + $0xb4] sm:$0xf]
  %v2595 = vld [vmem:[%s4 + $0xb8] sm:$0xf]
  %v2596 = vld [vmem:[%s4 + $0xbc] sm:$0xf]
  %v2597 = vld [vmem:[%s4 + $0xc0] sm:$0xf]
  %v2598 = vld [vmem:[%s4 + $0xc4] sm:$0xf]
  %v2599 = vld [vmem:[%s4 + $0xc8] sm:$0xf]
  %v2600 = vld [vmem:[%s4 + $0xcc] sm:$0xf]
  %v2601 = vld [vmem:[%s4 + $0xd0] sm:$0xf]
  %v2602 = vld [vmem:[%s4 + $0xd4] sm:$0xf]
  %v2603 = vld [vmem:[%s4 + $0xd8] sm:$0xf]
  %v2604 = vld [vmem:[%s4 + $0xdc] sm:$0xf]
  %v2605 = vld [vmem:[%s4 + $0xe0] sm:$0xf]
  %v2606 = vld [vmem:[%s4 + $0xe4] sm:$0xf]
  %v2607 = vld [vmem:[%s4 + $0xe8] sm:$0xf]
  %v2608 = vld [vmem:[%s4 + $0xec] sm:$0xf]
  %v2609 = vld [vmem:[%s4 + $0xf0] sm:$0xf]
  %v2610 = vld [vmem:[%s4 + $0xf4] sm:$0xf]
  %v2611 = vld [vmem:[%s4 + $0xf8] sm:$0xf]
  %v2612 = vld [vmem:[%s4 + $0xfc] sm:$0xf]
  %v2613 = vld [vmem:[%s4 + $0x100] sm:$0xf]
  %v2614 = vld [vmem:[%s4 + $0x104] sm:$0xf]
  %v2615 = vld [vmem:[%s4 + $0x108] sm:$0xf]
  %v2616 = vld [vmem:[%s4 + $0x10c] sm:$0xf]
  %v2617 = vld [vmem:[%s4 + $0x110] sm:$0xf]
  %v2618 = vld [vmem:[%s4 + $0x114] sm:$0xf]
  %v2619 = vld [vmem:[%s4 + $0x118] sm:$0xf]
  %v2620 = vld [vmem:[%s4 + $0x11c] sm:$0xf]
  %v2621 = vld [vmem:[%s4 + $0x120] sm:$0xf]
  %v2622 = vld [vmem:[%s4 + $0x124] sm:$0xf]
  %v2623 = vld [vmem:[%s4 + $0x128] sm:$0xf]
  %v2624 = vld [vmem:[%s4 + $0x12c] sm:$0xf]
  %v2625 = vld [vmem:[%s4 + $0x130] sm:$0xf]
  %v2626 = vld [vmem:[%s4 + $0x134] sm:$0xf]
  %v2627 = vld [vmem:[%s4 + $0x138] sm:$0xf]
  %v2628 = vld [vmem:[%s4 + $0x13c] sm:$0xf]
  %v2629 = vld [vmem:[%s4 + $0x140] sm:$0xf]
  %v2630 = vld [vmem:[%s4 + $0x144] sm:$0xf]
  %v2631 = vld [vmem:[%s4 + $0x148] sm:$0xf]
  %v2632 = vld [vmem:[%s4 + $0x14c] sm:$0xf]
  %v2633 = vld [vmem:[%s4 + $0x150] sm:$0xf]
  %v2634 = vld [vmem:[%s4 + $0x154] sm:$0xf]
  %v2635 = vld [vmem:[%s4 + $0x158] sm:$0xf]
  %v2636 = vld [vmem:[%s4 + $0x15c] sm:$0xf]
  %v2637 = vld [vmem:[%s4 + $0x160] sm:$0xf]
  %v2638 = vld [vmem:[%s4 + $0x164] sm:$0xf]
  %v2639 = vld [vmem:[%s4 + $0x168] sm:$0xf]
  %v2640 = vld [vmem:[%s4 + $0x16c] sm:$0xf]
  %v2641 = vld [vmem:[%s4 + $0x170] sm:$0xf]
  %v2642 = vld [vmem:[%s4 + $0x174] sm:$0xf]
  %v2643 = vld [vmem:[%s4 + $0x178] sm:$0xf]
  %v2644 = vld [vmem:[%s4 + $0x17c] sm:$0xf]
  %v2645 = vld [vmem:[%s4 + $0x180] sm:$0xf]
  %v2646 = vld [vmem:[%s4 + $0x184] sm:$0xf]
  %v2647 = vld [vmem:[%s4 + $0x188] sm:$0xf]
  %v2648 = vld [vmem:[%s4 + $0x18c] sm:$0xf]
  %v2649 = vld [vmem:[%s4 + $0x190] sm:$0xf]
  %v2650 = vld [vmem:[%s4 + $0x194] sm:$0xf]
  %v2651 = vld [vmem:[%s4 + $0x198] sm:$0xf]
  %v2652 = vld [vmem:[%s4 + $0x19c] sm:$0xf]
  %v2653 = vld [vmem:[%s4 + $0x1a0] sm:$0xf]
  %v2654 = vld [vmem:[%s4 + $0x1a4] sm:$0xf]
  %v2655 = vld [vmem:[%s4 + $0x1a8] sm:$0xf]
  %v2656 = vld [vmem:[%s4 + $0x1ac] sm:$0xf]
  %v2657 = vld [vmem:[%s4 + $0x1b0] sm:$0xf]
  %v2658 = vld [vmem:[%s4 + $0x1b4] sm:$0xf]
  %v2659 = vld [vmem:[%s4 + $0x1b8] sm:$0xf]
  %v2660 = vld [vmem:[%s4 + $0x1bc] sm:$0xf]
  %v2661 = vld [vmem:[%s4 + $0x1c0] sm:$0xf]
  %v2662 = vld [vmem:[%s4 + $0x1c4] sm:$0xf]
  %v2663 = vld [vmem:[%s4 + $0x1c8] sm:$0xf]
  %v2664 = vld [vmem:[%s4 + $0x1cc] sm:$0xf]
  %v2665 = vld [vmem:[%s4 + $0x1d0] sm:$0xf]
  %v2666 = vld [vmem:[%s4 + $0x1d4] sm:$0xf]
  %v2667 = vld [vmem:[%s4 + $0x1d8] sm:$0xf]
  %v2668 = vld [vmem:[%s4 + $0x1dc] sm:$0xf]
  %v2669 = vld [vmem:[%s4 + $0x1e0] sm:$0xf]
  %v2670 = vld [vmem:[%s4 + $0x1e4] sm:$0xf]
  %v2671 = vld [vmem:[%s4 + $0x1e8] sm:$0xf]
  %v2672 = vld [vmem:[%s4 + $0x1ec] sm:$0xf]
  %v2673 = vld [vmem:[%s4 + $0x1f0] sm:$0xf]
  %v2674 = vld [vmem:[%s4 + $0x1f4] sm:$0xf]
  %v2675 = vld [vmem:[%s4 + $0x1f8] sm:$0xf]
  %v2676 = vld [vmem:[%s4 + $0x1fc] sm:$0xf]
  %v2677 = vld [vmem:[%s3] sm:$0xff]
  %v2678 = vld [vmem:[%s3 + $0x8] sm:$0xff]
  %v2679 = vld [vmem:[%s3 + $0x10] sm:$0xff]
  %v2680 = vld [vmem:[%s3 + $0x18] sm:$0xff]
  %v2681 = vld [vmem:[%s3 + $0x20] sm:$0xff]
  %v2682 = vld [vmem:[%s3 + $0x28] sm:$0x1]
  %v2683 = vld [vmem:[#allocation3] sm:$0xf]
  %v2684 = vld [vmem:[#allocation3 + $0x4] sm:$0xf]
  %v2685 = vld [vmem:[#allocation3 + $0x8] sm:$0xf]
  %v2686 = vld [vmem:[#allocation3 + $0xc] sm:$0xf]
  %v2687 = vld [vmem:[#allocation3 + $0x10] sm:$0xf]
  %v2688 = vld [vmem:[#allocation3 + $0x14] sm:$0xf]
  %v2689 = vld [vmem:[#allocation3 + $0x18] sm:$0xf]
  %v2690 = vld [vmem:[#allocation3 + $0x1c] sm:$0xf]
  %v2691 = vld [vmem:[#allocation3 + $0x20] sm:$0xf]
  %v2692 = vld [vmem:[#allocation3 + $0x24] sm:$0xf]
  %v2693 = vld [vmem:[#allocation3 + $0x28] sm:$0xf]
  %v2694 = vld [vmem:[#allocation3 + $0x2c] sm:$0xf]
  %v2695 = vld [vmem:[#allocation3 + $0x30] sm:$0xf]
  %v2696 = vld [vmem:[#allocation3 + $0x34] sm:$0xf]
  %v2697 = vld [vmem:[#allocation3 + $0x38] sm:$0xf]
  %v2698 = vld [vmem:[#allocation3 + $0x3c] sm:$0xf]
  %v2699 = vld [vmem:[#allocation3 + $0x40] sm:$0xf]
  %v2700 = vld [vmem:[#allocation3 + $0x44] sm:$0xf]
  %v2701 = vld [vmem:[#allocation3 + $0x48] sm:$0xf]
  %v2702 = vld [vmem:[#allocation3 + $0x4c] sm:$0xf]
  %v2703 = vld [vmem:[#allocation3 + $0x50] sm:$0xf]
  %v2704 = vld [vmem:[#allocation3 + $0x54] sm:$0xf]
  %v2705 = vld [vmem:[#allocation3 + $0x58] sm:$0xf]
  %v2706 = vld [vmem:[#allocation3 + $0x5c] sm:$0xf]
  %v2707 = vld [vmem:[#allocation3 + $0x60] sm:$0xf]
  %v2708 = vld [vmem:[#allocation3 + $0x64] sm:$0xf]
  %v2709 = vld [vmem:[#allocation3 + $0x68] sm:$0xf]
  %v2710 = vld [vmem:[#allocation3 + $0x6c] sm:$0xf]
  %v2711 = vld [vmem:[#allocation3 + $0x70] sm:$0xf]
  %v2712 = vld [vmem:[#allocation3 + $0x74] sm:$0xf]
  %v2713 = vld [vmem:[#allocation3 + $0x78] sm:$0xf]
  %v2714 = vld [vmem:[#allocation3 + $0x7c] sm:$0xf]
  %v2715 = vld [vmem:[#allocation3 + $0x80] sm:$0xf]
  %v2716 = vld [vmem:[#allocation3 + $0x84] sm:$0xf]
  %v2717 = vld [vmem:[#allocation3 + $0x88] sm:$0xf]
  %v2718 = vld [vmem:[#allocation3 + $0x8c] sm:$0xf]
  %v2719 = vld [vmem:[#allocation3 + $0x90] sm:$0xf]
  %v2720 = vld [vmem:[#allocation3 + $0x94] sm:$0xf]
  %v2721 = vld [vmem:[#allocation3 + $0x98] sm:$0xf]
  %v2722 = vld [vmem:[#allocation3 + $0x9c] sm:$0xf]
  %v2723 = vld [vmem:[#allocation3 + $0xa0] sm:$0xf]
  %v2724 = vld [vmem:[#allocation3 + $0xa4] sm:$0xf]
  %v2725 = vld [vmem:[#allocation3 + $0xa8] sm:$0xf]
  %v2726 = vld [vmem:[#allocation3 + $0xac] sm:$0xf]
  %v2727 = vld [vmem:[#allocation3 + $0xb0] sm:$0xf]
  %v2728 = vld [vmem:[#allocation3 + $0xb4] sm:$0xf]
  %v2729 = vld [vmem:[#allocation3 + $0xb8] sm:$0xf]
  %v2730 = vld [vmem:[#allocation3 + $0xbc] sm:$0xf]
  %v2731 = vld [vmem:[#allocation3 + $0xc0] sm:$0xf]
  %v2732 = vld [vmem:[#allocation3 + $0xc4] sm:$0xf]
  %v2733 = vld [vmem:[#allocation3 + $0xc8] sm:$0xf]
  %v2734 = vld [vmem:[#allocation3 + $0xcc] sm:$0xf]
  %v2735 = vld [vmem:[#allocation3 + $0xd0] sm:$0xf]
  %v2736 = vld [vmem:[#allocation3 + $0xd4] sm:$0xf]
  %v2737 = vld [vmem:[#allocation3 + $0xd8] sm:$0xf]
  %v2738 = vld [vmem:[#allocation3 + $0xdc] sm:$0xf]
  %v2739 = vld [vmem:[#allocation3 + $0xe0] sm:$0xf]
  %v2740 = vld [vmem:[#allocation3 + $0xe4] sm:$0xf]
  %v2741 = vld [vmem:[#allocation3 + $0xe8] sm:$0xf]
  %v2742 = vld [vmem:[#allocation3 + $0xec] sm:$0xf]
  %v2743 = vld [vmem:[#allocation3 + $0xf0] sm:$0xf]
  %v2744 = vld [vmem:[#allocation3 + $0xf4] sm:$0xf]
  %v2745 = vld [vmem:[#allocation3 + $0xf8] sm:$0xf]
  %v2746 = vld [vmem:[#allocation3 + $0xfc] sm:$0xf]
  %v2747 = vld [vmem:[#allocation3 + $0x100] sm:$0xf]
  %v2748 = vld [vmem:[#allocation3 + $0x104] sm:$0xf]
  %v2749 = vld [vmem:[#allocation3 + $0x108] sm:$0xf]
  %v2750 = vld [vmem:[#allocation3 + $0x10c] sm:$0xf]
  %v2751 = vld [vmem:[#allocation3 + $0x110] sm:$0xf]
  %v2752 = vld [vmem:[#allocation3 + $0x114] sm:$0xf]
  %v2753 = vld [vmem:[#allocation3 + $0x118] sm:$0xf]
  %v2754 = vld [vmem:[#allocation3 + $0x11c] sm:$0xf]
  %v2755 = vld [vmem:[#allocation3 + $0x120] sm:$0xf]
  %v2756 = vld [vmem:[#allocation3 + $0x124] sm:$0xf]
  %v2757 = vld [vmem:[#allocation3 + $0x128] sm:$0xf]
  %v2758 = vld [vmem:[#allocation3 + $0x12c] sm:$0xf]
  %v2759 = vld [vmem:[#allocation3 + $0x130] sm:$0xf]
  %v2760 = vld [vmem:[#allocation3 + $0x134] sm:$0xf]
  %v2761 = vld [vmem:[#allocation3 + $0x138] sm:$0xf]
  %v2762 = vld [vmem:[#allocation3 + $0x13c] sm:$0xf]
  %v2763 = vld [vmem:[#allocation3 + $0x140] sm:$0xf]
  %v2764 = vld [vmem:[#allocation3 + $0x144] sm:$0xf]
  %v2765 = vld [vmem:[#allocation3 + $0x148] sm:$0xf]
  %v2766 = vld [vmem:[#allocation3 + $0x14c] sm:$0xf]
  %v2767 = vld [vmem:[#allocation3 + $0x150] sm:$0xf]
  %v2768 = vld [vmem:[#allocation3 + $0x154] sm:$0xf]
  %v2769 = vld [vmem:[#allocation3 + $0x158] sm:$0xf]
  %v2770 = vld [vmem:[#allocation3 + $0x15c] sm:$0xf]
  %v2771 = vld [vmem:[#allocation3 + $0x160] sm:$0xf]
  %v2772 = vld [vmem:[#allocation3 + $0x164] sm:$0xf]
  %v2773 = vld [vmem:[#allocation3 + $0x168] sm:$0xf]
  %v2774 = vld [vmem:[#allocation3 + $0x16c] sm:$0xf]
  %v2775 = vld [vmem:[#allocation3 + $0x170] sm:$0xf]
  %v2776 = vld [vmem:[#allocation3 + $0x174] sm:$0xf]
  %v2777 = vld [vmem:[#allocation3 + $0x178] sm:$0xf]
  %v2778 = vld [vmem:[#allocation3 + $0x17c] sm:$0xf]
  %v2779 = vld [vmem:[#allocation3 + $0x180] sm:$0xf]
  %v2780 = vld [vmem:[#allocation3 + $0x184] sm:$0xf]
  %v2781 = vld [vmem:[#allocation3 + $0x188] sm:$0xf]
  %v2782 = vld [vmem:[#allocation3 + $0x18c] sm:$0xf]
  %v2783 = vld [vmem:[#allocation3 + $0x190] sm:$0xf]
  %v2784 = vld [vmem:[#allocation3 + $0x194] sm:$0xf]
  %v2785 = vld [vmem:[#allocation3 + $0x198] sm:$0xf]
  %v2786 = vld [vmem:[#allocation3 + $0x19c] sm:$0xf]
  %v2787 = vld [vmem:[#allocation3 + $0x1a0] sm:$0xf]
  %v2788 = vld [vmem:[#allocation3 + $0x1a4] sm:$0xf]
  %v2789 = vld [vmem:[#allocation3 + $0x1a8] sm:$0xf]
  %v2790 = vld [vmem:[#allocation3 + $0x1ac] sm:$0xf]
  %v2791 = vld [vmem:[#allocation3 + $0x1b0] sm:$0xf]
  %v2792 = vld [vmem:[#allocation3 + $0x1b4] sm:$0xf]
  %v2793 = vld [vmem:[#allocation3 + $0x1b8] sm:$0xf]
  %v2794 = vld [vmem:[#allocation3 + $0x1bc] sm:$0xf]
  %v2795 = vld [vmem:[#allocation3 + $0x1c0] sm:$0xf]
  %v2796 = vld [vmem:[#allocation3 + $0x1c4] sm:$0xf]
  %v2797 = vld [vmem:[#allocation3 + $0x1c8] sm:$0xf]
  %v2798 = vld [vmem:[#allocation3 + $0x1cc] sm:$0xf]
  %v2799 = vld [vmem:[#allocation3 + $0x1d0] sm:$0xf]
  %v2800 = vld [vmem:[#allocation3 + $0x1d4] sm:$0xf]
  %v2801 = vld [vmem:[#allocation3 + $0x1d8] sm:$0xf]
  %v2802 = vld [vmem:[#allocation3 + $0x1dc] sm:$0xf]
  %v2803 = vld [vmem:[#allocation3 + $0x1e0] sm:$0xf]
  %v2804 = vld [vmem:[#allocation3 + $0x1e4] sm:$0xf]
  %v2805 = vld [vmem:[#allocation3 + $0x1e8] sm:$0xf]
  %v2806 = vld [vmem:[#allocation3 + $0x1ec] sm:$0xf]
  %v2807 = vld [vmem:[#allocation3 + $0x1f0] sm:$0xf]
  %v2808 = vld [vmem:[#allocation3 + $0x1f4] sm:$0xf]
  %v2809 = vld [vmem:[#allocation3 + $0x1f8] sm:$0xf]
  %v2810 = vld [vmem:[#allocation3 + $0x1fc] sm:$0xf]
  %v2811 = vld [vmem:[#allocation3 + $0x200] sm:$0xf]
  %v2812 = vld [vmem:[#allocation3 + $0x204] sm:$0xf]
  %v2813 = vld [vmem:[#allocation3 + $0x208] sm:$0xf]
  %v2814 = vld [vmem:[#allocation3 + $0x20c] sm:$0xf]
  %v2815 = vld [vmem:[#allocation3 + $0x210] sm:$0xf]
  %v2816 = vld [vmem:[#allocation3 + $0x214] sm:$0xf]
  %v2817 = vld [vmem:[#allocation3 + $0x218] sm:$0xf]
  %v2818 = vld [vmem:[#allocation3 + $0x21c] sm:$0xf]
  %v2819 = vld [vmem:[#allocation3 + $0x220] sm:$0xf]
  %v2820 = vld [vmem:[#allocation3 + $0x224] sm:$0xf]
  %v2821 = vld [vmem:[#allocation3 + $0x228] sm:$0xf]
  %v2822 = vld [vmem:[#allocation3 + $0x22c] sm:$0xf]
  %v2823 = vld [vmem:[#allocation3 + $0x230] sm:$0xf]
  %v2824 = vld [vmem:[#allocation3 + $0x234] sm:$0xf]
  %v2825 = vld [vmem:[#allocation3 + $0x238] sm:$0xf]
  %v2826 = vld [vmem:[#allocation3 + $0x23c] sm:$0xf]
  %v2827 = vld [vmem:[#allocation3 + $0x240] sm:$0xf]
  %v2828 = vld [vmem:[#allocation3 + $0x244] sm:$0xf]
  %v2829 = vld [vmem:[#allocation3 + $0x248] sm:$0xf]
  %v2830 = vld [vmem:[#allocation3 + $0x24c] sm:$0xf]
  %v2831 = vld [vmem:[#allocation3 + $0x250] sm:$0xf]
  %v2832 = vld [vmem:[#allocation3 + $0x254] sm:$0xf]
  %v2833 = vld [vmem:[#allocation3 + $0x258] sm:$0xf]
  %v2834 = vld [vmem:[#allocation3 + $0x25c] sm:$0xf]
  %v2835 = vld [vmem:[#allocation3 + $0x260] sm:$0xf]
  %v2836 = vld [vmem:[#allocation3 + $0x264] sm:$0xf]
  %v2837 = vld [vmem:[#allocation3 + $0x268] sm:$0xf]
  %v2838 = vld [vmem:[#allocation3 + $0x26c] sm:$0xf]
  %v2839 = vld [vmem:[#allocation3 + $0x270] sm:$0xf]
  %v2840 = vld [vmem:[#allocation3 + $0x274] sm:$0xf]
  %v2841 = vld [vmem:[#allocation3 + $0x278] sm:$0xf]
  %v2842 = vld [vmem:[#allocation3 + $0x27c] sm:$0xf]
  %v2843 = vld [vmem:[#allocation3 + $0x280] sm:$0xf]
  %v2844 = vld [vmem:[#allocation3 + $0x284] sm:$0xf]
  %v2845 = vld [vmem:[#allocation3 + $0x288] sm:$0xf]
  %v2846 = vld [vmem:[#allocation3 + $0x28c] sm:$0xf]
  %v2847 = vld [vmem:[#allocation3 + $0x290] sm:$0xf]
  %v2848 = vld [vmem:[#allocation3 + $0x294] sm:$0xf]
  %v2849 = vld [vmem:[#allocation3 + $0x298] sm:$0xf]
  %v2850 = vld [vmem:[#allocation3 + $0x29c] sm:$0xf]
  %v2851 = vld [vmem:[#allocation3 + $0x2a0] sm:$0xf]
  %v2852 = vld [vmem:[#allocation3 + $0x2a4] sm:$0xf]
  %v2853 = vld [vmem:[#allocation3 + $0x2a8] sm:$0xf]
  %v2854 = vld [vmem:[#allocation3 + $0x2ac] sm:$0xf]
  %v2855 = vld [vmem:[#allocation3 + $0x2b0] sm:$0xf]
  %v2856 = vld [vmem:[#allocation3 + $0x2b4] sm:$0xf]
  %v2857 = vld [vmem:[#allocation3 + $0x2b8] sm:$0xf]
  %v2858 = vld [vmem:[#allocation3 + $0x2bc] sm:$0xf]
  %v2859 = vld [vmem:[#allocation3 + $0x2c0] sm:$0xf]
  %v2860 = vld [vmem:[#allocation3 + $0x2c4] sm:$0xf]
  %v2861 = vld [vmem:[#allocation3 + $0x2c8] sm:$0xf]
  %v2862 = vld [vmem:[#allocation3 + $0x2cc] sm:$0xf]
  %v2863 = vld [vmem:[#allocation3 + $0x2d0] sm:$0xf]
  %v2864 = vld [vmem:[#allocation3 + $0x2d4] sm:$0xf]
  %v2865 = vld [vmem:[#allocation3 + $0x2d8] sm:$0xf]
  %v2866 = vld [vmem:[#allocation3 + $0x2dc] sm:$0xf]
  %v2867 = vld [vmem:[#allocation3 + $0x2e0] sm:$0xf]
  %v2868 = vld [vmem:[#allocation3 + $0x2e4] sm:$0xf]
  %v2869 = vld [vmem:[#allocation3 + $0x2e8] sm:$0xf]
  %v2870 = vld [vmem:[#allocation3 + $0x2ec] sm:$0xf]
  %v2871 = vld [vmem:[#allocation3 + $0x2f0] sm:$0xf]
  %v2872 = vld [vmem:[#allocation3 + $0x2f4] sm:$0xf]
  %v2873 = vld [vmem:[#allocation3 + $0x2f8] sm:$0xf]
  %v2874 = vld [vmem:[#allocation3 + $0x2fc] sm:$0xf]
  %v2875 = vld [vmem:[#allocation3 + $0x300] sm:$0xf]
  %v2876 = vld [vmem:[#allocation3 + $0x304] sm:$0xf]
  %v2877 = vld [vmem:[#allocation3 + $0x308] sm:$0xf]
  %v2878 = vld [vmem:[#allocation3 + $0x30c] sm:$0xf]
  %v2879 = vld [vmem:[#allocation3 + $0x310] sm:$0xf]
  %v2880 = vld [vmem:[#allocation3 + $0x314] sm:$0xf]
  %v2881 = vld [vmem:[#allocation3 + $0x318] sm:$0xf]
  %v2882 = vld [vmem:[#allocation3 + $0x31c] sm:$0xf]
  %v2883 = vld [vmem:[#allocation3 + $0x320] sm:$0xf]
  %v2884 = vld [vmem:[#allocation3 + $0x324] sm:$0xf]
  %v2885 = vld [vmem:[#allocation3 + $0x328] sm:$0xf]
  %v2886 = vld [vmem:[#allocation3 + $0x32c] sm:$0xf]
  %v2887 = vld [vmem:[#allocation3 + $0x330] sm:$0xf]
  %v2888 = vld [vmem:[#allocation3 + $0x334] sm:$0xf]
  %v2889 = vld [vmem:[#allocation3 + $0x338] sm:$0xf]
  %v2890 = vld [vmem:[#allocation3 + $0x33c] sm:$0xf]
  %v2891 = vld [vmem:[#allocation3 + $0x340] sm:$0xf]
  %v2892 = vld [vmem:[#allocation3 + $0x344] sm:$0xf]
  %v2893 = vld [vmem:[#allocation3 + $0x348] sm:$0xf]
  %v2894 = vld [vmem:[#allocation3 + $0x34c] sm:$0xf]
  %v2895 = vld [vmem:[#allocation3 + $0x350] sm:$0xf]
  %v2896 = vld [vmem:[#allocation3 + $0x354] sm:$0xf]
  %v2897 = vld [vmem:[#allocation3 + $0x358] sm:$0xf]
  %v2898 = vld [vmem:[#allocation3 + $0x35c] sm:$0xf]
  %v2899 = vld [vmem:[#allocation3 + $0x360] sm:$0xf]
  %v2900 = vld [vmem:[#allocation3 + $0x364] sm:$0xf]
  %v2901 = vld [vmem:[#allocation3 + $0x368] sm:$0xf]
  %v2902 = vld [vmem:[#allocation3 + $0x36c] sm:$0xf]
  %v2903 = vld [vmem:[#allocation3 + $0x370] sm:$0xf]
  %v2904 = vld [vmem:[#allocation3 + $0x374] sm:$0xf]
  %v2905 = vld [vmem:[#allocation3 + $0x378] sm:$0xf]
  %v2906 = vld [vmem:[#allocation3 + $0x37c] sm:$0xf]
  %v2907 = vld [vmem:[#allocation3 + $0x380] sm:$0xf]
  %v2908 = vld [vmem:[#allocation3 + $0x384] sm:$0xf]
  %v2909 = vld [vmem:[#allocation3 + $0x388] sm:$0xf]
  %v2910 = vld [vmem:[#allocation3 + $0x38c] sm:$0xf]
  %v2911 = vld [vmem:[#allocation3 + $0x390] sm:$0xf]
  %v2912 = vld [vmem:[#allocation3 + $0x394] sm:$0xf]
  %v2913 = vld [vmem:[#allocation3 + $0x398] sm:$0xf]
  %v2914 = vld [vmem:[#allocation3 + $0x39c] sm:$0xf]
  %v2915 = vld [vmem:[#allocation3 + $0x3a0] sm:$0xf]
  %v2916 = vld [vmem:[#allocation3 + $0x3a4] sm:$0xf]
  %v2917 = vld [vmem:[#allocation3 + $0x3a8] sm:$0xf]
  %v2918 = vld [vmem:[#allocation3 + $0x3ac] sm:$0xf]
  %v2919 = vld [vmem:[#allocation3 + $0x3b0] sm:$0xf]
  %v2920 = vld [vmem:[#allocation3 + $0x3b4] sm:$0xf]
  %v2921 = vld [vmem:[#allocation3 + $0x3b8] sm:$0xf]
  %v2922 = vld [vmem:[#allocation3 + $0x3bc] sm:$0xf]
  %v2923 = vld [vmem:[#allocation3 + $0x3c0] sm:$0xf]
  %v2924 = vld [vmem:[#allocation3 + $0x3c4] sm:$0xf]
  %v2925 = vld [vmem:[#allocation3 + $0x3c8] sm:$0xf]
  %v2926 = vld [vmem:[#allocation3 + $0x3cc] sm:$0xf]
  %v2927 = vld [vmem:[#allocation3 + $0x3d0] sm:$0xf]
  %v2928 = vld [vmem:[#allocation3 + $0x3d4] sm:$0xf]
  %v2929 = vld [vmem:[#allocation3 + $0x3d8] sm:$0xf]
  %v2930 = vld [vmem:[#allocation3 + $0x3dc] sm:$0xf]
  %v2931 = vld [vmem:[#allocation3 + $0x3e0] sm:$0xf]
  %v2932 = vld [vmem:[#allocation3 + $0x3e4] sm:$0xf]
  %v2933 = vld [vmem:[#allocation3 + $0x3e8] sm:$0xf]
  %v2934 = vld [vmem:[#allocation3 + $0x3ec] sm:$0xf]
  %v2935 = vld [vmem:[#allocation3 + $0x3f0] sm:$0xf]
  %v2936 = vld [vmem:[#allocation3 + $0x3f4] sm:$0xf]
  %v2937 = vld [vmem:[#allocation3 + $0x3f8] sm:$0xf]
  %v2938 = vld [vmem:[#allocation3 + $0x3fc] sm:$0xf]
  %v2939 = vld [vmem:[#allocation3 + $0x400] sm:$0xf]
  %v2940 = vld [vmem:[#allocation3 + $0x404] sm:$0xf]
  %v2941 = vld [vmem:[#allocation3 + $0x408] sm:$0xf]
  %v2942 = vld [vmem:[#allocation3 + $0x40c] sm:$0xf]
  %v2943 = vld [vmem:[#allocation3 + $0x410] sm:$0xf]
  %v2944 = vld [vmem:[#allocation3 + $0x414] sm:$0xf]
  %v2945 = vld [vmem:[#allocation3 + $0x418] sm:$0xf]
  %v2946 = vld [vmem:[#allocation3 + $0x41c] sm:$0xf]
  %v2947 = vld [vmem:[#allocation3 + $0x420] sm:$0xf]
  %v2948 = vld [vmem:[#allocation3 + $0x424] sm:$0xf]
  %v2949 = vld [vmem:[#allocation3 + $0x428] sm:$0xf]
  %v2950 = vld [vmem:[#allocation3 + $0x42c] sm:$0xf]
  %v2951 = vld [vmem:[#allocation3 + $0x430] sm:$0xf]
  %v2952 = vld [vmem:[#allocation3 + $0x434] sm:$0xf]
  %v2953 = vld [vmem:[#allocation3 + $0x438] sm:$0xf]
  %v2954 = vld [vmem:[#allocation3 + $0x43c] sm:$0xf]
  %v2955 = vld [vmem:[#allocation3 + $0x440] sm:$0xf]
  %v2956 = vld [vmem:[#allocation3 + $0x444] sm:$0xf]
  %v2957 = vld [vmem:[#allocation3 + $0x448] sm:$0xf]
  %v2958 = vld [vmem:[#allocation3 + $0x44c] sm:$0xf]
  %v2959 = vld [vmem:[#allocation3 + $0x450] sm:$0xf]
  %v2960 = vld [vmem:[#allocation3 + $0x454] sm:$0xf]
  %v2961 = vld [vmem:[#allocation3 + $0x458] sm:$0xf]
  %v2962 = vld [vmem:[#allocation3 + $0x45c] sm:$0xf]
  %v2963 = vld [vmem:[#allocation3 + $0x460] sm:$0xf]
  %v2964 = vld [vmem:[#allocation3 + $0x464] sm:$0xf]
  %v2965 = vld [vmem:[#allocation3 + $0x468] sm:$0xf]
  %v2966 = vld [vmem:[#allocation3 + $0x46c] sm:$0xf]
  %v2967 = vld [vmem:[#allocation3 + $0x470] sm:$0xf]
  %v2968 = vld [vmem:[#allocation3 + $0x474] sm:$0xf]
  %v2969 = vld [vmem:[#allocation3 + $0x478] sm:$0xf]
  %v2970 = vld [vmem:[#allocation3 + $0x47c] sm:$0xf]
  %v2971 = vld [vmem:[#allocation3 + $0x480] sm:$0xf]
  %v2972 = vld [vmem:[#allocation3 + $0x484] sm:$0xf]
  %v2973 = vld [vmem:[#allocation3 + $0x488] sm:$0xf]
  %v2974 = vld [vmem:[#allocation3 + $0x48c] sm:$0xf]
  %v2975 = vld [vmem:[#allocation3 + $0x490] sm:$0xf]
  %v2976 = vld [vmem:[#allocation3 + $0x494] sm:$0xf]
  %v2977 = vld [vmem:[#allocation3 + $0x498] sm:$0xf]
  %v2978 = vld [vmem:[#allocation3 + $0x49c] sm:$0xf]
  %v2979 = vld [vmem:[#allocation3 + $0x4a0] sm:$0xf]
  %v2980 = vld [vmem:[#allocation3 + $0x4a4] sm:$0xf]
  %v2981 = vld [vmem:[#allocation3 + $0x4a8] sm:$0xf]
  %v2982 = vld [vmem:[#allocation3 + $0x4ac] sm:$0xf]
  %v2983 = vld [vmem:[#allocation3 + $0x4b0] sm:$0xf]
  %v2984 = vld [vmem:[#allocation3 + $0x4b4] sm:$0xf]
  %v2985 = vld [vmem:[#allocation3 + $0x4b8] sm:$0xf]
  %v2986 = vld [vmem:[#allocation3 + $0x4bc] sm:$0xf]
  %v2987 = vld [vmem:[#allocation3 + $0x4c0] sm:$0xf]
  %v2988 = vld [vmem:[#allocation3 + $0x4c4] sm:$0xf]
  %v2989 = vld [vmem:[#allocation3 + $0x4c8] sm:$0xf]
  %v2990 = vld [vmem:[#allocation3 + $0x4cc] sm:$0xf]
  %v2991 = vld [vmem:[#allocation3 + $0x4d0] sm:$0xf]
  %v2992 = vld [vmem:[#allocation3 + $0x4d4] sm:$0xf]
  %v2993 = vld [vmem:[#allocation3 + $0x4d8] sm:$0xf]
  %v2994 = vld [vmem:[#allocation3 + $0x4dc] sm:$0xf]
  %v2995 = vld [vmem:[#allocation3 + $0x4e0] sm:$0xf]
  %v2996 = vld [vmem:[#allocation3 + $0x4e4] sm:$0xf]
  %v2997 = vld [vmem:[#allocation3 + $0x4e8] sm:$0xf]
  %v2998 = vld [vmem:[#allocation3 + $0x4ec] sm:$0xf]
  %v2999 = vld [vmem:[#allocation3 + $0x4f0] sm:$0xf]
  %v3000 = vld [vmem:[#allocation3 + $0x4f4] sm:$0xf]
  %v3001 = vld [vmem:[#allocation3 + $0x4f8] sm:$0xf]
  %v3002 = vld [vmem:[#allocation3 + $0x4fc] sm:$0xf]
  %v3003 = vld [vmem:[#allocation3 + $0x500] sm:$0xf]
  %v3004 = vld [vmem:[#allocation3 + $0x504] sm:$0xf]
  %v3005 = vld [vmem:[#allocation3 + $0x508] sm:$0xf]
  %v3006 = vld [vmem:[#allocation3 + $0x50c] sm:$0xf]
  %v3007 = vld [vmem:[#allocation3 + $0x510] sm:$0xf]
  %v3008 = vld [vmem:[#allocation3 + $0x514] sm:$0xf]
  %v3009 = vld [vmem:[#allocation3 + $0x518] sm:$0xf]
  %v3010 = vld [vmem:[#allocation3 + $0x51c] sm:$0xf]
  %v3011 = vld [vmem:[#allocation3 + $0x520] sm:$0xf]
  %v3012 = vld [vmem:[#allocation3 + $0x524] sm:$0xf]
  %v3013 = vld [vmem:[#allocation3 + $0x528] sm:$0xf]
  %v3014 = vld [vmem:[#allocation3 + $0x52c] sm:$0xf]
  %v3015 = vld [vmem:[#allocation3 + $0x530] sm:$0xf]
  %v3016 = vld [vmem:[#allocation3 + $0x534] sm:$0xf]
  %v3017 = vld [vmem:[#allocation3 + $0x538] sm:$0xf]
  %v3018 = vld [vmem:[#allocation3 + $0x53c] sm:$0xf]
  %v3019 = vld [vmem:[#allocation3 + $0x540] sm:$0xf]
  %v3020 = vld [vmem:[#allocation3 + $0x544] sm:$0xf]
  %v3021 = vld [vmem:[#allocation3 + $0x548] sm:$0xf]
  %v3022 = vld [vmem:[#allocation3 + $0x54c] sm:$0xf]
  %v3023 = vld [vmem:[#allocation3 + $0x550] sm:$0xf]
  %v3024 = vld [vmem:[#allocation3 + $0x554] sm:$0xf]
  %v3025 = vld [vmem:[#allocation3 + $0x558] sm:$0xf]
  %v3026 = vld [vmem:[#allocation3 + $0x55c] sm:$0xf]
  %v3027 = vld [vmem:[#allocation3 + $0x560] sm:$0xf]
  %v3028 = vld [vmem:[#allocation3 + $0x564] sm:$0xf]
  %v3029 = vld [vmem:[#allocation3 + $0x568] sm:$0xf]
  %v3030 = vld [vmem:[#allocation3 + $0x56c] sm:$0xf]
  %v3031 = vld [vmem:[#allocation3 + $0x570] sm:$0xf]
  %v3032 = vld [vmem:[#allocation3 + $0x574] sm:$0xf]
  %v3033 = vld [vmem:[#allocation3 + $0x578] sm:$0xf]
  %v3034 = vld [vmem:[#allocation3 + $0x57c] sm:$0xf]
  %v3035 = vld [vmem:[#allocation3 + $0x580] sm:$0xf]
  %v3036 = vld [vmem:[#allocation3 + $0x584] sm:$0xf]
  %v3037 = vld [vmem:[#allocation3 + $0x588] sm:$0xf]
  %v3038 = vld [vmem:[#allocation3 + $0x58c] sm:$0xf]
  %v3039 = vld [vmem:[#allocation3 + $0x590] sm:$0xf]
  %v3040 = vld [vmem:[#allocation3 + $0x594] sm:$0xf]
  %v3041 = vld [vmem:[#allocation3 + $0x598] sm:$0xf]
  %v3042 = vld [vmem:[#allocation3 + $0x59c] sm:$0xf]
  %v3043 = vld [vmem:[#allocation3 + $0x5a0] sm:$0xf]
  %v3044 = vld [vmem:[#allocation3 + $0x5a4] sm:$0xf]
  %v3045 = vld [vmem:[#allocation3 + $0x5a8] sm:$0xf]
  %v3046 = vld [vmem:[#allocation3 + $0x5ac] sm:$0xf]
  %v3047 = vld [vmem:[#allocation3 + $0x5b0] sm:$0xf]
  %v3048 = vld [vmem:[#allocation3 + $0x5b4] sm:$0xf]
  %v3049 = vld [vmem:[#allocation3 + $0x5b8] sm:$0xf]
  %v3050 = vld [vmem:[#allocation3 + $0x5bc] sm:$0xf]
  %v3051 = vld [vmem:[#allocation3 + $0x5c0] sm:$0xf]
  %v3052 = vld [vmem:[#allocation3 + $0x5c4] sm:$0xf]
  %v3053 = vld [vmem:[#allocation3 + $0x5c8] sm:$0xf]
  %v3054 = vld [vmem:[#allocation3 + $0x5cc] sm:$0xf]
  %v3055 = vld [vmem:[#allocation3 + $0x5d0] sm:$0xf]
  %v3056 = vld [vmem:[#allocation3 + $0x5d4] sm:$0xf]
  %v3057 = vld [vmem:[#allocation3 + $0x5d8] sm:$0xf]
  %v3058 = vld [vmem:[#allocation3 + $0x5dc] sm:$0xf]
  %v3059 = vld [vmem:[#allocation3 + $0x5e0] sm:$0xf]
  %v3060 = vld [vmem:[#allocation3 + $0x5e4] sm:$0xf]
  %v3061 = vld [vmem:[#allocation3 + $0x5e8] sm:$0xf]
  %v3062 = vld [vmem:[#allocation3 + $0x5ec] sm:$0xf]
  %v3063 = vld [vmem:[#allocation3 + $0x5f0] sm:$0xf]
  %v3064 = vld [vmem:[#allocation3 + $0x5f4] sm:$0xf]
  %v3065 = vld [vmem:[#allocation3 + $0x5f8] sm:$0xf]
  %v3066 = vld [vmem:[#allocation3 + $0x5fc] sm:$0xf]
  %v3067 = vld [vmem:[#allocation3 + $0x600] sm:$0xf]
  %v3068 = vld [vmem:[#allocation3 + $0x604] sm:$0xf]
  %v3069 = vld [vmem:[#allocation3 + $0x608] sm:$0xf]
  %v3070 = vld [vmem:[#allocation3 + $0x60c] sm:$0xf]
  %v3071 = vld [vmem:[#allocation3 + $0x610] sm:$0xf]
  %v3072 = vld [vmem:[#allocation3 + $0x614] sm:$0xf]
  %v3073 = vld [vmem:[#allocation3 + $0x618] sm:$0xf]
  %v3074 = vld [vmem:[#allocation3 + $0x61c] sm:$0xf]
  %v3075 = vld [vmem:[#allocation3 + $0x620] sm:$0xf]
  %v3076 = vld [vmem:[#allocation3 + $0x624] sm:$0xf]
  %v3077 = vld [vmem:[#allocation3 + $0x628] sm:$0xf]
  %v3078 = vld [vmem:[#allocation3 + $0x62c] sm:$0xf]
  %v3079 = vld [vmem:[#allocation3 + $0x630] sm:$0xf]
  %v3080 = vld [vmem:[#allocation3 + $0x634] sm:$0xf]
  %v3081 = vld [vmem:[#allocation3 + $0x638] sm:$0xf]
  %v3082 = vld [vmem:[#allocation3 + $0x63c] sm:$0xf]
  %v3083 = vld [vmem:[#allocation3 + $0x640] sm:$0xf]
  %v3084 = vld [vmem:[#allocation3 + $0x644] sm:$0xf]
  %v3085 = vld [vmem:[#allocation3 + $0x648] sm:$0xf]
  %v3086 = vld [vmem:[#allocation3 + $0x64c] sm:$0xf]
  %v3087 = vld [vmem:[#allocation3 + $0x650] sm:$0xf]
  %v3088 = vld [vmem:[#allocation3 + $0x654] sm:$0xf]
  %v3089 = vld [vmem:[#allocation3 + $0x658] sm:$0xf]
  %v3090 = vld [vmem:[#allocation3 + $0x65c] sm:$0xf]
  %v3091 = vld [vmem:[#allocation3 + $0x660] sm:$0xf]
  %v3092 = vld [vmem:[#allocation3 + $0x664] sm:$0xf]
  %v3093 = vld [vmem:[#allocation3 + $0x668] sm:$0xf]
  %v3094 = vld [vmem:[#allocation3 + $0x66c] sm:$0xf]
  %v3095 = vld [vmem:[#allocation3 + $0x670] sm:$0xf]
  %v3096 = vld [vmem:[#allocation3 + $0x674] sm:$0xf]
  %v3097 = vld [vmem:[#allocation3 + $0x678] sm:$0xf]
  %v3098 = vld [vmem:[#allocation3 + $0x67c] sm:$0xf]
  %v3099 = vld [vmem:[#allocation3 + $0x680] sm:$0xf]
  %v3100 = vld [vmem:[#allocation3 + $0x684] sm:$0xf]
  %v3101 = vld [vmem:[#allocation3 + $0x688] sm:$0xf]
  %v3102 = vld [vmem:[#allocation3 + $0x68c] sm:$0xf]
  %v3103 = vld [vmem:[#allocation3 + $0x690] sm:$0xf]
  %v3104 = vld [vmem:[#allocation3 + $0x694] sm:$0xf]
  %v3105 = vld [vmem:[#allocation3 + $0x698] sm:$0xf]
  %v3106 = vld [vmem:[#allocation3 + $0x69c] sm:$0xf]
  %v3107 = vld [vmem:[#allocation3 + $0x6a0] sm:$0xf]
  %v3108 = vld [vmem:[#allocation3 + $0x6a4] sm:$0xf]
  %v3109 = vld [vmem:[#allocation3 + $0x6a8] sm:$0xf]
  %v3110 = vld [vmem:[#allocation3 + $0x6ac] sm:$0xf]
  %v3111 = vld [vmem:[#allocation3 + $0x6b0] sm:$0xf]
  %v3112 = vld [vmem:[#allocation3 + $0x6b4] sm:$0xf]
  %v3113 = vld [vmem:[#allocation3 + $0x6b8] sm:$0xf]
  %v3114 = vld [vmem:[#allocation3 + $0x6bc] sm:$0xf]
  %v3115 = vld [vmem:[#allocation3 + $0x6c0] sm:$0xf]
  %v3116 = vld [vmem:[#allocation3 + $0x6c4] sm:$0xf]
  %v3117 = vld [vmem:[#allocation3 + $0x6c8] sm:$0xf]
  %v3118 = vld [vmem:[#allocation3 + $0x6cc] sm:$0xf]
  %v3119 = vld [vmem:[#allocation3 + $0x6d0] sm:$0xf]
  %v3120 = vld [vmem:[#allocation3 + $0x6d4] sm:$0xf]
  %v3121 = vld [vmem:[#allocation3 + $0x6d8] sm:$0xf]
  %v3122 = vld [vmem:[#allocation3 + $0x6dc] sm:$0xf]
  %v3123 = vld [vmem:[#allocation3 + $0x6e0] sm:$0xf]
  %v3124 = vld [vmem:[#allocation3 + $0x6e4] sm:$0xf]
  %v3125 = vld [vmem:[#allocation3 + $0x6e8] sm:$0xf]
  %v3126 = vld [vmem:[#allocation3 + $0x6ec] sm:$0xf]
  %v3127 = vld [vmem:[#allocation3 + $0x6f0] sm:$0xf]
  %v3128 = vld [vmem:[#allocation3 + $0x6f4] sm:$0xf]
  %v3129 = vld [vmem:[#allocation3 + $0x6f8] sm:$0xf]
  %v3130 = vld [vmem:[#allocation3 + $0x6fc] sm:$0xf]
  %v3131 = vld [vmem:[#allocation3 + $0x700] sm:$0xf]
  %v3132 = vld [vmem:[#allocation3 + $0x704] sm:$0xf]
  %v3133 = vld [vmem:[#allocation3 + $0x708] sm:$0xf]
  %v3134 = vld [vmem:[#allocation3 + $0x70c] sm:$0xf]
  %v3135 = vld [vmem:[#allocation3 + $0x710] sm:$0xf]
  %v3136 = vld [vmem:[#allocation3 + $0x714] sm:$0xf]
  %v3137 = vld [vmem:[#allocation3 + $0x718] sm:$0xf]
  %v3138 = vld [vmem:[#allocation3 + $0x71c] sm:$0xf]
  %v3139 = vld [vmem:[#allocation3 + $0x720] sm:$0xf]
  %v3140 = vld [vmem:[#allocation3 + $0x724] sm:$0xf]
  %v3141 = vld [vmem:[#allocation3 + $0x728] sm:$0xf]
  %v3142 = vld [vmem:[#allocation3 + $0x72c] sm:$0xf]
  %v3143 = vld [vmem:[#allocation3 + $0x730] sm:$0xf]
  %v3144 = vld [vmem:[#allocation3 + $0x734] sm:$0xf]
  %v3145 = vld [vmem:[#allocation3 + $0x738] sm:$0xf]
  %v3146 = vld [vmem:[#allocation3 + $0x73c] sm:$0xf]
  %v3147 = vld [vmem:[#allocation3 + $0x740] sm:$0xf]
  %v3148 = vld [vmem:[#allocation3 + $0x744] sm:$0xf]
  %v3149 = vld [vmem:[#allocation3 + $0x748] sm:$0xf]
  %v3150 = vld [vmem:[#allocation3 + $0x74c] sm:$0xf]
  %v3151 = vld [vmem:[#allocation3 + $0x750] sm:$0xf]
  %v3152 = vld [vmem:[#allocation3 + $0x754] sm:$0xf]
  %v3153 = vld [vmem:[#allocation3 + $0x758] sm:$0xf]
  %v3154 = vld [vmem:[#allocation3 + $0x75c] sm:$0xf]
  %v3155 = vld [vmem:[#allocation3 + $0x760] sm:$0xf]
  %v3156 = vld [vmem:[#allocation3 + $0x764] sm:$0xf]
  %v3157 = vld [vmem:[#allocation3 + $0x768] sm:$0xf]
  %v3158 = vld [vmem:[#allocation3 + $0x76c] sm:$0xf]
  %v3159 = vld [vmem:[#allocation3 + $0x770] sm:$0xf]
  %v3160 = vld [vmem:[#allocation3 + $0x774] sm:$0xf]
  %v3161 = vld [vmem:[#allocation3 + $0x778] sm:$0xf]
  %v3162 = vld [vmem:[#allocation3 + $0x77c] sm:$0xf]
  %v3163 = vld [vmem:[#allocation3 + $0x780] sm:$0xf]
  %v3164 = vld [vmem:[#allocation3 + $0x784] sm:$0xf]
  %v3165 = vld [vmem:[#allocation3 + $0x788] sm:$0xf]
  %v3166 = vld [vmem:[#allocation3 + $0x78c] sm:$0xf]
  %v3167 = vld [vmem:[#allocation3 + $0x790] sm:$0xf]
  %v3168 = vld [vmem:[#allocation3 + $0x794] sm:$0xf]
  %v3169 = vld [vmem:[#allocation3 + $0x798] sm:$0xf]
  %v3170 = vld [vmem:[#allocation3 + $0x79c] sm:$0xf]
  %v3171 = vld [vmem:[#allocation3 + $0x7a0] sm:$0xf]
  %v3172 = vld [vmem:[#allocation3 + $0x7a4] sm:$0xf]
  %v3173 = vld [vmem:[#allocation3 + $0x7a8] sm:$0xf]
  %v3174 = vld [vmem:[#allocation3 + $0x7ac] sm:$0xf]
  %v3175 = vld [vmem:[#allocation3 + $0x7b0] sm:$0xf]
  %v3176 = vld [vmem:[#allocation3 + $0x7b4] sm:$0xf]
  %v3177 = vld [vmem:[#allocation3 + $0x7b8] sm:$0xf]
  %v3178 = vld [vmem:[#allocation3 + $0x7bc] sm:$0xf]
  %v3179 = vld [vmem:[#allocation3 + $0x7c0] sm:$0xf]
  %v3180 = vld [vmem:[#allocation3 + $0x7c4] sm:$0xf]
  %v3181 = vld [vmem:[#allocation3 + $0x7c8] sm:$0xf]
  %v3182 = vld [vmem:[#allocation3 + $0x7cc] sm:$0xf]
  %v3183 = vld [vmem:[#allocation3 + $0x7d0] sm:$0xf]
  %v3184 = vld [vmem:[#allocation3 + $0x7d4] sm:$0xf]
  %v3185 = vld [vmem:[#allocation3 + $0x7d8] sm:$0xf]
  %v3186 = vld [vmem:[#allocation3 + $0x7dc] sm:$0xf]
  %v3187 = vld [vmem:[#allocation3 + $0x7e0] sm:$0xf]
  %v3188 = vld [vmem:[#allocation3 + $0x7e4] sm:$0xf]
  %v3189 = vld [vmem:[#allocation3 + $0x7e8] sm:$0xf]
  %v3190 = vld [vmem:[#allocation3 + $0x7ec] sm:$0xf]
  %v3191 = vld [vmem:[#allocation3 + $0x7f0] sm:$0xf]
  %v3192 = vld [vmem:[#allocation3 + $0x7f4] sm:$0xf]
  %v3193 = vld [vmem:[#allocation3 + $0x7f8] sm:$0xf]
  %v3194 = vld [vmem:[#allocation3 + $0x7fc] sm:$0xf]
  %v3195 = vld [vmem:[#allocation3 + $0x800] sm:$0xf]
  %v3196 = vld [vmem:[#allocation3 + $0x804] sm:$0xf]
  %v3197 = vld [vmem:[#allocation3 + $0x808] sm:$0xf]
  %v3198 = vld [vmem:[#allocation3 + $0x80c] sm:$0xf]
  %v3199 = vld [vmem:[#allocation3 + $0x810] sm:$0xf]
  %v3200 = vld [vmem:[#allocation3 + $0x814] sm:$0xf]
  %v3201 = vld [vmem:[#allocation3 + $0x818] sm:$0xf]
  %v3202 = vld [vmem:[#allocation3 + $0x81c] sm:$0xf]
  %v3203 = vld [vmem:[#allocation3 + $0x820] sm:$0xf]
  %v3204 = vld [vmem:[#allocation3 + $0x824] sm:$0xf]
  %v3205 = vld [vmem:[#allocation3 + $0x828] sm:$0xf]
  %v3206 = vld [vmem:[#allocation3 + $0x82c] sm:$0xf]
  %v3207 = vld [vmem:[#allocation3 + $0x830] sm:$0xf]
  %v3208 = vld [vmem:[#allocation3 + $0x834] sm:$0xf]
  %v3209 = vld [vmem:[#allocation3 + $0x838] sm:$0xf]
  %v3210 = vld [vmem:[#allocation3 + $0x83c] sm:$0xf]
  %v3211 = vld [vmem:[#allocation3 + $0x840] sm:$0xf]
  %v3212 = vld [vmem:[#allocation3 + $0x844] sm:$0xf]
  %v3213 = vld [vmem:[#allocation3 + $0x848] sm:$0xf]
  %v3214 = vld [vmem:[#allocation3 + $0x84c] sm:$0xf]
  %v3215 = vld [vmem:[#allocation3 + $0x850] sm:$0xf]
  %v3216 = vld [vmem:[#allocation3 + $0x854] sm:$0xf]
  %v3217 = vld [vmem:[#allocation3 + $0x858] sm:$0xf]
  %v3218 = vld [vmem:[#allocation3 + $0x85c] sm:$0xf]
  %v3219 = vld [vmem:[#allocation3 + $0x860] sm:$0xf]
  %v3220 = vld [vmem:[#allocation3 + $0x864] sm:$0xf]
  %v3221 = vld [vmem:[#allocation3 + $0x868] sm:$0xf]
  %v3222 = vld [vmem:[#allocation3 + $0x86c] sm:$0xf]
  %v3223 = vld [vmem:[#allocation3 + $0x870] sm:$0xf]
  %v3224 = vld [vmem:[#allocation3 + $0x874] sm:$0xf]
  %v3225 = vld [vmem:[#allocation3 + $0x878] sm:$0xf]
  %v3226 = vld [vmem:[#allocation3 + $0x87c] sm:$0xf]
  %v3227 = vld [vmem:[#allocation3 + $0x880] sm:$0xf]
  %v3228 = vld [vmem:[#allocation3 + $0x884] sm:$0xf]
  %v3229 = vld [vmem:[#allocation3 + $0x888] sm:$0xf]
  %v3230 = vld [vmem:[#allocation3 + $0x88c] sm:$0xf]
  %v3231 = vld [vmem:[#allocation3 + $0x890] sm:$0xf]
  %v3232 = vld [vmem:[#allocation3 + $0x894] sm:$0xf]
  %v3233 = vld [vmem:[#allocation3 + $0x898] sm:$0xf]
  %v3234 = vld [vmem:[#allocation3 + $0x89c] sm:$0xf]
  %v3235 = vld [vmem:[#allocation3 + $0x8a0] sm:$0xf]
  %v3236 = vld [vmem:[#allocation3 + $0x8a4] sm:$0xf]
  %v3237 = vld [vmem:[#allocation3 + $0x8a8] sm:$0xf]
  %v3238 = vld [vmem:[#allocation3 + $0x8ac] sm:$0xf]
  %v3239 = vld [vmem:[#allocation3 + $0x8b0] sm:$0xf]
  %v3240 = vld [vmem:[#allocation3 + $0x8b4] sm:$0xf]
  %v3241 = vld [vmem:[#allocation3 + $0x8b8] sm:$0xf]
  %v3242 = vld [vmem:[#allocation3 + $0x8bc] sm:$0xf]
  %v3243 = vld [vmem:[#allocation3 + $0x8c0] sm:$0xf]
  %v3244 = vld [vmem:[#allocation3 + $0x8c4] sm:$0xf]
  %v3245 = vld [vmem:[#allocation3 + $0x8c8] sm:$0xf]
  %v3246 = vld [vmem:[#allocation3 + $0x8cc] sm:$0xf]
  %v3247 = vld [vmem:[#allocation3 + $0x8d0] sm:$0xf]
  %v3248 = vld [vmem:[#allocation3 + $0x8d4] sm:$0xf]
  %v3249 = vld [vmem:[#allocation3 + $0x8d8] sm:$0xf]
  %v3250 = vld [vmem:[#allocation3 + $0x8dc] sm:$0xf]
  %v3251 = vld [vmem:[#allocation3 + $0x8e0] sm:$0xf]
  %v3252 = vld [vmem:[#allocation3 + $0x8e4] sm:$0xf]
  %v3253 = vld [vmem:[#allocation3 + $0x8e8] sm:$0xf]
  %v3254 = vld [vmem:[#allocation3 + $0x8ec] sm:$0xf]
  %v3255 = vld [vmem:[#allocation3 + $0x8f0] sm:$0xf]
  %v3256 = vld [vmem:[#allocation3 + $0x8f4] sm:$0xf]
  %v3257 = vld [vmem:[#allocation3 + $0x8f8] sm:$0xf]
  %v3258 = vld [vmem:[#allocation3 + $0x8fc] sm:$0xf]
  %v3259 = vld [vmem:[#allocation3 + $0x900] sm:$0xf]
  %v3260 = vld [vmem:[#allocation3 + $0x904] sm:$0xf]
  %v3261 = vld [vmem:[#allocation3 + $0x908] sm:$0xf]
  %v3262 = vld [vmem:[#allocation3 + $0x90c] sm:$0xf]
  %v3263 = vld [vmem:[#allocation3 + $0x910] sm:$0xf]
  %v3264 = vld [vmem:[#allocation3 + $0x914] sm:$0xf]
  %v3265 = vld [vmem:[#allocation3 + $0x918] sm:$0xf]
  %v3266 = vld [vmem:[#allocation3 + $0x91c] sm:$0xf]
  %v3267 = vld [vmem:[#allocation3 + $0x920] sm:$0xf]
  %v3268 = vld [vmem:[#allocation3 + $0x924] sm:$0xf]
  %v3269 = vld [vmem:[#allocation3 + $0x928] sm:$0xf]
  %v3270 = vld [vmem:[#allocation3 + $0x92c] sm:$0xf]
  %v3271 = vld [vmem:[#allocation3 + $0x930] sm:$0xf]
  %v3272 = vld [vmem:[#allocation3 + $0x934] sm:$0xf]
  %v3273 = vld [vmem:[#allocation3 + $0x938] sm:$0xf]
  %v3274 = vld [vmem:[#allocation3 + $0x93c] sm:$0xf]
  %v3275 = vld [vmem:[#allocation3 + $0x940] sm:$0xf]
  %v3276 = vld [vmem:[#allocation3 + $0x944] sm:$0xf]
  %v3277 = vld [vmem:[#allocation3 + $0x948] sm:$0xf]
  %v3278 = vld [vmem:[#allocation3 + $0x94c] sm:$0xf]
  %v3279 = vld [vmem:[#allocation3 + $0x950] sm:$0xf]
  %v3280 = vld [vmem:[#allocation3 + $0x954] sm:$0xf]
  %v3281 = vld [vmem:[#allocation3 + $0x958] sm:$0xf]
  %v3282 = vld [vmem:[#allocation3 + $0x95c] sm:$0xf]
  %v3283 = vld [vmem:[#allocation3 + $0x960] sm:$0xf]
  %v3284 = vld [vmem:[#allocation3 + $0x964] sm:$0xf]
  %v3285 = vld [vmem:[#allocation3 + $0x968] sm:$0xf]
  %v3286 = vld [vmem:[#allocation3 + $0x96c] sm:$0xf]
  %v3287 = vld [vmem:[#allocation3 + $0x970] sm:$0xf]
  %v3288 = vld [vmem:[#allocation3 + $0x974] sm:$0xf]
  %v3289 = vld [vmem:[#allocation3 + $0x978] sm:$0xf]
  %v3290 = vld [vmem:[#allocation3 + $0x97c] sm:$0xf]
  %v3291 = vld [vmem:[#allocation3 + $0x980] sm:$0xf]
  %v3292 = vld [vmem:[#allocation3 + $0x984] sm:$0xf]
  %v3293 = vld [vmem:[#allocation3 + $0x988] sm:$0xf]
  %v3294 = vld [vmem:[#allocation3 + $0x98c] sm:$0xf]
  %v3295 = vld [vmem:[#allocation3 + $0x990] sm:$0xf]
  %v3296 = vld [vmem:[#allocation3 + $0x994] sm:$0xf]
  %v3297 = vld [vmem:[#allocation3 + $0x998] sm:$0xf]
  %v3298 = vld [vmem:[#allocation3 + $0x99c] sm:$0xf]
  %v3299 = vld [vmem:[#allocation3 + $0x9a0] sm:$0xf]
  %v3300 = vld [vmem:[#allocation3 + $0x9a4] sm:$0xf]
  %v3301 = vld [vmem:[#allocation3 + $0x9a8] sm:$0xf]
  %v3302 = vld [vmem:[#allocation3 + $0x9ac] sm:$0xf]
  %v3303 = vld [vmem:[#allocation3 + $0x9b0] sm:$0xf]
  %v3304 = vld [vmem:[#allocation3 + $0x9b4] sm:$0xf]
  %v3305 = vld [vmem:[#allocation3 + $0x9b8] sm:$0xf]
  %v3306 = vld [vmem:[#allocation3 + $0x9bc] sm:$0xf]
  %v3307 = vld [vmem:[#allocation3 + $0x9c0] sm:$0xf]
  %v3308 = vld [vmem:[#allocation3 + $0x9c4] sm:$0xf]
  %v3309 = vld [vmem:[#allocation3 + $0x9c8] sm:$0xf]
  %v3310 = vld [vmem:[#allocation3 + $0x9cc] sm:$0xf]
  %v3311 = vld [vmem:[#allocation3 + $0x9d0] sm:$0xf]
  %v3312 = vld [vmem:[#allocation3 + $0x9d4] sm:$0xf]
  %v3313 = vld [vmem:[#allocation3 + $0x9d8] sm:$0xf]
  %v3314 = vld [vmem:[#allocation3 + $0x9dc] sm:$0xf]
  %v3315 = vld [vmem:[#allocation3 + $0x9e0] sm:$0xf]
  %v3316 = vld [vmem:[#allocation3 + $0x9e4] sm:$0xf]
  %v3317 = vld [vmem:[#allocation3 + $0x9e8] sm:$0xf]
  %v3318 = vld [vmem:[#allocation3 + $0x9ec] sm:$0xf]
  %v3319 = vld [vmem:[#allocation3 + $0x9f0] sm:$0xf]
  %v3320 = vld [vmem:[#allocation3 + $0x9f4] sm:$0xf]
  %v3321 = vld [vmem:[#allocation3 + $0x9f8] sm:$0xf]
  %v3322 = vld [vmem:[#allocation3 + $0x9fc] sm:$0xf]
  %v3323 = vld [vmem:[#allocation3 + $0xa00] sm:$0xf]
  %v3324 = vld [vmem:[#allocation3 + $0xa04] sm:$0x1]
  %v3331 = vcombine.high %v2677, %v2677
  %v3333 = vunpack.c.l.s4 1966171168
  %v3334 = vunpack.c.0.s8 %v3333
  %v3335 = vlaneseq
  %v3336 = vshrl.u32 %v3335, 7
  %v3337 = vsub.s32 %v3334, %v3336
  %v3338 = vrot.slane %v2677, %v3337
  %v3340 = vunpack.c.l.s4 1966171168
  %v3341 = vunpack.c.0.s8 %v3340
  %v3342 = vlaneseq
  %v3343 = vshrl.u32 %v3342, 7
  %v3344 = vsub.s32 %v3341, %v3343
  %v3345 = vrot.slane %v3331, %v3344
  %v3346 = vcombine.high %v3338, %v3338
  %v3347 = vcombine.high %v3345, %v3345
  %v3349 = vunpack.c.l.s4 1966171168
  %v3350 = vunpack.c.0.s8 %v3349
  %v3351 = vlaneseq
  %v3352 = vshrl.u32 %v3351, 7
  %v3353 = vsub.s32 %v3350, %v3352
  %v3354 = vrot.slane %v3338, %v3353
  %v3356 = vunpack.c.l.s4 1966171168
  %v3357 = vunpack.c.0.s8 %v3356
  %v3358 = vlaneseq
  %v3359 = vshrl.u32 %v3358, 7
  %v3360 = vsub.s32 %v3357, %v3359
  %v3361 = vrot.slane %v3345, %v3360
  %v3363 = vunpack.c.l.s4 1966171168
  %v3364 = vunpack.c.0.s8 %v3363
  %v3365 = vlaneseq
  %v3366 = vshrl.u32 %v3365, 7
  %v3367 = vsub.s32 %v3364, %v3366
  %v3368 = vrot.slane %v3346, %v3367
  %v3370 = vunpack.c.l.s4 1966171168
  %v3371 = vunpack.c.0.s8 %v3370
  %v3372 = vlaneseq
  %v3373 = vshrl.u32 %v3372, 7
  %v3374 = vsub.s32 %v3371, %v3373
  %v3375 = vrot.slane %v3347, %v3374
  %v3376 = vcombine.high %v3354, %v3354
  %v3377 = vcombine.high %v3361, %v3361
  %v3378 = vcombine.high %v3368, %v3368
  %v3379 = vcombine.high %v3375, %v3375
  %v3380 = vcombine.high %v2678, %v2678
  %v3382 = vunpack.c.l.s4 1966171168
  %v3383 = vunpack.c.0.s8 %v3382
  %v3384 = vlaneseq
  %v3385 = vshrl.u32 %v3384, 7
  %v3386 = vsub.s32 %v3383, %v3385
  %v3387 = vrot.slane %v2678, %v3386
  %v3389 = vunpack.c.l.s4 1966171168
  %v3390 = vunpack.c.0.s8 %v3389
  %v3391 = vlaneseq
  %v3392 = vshrl.u32 %v3391, 7
  %v3393 = vsub.s32 %v3390, %v3392
  %v3394 = vrot.slane %v3380, %v3393
  %v3395 = vcombine.high %v3387, %v3387
  %v3396 = vcombine.high %v3394, %v3394
  %v3398 = vunpack.c.l.s4 1966171168
  %v3399 = vunpack.c.0.s8 %v3398
  %v3400 = vlaneseq
  %v3401 = vshrl.u32 %v3400, 7
  %v3402 = vsub.s32 %v3399, %v3401
  %v3403 = vrot.slane %v3387, %v3402
  %v3405 = vunpack.c.l.s4 1966171168
  %v3406 = vunpack.c.0.s8 %v3405
  %v3407 = vlaneseq
  %v3408 = vshrl.u32 %v3407, 7
  %v3409 = vsub.s32 %v3406, %v3408
  %v3410 = vrot.slane %v3394, %v3409
  %v3412 = vunpack.c.l.s4 1966171168
  %v3413 = vunpack.c.0.s8 %v3412
  %v3414 = vlaneseq
  %v3415 = vshrl.u32 %v3414, 7
  %v3416 = vsub.s32 %v3413, %v3415
  %v3417 = vrot.slane %v3395, %v3416
  %v3419 = vunpack.c.l.s4 1966171168
  %v3420 = vunpack.c.0.s8 %v3419
  %v3421 = vlaneseq
  %v3422 = vshrl.u32 %v3421, 7
  %v3423 = vsub.s32 %v3420, %v3422
  %v3424 = vrot.slane %v3396, %v3423
  %v3425 = vcombine.high %v3403, %v3403
  %v3426 = vcombine.high %v3410, %v3410
  %v3427 = vcombine.high %v3417, %v3417
  %v3428 = vcombine.high %v3424, %v3424
  %v3429 = vcombine.high %v2679, %v2679
  %v3431 = vunpack.c.l.s4 1966171168
  %v3432 = vunpack.c.0.s8 %v3431
  %v3433 = vlaneseq
  %v3434 = vshrl.u32 %v3433, 7
  %v3435 = vsub.s32 %v3432, %v3434
  %v3436 = vrot.slane %v2679, %v3435
  %v3438 = vunpack.c.l.s4 1966171168
  %v3439 = vunpack.c.0.s8 %v3438
  %v3440 = vlaneseq
  %v3441 = vshrl.u32 %v3440, 7
  %v3442 = vsub.s32 %v3439, %v3441
  %v3443 = vrot.slane %v3429, %v3442
  %v3444 = vcombine.high %v3436, %v3436
  %v3445 = vcombine.high %v3443, %v3443
  %v3447 = vunpack.c.l.s4 1966171168
  %v3448 = vunpack.c.0.s8 %v3447
  %v3449 = vlaneseq
  %v3450 = vshrl.u32 %v3449, 7
  %v3451 = vsub.s32 %v3448, %v3450
  %v3452 = vrot.slane %v3436, %v3451
  %v3454 = vunpack.c.l.s4 1966171168
  %v3455 = vunpack.c.0.s8 %v3454
  %v3456 = vlaneseq
  %v3457 = vshrl.u32 %v3456, 7
  %v3458 = vsub.s32 %v3455, %v3457
  %v3459 = vrot.slane %v3443, %v3458
  %v3461 = vunpack.c.l.s4 1966171168
  %v3462 = vunpack.c.0.s8 %v3461
  %v3463 = vlaneseq
  %v3464 = vshrl.u32 %v3463, 7
  %v3465 = vsub.s32 %v3462, %v3464
  %v3466 = vrot.slane %v3444, %v3465
  %v3468 = vunpack.c.l.s4 1966171168
  %v3469 = vunpack.c.0.s8 %v3468
  %v3470 = vlaneseq
  %v3471 = vshrl.u32 %v3470, 7
  %v3472 = vsub.s32 %v3469, %v3471
  %v3473 = vrot.slane %v3445, %v3472
  %v3474 = vcombine.high %v3452, %v3452
  %v3475 = vcombine.high %v3459, %v3459
  %v3476 = vcombine.high %v3466, %v3466
  %v3477 = vcombine.high %v3473, %v3473
  %v3478 = vcombine.high %v2680, %v2680
  %v3480 = vunpack.c.l.s4 1966171168
  %v3481 = vunpack.c.0.s8 %v3480
  %v3482 = vlaneseq
  %v3483 = vshrl.u32 %v3482, 7
  %v3484 = vsub.s32 %v3481, %v3483
  %v3485 = vrot.slane %v2680, %v3484
  %v3487 = vunpack.c.l.s4 1966171168
  %v3488 = vunpack.c.0.s8 %v3487
  %v3489 = vlaneseq
  %v3490 = vshrl.u32 %v3489, 7
  %v3491 = vsub.s32 %v3488, %v3490
  %v3492 = vrot.slane %v3478, %v3491
  %v3493 = vcombine.high %v3485, %v3485
  %v3494 = vcombine.high %v3492, %v3492
  %v3496 = vunpack.c.l.s4 1966171168
  %v3497 = vunpack.c.0.s8 %v3496
  %v3498 = vlaneseq
  %v3499 = vshrl.u32 %v3498, 7
  %v3500 = vsub.s32 %v3497, %v3499
  %v3501 = vrot.slane %v3485, %v3500
  %v3503 = vunpack.c.l.s4 1966171168
  %v3504 = vunpack.c.0.s8 %v3503
  %v3505 = vlaneseq
  %v3506 = vshrl.u32 %v3505, 7
  %v3507 = vsub.s32 %v3504, %v3506
  %v3508 = vrot.slane %v3492, %v3507
  %v3510 = vunpack.c.l.s4 1966171168
  %v3511 = vunpack.c.0.s8 %v3510
  %v3512 = vlaneseq
  %v3513 = vshrl.u32 %v3512, 7
  %v3514 = vsub.s32 %v3511, %v3513
  %v3515 = vrot.slane %v3493, %v3514
  %v3517 = vunpack.c.l.s4 1966171168
  %v3518 = vunpack.c.0.s8 %v3517
  %v3519 = vlaneseq
  %v3520 = vshrl.u32 %v3519, 7
  %v3521 = vsub.s32 %v3518, %v3520
  %v3522 = vrot.slane %v3494, %v3521
  %v3523 = vcombine.high %v3501, %v3501
  %v3524 = vcombine.high %v3508, %v3508
  %v3525 = vcombine.high %v3515, %v3515
  %v3526 = vcombine.high %v3522, %v3522
  %v3527 = vcombine.high %v2681, %v2681
  %v3529 = vunpack.c.l.s4 1966171168
  %v3530 = vunpack.c.0.s8 %v3529
  %v3531 = vlaneseq
  %v3532 = vshrl.u32 %v3531, 7
  %v3533 = vsub.s32 %v3530, %v3532
  %v3534 = vrot.slane %v2681, %v3533
  %v3536 = vunpack.c.l.s4 1966171168
  %v3537 = vunpack.c.0.s8 %v3536
  %v3538 = vlaneseq
  %v3539 = vshrl.u32 %v3538, 7
  %v3540 = vsub.s32 %v3537, %v3539
  %v3541 = vrot.slane %v3527, %v3540
  %v3542 = vcombine.high %v3534, %v3534
  %v3543 = vcombine.high %v3541, %v3541
  %v3545 = vunpack.c.l.s4 1966171168
  %v3546 = vunpack.c.0.s8 %v3545
  %v3547 = vlaneseq
  %v3548 = vshrl.u32 %v3547, 7
  %v3549 = vsub.s32 %v3546, %v3548
  %v3550 = vrot.slane %v3534, %v3549
  %v3552 = vunpack.c.l.s4 1966171168
  %v3553 = vunpack.c.0.s8 %v3552
  %v3554 = vlaneseq
  %v3555 = vshrl.u32 %v3554, 7
  %v3556 = vsub.s32 %v3553, %v3555
  %v3557 = vrot.slane %v3541, %v3556
  %v3559 = vunpack.c.l.s4 1966171168
  %v3560 = vunpack.c.0.s8 %v3559
  %v3561 = vlaneseq
  %v3562 = vshrl.u32 %v3561, 7
  %v3563 = vsub.s32 %v3560, %v3562
  %v3564 = vrot.slane %v3542, %v3563
  %v3566 = vunpack.c.l.s4 1966171168
  %v3567 = vunpack.c.0.s8 %v3566
  %v3568 = vlaneseq
  %v3569 = vshrl.u32 %v3568, 7
  %v3570 = vsub.s32 %v3567, %v3569
  %v3571 = vrot.slane %v3543, %v3570
  %v3572 = vcombine.high %v3550, %v3550
  %v3573 = vcombine.high %v3557, %v3557
  %v3574 = vcombine.high %v3564, %v3564
  %v3575 = vcombine.high %v3571, %v3571
  %v3577 = vunpack.c.l.s4 1966171168
  %v3578 = vunpack.c.0.s8 %v3577
  %v3579 = vlaneseq
  %v3580 = vshrl.u32 %v3579, 7
  %v3581 = vsub.s32 %v3578, %v3580
  %v3582 = vrot.slane %v2682, %v3581
  %v3584 = vunpack.c.l.s4 1966171168
  %v3585 = vunpack.c.0.s8 %v3584
  %v3586 = vlaneseq
  %v3587 = vshrl.u32 %v3586, 7
  %v3588 = vsub.s32 %v3585, %v3587
  %v3589 = vrot.slane %v3582, %v3588
  %v4272 = vunpack.c.l.b16 %v2683
  %v4273 = vunpack.c.l.b16 %v2684
  %v4274 = vunpack.c.l.b16 %v2685
  %v4275 = vunpack.c.l.b16 %v2686
  %v4276 = vunpack.c.l.b16 %v2687
  %v4277 = vunpack.c.l.b16 %v2688
  %v4278 = vunpack.c.l.b16 %v2689
  %v4279 = vunpack.c.l.b16 %v2690
  %v4280 = vunpack.c.l.b16 %v2691
  %v4281 = vunpack.c.l.b16 %v2692
  %v4282 = vunpack.c.l.b16 %v2693
  %v4283 = vunpack.c.l.b16 %v2694
  %v4284 = vunpack.c.l.b16 %v2695
  %v4285 = vunpack.c.l.b16 %v2696
  %v4286 = vunpack.c.l.b16 %v2697
  %v4287 = vunpack.c.l.b16 %v2698
  %v4288 = vunpack.c.l.b16 %v2699
  %v4289 = vunpack.c.l.b16 %v2700
  %v4290 = vunpack.c.l.b16 %v2701
  %v4291 = vunpack.c.l.b16 %v2702
  %v4292 = vunpack.c.l.b16 %v2703
  %v4293 = vunpack.c.l.b16 %v2704
  %v4294 = vunpack.c.l.b16 %v2705
  %v4295 = vunpack.c.l.b16 %v2706
  %v4296 = vunpack.c.l.b16 %v2707
  %v4297 = vunpack.c.l.b16 %v2708
  %v4298 = vunpack.c.l.b16 %v2709
  %v4299 = vunpack.c.l.b16 %v2710
  %v4300 = vunpack.c.l.b16 %v2711
  %v4301 = vunpack.c.l.b16 %v2712
  %v4302 = vunpack.c.l.b16 %v2713
  %v4303 = vunpack.c.l.b16 %v2714
  %v4304 = vunpack.c.l.b16 %v2715
  %v4305 = vunpack.c.l.b16 %v2716
  %v4306 = vunpack.c.l.b16 %v2717
  %v4307 = vunpack.c.l.b16 %v2718
  %v4308 = vunpack.c.l.b16 %v2719
  %v4309 = vunpack.c.l.b16 %v2720
  %v4310 = vunpack.c.l.b16 %v2721
  %v4311 = vunpack.c.l.b16 %v2722
  %v4312 = vunpack.c.l.b16 %v2723
  %v4313 = vunpack.c.l.b16 %v2724
  %v4314 = vunpack.c.l.b16 %v2725
  %v4315 = vunpack.c.l.b16 %v2726
  %v4316 = vunpack.c.l.b16 %v2727
  %v4317 = vunpack.c.l.b16 %v2728
  %v4318 = vunpack.c.l.b16 %v2729
  %v4319 = vunpack.c.l.b16 %v2730
  %v4320 = vunpack.c.l.b16 %v2731
  %v4321 = vunpack.c.l.b16 %v2732
  %v4322 = vunpack.c.l.b16 %v2733
  %v4323 = vunpack.c.l.b16 %v2734
  %v4324 = vunpack.c.l.b16 %v2735
  %v4325 = vunpack.c.l.b16 %v2736
  %v4326 = vunpack.c.l.b16 %v2737
  %v4327 = vunpack.c.l.b16 %v2738
  %v4328 = vunpack.c.l.b16 %v2739
  %v4329 = vunpack.c.l.b16 %v2740
  %v4330 = vunpack.c.l.b16 %v2741
  %v4331 = vunpack.c.l.b16 %v2742
  %v4332 = vunpack.c.l.b16 %v2743
  %v4333 = vunpack.c.l.b16 %v2744
  %v4334 = vunpack.c.l.b16 %v2745
  %v4335 = vunpack.c.l.b16 %v2746
  %v4336 = vunpack.c.l.b16 %v2747
  %v4337 = vunpack.c.l.b16 %v2748
  %v4338 = vunpack.c.l.b16 %v2749
  %v4339 = vunpack.c.l.b16 %v2750
  %v4340 = vunpack.c.l.b16 %v2751
  %v4341 = vunpack.c.l.b16 %v2752
  %v4342 = vunpack.c.l.b16 %v2753
  %v4343 = vunpack.c.l.b16 %v2754
  %v4344 = vunpack.c.l.b16 %v2755
  %v4345 = vunpack.c.l.b16 %v2756
  %v4346 = vunpack.c.l.b16 %v2757
  %v4347 = vunpack.c.l.b16 %v2758
  %v4348 = vunpack.c.l.b16 %v2759
  %v4349 = vunpack.c.l.b16 %v2760
  %v4350 = vunpack.c.l.b16 %v2761
  %v4351 = vunpack.c.l.b16 %v2762
  %v4352 = vunpack.c.l.b16 %v2763
  %v4353 = vunpack.c.l.b16 %v2764
  %v4354 = vunpack.c.l.b16 %v2765
  %v4355 = vunpack.c.l.b16 %v2766
  %v4356 = vunpack.c.l.b16 %v2767
  %v4357 = vunpack.c.l.b16 %v2768
  %v4358 = vunpack.c.l.b16 %v2769
  %v4359 = vunpack.c.l.b16 %v2770
  %v4360 = vunpack.c.l.b16 %v2771
  %v4361 = vunpack.c.l.b16 %v2772
  %v4362 = vunpack.c.l.b16 %v2773
  %v4363 = vunpack.c.l.b16 %v2774
  %v4364 = vunpack.c.l.b16 %v2775
  %v4365 = vunpack.c.l.b16 %v2776
  %v4366 = vunpack.c.l.b16 %v2777
  %v4367 = vunpack.c.l.b16 %v2778
  %v4368 = vunpack.c.l.b16 %v2779
  %v4369 = vunpack.c.l.b16 %v2780
  %v4370 = vunpack.c.l.b16 %v2781
  %v4371 = vunpack.c.l.b16 %v2782
  %v4372 = vunpack.c.l.b16 %v2783
  %v4373 = vunpack.c.l.b16 %v2784
  %v4374 = vunpack.c.l.b16 %v2785
  %v4375 = vunpack.c.l.b16 %v2786
  %v4376 = vunpack.c.l.b16 %v2787
  %v4377 = vunpack.c.l.b16 %v2788
  %v4378 = vunpack.c.l.b16 %v2789
  %v4379 = vunpack.c.l.b16 %v2790
  %v4380 = vunpack.c.l.b16 %v2791
  %v4381 = vunpack.c.l.b16 %v2792
  %v4382 = vunpack.c.l.b16 %v2793
  %v4383 = vunpack.c.l.b16 %v2794
  %v4384 = vunpack.c.l.b16 %v2795
  %v4385 = vunpack.c.l.b16 %v2796
  %v4386 = vunpack.c.l.b16 %v2797
  %v4387 = vunpack.c.l.b16 %v2798
  %v4388 = vunpack.c.l.b16 %v2799
  %v4389 = vunpack.c.l.b16 %v2800
  %v4390 = vunpack.c.l.b16 %v2801
  %v4391 = vunpack.c.l.b16 %v2802
  %v4392 = vunpack.c.l.b16 %v2803
  %v4393 = vunpack.c.l.b16 %v2804
  %v4394 = vunpack.c.l.b16 %v2805
  %v4395 = vunpack.c.l.b16 %v2806
  %v4396 = vunpack.c.l.b16 %v2807
  %v4397 = vunpack.c.l.b16 %v2808
  %v4398 = vunpack.c.l.b16 %v2809
  %v4399 = vunpack.c.l.b16 %v2810
  %v4400 = vunpack.c.l.b16 %v2811
  %v4401 = vunpack.c.l.b16 %v2812
  %v4402 = vunpack.c.l.b16 %v2813
  %v4403 = vunpack.c.l.b16 %v2814
  %v4404 = vunpack.c.l.b16 %v2815
  %v4405 = vunpack.c.l.b16 %v2816
  %v4406 = vunpack.c.l.b16 %v2817
  %v4407 = vunpack.c.l.b16 %v2818
  %v4408 = vunpack.c.l.b16 %v2819
  %v4409 = vunpack.c.l.b16 %v2820
  %v4410 = vunpack.c.l.b16 %v2821
  %v4411 = vunpack.c.l.b16 %v2822
  %v4412 = vunpack.c.l.b16 %v2823
  %v4413 = vunpack.c.l.b16 %v2824
  %v4414 = vunpack.c.l.b16 %v2825
  %v4415 = vunpack.c.l.b16 %v2826
  %v4416 = vunpack.c.l.b16 %v2827
  %v4417 = vunpack.c.l.b16 %v2828
  %v4418 = vunpack.c.l.b16 %v2829
  %v4419 = vunpack.c.l.b16 %v2830
  %v4420 = vunpack.c.l.b16 %v2831
  %v4421 = vunpack.c.l.b16 %v2832
  %v4422 = vunpack.c.l.b16 %v2833
  %v4423 = vunpack.c.l.b16 %v2834
  %v4424 = vunpack.c.l.b16 %v2835
  %v4425 = vunpack.c.l.b16 %v2836
  %v4426 = vunpack.c.l.b16 %v2837
  %v4427 = vunpack.c.l.b16 %v2838
  %v4428 = vunpack.c.l.b16 %v2839
  %v4429 = vunpack.c.l.b16 %v2840
  %v4430 = vunpack.c.l.b16 %v2841
  %v4431 = vunpack.c.l.b16 %v2842
  %v4432 = vunpack.c.l.b16 %v2843
  %v4433 = vunpack.c.l.b16 %v2844
  %v4434 = vunpack.c.l.b16 %v2845
  %v4435 = vunpack.c.l.b16 %v2846
  %v4436 = vunpack.c.l.b16 %v2847
  %v4437 = vunpack.c.l.b16 %v2848
  %v4438 = vunpack.c.l.b16 %v2849
  %v4439 = vunpack.c.l.b16 %v2850
  %v4440 = vunpack.c.l.b16 %v2851
  %v4441 = vunpack.c.l.b16 %v2852
  %v4442 = vunpack.c.l.b16 %v2853
  %v4443 = vunpack.c.l.b16 %v2854
  %v4444 = vunpack.c.l.b16 %v2855
  %v4445 = vunpack.c.l.b16 %v2856
  %v4446 = vunpack.c.l.b16 %v2857
  %v4447 = vunpack.c.l.b16 %v2858
  %v4448 = vunpack.c.l.b16 %v2859
  %v4449 = vunpack.c.l.b16 %v2860
  %v4450 = vunpack.c.l.b16 %v2861
  %v4451 = vunpack.c.l.b16 %v2862
  %v4452 = vunpack.c.l.b16 %v2863
  %v4453 = vunpack.c.l.b16 %v2864
  %v4454 = vunpack.c.l.b16 %v2865
  %v4455 = vunpack.c.l.b16 %v2866
  %v4456 = vunpack.c.l.b16 %v2867
  %v4457 = vunpack.c.l.b16 %v2868
  %v4458 = vunpack.c.l.b16 %v2869
  %v4459 = vunpack.c.l.b16 %v2870
  %v4460 = vunpack.c.l.b16 %v2871
  %v4461 = vunpack.c.l.b16 %v2872
  %v4462 = vunpack.c.l.b16 %v2873
  %v4463 = vunpack.c.l.b16 %v2874
  %v4464 = vunpack.c.l.b16 %v2875
  %v4465 = vunpack.c.l.b16 %v2876
  %v4466 = vunpack.c.l.b16 %v2877
  %v4467 = vunpack.c.l.b16 %v2878
  %v4468 = vunpack.c.l.b16 %v2879
  %v4469 = vunpack.c.l.b16 %v2880
  %v4470 = vunpack.c.l.b16 %v2881
  %v4471 = vunpack.c.l.b16 %v2882
  %v4472 = vunpack.c.l.b16 %v2883
  %v4473 = vunpack.c.l.b16 %v2884
  %v4474 = vunpack.c.l.b16 %v2885
  %v4475 = vunpack.c.l.b16 %v2886
  %v4476 = vunpack.c.l.b16 %v2887
  %v4477 = vunpack.c.l.b16 %v2888
  %v4478 = vunpack.c.l.b16 %v2889
  %v4479 = vunpack.c.l.b16 %v2890
  %v4480 = vunpack.c.l.b16 %v2891
  %v4481 = vunpack.c.l.b16 %v2892
  %v4482 = vunpack.c.l.b16 %v2893
  %v4483 = vunpack.c.l.b16 %v2894
  %v4484 = vunpack.c.l.b16 %v2895
  %v4485 = vunpack.c.l.b16 %v2896
  %v4486 = vunpack.c.l.b16 %v2897
  %v4487 = vunpack.c.l.b16 %v2898
  %v4488 = vunpack.c.l.b16 %v2899
  %v4489 = vunpack.c.l.b16 %v2900
  %v4490 = vunpack.c.l.b16 %v2901
  %v4491 = vunpack.c.l.b16 %v2902
  %v4492 = vunpack.c.l.b16 %v2903
  %v4493 = vunpack.c.l.b16 %v2904
  %v4494 = vunpack.c.l.b16 %v2905
  %v4495 = vunpack.c.l.b16 %v2906
  %v4496 = vunpack.c.l.b16 %v2907
  %v4497 = vunpack.c.l.b16 %v2908
  %v4498 = vunpack.c.l.b16 %v2909
  %v4499 = vunpack.c.l.b16 %v2910
  %v4500 = vunpack.c.l.b16 %v2911
  %v4501 = vunpack.c.l.b16 %v2912
  %v4502 = vunpack.c.l.b16 %v2913
  %v4503 = vunpack.c.l.b16 %v2914
  %v4504 = vunpack.c.l.b16 %v2915
  %v4505 = vunpack.c.l.b16 %v2916
  %v4506 = vunpack.c.l.b16 %v2917
  %v4507 = vunpack.c.l.b16 %v2918
  %v4508 = vunpack.c.l.b16 %v2919
  %v4509 = vunpack.c.l.b16 %v2920
  %v4510 = vunpack.c.l.b16 %v2921
  %v4511 = vunpack.c.l.b16 %v2922
  %v4512 = vunpack.c.l.b16 %v2923
  %v4513 = vunpack.c.l.b16 %v2924
  %v4514 = vunpack.c.l.b16 %v2925
  %v4515 = vunpack.c.l.b16 %v2926
  %v4516 = vunpack.c.l.b16 %v2927
  %v4517 = vunpack.c.l.b16 %v2928
  %v4518 = vunpack.c.l.b16 %v2929
  %v4519 = vunpack.c.l.b16 %v2930
  %v4520 = vunpack.c.l.b16 %v2931
  %v4521 = vunpack.c.l.b16 %v2932
  %v4522 = vunpack.c.l.b16 %v2933
  %v4523 = vunpack.c.l.b16 %v2934
  %v4524 = vunpack.c.l.b16 %v2935
  %v4525 = vunpack.c.l.b16 %v2936
  %v4526 = vunpack.c.l.b16 %v2937
  %v4527 = vunpack.c.l.b16 %v2938
  %v4528 = vunpack.c.l.b16 %v2939
  %v4529 = vunpack.c.l.b16 %v2940
  %v4530 = vunpack.c.l.b16 %v2941
  %v4531 = vunpack.c.l.b16 %v2942
  %v4532 = vunpack.c.l.b16 %v2943
  %v4533 = vunpack.c.l.b16 %v2944
  %v4534 = vunpack.c.l.b16 %v2945
  %v4535 = vunpack.c.l.b16 %v2946
  %v4536 = vunpack.c.l.b16 %v2947
  %v4537 = vunpack.c.l.b16 %v2948
  %v4538 = vunpack.c.l.b16 %v2949
  %v4539 = vunpack.c.l.b16 %v2950
  %v4540 = vunpack.c.l.b16 %v2951
  %v4541 = vunpack.c.l.b16 %v2952
  %v4542 = vunpack.c.l.b16 %v2953
  %v4543 = vunpack.c.l.b16 %v2954
  %v4544 = vunpack.c.l.b16 %v2955
  %v4545 = vunpack.c.l.b16 %v2956
  %v4546 = vunpack.c.l.b16 %v2957
  %v4547 = vunpack.c.l.b16 %v2958
  %v4548 = vunpack.c.l.b16 %v2959
  %v4549 = vunpack.c.l.b16 %v2960
  %v4550 = vunpack.c.l.b16 %v2961
  %v4551 = vunpack.c.l.b16 %v2962
  %v4552 = vunpack.c.l.b16 %v2963
  %v4553 = vunpack.c.l.b16 %v2964
  %v4554 = vunpack.c.l.b16 %v2965
  %v4555 = vunpack.c.l.b16 %v2966
  %v4556 = vunpack.c.l.b16 %v2967
  %v4557 = vunpack.c.l.b16 %v2968
  %v4558 = vunpack.c.l.b16 %v2969
  %v4559 = vunpack.c.l.b16 %v2970
  %v4560 = vunpack.c.l.b16 %v2971
  %v4561 = vunpack.c.l.b16 %v2972
  %v4562 = vunpack.c.l.b16 %v2973
  %v4563 = vunpack.c.l.b16 %v2974
  %v4564 = vunpack.c.l.b16 %v2975
  %v4565 = vunpack.c.l.b16 %v2976
  %v4566 = vunpack.c.l.b16 %v2977
  %v4567 = vunpack.c.l.b16 %v2978
  %v4568 = vunpack.c.l.b16 %v2979
  %v4569 = vunpack.c.l.b16 %v2980
  %v4570 = vunpack.c.l.b16 %v2981
  %v4571 = vunpack.c.l.b16 %v2982
  %v4572 = vunpack.c.l.b16 %v2983
  %v4573 = vunpack.c.l.b16 %v2984
  %v4574 = vunpack.c.l.b16 %v2985
  %v4575 = vunpack.c.l.b16 %v2986
  %v4576 = vunpack.c.l.b16 %v2987
  %v4577 = vunpack.c.l.b16 %v2988
  %v4578 = vunpack.c.l.b16 %v2989
  %v4579 = vunpack.c.l.b16 %v2990
  %v4580 = vunpack.c.l.b16 %v2991
  %v4581 = vunpack.c.l.b16 %v2992
  %v4582 = vunpack.c.l.b16 %v2993
  %v4583 = vunpack.c.l.b16 %v2994
  %v4584 = vunpack.c.l.b16 %v2995
  %v4585 = vunpack.c.l.b16 %v2996
  %v4586 = vunpack.c.l.b16 %v2997
  %v4587 = vunpack.c.l.b16 %v2998
  %v4588 = vunpack.c.l.b16 %v2999
  %v4589 = vunpack.c.l.b16 %v3000
  %v4590 = vunpack.c.l.b16 %v3001
  %v4591 = vunpack.c.l.b16 %v3002
  %v4592 = vunpack.c.l.b16 %v3003
  %v4593 = vunpack.c.l.b16 %v3004
  %v4594 = vunpack.c.l.b16 %v3005
  %v4595 = vunpack.c.l.b16 %v3006
  %v4596 = vunpack.c.l.b16 %v3007
  %v4597 = vunpack.c.l.b16 %v3008
  %v4598 = vunpack.c.l.b16 %v3009
  %v4599 = vunpack.c.l.b16 %v3010
  %v4600 = vunpack.c.l.b16 %v3011
  %v4601 = vunpack.c.l.b16 %v3012
  %v4602 = vunpack.c.l.b16 %v3013
  %v4603 = vunpack.c.l.b16 %v3014
  %v4604 = vunpack.c.l.b16 %v3015
  %v4605 = vunpack.c.l.b16 %v3016
  %v4606 = vunpack.c.l.b16 %v3017
  %v4607 = vunpack.c.l.b16 %v3018
  %v4608 = vunpack.c.l.b16 %v3019
  %v4609 = vunpack.c.l.b16 %v3020
  %v4610 = vunpack.c.l.b16 %v3021
  %v4611 = vunpack.c.l.b16 %v3022
  %v4612 = vunpack.c.l.b16 %v3023
  %v4613 = vunpack.c.l.b16 %v3024
  %v4614 = vunpack.c.l.b16 %v3025
  %v4615 = vunpack.c.l.b16 %v3026
  %v4616 = vunpack.c.l.b16 %v3027
  %v4617 = vunpack.c.l.b16 %v3028
  %v4618 = vunpack.c.l.b16 %v3029
  %v4619 = vunpack.c.l.b16 %v3030
  %v4620 = vunpack.c.l.b16 %v3031
  %v4621 = vunpack.c.l.b16 %v3032
  %v4622 = vunpack.c.l.b16 %v3033
  %v4623 = vunpack.c.l.b16 %v3034
  %v4624 = vunpack.c.l.b16 %v3035
  %v4625 = vunpack.c.l.b16 %v3036
  %v4626 = vunpack.c.l.b16 %v3037
  %v4627 = vunpack.c.l.b16 %v3038
  %v4628 = vunpack.c.l.b16 %v3039
  %v4629 = vunpack.c.l.b16 %v3040
  %v4630 = vunpack.c.l.b16 %v3041
  %v4631 = vunpack.c.l.b16 %v3042
  %v4632 = vunpack.c.l.b16 %v3043
  %v4633 = vunpack.c.l.b16 %v3044
  %v4634 = vunpack.c.l.b16 %v3045
  %v4635 = vunpack.c.l.b16 %v3046
  %v4636 = vunpack.c.l.b16 %v3047
  %v4637 = vunpack.c.l.b16 %v3048
  %v4638 = vunpack.c.l.b16 %v3049
  %v4639 = vunpack.c.l.b16 %v3050
  %v4640 = vunpack.c.l.b16 %v3051
  %v4641 = vunpack.c.l.b16 %v3052
  %v4642 = vunpack.c.l.b16 %v3053
  %v4643 = vunpack.c.l.b16 %v3054
  %v4644 = vunpack.c.l.b16 %v3055
  %v4645 = vunpack.c.l.b16 %v3056
  %v4646 = vunpack.c.l.b16 %v3057
  %v4647 = vunpack.c.l.b16 %v3058
  %v4648 = vunpack.c.l.b16 %v3059
  %v4649 = vunpack.c.l.b16 %v3060
  %v4650 = vunpack.c.l.b16 %v3061
  %v4651 = vunpack.c.l.b16 %v3062
  %v4652 = vunpack.c.l.b16 %v3063
  %v4653 = vunpack.c.l.b16 %v3064
  %v4654 = vunpack.c.l.b16 %v3065
  %v4655 = vunpack.c.l.b16 %v3066
  %v4656 = vunpack.c.l.b16 %v3067
  %v4657 = vunpack.c.l.b16 %v3068
  %v4658 = vunpack.c.l.b16 %v3069
  %v4659 = vunpack.c.l.b16 %v3070
  %v4660 = vunpack.c.l.b16 %v3071
  %v4661 = vunpack.c.l.b16 %v3072
  %v4662 = vunpack.c.l.b16 %v3073
  %v4663 = vunpack.c.l.b16 %v3074
  %v4664 = vunpack.c.l.b16 %v3075
  %v4665 = vunpack.c.l.b16 %v3076
  %v4666 = vunpack.c.l.b16 %v3077
  %v4667 = vunpack.c.l.b16 %v3078
  %v4668 = vunpack.c.l.b16 %v3079
  %v4669 = vunpack.c.l.b16 %v3080
  %v4670 = vunpack.c.l.b16 %v3081
  %v4671 = vunpack.c.l.b16 %v3082
  %v4672 = vunpack.c.l.b16 %v3083
  %v4673 = vunpack.c.l.b16 %v3084
  %v4674 = vunpack.c.l.b16 %v3085
  %v4675 = vunpack.c.l.b16 %v3086
  %v4676 = vunpack.c.l.b16 %v3087
  %v4677 = vunpack.c.l.b16 %v3088
  %v4678 = vunpack.c.l.b16 %v3089
  %v4679 = vunpack.c.l.b16 %v3090
  %v4680 = vunpack.c.l.b16 %v3091
  %v4681 = vunpack.c.l.b16 %v3092
  %v4682 = vunpack.c.l.b16 %v3093
  %v4683 = vunpack.c.l.b16 %v3094
  %v4684 = vunpack.c.l.b16 %v3095
  %v4685 = vunpack.c.l.b16 %v3096
  %v4686 = vunpack.c.l.b16 %v3097
  %v4687 = vunpack.c.l.b16 %v3098
  %v4688 = vunpack.c.l.b16 %v3099
  %v4689 = vunpack.c.l.b16 %v3100
  %v4690 = vunpack.c.l.b16 %v3101
  %v4691 = vunpack.c.l.b16 %v3102
  %v4692 = vunpack.c.l.b16 %v3103
  %v4693 = vunpack.c.l.b16 %v3104
  %v4694 = vunpack.c.l.b16 %v3105
  %v4695 = vunpack.c.l.b16 %v3106
  %v4696 = vunpack.c.l.b16 %v3107
  %v4697 = vunpack.c.l.b16 %v3108
  %v4698 = vunpack.c.l.b16 %v3109
  %v4699 = vunpack.c.l.b16 %v3110
  %v4700 = vunpack.c.l.b16 %v3111
  %v4701 = vunpack.c.l.b16 %v3112
  %v4702 = vunpack.c.l.b16 %v3113
  %v4703 = vunpack.c.l.b16 %v3114
  %v4704 = vunpack.c.l.b16 %v3115
  %v4705 = vunpack.c.l.b16 %v3116
  %v4706 = vunpack.c.l.b16 %v3117
  %v4707 = vunpack.c.l.b16 %v3118
  %v4708 = vunpack.c.l.b16 %v3119
  %v4709 = vunpack.c.l.b16 %v3120
  %v4710 = vunpack.c.l.b16 %v3121
  %v4711 = vunpack.c.l.b16 %v3122
  %v4712 = vunpack.c.l.b16 %v3123
  %v4713 = vunpack.c.l.b16 %v3124
  %v4714 = vunpack.c.l.b16 %v3125
  %v4715 = vunpack.c.l.b16 %v3126
  %v4716 = vunpack.c.l.b16 %v3127
  %v4717 = vunpack.c.l.b16 %v3128
  %v4718 = vunpack.c.l.b16 %v3129
  %v4719 = vunpack.c.l.b16 %v3130
  %v4720 = vunpack.c.l.b16 %v3131
  %v4721 = vunpack.c.l.b16 %v3132
  %v4722 = vunpack.c.l.b16 %v3133
  %v4723 = vunpack.c.l.b16 %v3134
  %v4724 = vunpack.c.l.b16 %v3135
  %v4725 = vunpack.c.l.b16 %v3136
  %v4726 = vunpack.c.l.b16 %v3137
  %v4727 = vunpack.c.l.b16 %v3138
  %v4728 = vunpack.c.l.b16 %v3139
  %v4729 = vunpack.c.l.b16 %v3140
  %v4730 = vunpack.c.l.b16 %v3141
  %v4731 = vunpack.c.l.b16 %v3142
  %v4732 = vunpack.c.l.b16 %v3143
  %v4733 = vunpack.c.l.b16 %v3144
  %v4734 = vunpack.c.l.b16 %v3145
  %v4735 = vunpack.c.l.b16 %v3146
  %v4736 = vunpack.c.l.b16 %v3147
  %v4737 = vunpack.c.l.b16 %v3148
  %v4738 = vunpack.c.l.b16 %v3149
  %v4739 = vunpack.c.l.b16 %v3150
  %v4740 = vunpack.c.l.b16 %v3151
  %v4741 = vunpack.c.l.b16 %v3152
  %v4742 = vunpack.c.l.b16 %v3153
  %v4743 = vunpack.c.l.b16 %v3154
  %v4744 = vunpack.c.l.b16 %v3155
  %v4745 = vunpack.c.l.b16 %v3156
  %v4746 = vunpack.c.l.b16 %v3157
  %v4747 = vunpack.c.l.b16 %v3158
  %v4748 = vunpack.c.l.b16 %v3159
  %v4749 = vunpack.c.l.b16 %v3160
  %v4750 = vunpack.c.l.b16 %v3161
  %v4751 = vunpack.c.l.b16 %v3162
  %v4752 = vunpack.c.l.b16 %v3163
  %v4753 = vunpack.c.l.b16 %v3164
  %v4754 = vunpack.c.l.b16 %v3165
  %v4755 = vunpack.c.l.b16 %v3166
  %v4756 = vunpack.c.l.b16 %v3167
  %v4757 = vunpack.c.l.b16 %v3168
  %v4758 = vunpack.c.l.b16 %v3169
  %v4759 = vunpack.c.l.b16 %v3170
  %v4760 = vunpack.c.l.b16 %v3171
  %v4761 = vunpack.c.l.b16 %v3172
  %v4762 = vunpack.c.l.b16 %v3173
  %v4763 = vunpack.c.l.b16 %v3174
  %v4764 = vunpack.c.l.b16 %v3175
  %v4765 = vunpack.c.l.b16 %v3176
  %v4766 = vunpack.c.l.b16 %v3177
  %v4767 = vunpack.c.l.b16 %v3178
  %v4768 = vunpack.c.l.b16 %v3179
  %v4769 = vunpack.c.l.b16 %v3180
  %v4770 = vunpack.c.l.b16 %v3181
  %v4771 = vunpack.c.l.b16 %v3182
  %v4772 = vunpack.c.l.b16 %v3183
  %v4773 = vunpack.c.l.b16 %v3184
  %v4774 = vunpack.c.l.b16 %v3185
  %v4775 = vunpack.c.l.b16 %v3186
  %v4776 = vunpack.c.l.b16 %v3187
  %v4777 = vunpack.c.l.b16 %v3188
  %v4778 = vunpack.c.l.b16 %v3189
  %v4779 = vunpack.c.l.b16 %v3190
  %v4780 = vunpack.c.l.b16 %v3191
  %v4781 = vunpack.c.l.b16 %v3192
  %v4782 = vunpack.c.l.b16 %v3193
  %v4783 = vunpack.c.l.b16 %v3194
  %v4784 = vunpack.c.l.b16 %v3195
  %v4785 = vunpack.c.l.b16 %v3196
  %v4786 = vunpack.c.l.b16 %v3197
  %v4787 = vunpack.c.l.b16 %v3198
  %v4788 = vunpack.c.l.b16 %v3199
  %v4789 = vunpack.c.l.b16 %v3200
  %v4790 = vunpack.c.l.b16 %v3201
  %v4791 = vunpack.c.l.b16 %v3202
  %v4792 = vunpack.c.l.b16 %v3203
  %v4793 = vunpack.c.l.b16 %v3204
  %v4794 = vunpack.c.l.b16 %v3205
  %v4795 = vunpack.c.l.b16 %v3206
  %v4796 = vunpack.c.l.b16 %v3207
  %v4797 = vunpack.c.l.b16 %v3208
  %v4798 = vunpack.c.l.b16 %v3209
  %v4799 = vunpack.c.l.b16 %v3210
  %v4800 = vunpack.c.l.b16 %v3211
  %v4801 = vunpack.c.l.b16 %v3212
  %v4802 = vunpack.c.l.b16 %v3213
  %v4803 = vunpack.c.l.b16 %v3214
  %v4804 = vunpack.c.l.b16 %v3215
  %v4805 = vunpack.c.l.b16 %v3216
  %v4806 = vunpack.c.l.b16 %v3217
  %v4807 = vunpack.c.l.b16 %v3218
  %v4808 = vunpack.c.l.b16 %v3219
  %v4809 = vunpack.c.l.b16 %v3220
  %v4810 = vunpack.c.l.b16 %v3221
  %v4811 = vunpack.c.l.b16 %v3222
  %v4812 = vunpack.c.l.b16 %v3223
  %v4813 = vunpack.c.l.b16 %v3224
  %v4814 = vunpack.c.l.b16 %v3225
  %v4815 = vunpack.c.l.b16 %v3226
  %v4816 = vunpack.c.l.b16 %v3227
  %v4817 = vunpack.c.l.b16 %v3228
  %v4818 = vunpack.c.l.b16 %v3229
  %v4819 = vunpack.c.l.b16 %v3230
  %v4820 = vunpack.c.l.b16 %v3231
  %v4821 = vunpack.c.l.b16 %v3232
  %v4822 = vunpack.c.l.b16 %v3233
  %v4823 = vunpack.c.l.b16 %v3234
  %v4824 = vunpack.c.l.b16 %v3235
  %v4825 = vunpack.c.l.b16 %v3236
  %v4826 = vunpack.c.l.b16 %v3237
  %v4827 = vunpack.c.l.b16 %v3238
  %v4828 = vunpack.c.l.b16 %v3239
  %v4829 = vunpack.c.l.b16 %v3240
  %v4830 = vunpack.c.l.b16 %v3241
  %v4831 = vunpack.c.l.b16 %v3242
  %v4832 = vunpack.c.l.b16 %v3243
  %v4833 = vunpack.c.l.b16 %v3244
  %v4834 = vunpack.c.l.b16 %v3245
  %v4835 = vunpack.c.l.b16 %v3246
  %v4836 = vunpack.c.l.b16 %v3247
  %v4837 = vunpack.c.l.b16 %v3248
  %v4838 = vunpack.c.l.b16 %v3249
  %v4839 = vunpack.c.l.b16 %v3250
  %v4840 = vunpack.c.l.b16 %v3251
  %v4841 = vunpack.c.l.b16 %v3252
  %v4842 = vunpack.c.l.b16 %v3253
  %v4843 = vunpack.c.l.b16 %v3254
  %v4844 = vunpack.c.l.b16 %v3255
  %v4845 = vunpack.c.l.b16 %v3256
  %v4846 = vunpack.c.l.b16 %v3257
  %v4847 = vunpack.c.l.b16 %v3258
  %v4848 = vunpack.c.l.b16 %v3259
  %v4849 = vunpack.c.l.b16 %v3260
  %v4850 = vunpack.c.l.b16 %v3261
  %v4851 = vunpack.c.l.b16 %v3262
  %v4852 = vunpack.c.l.b16 %v3263
  %v4853 = vunpack.c.l.b16 %v3264
  %v4854 = vunpack.c.l.b16 %v3265
  %v4855 = vunpack.c.l.b16 %v3266
  %v4856 = vunpack.c.l.b16 %v3267
  %v4857 = vunpack.c.l.b16 %v3268
  %v4858 = vunpack.c.l.b16 %v3269
  %v4859 = vunpack.c.l.b16 %v3270
  %v4860 = vunpack.c.l.b16 %v3271
  %v4861 = vunpack.c.l.b16 %v3272
  %v4862 = vunpack.c.l.b16 %v3273
  %v4863 = vunpack.c.l.b16 %v3274
  %v4864 = vunpack.c.l.b16 %v3275
  %v4865 = vunpack.c.l.b16 %v3276
  %v4866 = vunpack.c.l.b16 %v3277
  %v4867 = vunpack.c.l.b16 %v3278
  %v4868 = vunpack.c.l.b16 %v3279
  %v4869 = vunpack.c.l.b16 %v3280
  %v4870 = vunpack.c.l.b16 %v3281
  %v4871 = vunpack.c.l.b16 %v3282
  %v4872 = vunpack.c.l.b16 %v3283
  %v4873 = vunpack.c.l.b16 %v3284
  %v4874 = vunpack.c.l.b16 %v3285
  %v4875 = vunpack.c.l.b16 %v3286
  %v4876 = vunpack.c.l.b16 %v3287
  %v4877 = vunpack.c.l.b16 %v3288
  %v4878 = vunpack.c.l.b16 %v3289
  %v4879 = vunpack.c.l.b16 %v3290
  %v4880 = vunpack.c.l.b16 %v3291
  %v4881 = vunpack.c.l.b16 %v3292
  %v4882 = vunpack.c.l.b16 %v3293
  %v4883 = vunpack.c.l.b16 %v3294
  %v4884 = vunpack.c.l.b16 %v3295
  %v4885 = vunpack.c.l.b16 %v3296
  %v4886 = vunpack.c.l.b16 %v3297
  %v4887 = vunpack.c.l.b16 %v3298
  %v4888 = vunpack.c.l.b16 %v3299
  %v4889 = vunpack.c.l.b16 %v3300
  %v4890 = vunpack.c.l.b16 %v3301
  %v4891 = vunpack.c.l.b16 %v3302
  %v4892 = vunpack.c.l.b16 %v3303
  %v4893 = vunpack.c.l.b16 %v3304
  %v4894 = vunpack.c.l.b16 %v3305
  %v4895 = vunpack.c.l.b16 %v3306
  %v4896 = vunpack.c.l.b16 %v3307
  %v4897 = vunpack.c.l.b16 %v3308
  %v4898 = vunpack.c.l.b16 %v3309
  %v4899 = vunpack.c.l.b16 %v3310
  %v4900 = vunpack.c.l.b16 %v3311
  %v4901 = vunpack.c.l.b16 %v3312
  %v4902 = vunpack.c.l.b16 %v3313
  %v4903 = vunpack.c.l.b16 %v3314
  %v4904 = vunpack.c.l.b16 %v3315
  %v4905 = vunpack.c.l.b16 %v3316
  %v4906 = vunpack.c.l.b16 %v3317
  %v4907 = vunpack.c.l.b16 %v3318
  %v4908 = vunpack.c.l.b16 %v3319
  %v4909 = vunpack.c.l.b16 %v3320
  %v4910 = vunpack.c.l.b16 %v3321
  %v4911 = vunpack.c.l.b16 %v3322
  %v4912 = vunpack.c.l.b16 %v3323
  %v4913 = vunpack.c.l.b16 %v3324
  %v4914 = vpack.c.b16 %v4273, %v4272
  %v4915 = vpack.c.b16 %v4275, %v4274
  %v4916 = vpack.c.b16 %v4277, %v4276
  %v4917 = vpack.c.b16 %v4279, %v4278
  %v4918 = vpack.c.b16 %v4281, %v4280
  %v4919 = vpack.c.b16 %v4283, %v4282
  %v4920 = vpack.c.b16 %v4285, %v4284
  %v4921 = vpack.c.b16 %v4287, %v4286
  %v4922 = vpack.c.b16 %v4289, %v4288
  %v4923 = vpack.c.b16 %v4291, %v4290
  %v4924 = vpack.c.b16 %v4293, %v4292
  %v4925 = vpack.c.b16 %v4295, %v4294
  %v4926 = vpack.c.b16 %v4297, %v4296
  %v4927 = vpack.c.b16 %v4299, %v4298
  %v4928 = vpack.c.b16 %v4301, %v4300
  %v4929 = vpack.c.b16 %v4303, %v4302
  %v4930 = vpack.c.b16 %v4305, %v4304
  %v4931 = vpack.c.b16 %v4307, %v4306
  %v4932 = vpack.c.b16 %v4309, %v4308
  %v4933 = vpack.c.b16 %v4311, %v4310
  %v4934 = vpack.c.b16 %v4313, %v4312
  %v4935 = vpack.c.b16 %v4315, %v4314
  %v4936 = vpack.c.b16 %v4317, %v4316
  %v4937 = vpack.c.b16 %v4319, %v4318
  %v4938 = vpack.c.b16 %v4321, %v4320
  %v4939 = vpack.c.b16 %v4323, %v4322
  %v4940 = vpack.c.b16 %v4325, %v4324
  %v4941 = vpack.c.b16 %v4327, %v4326
  %v4942 = vpack.c.b16 %v4329, %v4328
  %v4943 = vpack.c.b16 %v4331, %v4330
  %v4944 = vpack.c.b16 %v4333, %v4332
  %v4945 = vpack.c.b16 %v4335, %v4334
  %v4946 = vpack.c.b16 %v4337, %v4336
  %v4947 = vpack.c.b16 %v4339, %v4338
  %v4948 = vpack.c.b16 %v4341, %v4340
  %v4949 = vpack.c.b16 %v4343, %v4342
  %v4950 = vpack.c.b16 %v4345, %v4344
  %v4951 = vpack.c.b16 %v4347, %v4346
  %v4952 = vpack.c.b16 %v4349, %v4348
  %v4953 = vpack.c.b16 %v4351, %v4350
  %v4954 = vpack.c.b16 %v4353, %v4352
  %v4955 = vpack.c.b16 %v4355, %v4354
  %v4956 = vpack.c.b16 %v4357, %v4356
  %v4957 = vpack.c.b16 %v4359, %v4358
  %v4958 = vpack.c.b16 %v4361, %v4360
  %v4959 = vpack.c.b16 %v4363, %v4362
  %v4960 = vpack.c.b16 %v4365, %v4364
  %v4961 = vpack.c.b16 %v4367, %v4366
  %v4962 = vpack.c.b16 %v4369, %v4368
  %v4963 = vpack.c.b16 %v4371, %v4370
  %v4964 = vpack.c.b16 %v4373, %v4372
  %v4965 = vpack.c.b16 %v4375, %v4374
  %v4966 = vpack.c.b16 %v4377, %v4376
  %v4967 = vpack.c.b16 %v4379, %v4378
  %v4968 = vpack.c.b16 %v4381, %v4380
  %v4969 = vpack.c.b16 %v4383, %v4382
  %v4970 = vpack.c.b16 %v4385, %v4384
  %v4971 = vpack.c.b16 %v4387, %v4386
  %v4972 = vpack.c.b16 %v4389, %v4388
  %v4973 = vpack.c.b16 %v4391, %v4390
  %v4974 = vpack.c.b16 %v4393, %v4392
  %v4975 = vpack.c.b16 %v4395, %v4394
  %v4976 = vpack.c.b16 %v4397, %v4396
  %v4977 = vpack.c.b16 %v4399, %v4398
  %v4978 = vpack.c.b16 %v4401, %v4400
  %v4979 = vpack.c.b16 %v4403, %v4402
  %v4980 = vpack.c.b16 %v4405, %v4404
  %v4981 = vpack.c.b16 %v4407, %v4406
  %v4982 = vpack.c.b16 %v4409, %v4408
  %v4983 = vpack.c.b16 %v4411, %v4410
  %v4984 = vpack.c.b16 %v4413, %v4412
  %v4985 = vpack.c.b16 %v4415, %v4414
  %v4986 = vpack.c.b16 %v4417, %v4416
  %v4987 = vpack.c.b16 %v4419, %v4418
  %v4988 = vpack.c.b16 %v4421, %v4420
  %v4989 = vpack.c.b16 %v4423, %v4422
  %v4990 = vpack.c.b16 %v4425, %v4424
  %v4991 = vpack.c.b16 %v4427, %v4426
  %v4992 = vpack.c.b16 %v4429, %v4428
  %v4993 = vpack.c.b16 %v4431, %v4430
  %v4994 = vpack.c.b16 %v4433, %v4432
  %v4995 = vpack.c.b16 %v4435, %v4434
  %v4996 = vpack.c.b16 %v4437, %v4436
  %v4997 = vpack.c.b16 %v4439, %v4438
  %v4998 = vpack.c.b16 %v4441, %v4440
  %v4999 = vpack.c.b16 %v4443, %v4442
  %v5000 = vpack.c.b16 %v4445, %v4444
  %v5001 = vpack.c.b16 %v4447, %v4446
  %v5002 = vpack.c.b16 %v4449, %v4448
  %v5003 = vpack.c.b16 %v4451, %v4450
  %v5004 = vpack.c.b16 %v4453, %v4452
  %v5005 = vpack.c.b16 %v4455, %v4454
  %v5006 = vpack.c.b16 %v4457, %v4456
  %v5007 = vpack.c.b16 %v4459, %v4458
  %v5008 = vpack.c.b16 %v4461, %v4460
  %v5009 = vpack.c.b16 %v4463, %v4462
  %v5010 = vpack.c.b16 %v4465, %v4464
  %v5011 = vpack.c.b16 %v4467, %v4466
  %v5012 = vpack.c.b16 %v4469, %v4468
  %v5013 = vpack.c.b16 %v4471, %v4470
  %v5014 = vpack.c.b16 %v4473, %v4472
  %v5015 = vpack.c.b16 %v4475, %v4474
  %v5016 = vpack.c.b16 %v4477, %v4476
  %v5017 = vpack.c.b16 %v4479, %v4478
  %v5018 = vpack.c.b16 %v4481, %v4480
  %v5019 = vpack.c.b16 %v4483, %v4482
  %v5020 = vpack.c.b16 %v4485, %v4484
  %v5021 = vpack.c.b16 %v4487, %v4486
  %v5022 = vpack.c.b16 %v4489, %v4488
  %v5023 = vpack.c.b16 %v4491, %v4490
  %v5024 = vpack.c.b16 %v4493, %v4492
  %v5025 = vpack.c.b16 %v4495, %v4494
  %v5026 = vpack.c.b16 %v4497, %v4496
  %v5027 = vpack.c.b16 %v4499, %v4498
  %v5028 = vpack.c.b16 %v4501, %v4500
  %v5029 = vpack.c.b16 %v4503, %v4502
  %v5030 = vpack.c.b16 %v4505, %v4504
  %v5031 = vpack.c.b16 %v4507, %v4506
  %v5032 = vpack.c.b16 %v4509, %v4508
  %v5033 = vpack.c.b16 %v4511, %v4510
  %v5034 = vpack.c.b16 %v4513, %v4512
  %v5035 = vpack.c.b16 %v4515, %v4514
  %v5036 = vpack.c.b16 %v4517, %v4516
  %v5037 = vpack.c.b16 %v4519, %v4518
  %v5038 = vpack.c.b16 %v4521, %v4520
  %v5039 = vpack.c.b16 %v4523, %v4522
  %v5040 = vpack.c.b16 %v4525, %v4524
  %v5041 = vpack.c.b16 %v4527, %v4526
  %v5042 = vpack.c.b16 %v4529, %v4528
  %v5043 = vpack.c.b16 %v4531, %v4530
  %v5044 = vpack.c.b16 %v4533, %v4532
  %v5045 = vpack.c.b16 %v4535, %v4534
  %v5046 = vpack.c.b16 %v4537, %v4536
  %v5047 = vpack.c.b16 %v4539, %v4538
  %v5048 = vpack.c.b16 %v4541, %v4540
  %v5049 = vpack.c.b16 %v4543, %v4542
  %v5050 = vpack.c.b16 %v4545, %v4544
  %v5051 = vpack.c.b16 %v4547, %v4546
  %v5052 = vpack.c.b16 %v4549, %v4548
  %v5053 = vpack.c.b16 %v4551, %v4550
  %v5054 = vpack.c.b16 %v4553, %v4552
  %v5055 = vpack.c.b16 %v4555, %v4554
  %v5056 = vpack.c.b16 %v4557, %v4556
  %v5057 = vpack.c.b16 %v4559, %v4558
  %v5058 = vpack.c.b16 %v4561, %v4560
  %v5059 = vpack.c.b16 %v4563, %v4562
  %v5060 = vpack.c.b16 %v4565, %v4564
  %v5061 = vpack.c.b16 %v4567, %v4566
  %v5062 = vpack.c.b16 %v4569, %v4568
  %v5063 = vpack.c.b16 %v4571, %v4570
  %v5064 = vpack.c.b16 %v4573, %v4572
  %v5065 = vpack.c.b16 %v4575, %v4574
  %v5066 = vpack.c.b16 %v4577, %v4576
  %v5067 = vpack.c.b16 %v4579, %v4578
  %v5068 = vpack.c.b16 %v4581, %v4580
  %v5069 = vpack.c.b16 %v4583, %v4582
  %v5070 = vpack.c.b16 %v4585, %v4584
  %v5071 = vpack.c.b16 %v4587, %v4586
  %v5072 = vpack.c.b16 %v4589, %v4588
  %v5073 = vpack.c.b16 %v4591, %v4590
  %v5074 = vpack.c.b16 %v4593, %v4592
  %v5075 = vpack.c.b16 %v4595, %v4594
  %v5076 = vpack.c.b16 %v4597, %v4596
  %v5077 = vpack.c.b16 %v4599, %v4598
  %v5078 = vpack.c.b16 %v4601, %v4600
  %v5079 = vpack.c.b16 %v4603, %v4602
  %v5080 = vpack.c.b16 %v4605, %v4604
  %v5081 = vpack.c.b16 %v4607, %v4606
  %v5082 = vpack.c.b16 %v4609, %v4608
  %v5083 = vpack.c.b16 %v4611, %v4610
  %v5084 = vpack.c.b16 %v4613, %v4612
  %v5085 = vpack.c.b16 %v4615, %v4614
  %v5086 = vpack.c.b16 %v4617, %v4616
  %v5087 = vpack.c.b16 %v4619, %v4618
  %v5088 = vpack.c.b16 %v4621, %v4620
  %v5089 = vpack.c.b16 %v4623, %v4622
  %v5090 = vpack.c.b16 %v4625, %v4624
  %v5091 = vpack.c.b16 %v4627, %v4626
  %v5092 = vpack.c.b16 %v4629, %v4628
  %v5093 = vpack.c.b16 %v4631, %v4630
  %v5094 = vpack.c.b16 %v4633, %v4632
  %v5095 = vpack.c.b16 %v4635, %v4634
  %v5096 = vpack.c.b16 %v4637, %v4636
  %v5097 = vpack.c.b16 %v4639, %v4638
  %v5098 = vpack.c.b16 %v4641, %v4640
  %v5099 = vpack.c.b16 %v4643, %v4642
  %v5100 = vpack.c.b16 %v4645, %v4644
  %v5101 = vpack.c.b16 %v4647, %v4646
  %v5102 = vpack.c.b16 %v4649, %v4648
  %v5103 = vpack.c.b16 %v4651, %v4650
  %v5104 = vpack.c.b16 %v4653, %v4652
  %v5105 = vpack.c.b16 %v4655, %v4654
  %v5106 = vpack.c.b16 %v4657, %v4656
  %v5107 = vpack.c.b16 %v4659, %v4658
  %v5108 = vpack.c.b16 %v4661, %v4660
  %v5109 = vpack.c.b16 %v4663, %v4662
  %v5110 = vpack.c.b16 %v4665, %v4664
  %v5111 = vpack.c.b16 %v4667, %v4666
  %v5112 = vpack.c.b16 %v4669, %v4668
  %v5113 = vpack.c.b16 %v4671, %v4670
  %v5114 = vpack.c.b16 %v4673, %v4672
  %v5115 = vpack.c.b16 %v4675, %v4674
  %v5116 = vpack.c.b16 %v4677, %v4676
  %v5117 = vpack.c.b16 %v4679, %v4678
  %v5118 = vpack.c.b16 %v4681, %v4680
  %v5119 = vpack.c.b16 %v4683, %v4682
  %v5120 = vpack.c.b16 %v4685, %v4684
  %v5121 = vpack.c.b16 %v4687, %v4686
  %v5122 = vpack.c.b16 %v4689, %v4688
  %v5123 = vpack.c.b16 %v4691, %v4690
  %v5124 = vpack.c.b16 %v4693, %v4692
  %v5125 = vpack.c.b16 %v4695, %v4694
  %v5126 = vpack.c.b16 %v4697, %v4696
  %v5127 = vpack.c.b16 %v4699, %v4698
  %v5128 = vpack.c.b16 %v4701, %v4700
  %v5129 = vpack.c.b16 %v4703, %v4702
  %v5130 = vpack.c.b16 %v4705, %v4704
  %v5131 = vpack.c.b16 %v4707, %v4706
  %v5132 = vpack.c.b16 %v4709, %v4708
  %v5133 = vpack.c.b16 %v4711, %v4710
  %v5134 = vpack.c.b16 %v4713, %v4712
  %v5135 = vpack.c.b16 %v4715, %v4714
  %v5136 = vpack.c.b16 %v4717, %v4716
  %v5137 = vpack.c.b16 %v4719, %v4718
  %v5138 = vpack.c.b16 %v4721, %v4720
  %v5139 = vpack.c.b16 %v4723, %v4722
  %v5140 = vpack.c.b16 %v4725, %v4724
  %v5141 = vpack.c.b16 %v4727, %v4726
  %v5142 = vpack.c.b16 %v4729, %v4728
  %v5143 = vpack.c.b16 %v4731, %v4730
  %v5144 = vpack.c.b16 %v4733, %v4732
  %v5145 = vpack.c.b16 %v4735, %v4734
  %v5146 = vpack.c.b16 %v4737, %v4736
  %v5147 = vpack.c.b16 %v4739, %v4738
  %v5148 = vpack.c.b16 %v4741, %v4740
  %v5149 = vpack.c.b16 %v4743, %v4742
  %v5150 = vpack.c.b16 %v4745, %v4744
  %v5151 = vpack.c.b16 %v4747, %v4746
  %v5152 = vpack.c.b16 %v4749, %v4748
  %v5153 = vpack.c.b16 %v4751, %v4750
  %v5154 = vpack.c.b16 %v4753, %v4752
  %v5155 = vpack.c.b16 %v4755, %v4754
  %v5156 = vpack.c.b16 %v4757, %v4756
  %v5157 = vpack.c.b16 %v4759, %v4758
  %v5158 = vpack.c.b16 %v4761, %v4760
  %v5159 = vpack.c.b16 %v4763, %v4762
  %v5160 = vpack.c.b16 %v4765, %v4764
  %v5161 = vpack.c.b16 %v4767, %v4766
  %v5162 = vpack.c.b16 %v4769, %v4768
  %v5163 = vpack.c.b16 %v4771, %v4770
  %v5164 = vpack.c.b16 %v4773, %v4772
  %v5165 = vpack.c.b16 %v4775, %v4774
  %v5166 = vpack.c.b16 %v4777, %v4776
  %v5167 = vpack.c.b16 %v4779, %v4778
  %v5168 = vpack.c.b16 %v4781, %v4780
  %v5169 = vpack.c.b16 %v4783, %v4782
  %v5170 = vpack.c.b16 %v4785, %v4784
  %v5171 = vpack.c.b16 %v4787, %v4786
  %v5172 = vpack.c.b16 %v4789, %v4788
  %v5173 = vpack.c.b16 %v4791, %v4790
  %v5174 = vpack.c.b16 %v4793, %v4792
  %v5175 = vpack.c.b16 %v4795, %v4794
  %v5176 = vpack.c.b16 %v4797, %v4796
  %v5177 = vpack.c.b16 %v4799, %v4798
  %v5178 = vpack.c.b16 %v4801, %v4800
  %v5179 = vpack.c.b16 %v4803, %v4802
  %v5180 = vpack.c.b16 %v4805, %v4804
  %v5181 = vpack.c.b16 %v4807, %v4806
  %v5182 = vpack.c.b16 %v4809, %v4808
  %v5183 = vpack.c.b16 %v4811, %v4810
  %v5184 = vpack.c.b16 %v4813, %v4812
  %v5185 = vpack.c.b16 %v4815, %v4814
  %v5186 = vpack.c.b16 %v4817, %v4816
  %v5187 = vpack.c.b16 %v4819, %v4818
  %v5188 = vpack.c.b16 %v4821, %v4820
  %v5189 = vpack.c.b16 %v4823, %v4822
  %v5190 = vpack.c.b16 %v4825, %v4824
  %v5191 = vpack.c.b16 %v4827, %v4826
  %v5192 = vpack.c.b16 %v4829, %v4828
  %v5193 = vpack.c.b16 %v4831, %v4830
  %v5194 = vpack.c.b16 %v4833, %v4832
  %v5195 = vpack.c.b16 %v4835, %v4834
  %v5196 = vpack.c.b16 %v4837, %v4836
  %v5197 = vpack.c.b16 %v4839, %v4838
  %v5198 = vpack.c.b16 %v4841, %v4840
  %v5199 = vpack.c.b16 %v4843, %v4842
  %v5200 = vpack.c.b16 %v4845, %v4844
  %v5201 = vpack.c.b16 %v4847, %v4846
  %v5202 = vpack.c.b16 %v4849, %v4848
  %v5203 = vpack.c.b16 %v4851, %v4850
  %v5204 = vpack.c.b16 %v4853, %v4852
  %v5205 = vpack.c.b16 %v4855, %v4854
  %v5206 = vpack.c.b16 %v4857, %v4856
  %v5207 = vpack.c.b16 %v4859, %v4858
  %v5208 = vpack.c.b16 %v4861, %v4860
  %v5209 = vpack.c.b16 %v4863, %v4862
  %v5210 = vpack.c.b16 %v4865, %v4864
  %v5211 = vpack.c.b16 %v4867, %v4866
  %v5212 = vpack.c.b16 %v4869, %v4868
  %v5213 = vpack.c.b16 %v4871, %v4870
  %v5214 = vpack.c.b16 %v4873, %v4872
  %v5215 = vpack.c.b16 %v4875, %v4874
  %v5216 = vpack.c.b16 %v4877, %v4876
  %v5217 = vpack.c.b16 %v4879, %v4878
  %v5218 = vpack.c.b16 %v4881, %v4880
  %v5219 = vpack.c.b16 %v4883, %v4882
  %v5220 = vpack.c.b16 %v4885, %v4884
  %v5221 = vpack.c.b16 %v4887, %v4886
  %v5222 = vpack.c.b16 %v4889, %v4888
  %v5223 = vpack.c.b16 %v4891, %v4890
  %v5224 = vpack.c.b16 %v4893, %v4892
  %v5225 = vpack.c.b16 %v4895, %v4894
  %v5226 = vpack.c.b16 %v4897, %v4896
  %v5227 = vpack.c.b16 %v4899, %v4898
  %v5228 = vpack.c.b16 %v4901, %v4900
  %v5229 = vpack.c.b16 %v4903, %v4902
  %v5230 = vpack.c.b16 %v4905, %v4904
  %v5231 = vpack.c.b16 %v4907, %v4906
  %v5232 = vpack.c.b16 %v4909, %v4908
  %v5233 = vpack.c.b16 %v4911, %v4910
  %v5234 = vpack.c.b16 %v4913, %v4912
  %vm5555 = vcmask 80896
  %v5557 = vsel %vm5555, %v3589, 0
  %vm5559 = vcmask 1044480
  %v5561 = vsel %vm5559, %v5234, 0
  %5563 = vmatprep.subr.bf16.mxu0 0
  %5564 = vmatpush1.bf16.msra.mxu0 %v4921
  %5565 = vmatprep.subr.bf16.mxu0 0
  %5566 = vmatpush1.bf16.msra.mxu0 %v4920
  %5567 = vmatprep.subr.bf16.mxu0 0
  %5568 = vmatpush1.bf16.msra.mxu0 %v4919
  %5569 = vmatprep.subr.bf16.mxu0 0
  %5570 = vmatpush1.bf16.msra.mxu0 %v4918
  %5571 = vmatprep.subr.bf16.mxu0 0
  %5572 = vmatpush1.bf16.msra.mxu0 %v4917
  %5573 = vmatprep.subr.bf16.mxu0 0
  %5574 = vmatpush1.bf16.msra.mxu0 %v4916
  %5575 = vmatprep.subr.bf16.mxu0 0
  %5576 = vmatpush1.bf16.msra.mxu0 %v4915
  %5577 = vmatprep.subr.bf16.mxu0 0
  %5578 = vmatpush1.bf16.msra.mxu0 %v4914
  %5579 = vmatprep.subr.bf16.mxu0 0
  %5580 = vmatpush2.bf16.msra.mxu0 %v4929
  %5581 = vmatprep.subr.bf16.mxu0 0
  %5582 = vmatpush2.bf16.msra.mxu0 %v4928
  %5583 = vmatprep.subr.bf16.mxu0 0
  %5584 = vmatpush2.bf16.msra.mxu0 %v4927
  %5585 = vmatprep.subr.bf16.mxu0 0
  %5586 = vmatpush2.bf16.msra.mxu0 %v4926
  %5587 = vmatprep.subr.bf16.mxu0 0
  %5588 = vmatpush2.bf16.msra.mxu0 %v4925
  %5589 = vmatprep.subr.bf16.mxu0 0
  %5590 = vmatpush2.bf16.msra.mxu0 %v4924
  %5591 = vmatprep.subr.bf16.mxu0 0
  %5592 = vmatpush2.bf16.msra.mxu0 %v4923
  %5593 = vmatprep.subr.bf16.mxu0 0
  %5594 = vmatpush2.bf16.msra.mxu0 %v4922
  %5595 = vmatprep.mubr.bf16.mxu0 %v3368
  %5596 = vmatmul.mubr.bf16.gmra.mxu0 %v3354
  %v5597 = vpop.f32.mrf.mxu0
  %v5598 = vadd.f32 0.0, %v5597
  %v5599 = vpop.f32.mrf.mxu0
  %v5600 = vpop.f32.mrf.mxu0
  %v5601 = vpop.f32.mrf.mxu0
  %5602 = vdwg.mxu0
  %5603 = vmatprep.subr.bf16.mxu0 0
  %5604 = vmatpush1.bf16.msra.mxu0 %v4937
  %5605 = vmatprep.subr.bf16.mxu0 0
  %5606 = vmatpush1.bf16.msra.mxu0 %v4936
  %5607 = vmatprep.subr.bf16.mxu0 0
  %5608 = vmatpush1.bf16.msra.mxu0 %v4935
  %5609 = vmatprep.subr.bf16.mxu0 0
  %5610 = vmatpush1.bf16.msra.mxu0 %v4934
  %5611 = vmatprep.subr.bf16.mxu0 0
  %5612 = vmatpush1.bf16.msra.mxu0 %v4933
  %5613 = vmatprep.subr.bf16.mxu0 0
  %5614 = vmatpush1.bf16.msra.mxu0 %v4932
  %5615 = vmatprep.subr.bf16.mxu0 0
  %5616 = vmatpush1.bf16.msra.mxu0 %v4931
  %5617 = vmatprep.subr.bf16.mxu0 0
  %5618 = vmatpush1.bf16.msra.mxu0 %v4930
  %5619 = vmatprep.subr.bf16.mxu0 0
  %5620 = vmatpush2.bf16.msra.mxu0 %v4945
  %5621 = vmatprep.subr.bf16.mxu0 0
  %5622 = vmatpush2.bf16.msra.mxu0 %v4944
  %5623 = vmatprep.subr.bf16.mxu0 0
  %5624 = vmatpush2.bf16.msra.mxu0 %v4943
  %5625 = vmatprep.subr.bf16.mxu0 0
  %5626 = vmatpush2.bf16.msra.mxu0 %v4942
  %5627 = vmatprep.subr.bf16.mxu0 0
  %5628 = vmatpush2.bf16.msra.mxu0 %v4941
  %5629 = vmatprep.subr.bf16.mxu0 0
  %5630 = vmatpush2.bf16.msra.mxu0 %v4940
  %5631 = vmatprep.subr.bf16.mxu0 0
  %5632 = vmatpush2.bf16.msra.mxu0 %v4939
  %5633 = vmatprep.subr.bf16.mxu0 0
  %5634 = vmatpush2.bf16.msra.mxu0 %v4938
  %5635 = vmatprep.mubr.bf16.mxu0 %v3378
  %5636 = vmatmul.mubr.bf16.gmra.mxu0 %v3376
  %v5637 = vpop.f32.mrf.mxu0
  %v5638 = vadd.f32 %v5598, %v5637
  %v5639 = vpop.f32.mrf.mxu0
  %v5640 = vpop.f32.mrf.mxu0
  %v5641 = vpop.f32.mrf.mxu0
  %5642 = vdwg.mxu0
  %5643 = vmatprep.subr.bf16.mxu0 0
  %5644 = vmatpush1.bf16.msra.mxu0 %v4953
  %5645 = vmatprep.subr.bf16.mxu0 0
  %5646 = vmatpush1.bf16.msra.mxu0 %v4952
  %5647 = vmatprep.subr.bf16.mxu0 0
  %5648 = vmatpush1.bf16.msra.mxu0 %v4951
  %5649 = vmatprep.subr.bf16.mxu0 0
  %5650 = vmatpush1.bf16.msra.mxu0 %v4950
  %5651 = vmatprep.subr.bf16.mxu0 0
  %5652 = vmatpush1.bf16.msra.mxu0 %v4949
  %5653 = vmatprep.subr.bf16.mxu0 0
  %5654 = vmatpush1.bf16.msra.mxu0 %v4948
  %5655 = vmatprep.subr.bf16.mxu0 0
  %5656 = vmatpush1.bf16.msra.mxu0 %v4947
  %5657 = vmatprep.subr.bf16.mxu0 0
  %5658 = vmatpush1.bf16.msra.mxu0 %v4946
  %5659 = vmatprep.subr.bf16.mxu0 0
  %5660 = vmatpush2.bf16.msra.mxu0 %v4961
  %5661 = vmatprep.subr.bf16.mxu0 0
  %5662 = vmatpush2.bf16.msra.mxu0 %v4960
  %5663 = vmatprep.subr.bf16.mxu0 0
  %5664 = vmatpush2.bf16.msra.mxu0 %v4959
  %5665 = vmatprep.subr.bf16.mxu0 0
  %5666 = vmatpush2.bf16.msra.mxu0 %v4958
  %5667 = vmatprep.subr.bf16.mxu0 0
  %5668 = vmatpush2.bf16.msra.mxu0 %v4957
  %5669 = vmatprep.subr.bf16.mxu0 0
  %5670 = vmatpush2.bf16.msra.mxu0 %v4956
  %5671 = vmatprep.subr.bf16.mxu0 0
  %5672 = vmatpush2.bf16.msra.mxu0 %v4955
  %5673 = vmatprep.subr.bf16.mxu0 0
  %5674 = vmatpush2.bf16.msra.mxu0 %v4954
  %5675 = vmatprep.mubr.bf16.mxu0 %v3375
  %5676 = vmatmul.mubr.bf16.gmra.mxu0 %v3361
  %v5677 = vpop.f32.mrf.mxu0
  %v5678 = vadd.f32 %v5638, %v5677
  %v5679 = vpop.f32.mrf.mxu0
  %v5680 = vpop.f32.mrf.mxu0
  %v5681 = vpop.f32.mrf.mxu0
  %5682 = vdwg.mxu0
  %5683 = vmatprep.subr.bf16.mxu0 0
  %5684 = vmatpush1.bf16.msra.mxu0 %v4969
  %5685 = vmatprep.subr.bf16.mxu0 0
  %5686 = vmatpush1.bf16.msra.mxu0 %v4968
  %5687 = vmatprep.subr.bf16.mxu0 0
  %5688 = vmatpush1.bf16.msra.mxu0 %v4967
  %5689 = vmatprep.subr.bf16.mxu0 0
  %5690 = vmatpush1.bf16.msra.mxu0 %v4966
  %5691 = vmatprep.subr.bf16.mxu0 0
  %5692 = vmatpush1.bf16.msra.mxu0 %v4965
  %5693 = vmatprep.subr.bf16.mxu0 0
  %5694 = vmatpush1.bf16.msra.mxu0 %v4964
  %5695 = vmatprep.subr.bf16.mxu0 0
  %5696 = vmatpush1.bf16.msra.mxu0 %v4963
  %5697 = vmatprep.subr.bf16.mxu0 0
  %5698 = vmatpush1.bf16.msra.mxu0 %v4962
  %5699 = vmatprep.subr.bf16.mxu0 0
  %5700 = vmatpush2.bf16.msra.mxu0 %v4977
  %5701 = vmatprep.subr.bf16.mxu0 0
  %5702 = vmatpush2.bf16.msra.mxu0 %v4976
  %5703 = vmatprep.subr.bf16.mxu0 0
  %5704 = vmatpush2.bf16.msra.mxu0 %v4975
  %5705 = vmatprep.subr.bf16.mxu0 0
  %5706 = vmatpush2.bf16.msra.mxu0 %v4974
  %5707 = vmatprep.subr.bf16.mxu0 0
  %5708 = vmatpush2.bf16.msra.mxu0 %v4973
  %5709 = vmatprep.subr.bf16.mxu0 0
  %5710 = vmatpush2.bf16.msra.mxu0 %v4972
  %5711 = vmatprep.subr.bf16.mxu0 0
  %5712 = vmatpush2.bf16.msra.mxu0 %v4971
  %5713 = vmatprep.subr.bf16.mxu0 0
  %5714 = vmatpush2.bf16.msra.mxu0 %v4970
  %5715 = vmatprep.mubr.bf16.mxu0 %v3379
  %5716 = vmatmul.mubr.bf16.gmra.mxu0 %v3377
  %v5717 = vpop.f32.mrf.mxu0
  %v5718 = vadd.f32 %v5678, %v5717
  %v5719 = vpop.f32.mrf.mxu0
  %v5720 = vpop.f32.mrf.mxu0
  %v5721 = vpop.f32.mrf.mxu0
  %5722 = vdwg.mxu0
  %5723 = vmatprep.subr.bf16.mxu0 0
  %5724 = vmatpush1.bf16.msra.mxu0 %v4985
  %5725 = vmatprep.subr.bf16.mxu0 0
  %5726 = vmatpush1.bf16.msra.mxu0 %v4984
  %5727 = vmatprep.subr.bf16.mxu0 0
  %5728 = vmatpush1.bf16.msra.mxu0 %v4983
  %5729 = vmatprep.subr.bf16.mxu0 0
  %5730 = vmatpush1.bf16.msra.mxu0 %v4982
  %5731 = vmatprep.subr.bf16.mxu0 0
  %5732 = vmatpush1.bf16.msra.mxu0 %v4981
  %5733 = vmatprep.subr.bf16.mxu0 0
  %5734 = vmatpush1.bf16.msra.mxu0 %v4980
  %5735 = vmatprep.subr.bf16.mxu0 0
  %5736 = vmatpush1.bf16.msra.mxu0 %v4979
  %5737 = vmatprep.subr.bf16.mxu0 0
  %5738 = vmatpush1.bf16.msra.mxu0 %v4978
  %5739 = vmatprep.subr.bf16.mxu0 0
  %5740 = vmatpush2.bf16.msra.mxu0 %v4993
  %5741 = vmatprep.subr.bf16.mxu0 0
  %5742 = vmatpush2.bf16.msra.mxu0 %v4992
  %5743 = vmatprep.subr.bf16.mxu0 0
  %5744 = vmatpush2.bf16.msra.mxu0 %v4991
  %5745 = vmatprep.subr.bf16.mxu0 0
  %5746 = vmatpush2.bf16.msra.mxu0 %v4990
  %5747 = vmatprep.subr.bf16.mxu0 0
  %5748 = vmatpush2.bf16.msra.mxu0 %v4989
  %5749 = vmatprep.subr.bf16.mxu0 0
  %5750 = vmatpush2.bf16.msra.mxu0 %v4988
  %5751 = vmatprep.subr.bf16.mxu0 0
  %5752 = vmatpush2.bf16.msra.mxu0 %v4987
  %5753 = vmatprep.subr.bf16.mxu0 0
  %5754 = vmatpush2.bf16.msra.mxu0 %v4986
  %5755 = vmatprep.mubr.bf16.mxu0 %v3417
  %5756 = vmatmul.mubr.bf16.gmra.mxu0 %v3403
  %v5757 = vpop.f32.mrf.mxu0
  %v5758 = vadd.f32 %v5718, %v5757
  %v5759 = vpop.f32.mrf.mxu0
  %v5760 = vpop.f32.mrf.mxu0
  %v5761 = vpop.f32.mrf.mxu0
  %5762 = vdwg.mxu0
  %5763 = vmatprep.subr.bf16.mxu0 0
  %5764 = vmatpush1.bf16.msra.mxu0 %v5001
  %5765 = vmatprep.subr.bf16.mxu0 0
  %5766 = vmatpush1.bf16.msra.mxu0 %v5000
  %5767 = vmatprep.subr.bf16.mxu0 0
  %5768 = vmatpush1.bf16.msra.mxu0 %v4999
  %5769 = vmatprep.subr.bf16.mxu0 0
  %5770 = vmatpush1.bf16.msra.mxu0 %v4998
  %5771 = vmatprep.subr.bf16.mxu0 0
  %5772 = vmatpush1.bf16.msra.mxu0 %v4997
  %5773 = vmatprep.subr.bf16.mxu0 0
  %5774 = vmatpush1.bf16.msra.mxu0 %v4996
  %5775 = vmatprep.subr.bf16.mxu0 0
  %5776 = vmatpush1.bf16.msra.mxu0 %v4995
  %5777 = vmatprep.subr.bf16.mxu0 0
  %5778 = vmatpush1.bf16.msra.mxu0 %v4994
  %5779 = vmatprep.subr.bf16.mxu0 0
  %5780 = vmatpush2.bf16.msra.mxu0 %v5009
  %5781 = vmatprep.subr.bf16.mxu0 0
  %5782 = vmatpush2.bf16.msra.mxu0 %v5008
  %5783 = vmatprep.subr.bf16.mxu0 0
  %5784 = vmatpush2.bf16.msra.mxu0 %v5007
  %5785 = vmatprep.subr.bf16.mxu0 0
  %5786 = vmatpush2.bf16.msra.mxu0 %v5006
  %5787 = vmatprep.subr.bf16.mxu0 0
  %5788 = vmatpush2.bf16.msra.mxu0 %v5005
  %5789 = vmatprep.subr.bf16.mxu0 0
  %5790 = vmatpush2.bf16.msra.mxu0 %v5004
  %5791 = vmatprep.subr.bf16.mxu0 0
  %5792 = vmatpush2.bf16.msra.mxu0 %v5003
  %5793 = vmatprep.subr.bf16.mxu0 0
  %5794 = vmatpush2.bf16.msra.mxu0 %v5002
  %5795 = vmatprep.mubr.bf16.mxu0 %v3427
  %5796 = vmatmul.mubr.bf16.gmra.mxu0 %v3425
  %v5797 = vpop.f32.mrf.mxu0
  %v5798 = vadd.f32 %v5758, %v5797
  %v5799 = vpop.f32.mrf.mxu0
  %v5800 = vpop.f32.mrf.mxu0
  %v5801 = vpop.f32.mrf.mxu0
  %5802 = vdwg.mxu0
  %5803 = vmatprep.subr.bf16.mxu0 0
  %5804 = vmatpush1.bf16.msra.mxu0 %v5017
  %5805 = vmatprep.subr.bf16.mxu0 0
  %5806 = vmatpush1.bf16.msra.mxu0 %v5016
  %5807 = vmatprep.subr.bf16.mxu0 0
  %5808 = vmatpush1.bf16.msra.mxu0 %v5015
  %5809 = vmatprep.subr.bf16.mxu0 0
  %5810 = vmatpush1.bf16.msra.mxu0 %v5014
  %5811 = vmatprep.subr.bf16.mxu0 0
  %5812 = vmatpush1.bf16.msra.mxu0 %v5013
  %5813 = vmatprep.subr.bf16.mxu0 0
  %5814 = vmatpush1.bf16.msra.mxu0 %v5012
  %5815 = vmatprep.subr.bf16.mxu0 0
  %5816 = vmatpush1.bf16.msra.mxu0 %v5011
  %5817 = vmatprep.subr.bf16.mxu0 0
  %5818 = vmatpush1.bf16.msra.mxu0 %v5010
  %5819 = vmatprep.subr.bf16.mxu0 0
  %5820 = vmatpush2.bf16.msra.mxu0 %v5025
  %5821 = vmatprep.subr.bf16.mxu0 0
  %5822 = vmatpush2.bf16.msra.mxu0 %v5024
  %5823 = vmatprep.subr.bf16.mxu0 0
  %5824 = vmatpush2.bf16.msra.mxu0 %v5023
  %5825 = vmatprep.subr.bf16.mxu0 0
  %5826 = vmatpush2.bf16.msra.mxu0 %v5022
  %5827 = vmatprep.subr.bf16.mxu0 0
  %5828 = vmatpush2.bf16.msra.mxu0 %v5021
  %5829 = vmatprep.subr.bf16.mxu0 0
  %5830 = vmatpush2.bf16.msra.mxu0 %v5020
  %5831 = vmatprep.subr.bf16.mxu0 0
  %5832 = vmatpush2.bf16.msra.mxu0 %v5019
  %5833 = vmatprep.subr.bf16.mxu0 0
  %5834 = vmatpush2.bf16.msra.mxu0 %v5018
  %5835 = vmatprep.mubr.bf16.mxu0 %v3424
  %5836 = vmatmul.mubr.bf16.gmra.mxu0 %v3410
  %v5837 = vpop.f32.mrf.mxu0
  %v5838 = vadd.f32 %v5798, %v5837
  %v5839 = vpop.f32.mrf.mxu0
  %v5840 = vpop.f32.mrf.mxu0
  %v5841 = vpop.f32.mrf.mxu0
  %5842 = vdwg.mxu0
  %5843 = vmatprep.subr.bf16.mxu0 0
  %5844 = vmatpush1.bf16.msra.mxu0 %v5033
  %5845 = vmatprep.subr.bf16.mxu0 0
  %5846 = vmatpush1.bf16.msra.mxu0 %v5032
  %5847 = vmatprep.subr.bf16.mxu0 0
  %5848 = vmatpush1.bf16.msra.mxu0 %v5031
  %5849 = vmatprep.subr.bf16.mxu0 0
  %5850 = vmatpush1.bf16.msra.mxu0 %v5030
  %5851 = vmatprep.subr.bf16.mxu0 0
  %5852 = vmatpush1.bf16.msra.mxu0 %v5029
  %5853 = vmatprep.subr.bf16.mxu0 0
  %5854 = vmatpush1.bf16.msra.mxu0 %v5028
  %5855 = vmatprep.subr.bf16.mxu0 0
  %5856 = vmatpush1.bf16.msra.mxu0 %v5027
  %5857 = vmatprep.subr.bf16.mxu0 0
  %5858 = vmatpush1.bf16.msra.mxu0 %v5026
  %5859 = vmatprep.subr.bf16.mxu0 0
  %5860 = vmatpush2.bf16.msra.mxu0 %v5041
  %5861 = vmatprep.subr.bf16.mxu0 0
  %5862 = vmatpush2.bf16.msra.mxu0 %v5040
  %5863 = vmatprep.subr.bf16.mxu0 0
  %5864 = vmatpush2.bf16.msra.mxu0 %v5039
  %5865 = vmatprep.subr.bf16.mxu0 0
  %5866 = vmatpush2.bf16.msra.mxu0 %v5038
  %5867 = vmatprep.subr.bf16.mxu0 0
  %5868 = vmatpush2.bf16.msra.mxu0 %v5037
  %5869 = vmatprep.subr.bf16.mxu0 0
  %5870 = vmatpush2.bf16.msra.mxu0 %v5036
  %5871 = vmatprep.subr.bf16.mxu0 0
  %5872 = vmatpush2.bf16.msra.mxu0 %v5035
  %5873 = vmatprep.subr.bf16.mxu0 0
  %5874 = vmatpush2.bf16.msra.mxu0 %v5034
  %5875 = vmatprep.mubr.bf16.mxu0 %v3428
  %5876 = vmatmul.mubr.bf16.gmra.mxu0 %v3426
  %v5877 = vpop.f32.mrf.mxu0
  %v5878 = vadd.f32 %v5838, %v5877
  %v5879 = vpop.f32.mrf.mxu0
  %v5880 = vpop.f32.mrf.mxu0
  %v5881 = vpop.f32.mrf.mxu0
  %5882 = vdwg.mxu0
  %5883 = vmatprep.subr.bf16.mxu0 0
  %5884 = vmatpush1.bf16.msra.mxu0 %v5049
  %5885 = vmatprep.subr.bf16.mxu0 0
  %5886 = vmatpush1.bf16.msra.mxu0 %v5048
  %5887 = vmatprep.subr.bf16.mxu0 0
  %5888 = vmatpush1.bf16.msra.mxu0 %v5047
  %5889 = vmatprep.subr.bf16.mxu0 0
  %5890 = vmatpush1.bf16.msra.mxu0 %v5046
  %5891 = vmatprep.subr.bf16.mxu0 0
  %5892 = vmatpush1.bf16.msra.mxu0 %v5045
  %5893 = vmatprep.subr.bf16.mxu0 0
  %5894 = vmatpush1.bf16.msra.mxu0 %v5044
  %5895 = vmatprep.subr.bf16.mxu0 0
  %5896 = vmatpush1.bf16.msra.mxu0 %v5043
  %5897 = vmatprep.subr.bf16.mxu0 0
  %5898 = vmatpush1.bf16.msra.mxu0 %v5042
  %5899 = vmatprep.subr.bf16.mxu0 0
  %5900 = vmatpush2.bf16.msra.mxu0 %v5057
  %5901 = vmatprep.subr.bf16.mxu0 0
  %5902 = vmatpush2.bf16.msra.mxu0 %v5056
  %5903 = vmatprep.subr.bf16.mxu0 0
  %5904 = vmatpush2.bf16.msra.mxu0 %v5055
  %5905 = vmatprep.subr.bf16.mxu0 0
  %5906 = vmatpush2.bf16.msra.mxu0 %v5054
  %5907 = vmatprep.subr.bf16.mxu0 0
  %5908 = vmatpush2.bf16.msra.mxu0 %v5053
  %5909 = vmatprep.subr.bf16.mxu0 0
  %5910 = vmatpush2.bf16.msra.mxu0 %v5052
  %5911 = vmatprep.subr.bf16.mxu0 0
  %5912 = vmatpush2.bf16.msra.mxu0 %v5051
  %5913 = vmatprep.subr.bf16.mxu0 0
  %5914 = vmatpush2.bf16.msra.mxu0 %v5050
  %5915 = vmatprep.mubr.bf16.mxu0 %v3466
  %5916 = vmatmul.mubr.bf16.gmra.mxu0 %v3452
  %v5917 = vpop.f32.mrf.mxu0
  %v5918 = vadd.f32 %v5878, %v5917
  %v5919 = vpop.f32.mrf.mxu0
  %v5920 = vpop.f32.mrf.mxu0
  %v5921 = vpop.f32.mrf.mxu0
  %5922 = vdwg.mxu0
  %5923 = vmatprep.subr.bf16.mxu0 0
  %5924 = vmatpush1.bf16.msra.mxu0 %v5065
  %5925 = vmatprep.subr.bf16.mxu0 0
  %5926 = vmatpush1.bf16.msra.mxu0 %v5064
  %5927 = vmatprep.subr.bf16.mxu0 0
  %5928 = vmatpush1.bf16.msra.mxu0 %v5063
  %5929 = vmatprep.subr.bf16.mxu0 0
  %5930 = vmatpush1.bf16.msra.mxu0 %v5062
  %5931 = vmatprep.subr.bf16.mxu0 0
  %5932 = vmatpush1.bf16.msra.mxu0 %v5061
  %5933 = vmatprep.subr.bf16.mxu0 0
  %5934 = vmatpush1.bf16.msra.mxu0 %v5060
  %5935 = vmatprep.subr.bf16.mxu0 0
  %5936 = vmatpush1.bf16.msra.mxu0 %v5059
  %5937 = vmatprep.subr.bf16.mxu0 0
  %5938 = vmatpush1.bf16.msra.mxu0 %v5058
  %5939 = vmatprep.subr.bf16.mxu0 0
  %5940 = vmatpush2.bf16.msra.mxu0 %v5073
  %5941 = vmatprep.subr.bf16.mxu0 0
  %5942 = vmatpush2.bf16.msra.mxu0 %v5072
  %5943 = vmatprep.subr.bf16.mxu0 0
  %5944 = vmatpush2.bf16.msra.mxu0 %v5071
  %5945 = vmatprep.subr.bf16.mxu0 0
  %5946 = vmatpush2.bf16.msra.mxu0 %v5070
  %5947 = vmatprep.subr.bf16.mxu0 0
  %5948 = vmatpush2.bf16.msra.mxu0 %v5069
  %5949 = vmatprep.subr.bf16.mxu0 0
  %5950 = vmatpush2.bf16.msra.mxu0 %v5068
  %5951 = vmatprep.subr.bf16.mxu0 0
  %5952 = vmatpush2.bf16.msra.mxu0 %v5067
  %5953 = vmatprep.subr.bf16.mxu0 0
  %5954 = vmatpush2.bf16.msra.mxu0 %v5066
  %5955 = vmatprep.mubr.bf16.mxu0 %v3476
  %5956 = vmatmul.mubr.bf16.gmra.mxu0 %v3474
  %v5957 = vpop.f32.mrf.mxu0
  %v5958 = vadd.f32 %v5918, %v5957
  %v5959 = vpop.f32.mrf.mxu0
  %v5960 = vpop.f32.mrf.mxu0
  %v5961 = vpop.f32.mrf.mxu0
  %5962 = vdwg.mxu0
  %5963 = vmatprep.subr.bf16.mxu0 0
  %5964 = vmatpush1.bf16.msra.mxu0 %v5081
  %5965 = vmatprep.subr.bf16.mxu0 0
  %5966 = vmatpush1.bf16.msra.mxu0 %v5080
  %5967 = vmatprep.subr.bf16.mxu0 0
  %5968 = vmatpush1.bf16.msra.mxu0 %v5079
  %5969 = vmatprep.subr.bf16.mxu0 0
  %5970 = vmatpush1.bf16.msra.mxu0 %v5078
  %5971 = vmatprep.subr.bf16.mxu0 0
  %5972 = vmatpush1.bf16.msra.mxu0 %v5077
  %5973 = vmatprep.subr.bf16.mxu0 0
  %5974 = vmatpush1.bf16.msra.mxu0 %v5076
  %5975 = vmatprep.subr.bf16.mxu0 0
  %5976 = vmatpush1.bf16.msra.mxu0 %v5075
  %5977 = vmatprep.subr.bf16.mxu0 0
  %5978 = vmatpush1.bf16.msra.mxu0 %v5074
  %5979 = vmatprep.subr.bf16.mxu0 0
  %5980 = vmatpush2.bf16.msra.mxu0 %v5089
  %5981 = vmatprep.subr.bf16.mxu0 0
  %5982 = vmatpush2.bf16.msra.mxu0 %v5088
  %5983 = vmatprep.subr.bf16.mxu0 0
  %5984 = vmatpush2.bf16.msra.mxu0 %v5087
  %5985 = vmatprep.subr.bf16.mxu0 0
  %5986 = vmatpush2.bf16.msra.mxu0 %v5086
  %5987 = vmatprep.subr.bf16.mxu0 0
  %5988 = vmatpush2.bf16.msra.mxu0 %v5085
  %5989 = vmatprep.subr.bf16.mxu0 0
  %5990 = vmatpush2.bf16.msra.mxu0 %v5084
  %5991 = vmatprep.subr.bf16.mxu0 0
  %5992 = vmatpush2.bf16.msra.mxu0 %v5083
  %5993 = vmatprep.subr.bf16.mxu0 0
  %5994 = vmatpush2.bf16.msra.mxu0 %v5082
  %5995 = vmatprep.mubr.bf16.mxu0 %v3473
  %5996 = vmatmul.mubr.bf16.gmra.mxu0 %v3459
  %v5997 = vpop.f32.mrf.mxu0
  %v5998 = vadd.f32 %v5958, %v5997
  %v5999 = vpop.f32.mrf.mxu0
  %v6000 = vpop.f32.mrf.mxu0
  %v6001 = vpop.f32.mrf.mxu0
  %6002 = vdwg.mxu0
  %6003 = vmatprep.subr.bf16.mxu0 0
  %6004 = vmatpush1.bf16.msra.mxu0 %v5097
  %6005 = vmatprep.subr.bf16.mxu0 0
  %6006 = vmatpush1.bf16.msra.mxu0 %v5096
  %6007 = vmatprep.subr.bf16.mxu0 0
  %6008 = vmatpush1.bf16.msra.mxu0 %v5095
  %6009 = vmatprep.subr.bf16.mxu0 0
  %6010 = vmatpush1.bf16.msra.mxu0 %v5094
  %6011 = vmatprep.subr.bf16.mxu0 0
  %6012 = vmatpush1.bf16.msra.mxu0 %v5093
  %6013 = vmatprep.subr.bf16.mxu0 0
  %6014 = vmatpush1.bf16.msra.mxu0 %v5092
  %6015 = vmatprep.subr.bf16.mxu0 0
  %6016 = vmatpush1.bf16.msra.mxu0 %v5091
  %6017 = vmatprep.subr.bf16.mxu0 0
  %6018 = vmatpush1.bf16.msra.mxu0 %v5090
  %6019 = vmatprep.subr.bf16.mxu0 0
  %6020 = vmatpush2.bf16.msra.mxu0 %v5105
  %6021 = vmatprep.subr.bf16.mxu0 0
  %6022 = vmatpush2.bf16.msra.mxu0 %v5104
  %6023 = vmatprep.subr.bf16.mxu0 0
  %6024 = vmatpush2.bf16.msra.mxu0 %v5103
  %6025 = vmatprep.subr.bf16.mxu0 0
  %6026 = vmatpush2.bf16.msra.mxu0 %v5102
  %6027 = vmatprep.subr.bf16.mxu0 0
  %6028 = vmatpush2.bf16.msra.mxu0 %v5101
  %6029 = vmatprep.subr.bf16.mxu0 0
  %6030 = vmatpush2.bf16.msra.mxu0 %v5100
  %6031 = vmatprep.subr.bf16.mxu0 0
  %6032 = vmatpush2.bf16.msra.mxu0 %v5099
  %6033 = vmatprep.subr.bf16.mxu0 0
  %6034 = vmatpush2.bf16.msra.mxu0 %v5098
  %6035 = vmatprep.mubr.bf16.mxu0 %v3477
  %6036 = vmatmul.mubr.bf16.gmra.mxu0 %v3475
  %v6037 = vpop.f32.mrf.mxu0
  %v6038 = vadd.f32 %v5998, %v6037
  %v6039 = vpop.f32.mrf.mxu0
  %v6040 = vpop.f32.mrf.mxu0
  %v6041 = vpop.f32.mrf.mxu0
  %6042 = vdwg.mxu0
  %6043 = vmatprep.subr.bf16.mxu0 0
  %6044 = vmatpush1.bf16.msra.mxu0 %v5113
  %6045 = vmatprep.subr.bf16.mxu0 0
  %6046 = vmatpush1.bf16.msra.mxu0 %v5112
  %6047 = vmatprep.subr.bf16.mxu0 0
  %6048 = vmatpush1.bf16.msra.mxu0 %v5111
  %6049 = vmatprep.subr.bf16.mxu0 0
  %6050 = vmatpush1.bf16.msra.mxu0 %v5110
  %6051 = vmatprep.subr.bf16.mxu0 0
  %6052 = vmatpush1.bf16.msra.mxu0 %v5109
  %6053 = vmatprep.subr.bf16.mxu0 0
  %6054 = vmatpush1.bf16.msra.mxu0 %v5108
  %6055 = vmatprep.subr.bf16.mxu0 0
  %6056 = vmatpush1.bf16.msra.mxu0 %v5107
  %6057 = vmatprep.subr.bf16.mxu0 0
  %6058 = vmatpush1.bf16.msra.mxu0 %v5106
  %6059 = vmatprep.subr.bf16.mxu0 0
  %6060 = vmatpush2.bf16.msra.mxu0 %v5121
  %6061 = vmatprep.subr.bf16.mxu0 0
  %6062 = vmatpush2.bf16.msra.mxu0 %v5120
  %6063 = vmatprep.subr.bf16.mxu0 0
  %6064 = vmatpush2.bf16.msra.mxu0 %v5119
  %6065 = vmatprep.subr.bf16.mxu0 0
  %6066 = vmatpush2.bf16.msra.mxu0 %v5118
  %6067 = vmatprep.subr.bf16.mxu0 0
  %6068 = vmatpush2.bf16.msra.mxu0 %v5117
  %6069 = vmatprep.subr.bf16.mxu0 0
  %6070 = vmatpush2.bf16.msra.mxu0 %v5116
  %6071 = vmatprep.subr.bf16.mxu0 0
  %6072 = vmatpush2.bf16.msra.mxu0 %v5115
  %6073 = vmatprep.subr.bf16.mxu0 0
  %6074 = vmatpush2.bf16.msra.mxu0 %v5114
  %6075 = vmatprep.mubr.bf16.mxu0 %v3515
  %6076 = vmatmul.mubr.bf16.gmra.mxu0 %v3501
  %v6077 = vpop.f32.mrf.mxu0
  %v6078 = vadd.f32 %v6038, %v6077
  %v6079 = vpop.f32.mrf.mxu0
  %v6080 = vpop.f32.mrf.mxu0
  %v6081 = vpop.f32.mrf.mxu0
  %6082 = vdwg.mxu0
  %6083 = vmatprep.subr.bf16.mxu0 0
  %6084 = vmatpush1.bf16.msra.mxu0 %v5129
  %6085 = vmatprep.subr.bf16.mxu0 0
  %6086 = vmatpush1.bf16.msra.mxu0 %v5128
  %6087 = vmatprep.subr.bf16.mxu0 0
  %6088 = vmatpush1.bf16.msra.mxu0 %v5127
  %6089 = vmatprep.subr.bf16.mxu0 0
  %6090 = vmatpush1.bf16.msra.mxu0 %v5126
  %6091 = vmatprep.subr.bf16.mxu0 0
  %6092 = vmatpush1.bf16.msra.mxu0 %v5125
  %6093 = vmatprep.subr.bf16.mxu0 0
  %6094 = vmatpush1.bf16.msra.mxu0 %v5124
  %6095 = vmatprep.subr.bf16.mxu0 0
  %6096 = vmatpush1.bf16.msra.mxu0 %v5123
  %6097 = vmatprep.subr.bf16.mxu0 0
  %6098 = vmatpush1.bf16.msra.mxu0 %v5122
  %6099 = vmatprep.subr.bf16.mxu0 0
  %6100 = vmatpush2.bf16.msra.mxu0 %v5137
  %6101 = vmatprep.subr.bf16.mxu0 0
  %6102 = vmatpush2.bf16.msra.mxu0 %v5136
  %6103 = vmatprep.subr.bf16.mxu0 0
  %6104 = vmatpush2.bf16.msra.mxu0 %v5135
  %6105 = vmatprep.subr.bf16.mxu0 0
  %6106 = vmatpush2.bf16.msra.mxu0 %v5134
  %6107 = vmatprep.subr.bf16.mxu0 0
  %6108 = vmatpush2.bf16.msra.mxu0 %v5133
  %6109 = vmatprep.subr.bf16.mxu0 0
  %6110 = vmatpush2.bf16.msra.mxu0 %v5132
  %6111 = vmatprep.subr.bf16.mxu0 0
  %6112 = vmatpush2.bf16.msra.mxu0 %v5131
  %6113 = vmatprep.subr.bf16.mxu0 0
  %6114 = vmatpush2.bf16.msra.mxu0 %v5130
  %6115 = vmatprep.mubr.bf16.mxu0 %v3525
  %6116 = vmatmul.mubr.bf16.gmra.mxu0 %v3523
  %v6117 = vpop.f32.mrf.mxu0
  %v6118 = vadd.f32 %v6078, %v6117
  %v6119 = vpop.f32.mrf.mxu0
  %v6120 = vpop.f32.mrf.mxu0
  %v6121 = vpop.f32.mrf.mxu0
  %6122 = vdwg.mxu0
  %6123 = vmatprep.subr.bf16.mxu0 0
  %6124 = vmatpush1.bf16.msra.mxu0 %v5145
  %6125 = vmatprep.subr.bf16.mxu0 0
  %6126 = vmatpush1.bf16.msra.mxu0 %v5144
  %6127 = vmatprep.subr.bf16.mxu0 0
  %6128 = vmatpush1.bf16.msra.mxu0 %v5143
  %6129 = vmatprep.subr.bf16.mxu0 0
  %6130 = vmatpush1.bf16.msra.mxu0 %v5142
  %6131 = vmatprep.subr.bf16.mxu0 0
  %6132 = vmatpush1.bf16.msra.mxu0 %v5141
  %6133 = vmatprep.subr.bf16.mxu0 0
  %6134 = vmatpush1.bf16.msra.mxu0 %v5140
  %6135 = vmatprep.subr.bf16.mxu0 0
  %6136 = vmatpush1.bf16.msra.mxu0 %v5139
  %6137 = vmatprep.subr.bf16.mxu0 0
  %6138 = vmatpush1.bf16.msra.mxu0 %v5138
  %6139 = vmatprep.subr.bf16.mxu0 0
  %6140 = vmatpush2.bf16.msra.mxu0 %v5153
  %6141 = vmatprep.subr.bf16.mxu0 0
  %6142 = vmatpush2.bf16.msra.mxu0 %v5152
  %6143 = vmatprep.subr.bf16.mxu0 0
  %6144 = vmatpush2.bf16.msra.mxu0 %v5151
  %6145 = vmatprep.subr.bf16.mxu0 0
  %6146 = vmatpush2.bf16.msra.mxu0 %v5150
  %6147 = vmatprep.subr.bf16.mxu0 0
  %6148 = vmatpush2.bf16.msra.mxu0 %v5149
  %6149 = vmatprep.subr.bf16.mxu0 0
  %6150 = vmatpush2.bf16.msra.mxu0 %v5148
  %6151 = vmatprep.subr.bf16.mxu0 0
  %6152 = vmatpush2.bf16.msra.mxu0 %v5147
  %6153 = vmatprep.subr.bf16.mxu0 0
  %6154 = vmatpush2.bf16.msra.mxu0 %v5146
  %6155 = vmatprep.mubr.bf16.mxu0 %v3522
  %6156 = vmatmul.mubr.bf16.gmra.mxu0 %v3508
  %v6157 = vpop.f32.mrf.mxu0
  %v6158 = vadd.f32 %v6118, %v6157
  %v6159 = vpop.f32.mrf.mxu0
  %v6160 = vpop.f32.mrf.mxu0
  %v6161 = vpop.f32.mrf.mxu0
  %6162 = vdwg.mxu0
  %6163 = vmatprep.subr.bf16.mxu0 0
  %6164 = vmatpush1.bf16.msra.mxu0 %v5161
  %6165 = vmatprep.subr.bf16.mxu0 0
  %6166 = vmatpush1.bf16.msra.mxu0 %v5160
  %6167 = vmatprep.subr.bf16.mxu0 0
  %6168 = vmatpush1.bf16.msra.mxu0 %v5159
  %6169 = vmatprep.subr.bf16.mxu0 0
  %6170 = vmatpush1.bf16.msra.mxu0 %v5158
  %6171 = vmatprep.subr.bf16.mxu0 0
  %6172 = vmatpush1.bf16.msra.mxu0 %v5157
  %6173 = vmatprep.subr.bf16.mxu0 0
  %6174 = vmatpush1.bf16.msra.mxu0 %v5156
  %6175 = vmatprep.subr.bf16.mxu0 0
  %6176 = vmatpush1.bf16.msra.mxu0 %v5155
  %6177 = vmatprep.subr.bf16.mxu0 0
  %6178 = vmatpush1.bf16.msra.mxu0 %v5154
  %6179 = vmatprep.subr.bf16.mxu0 0
  %6180 = vmatpush2.bf16.msra.mxu0 %v5169
  %6181 = vmatprep.subr.bf16.mxu0 0
  %6182 = vmatpush2.bf16.msra.mxu0 %v5168
  %6183 = vmatprep.subr.bf16.mxu0 0
  %6184 = vmatpush2.bf16.msra.mxu0 %v5167
  %6185 = vmatprep.subr.bf16.mxu0 0
  %6186 = vmatpush2.bf16.msra.mxu0 %v5166
  %6187 = vmatprep.subr.bf16.mxu0 0
  %6188 = vmatpush2.bf16.msra.mxu0 %v5165
  %6189 = vmatprep.subr.bf16.mxu0 0
  %6190 = vmatpush2.bf16.msra.mxu0 %v5164
  %6191 = vmatprep.subr.bf16.mxu0 0
  %6192 = vmatpush2.bf16.msra.mxu0 %v5163
  %6193 = vmatprep.subr.bf16.mxu0 0
  %6194 = vmatpush2.bf16.msra.mxu0 %v5162
  %6195 = vmatprep.mubr.bf16.mxu0 %v3526
  %6196 = vmatmul.mubr.bf16.gmra.mxu0 %v3524
  %v6197 = vpop.f32.mrf.mxu0
  %v6198 = vadd.f32 %v6158, %v6197
  %v6199 = vpop.f32.mrf.mxu0
  %v6200 = vpop.f32.mrf.mxu0
  %v6201 = vpop.f32.mrf.mxu0
  %6202 = vdwg.mxu0
  %6203 = vmatprep.subr.bf16.mxu0 0
  %6204 = vmatpush1.bf16.msra.mxu0 %v5177
  %6205 = vmatprep.subr.bf16.mxu0 0
  %6206 = vmatpush1.bf16.msra.mxu0 %v5176
  %6207 = vmatprep.subr.bf16.mxu0 0
  %6208 = vmatpush1.bf16.msra.mxu0 %v5175
  %6209 = vmatprep.subr.bf16.mxu0 0
  %6210 = vmatpush1.bf16.msra.mxu0 %v5174
  %6211 = vmatprep.subr.bf16.mxu0 0
  %6212 = vmatpush1.bf16.msra.mxu0 %v5173
  %6213 = vmatprep.subr.bf16.mxu0 0
  %6214 = vmatpush1.bf16.msra.mxu0 %v5172
  %6215 = vmatprep.subr.bf16.mxu0 0
  %6216 = vmatpush1.bf16.msra.mxu0 %v5171
  %6217 = vmatprep.subr.bf16.mxu0 0
  %6218 = vmatpush1.bf16.msra.mxu0 %v5170
  %6219 = vmatprep.subr.bf16.mxu0 0
  %6220 = vmatpush2.bf16.msra.mxu0 %v5185
  %6221 = vmatprep.subr.bf16.mxu0 0
  %6222 = vmatpush2.bf16.msra.mxu0 %v5184
  %6223 = vmatprep.subr.bf16.mxu0 0
  %6224 = vmatpush2.bf16.msra.mxu0 %v5183
  %6225 = vmatprep.subr.bf16.mxu0 0
  %6226 = vmatpush2.bf16.msra.mxu0 %v5182
  %6227 = vmatprep.subr.bf16.mxu0 0
  %6228 = vmatpush2.bf16.msra.mxu0 %v5181
  %6229 = vmatprep.subr.bf16.mxu0 0
  %6230 = vmatpush2.bf16.msra.mxu0 %v5180
  %6231 = vmatprep.subr.bf16.mxu0 0
  %6232 = vmatpush2.bf16.msra.mxu0 %v5179
  %6233 = vmatprep.subr.bf16.mxu0 0
  %6234 = vmatpush2.bf16.msra.mxu0 %v5178
  %6235 = vmatprep.mubr.bf16.mxu0 %v3564
  %6236 = vmatmul.mubr.bf16.gmra.mxu0 %v3550
  %v6237 = vpop.f32.mrf.mxu0
  %v6238 = vadd.f32 %v6198, %v6237
  %v6239 = vpop.f32.mrf.mxu0
  %v6240 = vpop.f32.mrf.mxu0
  %v6241 = vpop.f32.mrf.mxu0
  %6242 = vdwg.mxu0
  %6243 = vmatprep.subr.bf16.mxu0 0
  %6244 = vmatpush1.bf16.msra.mxu0 %v5193
  %6245 = vmatprep.subr.bf16.mxu0 0
  %6246 = vmatpush1.bf16.msra.mxu0 %v5192
  %6247 = vmatprep.subr.bf16.mxu0 0
  %6248 = vmatpush1.bf16.msra.mxu0 %v5191
  %6249 = vmatprep.subr.bf16.mxu0 0
  %6250 = vmatpush1.bf16.msra.mxu0 %v5190
  %6251 = vmatprep.subr.bf16.mxu0 0
  %6252 = vmatpush1.bf16.msra.mxu0 %v5189
  %6253 = vmatprep.subr.bf16.mxu0 0
  %6254 = vmatpush1.bf16.msra.mxu0 %v5188
  %6255 = vmatprep.subr.bf16.mxu0 0
  %6256 = vmatpush1.bf16.msra.mxu0 %v5187
  %6257 = vmatprep.subr.bf16.mxu0 0
  %6258 = vmatpush1.bf16.msra.mxu0 %v5186
  %6259 = vmatprep.subr.bf16.mxu0 0
  %6260 = vmatpush2.bf16.msra.mxu0 %v5201
  %6261 = vmatprep.subr.bf16.mxu0 0
  %6262 = vmatpush2.bf16.msra.mxu0 %v5200
  %6263 = vmatprep.subr.bf16.mxu0 0
  %6264 = vmatpush2.bf16.msra.mxu0 %v5199
  %6265 = vmatprep.subr.bf16.mxu0 0
  %6266 = vmatpush2.bf16.msra.mxu0 %v5198
  %6267 = vmatprep.subr.bf16.mxu0 0
  %6268 = vmatpush2.bf16.msra.mxu0 %v5197
  %6269 = vmatprep.subr.bf16.mxu0 0
  %6270 = vmatpush2.bf16.msra.mxu0 %v5196
  %6271 = vmatprep.subr.bf16.mxu0 0
  %6272 = vmatpush2.bf16.msra.mxu0 %v5195
  %6273 = vmatprep.subr.bf16.mxu0 0
  %6274 = vmatpush2.bf16.msra.mxu0 %v5194
  %6275 = vmatprep.mubr.bf16.mxu0 %v3574
  %6276 = vmatmul.mubr.bf16.gmra.mxu0 %v3572
  %v6277 = vpop.f32.mrf.mxu0
  %v6278 = vadd.f32 %v6238, %v6277
  %v6279 = vpop.f32.mrf.mxu0
  %v6280 = vpop.f32.mrf.mxu0
  %v6281 = vpop.f32.mrf.mxu0
  %6282 = vdwg.mxu0
  %6283 = vmatprep.subr.bf16.mxu0 0
  %6284 = vmatpush1.bf16.msra.mxu0 %v5209
  %6285 = vmatprep.subr.bf16.mxu0 0
  %6286 = vmatpush1.bf16.msra.mxu0 %v5208
  %6287 = vmatprep.subr.bf16.mxu0 0
  %6288 = vmatpush1.bf16.msra.mxu0 %v5207
  %6289 = vmatprep.subr.bf16.mxu0 0
  %6290 = vmatpush1.bf16.msra.mxu0 %v5206
  %6291 = vmatprep.subr.bf16.mxu0 0
  %6292 = vmatpush1.bf16.msra.mxu0 %v5205
  %6293 = vmatprep.subr.bf16.mxu0 0
  %6294 = vmatpush1.bf16.msra.mxu0 %v5204
  %6295 = vmatprep.subr.bf16.mxu0 0
  %6296 = vmatpush1.bf16.msra.mxu0 %v5203
  %6297 = vmatprep.subr.bf16.mxu0 0
  %6298 = vmatpush1.bf16.msra.mxu0 %v5202
  %6299 = vmatprep.subr.bf16.mxu0 0
  %6300 = vmatpush2.bf16.msra.mxu0 %v5217
  %6301 = vmatprep.subr.bf16.mxu0 0
  %6302 = vmatpush2.bf16.msra.mxu0 %v5216
  %6303 = vmatprep.subr.bf16.mxu0 0
  %6304 = vmatpush2.bf16.msra.mxu0 %v5215
  %6305 = vmatprep.subr.bf16.mxu0 0
  %6306 = vmatpush2.bf16.msra.mxu0 %v5214
  %6307 = vmatprep.subr.bf16.mxu0 0
  %6308 = vmatpush2.bf16.msra.mxu0 %v5213
  %6309 = vmatprep.subr.bf16.mxu0 0
  %6310 = vmatpush2.bf16.msra.mxu0 %v5212
  %6311 = vmatprep.subr.bf16.mxu0 0
  %6312 = vmatpush2.bf16.msra.mxu0 %v5211
  %6313 = vmatprep.subr.bf16.mxu0 0
  %6314 = vmatpush2.bf16.msra.mxu0 %v5210
  %6315 = vmatprep.mubr.bf16.mxu0 %v3571
  %6316 = vmatmul.mubr.bf16.gmra.mxu0 %v3557
  %v6317 = vpop.f32.mrf.mxu0
  %v6318 = vadd.f32 %v6278, %v6317
  %v6319 = vpop.f32.mrf.mxu0
  %v6320 = vpop.f32.mrf.mxu0
  %v6321 = vpop.f32.mrf.mxu0
  %6322 = vdwg.mxu0
  %6323 = vmatprep.subr.bf16.mxu0 0
  %6324 = vmatpush1.bf16.msra.mxu0 %v5225
  %6325 = vmatprep.subr.bf16.mxu0 0
  %6326 = vmatpush1.bf16.msra.mxu0 %v5224
  %6327 = vmatprep.subr.bf16.mxu0 0
  %6328 = vmatpush1.bf16.msra.mxu0 %v5223
  %6329 = vmatprep.subr.bf16.mxu0 0
  %6330 = vmatpush1.bf16.msra.mxu0 %v5222
  %6331 = vmatprep.subr.bf16.mxu0 0
  %6332 = vmatpush1.bf16.msra.mxu0 %v5221
  %6333 = vmatprep.subr.bf16.mxu0 0
  %6334 = vmatpush1.bf16.msra.mxu0 %v5220
  %6335 = vmatprep.subr.bf16.mxu0 0
  %6336 = vmatpush1.bf16.msra.mxu0 %v5219
  %6337 = vmatprep.subr.bf16.mxu0 0
  %6338 = vmatpush1.bf16.msra.mxu0 %v5218
  %6339 = vmatprep.subr.bf16.mxu0 0
  %6340 = vmatpush2.bf16.msra.mxu0 %v5233
  %6341 = vmatprep.subr.bf16.mxu0 0
  %6342 = vmatpush2.bf16.msra.mxu0 %v5232
  %6343 = vmatprep.subr.bf16.mxu0 0
  %6344 = vmatpush2.bf16.msra.mxu0 %v5231
  %6345 = vmatprep.subr.bf16.mxu0 0
  %6346 = vmatpush2.bf16.msra.mxu0 %v5230
  %6347 = vmatprep.subr.bf16.mxu0 0
  %6348 = vmatpush2.bf16.msra.mxu0 %v5229
  %6349 = vmatprep.subr.bf16.mxu0 0
  %6350 = vmatpush2.bf16.msra.mxu0 %v5228
  %6351 = vmatprep.subr.bf16.mxu0 0
  %6352 = vmatpush2.bf16.msra.mxu0 %v5227
  %6353 = vmatprep.subr.bf16.mxu0 0
  %6354 = vmatpush2.bf16.msra.mxu0 %v5226
  %6355 = vmatprep.mubr.bf16.mxu0 %v3575
  %6356 = vmatmul.mubr.bf16.gmra.mxu0 %v3573
  %v6357 = vpop.f32.mrf.mxu0
  %v6358 = vadd.f32 %v6318, %v6357
  %v6359 = vpop.f32.mrf.mxu0
  %v6360 = vpop.f32.mrf.mxu0
  %v6361 = vpop.f32.mrf.mxu0
  %6362 = vdwg.mxu0
  %6363 = vmatprep.subr.bf16.mxu0 0
  %6364 = vmatpush1.bf16.msra.mxu0 0
  %6365 = vmatprep.subr.bf16.mxu0 0
  %6366 = vmatpush1.bf16.msra.mxu0 0
  %6367 = vmatprep.subr.bf16.mxu0 0
  %6368 = vmatpush1.bf16.msra.mxu0 0
  %6369 = vmatprep.subr.bf16.mxu0 0
  %6370 = vmatpush1.bf16.msra.mxu0 0
  %6371 = vmatprep.subr.bf16.mxu0 0
  %6372 = vmatpush1.bf16.msra.mxu0 0
  %6373 = vmatprep.subr.bf16.mxu0 0
  %6374 = vmatpush1.bf16.msra.mxu0 0
  %6375 = vmatprep.subr.bf16.mxu0 0
  %6376 = vmatpush1.bf16.msra.mxu0 0
  %6377 = vmatprep.subr.bf16.mxu0 0
  %6378 = vmatpush1.bf16.msra.mxu0 %v5561
  %6379 = vmatprep.subr.bf16.mxu0 0
  %6380 = vmatpush2.bf16.msra.mxu0 0
  %6381 = vmatprep.subr.bf16.mxu0 0
  %6382 = vmatpush2.bf16.msra.mxu0 0
  %6383 = vmatprep.subr.bf16.mxu0 0
  %6384 = vmatpush2.bf16.msra.mxu0 0
  %6385 = vmatprep.subr.bf16.mxu0 0
  %6386 = vmatpush2.bf16.msra.mxu0 0
  %6387 = vmatprep.subr.bf16.mxu0 0
  %6388 = vmatpush2.bf16.msra.mxu0 0
  %6389 = vmatprep.subr.bf16.mxu0 0
  %6390 = vmatpush2.bf16.msra.mxu0 0
  %6391 = vmatprep.subr.bf16.mxu0 0
  %6392 = vmatpush2.bf16.msra.mxu0 0
  %6393 = vmatprep.subr.bf16.mxu0 0
  %6394 = vmatpush2.bf16.msra.mxu0 0
  %6395 = vmatprep.mubr.bf16.mxu0 0
  %6396 = vmatmul.mubr.bf16.gmra.mxu0 %v5557
  %v6397 = vpop.f32.mrf.mxu0
  %v6398 = vadd.f32 %v6358, %v6397
  %v6399 = vpop.f32.mrf.mxu0
  %v6400 = vpop.f32.mrf.mxu0
  %v6401 = vpop.f32.mrf.mxu0
  %6402 = vdwg.mxu0
  %v6531 = vunpack.c.l.b16 %v2549
  %v6532 = vunpack.c.l.b16 %v2550
  %v6533 = vunpack.c.l.b16 %v2551
  %v6534 = vunpack.c.l.b16 %v2552
  %v6535 = vunpack.c.l.b16 %v2553
  %v6536 = vunpack.c.l.b16 %v2554
  %v6537 = vunpack.c.l.b16 %v2555
  %v6538 = vunpack.c.l.b16 %v2556
  %v6539 = vunpack.c.l.b16 %v2557
  %v6540 = vunpack.c.l.b16 %v2558
  %v6541 = vunpack.c.l.b16 %v2559
  %v6542 = vunpack.c.l.b16 %v2560
  %v6543 = vunpack.c.l.b16 %v2561
  %v6544 = vunpack.c.l.b16 %v2562
  %v6545 = vunpack.c.l.b16 %v2563
  %v6546 = vunpack.c.l.b16 %v2564
  %v6547 = vunpack.c.l.b16 %v2565
  %v6548 = vunpack.c.l.b16 %v2566
  %v6549 = vunpack.c.l.b16 %v2567
  %v6550 = vunpack.c.l.b16 %v2568
  %v6551 = vunpack.c.l.b16 %v2569
  %v6552 = vunpack.c.l.b16 %v2570
  %v6553 = vunpack.c.l.b16 %v2571
  %v6554 = vunpack.c.l.b16 %v2572
  %v6555 = vunpack.c.l.b16 %v2573
  %v6556 = vunpack.c.l.b16 %v2574
  %v6557 = vunpack.c.l.b16 %v2575
  %v6558 = vunpack.c.l.b16 %v2576
  %v6559 = vunpack.c.l.b16 %v2577
  %v6560 = vunpack.c.l.b16 %v2578
  %v6561 = vunpack.c.l.b16 %v2579
  %v6562 = vunpack.c.l.b16 %v2580
  %v6563 = vunpack.c.l.b16 %v2581
  %v6564 = vunpack.c.l.b16 %v2582
  %v6565 = vunpack.c.l.b16 %v2583
  %v6566 = vunpack.c.l.b16 %v2584
  %v6567 = vunpack.c.l.b16 %v2585
  %v6568 = vunpack.c.l.b16 %v2586
  %v6569 = vunpack.c.l.b16 %v2587
  %v6570 = vunpack.c.l.b16 %v2588
  %v6571 = vunpack.c.l.b16 %v2589
  %v6572 = vunpack.c.l.b16 %v2590
  %v6573 = vunpack.c.l.b16 %v2591
  %v6574 = vunpack.c.l.b16 %v2592
  %v6575 = vunpack.c.l.b16 %v2593
  %v6576 = vunpack.c.l.b16 %v2594
  %v6577 = vunpack.c.l.b16 %v2595
  %v6578 = vunpack.c.l.b16 %v2596
  %v6579 = vunpack.c.l.b16 %v2597
  %v6580 = vunpack.c.l.b16 %v2598
  %v6581 = vunpack.c.l.b16 %v2599
  %v6582 = vunpack.c.l.b16 %v2600
  %v6583 = vunpack.c.l.b16 %v2601
  %v6584 = vunpack.c.l.b16 %v2602
  %v6585 = vunpack.c.l.b16 %v2603
  %v6586 = vunpack.c.l.b16 %v2604
  %v6587 = vunpack.c.l.b16 %v2605
  %v6588 = vunpack.c.l.b16 %v2606
  %v6589 = vunpack.c.l.b16 %v2607
  %v6590 = vunpack.c.l.b16 %v2608
  %v6591 = vunpack.c.l.b16 %v2609
  %v6592 = vunpack.c.l.b16 %v2610
  %v6593 = vunpack.c.l.b16 %v2611
  %v6594 = vunpack.c.l.b16 %v2612
  %v6595 = vunpack.c.l.b16 %v2613
  %v6596 = vunpack.c.l.b16 %v2614
  %v6597 = vunpack.c.l.b16 %v2615
  %v6598 = vunpack.c.l.b16 %v2616
  %v6599 = vunpack.c.l.b16 %v2617
  %v6600 = vunpack.c.l.b16 %v2618
  %v6601 = vunpack.c.l.b16 %v2619
  %v6602 = vunpack.c.l.b16 %v2620
  %v6603 = vunpack.c.l.b16 %v2621
  %v6604 = vunpack.c.l.b16 %v2622
  %v6605 = vunpack.c.l.b16 %v2623
  %v6606 = vunpack.c.l.b16 %v2624
  %v6607 = vunpack.c.l.b16 %v2625
  %v6608 = vunpack.c.l.b16 %v2626
  %v6609 = vunpack.c.l.b16 %v2627
  %v6610 = vunpack.c.l.b16 %v2628
  %v6611 = vunpack.c.l.b16 %v2629
  %v6612 = vunpack.c.l.b16 %v2630
  %v6613 = vunpack.c.l.b16 %v2631
  %v6614 = vunpack.c.l.b16 %v2632
  %v6615 = vunpack.c.l.b16 %v2633
  %v6616 = vunpack.c.l.b16 %v2634
  %v6617 = vunpack.c.l.b16 %v2635
  %v6618 = vunpack.c.l.b16 %v2636
  %v6619 = vunpack.c.l.b16 %v2637
  %v6620 = vunpack.c.l.b16 %v2638
  %v6621 = vunpack.c.l.b16 %v2639
  %v6622 = vunpack.c.l.b16 %v2640
  %v6623 = vunpack.c.l.b16 %v2641
  %v6624 = vunpack.c.l.b16 %v2642
  %v6625 = vunpack.c.l.b16 %v2643
  %v6626 = vunpack.c.l.b16 %v2644
  %v6627 = vunpack.c.l.b16 %v2645
  %v6628 = vunpack.c.l.b16 %v2646
  %v6629 = vunpack.c.l.b16 %v2647
  %v6630 = vunpack.c.l.b16 %v2648
  %v6631 = vunpack.c.l.b16 %v2649
  %v6632 = vunpack.c.l.b16 %v2650
  %v6633 = vunpack.c.l.b16 %v2651
  %v6634 = vunpack.c.l.b16 %v2652
  %v6635 = vunpack.c.l.b16 %v2653
  %v6636 = vunpack.c.l.b16 %v2654
  %v6637 = vunpack.c.l.b16 %v2655
  %v6638 = vunpack.c.l.b16 %v2656
  %v6639 = vunpack.c.l.b16 %v2657
  %v6640 = vunpack.c.l.b16 %v2658
  %v6641 = vunpack.c.l.b16 %v2659
  %v6642 = vunpack.c.l.b16 %v2660
  %v6643 = vunpack.c.l.b16 %v2661
  %v6644 = vunpack.c.l.b16 %v2662
  %v6645 = vunpack.c.l.b16 %v2663
  %v6646 = vunpack.c.l.b16 %v2664
  %v6647 = vunpack.c.l.b16 %v2665
  %v6648 = vunpack.c.l.b16 %v2666
  %v6649 = vunpack.c.l.b16 %v2667
  %v6650 = vunpack.c.l.b16 %v2668
  %v6651 = vunpack.c.l.b16 %v2669
  %v6652 = vunpack.c.l.b16 %v2670
  %v6653 = vunpack.c.l.b16 %v2671
  %v6654 = vunpack.c.l.b16 %v2672
  %v6655 = vunpack.c.l.b16 %v2673
  %v6656 = vunpack.c.l.b16 %v2674
  %v6657 = vunpack.c.l.b16 %v2675
  %v6658 = vunpack.c.l.b16 %v2676
  %v6659 = vpack.c.b16 %v6532, %v6531
  %v6660 = vpack.c.b16 %v6534, %v6533
  %v6661 = vpack.c.b16 %v6536, %v6535
  %v6662 = vpack.c.b16 %v6538, %v6537
  %v6663 = vpack.c.b16 %v6540, %v6539
  %v6664 = vpack.c.b16 %v6542, %v6541
  %v6665 = vpack.c.b16 %v6544, %v6543
  %v6666 = vpack.c.b16 %v6546, %v6545
  %v6667 = vpack.c.b16 %v6548, %v6547
  %v6668 = vpack.c.b16 %v6550, %v6549
  %v6669 = vpack.c.b16 %v6552, %v6551
  %v6670 = vpack.c.b16 %v6554, %v6553
  %v6671 = vpack.c.b16 %v6556, %v6555
  %v6672 = vpack.c.b16 %v6558, %v6557
  %v6673 = vpack.c.b16 %v6560, %v6559
  %v6674 = vpack.c.b16 %v6562, %v6561
  %v6675 = vpack.c.b16 %v6564, %v6563
  %v6676 = vpack.c.b16 %v6566, %v6565
  %v6677 = vpack.c.b16 %v6568, %v6567
  %v6678 = vpack.c.b16 %v6570, %v6569
  %v6679 = vpack.c.b16 %v6572, %v6571
  %v6680 = vpack.c.b16 %v6574, %v6573
  %v6681 = vpack.c.b16 %v6576, %v6575
  %v6682 = vpack.c.b16 %v6578, %v6577
  %v6683 = vpack.c.b16 %v6580, %v6579
  %v6684 = vpack.c.b16 %v6582, %v6581
  %v6685 = vpack.c.b16 %v6584, %v6583
  %v6686 = vpack.c.b16 %v6586, %v6585
  %v6687 = vpack.c.b16 %v6588, %v6587
  %v6688 = vpack.c.b16 %v6590, %v6589
  %v6689 = vpack.c.b16 %v6592, %v6591
  %v6690 = vpack.c.b16 %v6594, %v6593
  %v6691 = vpack.c.b16 %v6596, %v6595
  %v6692 = vpack.c.b16 %v6598, %v6597
  %v6693 = vpack.c.b16 %v6600, %v6599
  %v6694 = vpack.c.b16 %v6602, %v6601
  %v6695 = vpack.c.b16 %v6604, %v6603
  %v6696 = vpack.c.b16 %v6606, %v6605
  %v6697 = vpack.c.b16 %v6608, %v6607
  %v6698 = vpack.c.b16 %v6610, %v6609
  %v6699 = vpack.c.b16 %v6612, %v6611
  %v6700 = vpack.c.b16 %v6614, %v6613
  %v6701 = vpack.c.b16 %v6616, %v6615
  %v6702 = vpack.c.b16 %v6618, %v6617
  %v6703 = vpack.c.b16 %v6620, %v6619
  %v6704 = vpack.c.b16 %v6622, %v6621
  %v6705 = vpack.c.b16 %v6624, %v6623
  %v6706 = vpack.c.b16 %v6626, %v6625
  %v6707 = vpack.c.b16 %v6628, %v6627
  %v6708 = vpack.c.b16 %v6630, %v6629
  %v6709 = vpack.c.b16 %v6632, %v6631
  %v6710 = vpack.c.b16 %v6634, %v6633
  %v6711 = vpack.c.b16 %v6636, %v6635
  %v6712 = vpack.c.b16 %v6638, %v6637
  %v6713 = vpack.c.b16 %v6640, %v6639
  %v6714 = vpack.c.b16 %v6642, %v6641
  %v6715 = vpack.c.b16 %v6644, %v6643
  %v6716 = vpack.c.b16 %v6646, %v6645
  %v6717 = vpack.c.b16 %v6648, %v6647
  %v6718 = vpack.c.b16 %v6650, %v6649
  %v6719 = vpack.c.b16 %v6652, %v6651
  %v6720 = vpack.c.b16 %v6654, %v6653
  %v6721 = vpack.c.b16 %v6656, %v6655
  %v6722 = vpack.c.b16 %v6658, %v6657
  %6787 = vmatprep.subr.bf16.mxu0 0
  %6788 = vmatpush1.bf16.msra.mxu0 %v6666
  %6789 = vmatprep.subr.bf16.mxu0 0
  %6790 = vmatpush1.bf16.msra.mxu0 %v6665
  %6791 = vmatprep.subr.bf16.mxu0 0
  %6792 = vmatpush1.bf16.msra.mxu0 %v6664
  %6793 = vmatprep.subr.bf16.mxu0 0
  %6794 = vmatpush1.bf16.msra.mxu0 %v6663
  %6795 = vmatprep.subr.bf16.mxu0 0
  %6796 = vmatpush1.bf16.msra.mxu0 %v6662
  %6797 = vmatprep.subr.bf16.mxu0 0
  %6798 = vmatpush1.bf16.msra.mxu0 %v6661
  %6799 = vmatprep.subr.bf16.mxu0 0
  %6800 = vmatpush1.bf16.msra.mxu0 %v6660
  %6801 = vmatprep.subr.bf16.mxu0 0
  %6802 = vmatpush1.bf16.msra.mxu0 %v6659
  %6803 = vmatprep.subr.bf16.mxu0 0
  %6804 = vmatpush2.bf16.msra.mxu0 %v6674
  %6805 = vmatprep.subr.bf16.mxu0 0
  %6806 = vmatpush2.bf16.msra.mxu0 %v6673
  %6807 = vmatprep.subr.bf16.mxu0 0
  %6808 = vmatpush2.bf16.msra.mxu0 %v6672
  %6809 = vmatprep.subr.bf16.mxu0 0
  %6810 = vmatpush2.bf16.msra.mxu0 %v6671
  %6811 = vmatprep.subr.bf16.mxu0 0
  %6812 = vmatpush2.bf16.msra.mxu0 %v6670
  %6813 = vmatprep.subr.bf16.mxu0 0
  %6814 = vmatpush2.bf16.msra.mxu0 %v6669
  %6815 = vmatprep.subr.bf16.mxu0 0
  %6816 = vmatpush2.bf16.msra.mxu0 %v6668
  %6817 = vmatprep.subr.bf16.mxu0 0
  %6818 = vmatpush2.bf16.msra.mxu0 %v6667
  %6819 = vmatprep.mubr.bf16.mxu0 %v2538
  %6820 = vmatmul.mubr.bf16.gmra.mxu0 %v2537
  %v6821 = vpop.f32.mrf.mxu0
  %v6822 = vadd.f32 %v6398, %v6821
  %v6823 = vpop.f32.mrf.mxu0
  %v6824 = vpop.f32.mrf.mxu0
  %v6825 = vpop.f32.mrf.mxu0
  %6826 = vdwg.mxu0
  %6827 = vmatprep.subr.bf16.mxu0 0
  %6828 = vmatpush1.bf16.msra.mxu0 %v6682
  %6829 = vmatprep.subr.bf16.mxu0 0
  %6830 = vmatpush1.bf16.msra.mxu0 %v6681
  %6831 = vmatprep.subr.bf16.mxu0 0
  %6832 = vmatpush1.bf16.msra.mxu0 %v6680
  %6833 = vmatprep.subr.bf16.mxu0 0
  %6834 = vmatpush1.bf16.msra.mxu0 %v6679
  %6835 = vmatprep.subr.bf16.mxu0 0
  %6836 = vmatpush1.bf16.msra.mxu0 %v6678
  %6837 = vmatprep.subr.bf16.mxu0 0
  %6838 = vmatpush1.bf16.msra.mxu0 %v6677
  %6839 = vmatprep.subr.bf16.mxu0 0
  %6840 = vmatpush1.bf16.msra.mxu0 %v6676
  %6841 = vmatprep.subr.bf16.mxu0 0
  %6842 = vmatpush1.bf16.msra.mxu0 %v6675
  %6843 = vmatprep.subr.bf16.mxu0 0
  %6844 = vmatpush2.bf16.msra.mxu0 %v6690
  %6845 = vmatprep.subr.bf16.mxu0 0
  %6846 = vmatpush2.bf16.msra.mxu0 %v6689
  %6847 = vmatprep.subr.bf16.mxu0 0
  %6848 = vmatpush2.bf16.msra.mxu0 %v6688
  %6849 = vmatprep.subr.bf16.mxu0 0
  %6850 = vmatpush2.bf16.msra.mxu0 %v6687
  %6851 = vmatprep.subr.bf16.mxu0 0
  %6852 = vmatpush2.bf16.msra.mxu0 %v6686
  %6853 = vmatprep.subr.bf16.mxu0 0
  %6854 = vmatpush2.bf16.msra.mxu0 %v6685
  %6855 = vmatprep.subr.bf16.mxu0 0
  %6856 = vmatpush2.bf16.msra.mxu0 %v6684
  %6857 = vmatprep.subr.bf16.mxu0 0
  %6858 = vmatpush2.bf16.msra.mxu0 %v6683
  %6859 = vmatprep.mubr.bf16.mxu0 %v2540
  %6860 = vmatmul.mubr.bf16.gmra.mxu0 %v2539
  %v6861 = vpop.f32.mrf.mxu0
  %v6862 = vadd.f32 %v6822, %v6861
  %v6863 = vpop.f32.mrf.mxu0
  %v6864 = vpop.f32.mrf.mxu0
  %v6865 = vpop.f32.mrf.mxu0
  %6866 = vdwg.mxu0
  %6867 = vmatprep.subr.bf16.mxu0 0
  %6868 = vmatpush1.bf16.msra.mxu0 %v6698
  %6869 = vmatprep.subr.bf16.mxu0 0
  %6870 = vmatpush1.bf16.msra.mxu0 %v6697
  %6871 = vmatprep.subr.bf16.mxu0 0
  %6872 = vmatpush1.bf16.msra.mxu0 %v6696
  %6873 = vmatprep.subr.bf16.mxu0 0
  %6874 = vmatpush1.bf16.msra.mxu0 %v6695
  %6875 = vmatprep.subr.bf16.mxu0 0
  %6876 = vmatpush1.bf16.msra.mxu0 %v6694
  %6877 = vmatprep.subr.bf16.mxu0 0
  %6878 = vmatpush1.bf16.msra.mxu0 %v6693
  %6879 = vmatprep.subr.bf16.mxu0 0
  %6880 = vmatpush1.bf16.msra.mxu0 %v6692
  %6881 = vmatprep.subr.bf16.mxu0 0
  %6882 = vmatpush1.bf16.msra.mxu0 %v6691
  %6883 = vmatprep.subr.bf16.mxu0 0
  %6884 = vmatpush2.bf16.msra.mxu0 %v6706
  %6885 = vmatprep.subr.bf16.mxu0 0
  %6886 = vmatpush2.bf16.msra.mxu0 %v6705
  %6887 = vmatprep.subr.bf16.mxu0 0
  %6888 = vmatpush2.bf16.msra.mxu0 %v6704
  %6889 = vmatprep.subr.bf16.mxu0 0
  %6890 = vmatpush2.bf16.msra.mxu0 %v6703
  %6891 = vmatprep.subr.bf16.mxu0 0
  %6892 = vmatpush2.bf16.msra.mxu0 %v6702
  %6893 = vmatprep.subr.bf16.mxu0 0
  %6894 = vmatpush2.bf16.msra.mxu0 %v6701
  %6895 = vmatprep.subr.bf16.mxu0 0
  %6896 = vmatpush2.bf16.msra.mxu0 %v6700
  %6897 = vmatprep.subr.bf16.mxu0 0
  %6898 = vmatpush2.bf16.msra.mxu0 %v6699
  %6899 = vmatprep.mubr.bf16.mxu0 %v2542
  %6900 = vmatmul.mubr.bf16.gmra.mxu0 %v2541
  %v6901 = vpop.f32.mrf.mxu0
  %v6902 = vadd.f32 %v6862, %v6901
  %v6903 = vpop.f32.mrf.mxu0
  %v6904 = vpop.f32.mrf.mxu0
  %v6905 = vpop.f32.mrf.mxu0
  %6906 = vdwg.mxu0
  %6907 = vmatprep.subr.bf16.mxu0 0
  %6908 = vmatpush1.bf16.msra.mxu0 %v6714
  %6909 = vmatprep.subr.bf16.mxu0 0
  %6910 = vmatpush1.bf16.msra.mxu0 %v6713
  %6911 = vmatprep.subr.bf16.mxu0 0
  %6912 = vmatpush1.bf16.msra.mxu0 %v6712
  %6913 = vmatprep.subr.bf16.mxu0 0
  %6914 = vmatpush1.bf16.msra.mxu0 %v6711
  %6915 = vmatprep.subr.bf16.mxu0 0
  %6916 = vmatpush1.bf16.msra.mxu0 %v6710
  %6917 = vmatprep.subr.bf16.mxu0 0
  %6918 = vmatpush1.bf16.msra.mxu0 %v6709
  %6919 = vmatprep.subr.bf16.mxu0 0
  %6920 = vmatpush1.bf16.msra.mxu0 %v6708
  %6921 = vmatprep.subr.bf16.mxu0 0
  %6922 = vmatpush1.bf16.msra.mxu0 %v6707
  %6923 = vmatprep.subr.bf16.mxu0 0
  %6924 = vmatpush2.bf16.msra.mxu0 %v6722
  %6925 = vmatprep.subr.bf16.mxu0 0
  %6926 = vmatpush2.bf16.msra.mxu0 %v6721
  %6927 = vmatprep.subr.bf16.mxu0 0
  %6928 = vmatpush2.bf16.msra.mxu0 %v6720
  %6929 = vmatprep.subr.bf16.mxu0 0
  %6930 = vmatpush2.bf16.msra.mxu0 %v6719
  %6931 = vmatprep.subr.bf16.mxu0 0
  %6932 = vmatpush2.bf16.msra.mxu0 %v6718
  %6933 = vmatprep.subr.bf16.mxu0 0
  %6934 = vmatpush2.bf16.msra.mxu0 %v6717
  %6935 = vmatprep.subr.bf16.mxu0 0
  %6936 = vmatpush2.bf16.msra.mxu0 %v6716
  %6937 = vmatprep.subr.bf16.mxu0 0
  %6938 = vmatpush2.bf16.msra.mxu0 %v6715
  %6939 = vmatprep.mubr.bf16.mxu0 %v2544
  %6940 = vmatmul.mubr.bf16.gmra.mxu0 %v2543
  %v6941 = vpop.f32.mrf.mxu0
  %v6942 = vadd.f32 %v6902, %v6941
  %v6943 = vpop.f32.mrf.mxu0
  %v6944 = vpop.f32.mrf.mxu0
  %v6945 = vpop.f32.mrf.mxu0
  %6946 = vdwg.mxu0
  %v6947 = vld [vmem:[%s6] sm:$0x1]
  %v6949 = vlaneseq
  %v6950 = vshrl.u32 %v6949, 7
  %v6951 = vsub.s32 0, %v6950
  %v6952 = vrot.slane %v6947, %v6951
  %v6954 = vadd.f32 %v6942, %v6952
  %v6955 = vmax.f32 %v6954, 0.0
  %v6956 = vpack.c.bf16 %v6955, %v6955
  %v6957 = vld [vmem:[%s7] sm:$0xf]
  %v6958 = vld [vmem:[%s7 + $0x4] sm:$0xf]
  %v6959 = vld [vmem:[%s7 + $0x8] sm:$0xf]
  %v6960 = vld [vmem:[%s7 + $0xc] sm:$0xf]
  %v6961 = vld [vmem:[%s7 + $0x10] sm:$0xf]
  %v6962 = vld [vmem:[%s7 + $0x14] sm:$0xf]
  %v6963 = vld [vmem:[%s7 + $0x18] sm:$0xf]
  %v6964 = vld [vmem:[%s7 + $0x1c] sm:$0xf]
  %v6965 = vld [vmem:[%s8] sm:$0x1]
  %v6967 = vlaneseq
  %v6968 = vshrl.u32 %v6967, 7
  %v6969 = vsub.s32 0, %v6968
  %v6970 = vrot.slane %v6965, %v6969
  %v6980 = vunpack.c.l.b16 %v6957
  %v6981 = vunpack.c.l.b16 %v6958
  %v6982 = vunpack.c.l.b16 %v6959
  %v6983 = vunpack.c.l.b16 %v6960
  %v6984 = vunpack.c.l.b16 %v6961
  %v6985 = vunpack.c.l.b16 %v6962
  %v6986 = vunpack.c.l.b16 %v6963
  %v6987 = vunpack.c.l.b16 %v6964
  %v6988 = vpack.c.b16 %v6981, %v6980
  %v6989 = vpack.c.b16 %v6983, %v6982
  %v6990 = vpack.c.b16 %v6985, %v6984
  %v6991 = vpack.c.b16 %v6987, %v6986
  %vm6996 = vcmask 523264
  %v6998 = vsel %vm6996, %v6956, 0
  %7000 = vmatprep.subr.bf16.mxu0 0
  %7001 = vmatpush1.bf16.msra.mxu0 0
  %7002 = vmatprep.subr.bf16.mxu0 0
  %7003 = vmatpush1.bf16.msra.mxu0 0
  %7004 = vmatprep.subr.bf16.mxu0 0
  %7005 = vmatpush1.bf16.msra.mxu0 0
  %7006 = vmatprep.subr.bf16.mxu0 0
  %7007 = vmatpush1.bf16.msra.mxu0 0
  %7008 = vmatprep.subr.bf16.mxu0 0
  %7009 = vmatpush1.bf16.msra.mxu0 %v6991
  %7010 = vmatprep.subr.bf16.mxu0 0
  %7011 = vmatpush1.bf16.msra.mxu0 %v6990
  %7012 = vmatprep.subr.bf16.mxu0 0
  %7013 = vmatpush1.bf16.msra.mxu0 %v6989
  %7014 = vmatprep.subr.bf16.mxu0 0
  %7015 = vmatpush1.bf16.msra.mxu0 %v6988
  %7016 = vmatprep.subr.bf16.mxu0 0
  %7017 = vmatpush2.bf16.msra.mxu0 0
  %7018 = vmatprep.subr.bf16.mxu0 0
  %7019 = vmatpush2.bf16.msra.mxu0 0
  %7020 = vmatprep.subr.bf16.mxu0 0
  %7021 = vmatpush2.bf16.msra.mxu0 0
  %7022 = vmatprep.subr.bf16.mxu0 0
  %7023 = vmatpush2.bf16.msra.mxu0 0
  %7024 = vmatprep.subr.bf16.mxu0 0
  %7025 = vmatpush2.bf16.msra.mxu0 0
  %7026 = vmatprep.subr.bf16.mxu0 0
  %7027 = vmatpush2.bf16.msra.mxu0 0
  %7028 = vmatprep.subr.bf16.mxu0 0
  %7029 = vmatpush2.bf16.msra.mxu0 0
  %7030 = vmatprep.subr.bf16.mxu0 0
  %7031 = vmatpush2.bf16.msra.mxu0 0
  %7032 = vmatprep.mubr.bf16.mxu0 0
  %7033 = vmatmul.mubr.bf16.gmra.mxu0 %v6998
  %v7034 = vpop.f32.mrf.mxu0
  %v7035 = vadd.f32 %v6970, %v7034
  %v7036 = vpop.f32.mrf.mxu0
  %v7037 = vpop.f32.mrf.mxu0
  %v7038 = vpop.f32.mrf.mxu0
  %7039 = vdwg.mxu0
  %v7040 = vmax.f32 %v7035, 0.0
  %v7041 = vpack.c.bf16 %v7040, %v7040
  %v7042 = vld [vmem:[%s9] sm:$0xf]
  %v7043 = vld [vmem:[%s9 + $0x4] sm:$0xf]
  %v7044 = vld [vmem:[%s9 + $0x8] sm:$0xf]
  %v7045 = vld [vmem:[%s9 + $0xc] sm:$0xf]
  %v7046 = vld [vmem:[%s10] sm:$0x1]
  %v7048 = vlaneseq
  %v7049 = vshrl.u32 %v7048, 7
  %v7050 = vsub.s32 0, %v7049
  %v7051 = vrot.slane %v7046, %v7050
  %v7057 = vunpack.c.l.b16 %v7042
  %v7058 = vunpack.c.l.b16 %v7043
  %v7059 = vunpack.c.l.b16 %v7044
  %v7060 = vunpack.c.l.b16 %v7045
  %v7061 = vpack.c.b16 %v7058, %v7057
  %v7062 = vpack.c.b16 %v7060, %v7059
  %v7066 = vsel %vm1981, %v7041, 0
  %7068 = vmatprep.subr.bf16.mxu0 0
  %7069 = vmatpush1.bf16.msra.mxu0 0
  %7070 = vmatprep.subr.bf16.mxu0 0
  %7071 = vmatpush1.bf16.msra.mxu0 0
  %7072 = vmatprep.subr.bf16.mxu0 0
  %7073 = vmatpush1.bf16.msra.mxu0 0
  %7074 = vmatprep.subr.bf16.mxu0 0
  %7075 = vmatpush1.bf16.msra.mxu0 0
  %7076 = vmatprep.subr.bf16.mxu0 0
  %7077 = vmatpush1.bf16.msra.mxu0 0
  %7078 = vmatprep.subr.bf16.mxu0 0
  %7079 = vmatpush1.bf16.msra.mxu0 0
  %7080 = vmatprep.subr.bf16.mxu0 0
  %7081 = vmatpush1.bf16.msra.mxu0 %v7062
  %7082 = vmatprep.subr.bf16.mxu0 0
  %7083 = vmatpush1.bf16.msra.mxu0 %v7061
  %7084 = vmatprep.subr.bf16.mxu0 0
  %7085 = vmatpush2.bf16.msra.mxu0 0
  %7086 = vmatprep.subr.bf16.mxu0 0
  %7087 = vmatpush2.bf16.msra.mxu0 0
  %7088 = vmatprep.subr.bf16.mxu0 0
  %7089 = vmatpush2.bf16.msra.mxu0 0
  %7090 = vmatprep.subr.bf16.mxu0 0
  %7091 = vmatpush2.bf16.msra.mxu0 0
  %7092 = vmatprep.subr.bf16.mxu0 0
  %7093 = vmatpush2.bf16.msra.mxu0 0
  %7094 = vmatprep.subr.bf16.mxu0 0
  %7095 = vmatpush2.bf16.msra.mxu0 0
  %7096 = vmatprep.subr.bf16.mxu0 0
  %7097 = vmatpush2.bf16.msra.mxu0 0
  %7098 = vmatprep.subr.bf16.mxu0 0
  %7099 = vmatpush2.bf16.msra.mxu0 0
  %7100 = vmatprep.mubr.bf16.mxu0 0
  %7101 = vmatmul.mubr.bf16.gmra.mxu0 %v7066
  %v7102 = vpop.f32.mrf.mxu0
  %v7103 = vadd.f32 %v7051, %v7102
  %v7104 = vpop.f32.mrf.mxu0
  %v7105 = vpop.f32.mrf.mxu0
  %v7106 = vpop.f32.mrf.mxu0
  %7107 = vdwg.mxu0
  %v7108 = vtanh.pop %v7103
  %v7109 = vmax.f32 %v7108, 0.0
  %v7110 = vpack.c.bf16 %v7109, %v7109
  %v7111 = vld [vmem:[%s11] sm:$0xf]
  %v7112 = vld [vmem:[%s11 + $0x4] sm:$0xf]
  %v7113 = vld [vmem:[%s12] sm:$0x1]
  %v7115 = vlaneseq
  %v7116 = vshrl.u32 %v7115, 7
  %v7117 = vsub.s32 0, %v7116
  %v7118 = vrot.slane %v7113, %v7117
  %v7122 = vunpack.c.l.b16 %v7111
  %v7123 = vunpack.c.l.b16 %v7112
  %v7124 = vpack.c.b16 %v7123, %v7122
  %vm7126 = vcmask 130048
  %v7128 = vsel %vm7126, %v7110, 0
  %7130 = vmatprep.subr.bf16.mxu0 0
  %7131 = vmatpush1.bf16.msra.mxu0 0
  %7132 = vmatprep.subr.bf16.mxu0 0
  %7133 = vmatpush1.bf16.msra.mxu0 0
  %7134 = vmatprep.subr.bf16.mxu0 0
  %7135 = vmatpush1.bf16.msra.mxu0 0
  %7136 = vmatprep.subr.bf16.mxu0 0
  %7137 = vmatpush1.bf16.msra.mxu0 0
  %7138 = vmatprep.subr.bf16.mxu0 0
  %7139 = vmatpush1.bf16.msra.mxu0 0
  %7140 = vmatprep.subr.bf16.mxu0 0
  %7141 = vmatpush1.bf16.msra.mxu0 0
  %7142 = vmatprep.subr.bf16.mxu0 0
  %7143 = vmatpush1.bf16.msra.mxu0 0
  %7144 = vmatprep.subr.bf16.mxu0 0
  %7145 = vmatpush1.bf16.msra.mxu0 %v7124
  %7146 = vmatprep.subr.bf16.mxu0 0
  %7147 = vmatpush2.bf16.msra.mxu0 0
  %7148 = vmatprep.subr.bf16.mxu0 0
  %7149 = vmatpush2.bf16.msra.mxu0 0
  %7150 = vmatprep.subr.bf16.mxu0 0
  %7151 = vmatpush2.bf16.msra.mxu0 0
  %7152 = vmatprep.subr.bf16.mxu0 0
  %7153 = vmatpush2.bf16.msra.mxu0 0
  %7154 = vmatprep.subr.bf16.mxu0 0
  %7155 = vmatpush2.bf16.msra.mxu0 0
  %7156 = vmatprep.subr.bf16.mxu0 0
  %7157 = vmatpush2.bf16.msra.mxu0 0
  %7158 = vmatprep.subr.bf16.mxu0 0
  %7159 = vmatpush2.bf16.msra.mxu0 0
  %7160 = vmatprep.subr.bf16.mxu0 0
  %7161 = vmatpush2.bf16.msra.mxu0 0
  %7162 = vmatprep.mubr.bf16.mxu0 0
  %7163 = vmatmul.mubr.bf16.gmra.mxu0 %v7128
  %v7164 = vpop.f32.mrf.mxu0
  %v7165 = vadd.f32 %v7118, %v7164
  %v7166 = vpop.f32.mrf.mxu0
  %v7167 = vpop.f32.mrf.mxu0
  %v7168 = vpop.f32.mrf.mxu0
  %7169 = vdwg.mxu0
  %vm7170 = vcmask 9216
  %7171 = vst.msk [vmem:[%s13] sm:$0x3] %vm7170, %v7165
  // Predicated region
  $region84: #{model_forward.3} parent=0 // pred_check
    _
  $region85: #{model_forward.3} parent=0 // pred_check_branch
    %7173 = sbr.rel (0) target = $region87
  $region86: #{model_forward.3} parent=0 // pred_region
    _
  $region87: #{model_forward.3} parent=0 // pred_fallthru
    _
  // Predicated region
  $region88: #{model_forward.3} parent=0 // pred_check
    _
  $region89: #{model_forward.3} parent=0 // pred_check_branch
    %7175 = sbr.rel (0) target = $region91
  $region90: #{model_forward.3} parent=0 // pred_region
    _
  $region91: #{model_forward.3} parent=0 // pred_fallthru
    _
  %7176 = vsyncmov [#allocation4]
  %s7177 = vpop.sfrf %7176
  %p7178 = scmp.eq.s32.totalorder %s7177, 0
  %p7179 = pneg %p7178
  %7181 = shalt.err (%p7179)

</llo_original>
